<compile_context>
chip_gen: v5e
topology: v5e:2x2
jax: 0.10.0
libtpu: 0.0.40
codegen_flags: <defaults>
</compile_context>

<pallas_src>
import functools

import numpy as np
import jax
import jax.numpy as jnp
from jax.experimental import pallas as pl
from jax.experimental.pallas import tpu as pltpu

MAX_BT = 256      # batch-tile cap (multiple of 8); sized for v7x 64 MiB VMEM
C1P = 16          # conv1 out-channels padded 10 -> 16
C2P = 32          # conv2 out-channels padded 20 -> 32
RSLAB = 256       # per-r conv1 input slab: 6 rows x 28 cols = 168, padded to 256
NEG = -1e30       # masks padded logit lanes out of the softmax


# ------------------------------ Pallas kernel ------------------------------

def fused_forward_kernel(xs_ref, w1s_ref, b1_ref, w2s_ref, b2_ref,
                         wf1_ref, bf1_ref, wf2_ref, bf2_ref, o_ref, *, bt):
    # xs_ref : (4*bt, 6*256) bf16.  rows = (m2, b_local); lanes = (r, slab256)
    # w1s_ref: (256, 1024)   bf16.  K = per-r slab; N = 4 pool parities x 256
    # w2s_ref: (6, 256, 512) bf16.  K split by r;   N = 4 pool parities x 128
    # wf1_ref: (4, 128, f1p) bf16.  K split by m2 (pooled conv2 row)
    w1 = w1s_ref[...]
    b1 = b1_ref[...]                                 # (1, 256) f32
    b2 = b2_ref[...]                                 # (1, 128) f32

    # ---- stage 1 (conv1+bias+maxpool+relu) fused with stage-2 K-accumulation.
    # TODO(synk): nn.Dropout2d before maxpool2 is identity in eval mode.
    y2 = None
    for r in range(6):
        lhs = xs_ref[:, RSLAB * r:RSLAB * (r + 1)]   # (4*bt, 256), lane-aligned
        y1 = jnp.dot(lhs, w1, preferred_element_type=jnp.float32)  # (4*bt,1024)
        ym = jnp.maximum(jnp.maximum(y1[:, 0:256], y1[:, 256:512]),
                         jnp.maximum(y1[:, 512:768], y1[:, 768:1024]))
        z_r = jnp.maximum(ym + b1, 0.0).astype(jnp.bfloat16)       # (4*bt, 256)
        d = jnp.dot(z_r, w2s_ref[r], preferred_element_type=jnp.float32)
        y2 = d if y2 is None else y2 + d             # (4*bt, 512)

    # ---- stage 2 epilogue: max over parity groups (128-aligned), bias, relu.
    ym2 = jnp.maximum(jnp.maximum(y2[:, 0:128], y2[:, 128:256]),
                      jnp.maximum(y2[:, 256:384], y2[:, 384:512]))
    s2 = jnp.maximum(ym2 + b2, 0.0).astype(jnp.bfloat16)           # (4*bt, 128)

    # ---- fc1 + relu: K-split accumulation over m2 (F.dropout identity). -----
    f1 = jnp.dot(s2[0:bt, :], wf1_ref[0], preferred_element_type=jnp.float32)
    for m2 in range(1, 4):
        f1 = f1 + jnp.dot(s2[m2 * bt:(m2 + 1) * bt, :], wf1_ref[m2],
                          preferred_element_type=jnp.float32)
    f1 = jnp.maximum(f1 + bf1_ref[...], 0.0).astype(jnp.bfloat16)  # (bt, f1p)

    # ---- fc2 + log_softmax (padded lanes carry -1e30 bias -> excluded) ------
    logits = jnp.dot(f1, wf2_ref[...], preferred_element_type=jnp.float32)
    logits = logits + bf2_ref[...]
    m = jnp.max(logits, axis=-1, keepdims=True)
    zc = logits - m
    lse = jnp.log(jnp.sum(jnp.exp(zc), axis=-1, keepdims=True))
    o_ref[...] = zc - lse


# ------------------------------ forward wrapper -----------------------------

def _round_up(n, m):
    return ((n + m - 1) // m) * m


def _pick_bt(batch):
    """Batch tile: as large as possible (<= MAX_BT), multiple of 8, and split
    into >= 2 grid steps when the batch allows so the "parallel" grid axis can
    occupy both TensorCores on megacore parts."""
    if batch >= 2 * MAX_BT:
        return MAX_BT
    if batch > 16:
        return min(MAX_BT, _round_up((batch + 1) // 2, 8))
    return _round_up(max(batch, 1), 8)


@jax.jit
def forward(x_nchw, params):
    B = x_nchw.shape[0]
    bt = _pick_bt(B)
    n_tiles = (B + bt - 1) // bt
    b_pad = n_tiles * bt

    x = x_nchw[:, 0, :, :].astype(jnp.bfloat16)               # (B, 28, 28)
    if b_pad != B:
        x = jnp.pad(x, ((0, b_pad - B), (0, 0), (0, 0)))

    # Per (m2, r) slab: 6 input rows [4*m2+2r, 4*m2+2r+6) x 28 cols, flattened
    # to 168 lanes and zero-padded to a 128-aligned 256-lane block.  Built once
    # per call by XLA on the tiny raw input, already in bf16.
    slabs = []
    for m2 in range(4):
        for r in range(6):
            s = x[:, 4 * m2 + 2 * r:4 * m2 + 2 * r + 6, :].reshape(b_pad, 168)
            slabs.append(jnp.pad(s, ((0, 0), (0, RSLAB - 168))))
    xs = jnp.stack(slabs, axis=1)                              # (b_pad, 24, 256)
    xs = xs.reshape(b_pad, 4, 6 * RSLAB)
    # row order (tile, m2, b_local): each grid step sees one (4*bt, 1536) block
    xs = xs.reshape(n_tiles, bt, 4, 6 * RSLAB).transpose(0, 2, 1, 3)
    xs = xs.reshape(n_tiles * 4 * bt, 6 * RSLAB)

    f1p = params["wf1"].shape[2]
    out = pl.pallas_call(
        functools.partial(fused_forward_kernel, bt=bt),
        out_shape=jax.ShapeDtypeStruct((b_pad, 128), jnp.float32),
        grid=(n_tiles,),
        in_specs=[
            pl.BlockSpec((4 * bt, 6 * RSLAB), lambda i: (i, 0)),
            pl.BlockSpec((RSLAB, 4 * RSLAB), lambda i: (0, 0)),
            pl.BlockSpec((1, RSLAB), lambda i: (0, 0)),
            pl.BlockSpec((6, RSLAB, 4 * 4 * C2P), lambda i: (0, 0, 0)),
            pl.BlockSpec((1, 4 * C2P), lambda i: (0, 0)),
            pl.BlockSpec((4, 4 * C2P, f1p), lambda i: (0, 0, 0)),
            pl.BlockSpec((1, f1p), lambda i: (0, 0)),
            pl.BlockSpec((f1p, 128), lambda i: (0, 0)),
            pl.BlockSpec((1, 128), lambda i: (0, 0)),
        ],
        out_specs=pl.BlockSpec((bt, 128), lambda i: (i, 0)),
        compiler_params=pltpu.CompilerParams(
            dimension_semantics=("parallel",),
            # ~20 MB working set at bt=256; 48 MiB leaves headroom under v7x's
            # 64 MiB physical VMEM (raise to ~96 MiB on 128 MiB v5e/v6e parts).
            vmem_limit_bytes=48 * 1024 * 1024,
        ),
    )(xs, params["w1s"], params["b1"], params["w2s"], params["b2"],
      params["wf1"], params["bf1"], params["wf2"], params["bf2"])

    return out[:B, :10]


# --------------------- structured weight construction -----------------------

def build_structured_params(raw):
    """Fold PyTorch-layout weights into the structured matrices the kernel uses."""
    w1 = np.asarray(raw["w1"], np.float32)     # (10, 1, 5, 5)
    b1 = np.asarray(raw["b1"], np.float32)     # (10,)
    w2 = np.asarray(raw["w2"], np.float32)     # (20, 10, 5, 5)
    b2 = np.asarray(raw["b2"], np.float32)     # (20,)
    fw1 = np.asarray(raw["fw1"], np.float32)   # (F1, 320)
    fb1 = np.asarray(raw["fb1"], np.float32)   # (F1,)
    fw2 = np.asarray(raw["fw2"], np.float32)   # (10, F1)
    fb2 = np.asarray(raw["fb2"], np.float32)   # (10,)

    f1 = fw1.shape[0]
    f1p = ((f1 + 127) // 128) * 128

    # stage 1: rows = per-r input slab (6 rows x 28 cols, padded to 256);
    # cols  = 4 pooling parities x (12 pooled cols x C1P), each padded to 256.
    w1s = np.zeros((RSLAB, 4 * RSLAB), np.float32)
    for p in range(2):
        for q in range(2):
            t = 2 * p + q
            for ky in range(5):
                for kx in range(5):
                    s = p + ky
                    for j in range(12):
                        w = 2 * j + q + kx
                        col = t * RSLAB + j * C1P
                        w1s[s * 28 + w, col:col + 10] = w1[:, 0, ky, kx]
    b1r = np.zeros((1, RSLAB), np.float32)
    for j in range(12):
        b1r[0, j * C1P:j * C1P + 10] = b1

    # stage 2, K-split by r: rows = (j, c1) padded to 256 per r chunk;
    # cols = 4 pooling parities x (4 pooled cols x C2P) = 4 x 128.
    w2s = np.zeros((6, RSLAB, 4 * 4 * C2P), np.float32)
    for p in range(2):
        for q in range(2):
            t = 2 * p + q
            for ky in range(5):
                for kx in range(5):
                    r = p + ky
                    for j2 in range(4):
                        j = 2 * j2 + q + kx
                        col = t * 4 * C2P + j2 * C2P
                        for ci in range(10):
                            w2s[r, j * C1P + ci, col:col + 20] = w2[:, ci, ky, kx]
    b2r = np.zeros((1, 4 * C2P), np.float32)
    for j2 in range(4):
        b2r[0, j2 * C2P:j2 * C2P + 20] = b2

    # fc1: K-split by m2; rows within a chunk = (j2, c2).  Folds torch's NCHW
    # x.view(-1, 320) flatten (flat idx = c2*16 + m2*4 + j2) and the W^T.
    wf1 = np.zeros((4, 4 * C2P, f1p), np.float32)
    for m2 in range(4):
        for j2 in range(4):
            for c2 in range(20):
                wf1[m2, j2 * C2P + c2, :f1] = fw1[:, c2 * 16 + m2 * 4 + j2]
    bf1r = np.zeros((1, f1p), np.float32)
    bf1r[0, :f1] = fb1

    wf2 = np.zeros((f1p, 128), np.float32)
    wf2[:f1, :10] = fw2.T
    bf2r = np.full((1, 128), NEG, np.float32)
    bf2r[0, :10] = fb2

    return {
        "w1s": jnp.asarray(w1s, jnp.bfloat16),
        "b1": jnp.asarray(b1r),
        "w2s": jnp.asarray(w2s, jnp.bfloat16),
        "b2": jnp.asarray(b2r),
        "wf1": jnp.asarray(wf1, jnp.bfloat16),
        "bf1": jnp.asarray(bf1r),
        "wf2": jnp.asarray(wf2, jnp.bfloat16),
        "bf2": jnp.asarray(bf2r),
    }


def init_params(key, fc1_nodes):
    """Deterministic synthetic weights in PyTorch layout + structured versions."""
    ks = jax.random.split(key, 8)
    raw = {
        "w1": 0.1 * jax.random.normal(ks[0], (10, 1, 5, 5), jnp.float32),
        "b1": 0.1 * jax.random.normal(ks[1], (10,), jnp.float32),
        "w2": 0.05 * jax.random.normal(ks[2], (20, 10, 5, 5), jnp.float32),
        "b2": 0.1 * jax.random.normal(ks[3], (20,), jnp.float32),
        "fw1": 0.05 * jax.random.normal(ks[4], (fc1_nodes, 320), jnp.float32),
        "fb1": 0.1 * jax.random.normal(ks[5], (fc1_nodes,), jnp.float32),
        "fw2": 0.05 * jax.random.normal(ks[6], (10, fc1_nodes), jnp.float32),
        "fb2": 0.1 * jax.random.normal(ks[7], (10,), jnp.float32),
    }
    return raw, build_structured_params(raw)


# --------------------------- plain-XLA reference ----------------------------

def reference_forward(x, raw):
    y = jax.lax.conv_general_dilated(
        x, raw["w1"], window_strides=(1, 1), padding="VALID",
        dimension_numbers=("NCHW", "OIHW", "NCHW")) + raw["b1"][None, :, None, None]
    y = jax.lax.reduce_window(y, -jnp.inf, jax.lax.max,
                              (1, 1, 2, 2), (1, 1, 2, 2), "VALID")
    y = jax.nn.relu(y)
    y = jax.lax.conv_general_dilated(
        y, raw["w2"], window_strides=(1, 1), padding="VALID",
        dimension_numbers=("NCHW", "OIHW", "NCHW")) + raw["b2"][None, :, None, None]
    y = jax.lax.reduce_window(y, -jnp.inf, jax.lax.max,
                              (1, 1, 2, 2), (1, 1, 2, 2), "VALID")
    y = jax.nn.relu(y)
    y = y.reshape(y.shape[0], 320)                    # torch x.view(-1, 320)
    y = jax.nn.relu(y @ raw["fw1"].T + raw["fb1"])
    y = y @ raw["fw2"].T + raw["fb2"]
    return jax.nn.log_softmax(y, axis=1)


if __name__ == "__main__":
    dropout_rate = 0.5        # unused at inference (eval mode)
    fc1_nodes = 50

    x = jax.random.normal(jax.random.PRNGKey(0), (2, 1, 28, 28), jnp.float32)
    raw, params = init_params(jax.random.PRNGKey(1), fc1_nodes)

    out = jax.block_until_ready(forward(x, params))
    assert out.shape == (2, 10)
    # log_softmax rows must normalize to 1 in probability space
    assert bool(jnp.all(jnp.abs(jnp.sum(jnp.exp(out), axis=1) - 1.0) < 1e-4))
    # agreement with a plain-XLA f32 reference (kernel uses bf16 matmul inputs)
    ref = reference_forward(x, raw)
    assert float(jnp.max(jnp.abs(out - ref))) < 5e-2

    print("KERNEL_OK")
</pallas_src>

<mosaic_0001>
module attributes {stable_mosaic.version = 11 : i64} {
  func.func @fused_forward_kernel(%arg0: i32, %arg1: memref<32x1536xbf16, #tpu.memory_space<vmem>>, %arg2: memref<256x1024xbf16, #tpu.memory_space<vmem>>, %arg3: memref<1x256xf32, #tpu.memory_space<vmem>>, %arg4: memref<6x256x512xbf16, #tpu.memory_space<vmem>>, %arg5: memref<1x128xf32, #tpu.memory_space<vmem>>, %arg6: memref<4x128x128xbf16, #tpu.memory_space<vmem>>, %arg7: memref<1x128xf32, #tpu.memory_space<vmem>>, %arg8: memref<128x128xbf16, #tpu.memory_space<vmem>>, %arg9: memref<1x128xf32, #tpu.memory_space<vmem>>, %arg10: memref<8x128xf32, #tpu.memory_space<vmem>>) attributes {dimension_semantics = [#tpu.dimension_semantics<parallel>], iteration_bounds = array<i64: 1>, scalar_prefetch = 0 : i64, scratch_operands = 0 : i64, tpu.core_type = #tpu.core_type<tc>, window_params = [{transform_indices = @transform_0, window_bounds = array<i64: 32, 1536>}, {pipeline_mode = #tpu.pipeline_mode<synchronous>, transform_indices = @transform_1, window_bounds = array<i64: 256, 1024>}, {pipeline_mode = #tpu.pipeline_mode<synchronous>, transform_indices = @transform_2, window_bounds = array<i64: 1, 256>}, {pipeline_mode = #tpu.pipeline_mode<synchronous>, transform_indices = @transform_3, window_bounds = array<i64: 6, 256, 512>}, {pipeline_mode = #tpu.pipeline_mode<synchronous>, transform_indices = @transform_4, window_bounds = array<i64: 1, 128>}, {pipeline_mode = #tpu.pipeline_mode<synchronous>, transform_indices = @transform_5, window_bounds = array<i64: 4, 128, 128>}, {pipeline_mode = #tpu.pipeline_mode<synchronous>, transform_indices = @transform_6, window_bounds = array<i64: 1, 128>}, {pipeline_mode = #tpu.pipeline_mode<synchronous>, transform_indices = @transform_7, window_bounds = array<i64: 128, 128>}, {pipeline_mode = #tpu.pipeline_mode<synchronous>, transform_indices = @transform_8, window_bounds = array<i64: 1, 128>}, {transform_indices = @transform_9, window_bounds = array<i64: 8, 128>}]} {
    %c0 = arith.constant 0 : index
    %c0_0 = arith.constant 0 : index
    %0 = vector.load %arg2[%c0, %c0_0] : memref<256x1024xbf16, #tpu.memory_space<vmem>>, vector<256x1024xbf16>
    %c0_1 = arith.constant 0 : index
    %c0_2 = arith.constant 0 : index
    %1 = vector.load %arg3[%c0_1, %c0_2] : memref<1x256xf32, #tpu.memory_space<vmem>>, vector<1x256xf32>
    %c0_3 = arith.constant 0 : index
    %c0_4 = arith.constant 0 : index
    %2 = vector.load %arg5[%c0_3, %c0_4] : memref<1x128xf32, #tpu.memory_space<vmem>>, vector<1x128xf32>
    %c0_5 = arith.constant 0 : index
    %c0_6 = arith.constant 0 : index
    %3 = vector.load %arg1[%c0_5, %c0_6] : memref<32x1536xbf16, #tpu.memory_space<vmem>>, vector<32x256xbf16>
    %cst = arith.constant dense<0.000000e+00> : vector<32x1024xf32>
    %4 = tpu.matmul %3, %0, %cst {dimension_numbers = #tpu.dot_dimension_numbers<[1], [0], [0], [1], [0, 0, 1, 1], [], []>} : vector<32x256xbf16>, vector<256x1024xbf16>, vector<32x1024xf32> -> vector<32x1024xf32>
    %5 = vector.extract_strided_slice %4 {offsets = [0, 0], sizes = [32, 256], strides = [1, 1]} : vector<32x1024xf32> to vector<32x256xf32>
    %6 = vector.extract_strided_slice %4 {offsets = [0, 256], sizes = [32, 256], strides = [1, 1]} : vector<32x1024xf32> to vector<32x256xf32>
    %7 = arith.maximumf %5, %6 : vector<32x256xf32>
    %8 = vector.extract_strided_slice %4 {offsets = [0, 512], sizes = [32, 256], strides = [1, 1]} : vector<32x1024xf32> to vector<32x256xf32>
    %9 = vector.extract_strided_slice %4 {offsets = [0, 768], sizes = [32, 256], strides = [1, 1]} : vector<32x1024xf32> to vector<32x256xf32>
    %10 = arith.maximumf %8, %9 : vector<32x256xf32>
    %11 = arith.maximumf %7, %10 : vector<32x256xf32>
    %12 = vector.broadcast %1 : vector<1x256xf32> to vector<32x256xf32>
    %13 = arith.addf %11, %12 : vector<32x256xf32>
    %cst_7 = arith.constant 0.000000e+00 : f32
    %14 = vector.broadcast %cst_7 : f32 to vector<32x256xf32>
    %15 = arith.maximumf %13, %14 : vector<32x256xf32>
    %16 = arith.truncf %15 : vector<32x256xf32> to vector<32x256xbf16>
    %c0_8 = arith.constant 0 : index
    %c0_9 = arith.constant 0 : index
    %c0_10 = arith.constant 0 : index
    %17 = vector.load %arg4[%c0_8, %c0_9, %c0_10] : memref<6x256x512xbf16, #tpu.memory_space<vmem>>, vector<1x256x512xbf16>
    %18 = vector.shape_cast %17 : vector<1x256x512xbf16> to vector<256x512xbf16>
    %cst_11 = arith.constant dense<0.000000e+00> : vector<32x512xf32>
    %19 = tpu.matmul %16, %18, %cst_11 {dimension_numbers = #tpu.dot_dimension_numbers<[1], [0], [0], [1], [0, 0, 1, 1], [], []>} : vector<32x256xbf16>, vector<256x512xbf16>, vector<32x512xf32> -> vector<32x512xf32>
    %c0_12 = arith.constant 0 : index
    %c256 = arith.constant 256 : index
    %20 = vector.load %arg1[%c0_12, %c256] : memref<32x1536xbf16, #tpu.memory_space<vmem>>, vector<32x256xbf16>
    %cst_13 = arith.constant dense<0.000000e+00> : vector<32x1024xf32>
    %21 = tpu.matmul %20, %0, %cst_13 {dimension_numbers = #tpu.dot_dimension_numbers<[1], [0], [0], [1], [0, 0, 1, 1], [], []>} : vector<32x256xbf16>, vector<256x1024xbf16>, vector<32x1024xf32> -> vector<32x1024xf32>
    %22 = vector.extract_strided_slice %21 {offsets = [0, 0], sizes = [32, 256], strides = [1, 1]} : vector<32x1024xf32> to vector<32x256xf32>
    %23 = vector.extract_strided_slice %21 {offsets = [0, 256], sizes = [32, 256], strides = [1, 1]} : vector<32x1024xf32> to vector<32x256xf32>
    %24 = arith.maximumf %22, %23 : vector<32x256xf32>
    %25 = vector.extract_strided_slice %21 {offsets = [0, 512], sizes = [32, 256], strides = [1, 1]} : vector<32x1024xf32> to vector<32x256xf32>
    %26 = vector.extract_strided_slice %21 {offsets = [0, 768], sizes = [32, 256], strides = [1, 1]} : vector<32x1024xf32> to vector<32x256xf32>
    %27 = arith.maximumf %25, %26 : vector<32x256xf32>
    %28 = arith.maximumf %24, %27 : vector<32x256xf32>
    %29 = vector.broadcast %1 : vector<1x256xf32> to vector<32x256xf32>
    %30 = arith.addf %28, %29 : vector<32x256xf32>
    %cst_14 = arith.constant 0.000000e+00 : f32
    %31 = vector.broadcast %cst_14 : f32 to vector<32x256xf32>
    %32 = arith.maximumf %30, %31 : vector<32x256xf32>
    %33 = arith.truncf %32 : vector<32x256xf32> to vector<32x256xbf16>
    %c1 = arith.constant 1 : index
    %c0_15 = arith.constant 0 : index
    %c0_16 = arith.constant 0 : index
    %34 = vector.load %arg4[%c1, %c0_15, %c0_16] : memref<6x256x512xbf16, #tpu.memory_space<vmem>>, vector<1x256x512xbf16>
    %35 = vector.shape_cast %34 : vector<1x256x512xbf16> to vector<256x512xbf16>
    %cst_17 = arith.constant dense<0.000000e+00> : vector<32x512xf32>
    %36 = tpu.matmul %33, %35, %cst_17 {dimension_numbers = #tpu.dot_dimension_numbers<[1], [0], [0], [1], [0, 0, 1, 1], [], []>} : vector<32x256xbf16>, vector<256x512xbf16>, vector<32x512xf32> -> vector<32x512xf32>
    %37 = arith.addf %19, %36 : vector<32x512xf32>
    %c0_18 = arith.constant 0 : index
    %c512 = arith.constant 512 : index
    %38 = vector.load %arg1[%c0_18, %c512] : memref<32x1536xbf16, #tpu.memory_space<vmem>>, vector<32x256xbf16>
    %cst_19 = arith.constant dense<0.000000e+00> : vector<32x1024xf32>
    %39 = tpu.matmul %38, %0, %cst_19 {dimension_numbers = #tpu.dot_dimension_numbers<[1], [0], [0], [1], [0, 0, 1, 1], [], []>} : vector<32x256xbf16>, vector<256x1024xbf16>, vector<32x1024xf32> -> vector<32x1024xf32>
    %40 = vector.extract_strided_slice %39 {offsets = [0, 0], sizes = [32, 256], strides = [1, 1]} : vector<32x1024xf32> to vector<32x256xf32>
    %41 = vector.extract_strided_slice %39 {offsets = [0, 256], sizes = [32, 256], strides = [1, 1]} : vector<32x1024xf32> to vector<32x256xf32>
    %42 = arith.maximumf %40, %41 : vector<32x256xf32>
    %43 = vector.extract_strided_slice %39 {offsets = [0, 512], sizes = [32, 256], strides = [1, 1]} : vector<32x1024xf32> to vector<32x256xf32>
    %44 = vector.extract_strided_slice %39 {offsets = [0, 768], sizes = [32, 256], strides = [1, 1]} : vector<32x1024xf32> to vector<32x256xf32>
    %45 = arith.maximumf %43, %44 : vector<32x256xf32>
    %46 = arith.maximumf %42, %45 : vector<32x256xf32>
    %47 = vector.broadcast %1 : vector<1x256xf32> to vector<32x256xf32>
    %48 = arith.addf %46, %47 : vector<32x256xf32>
    %cst_20 = arith.constant 0.000000e+00 : f32
    %49 = vector.broadcast %cst_20 : f32 to vector<32x256xf32>
    %50 = arith.maximumf %48, %49 : vector<32x256xf32>
    %51 = arith.truncf %50 : vector<32x256xf32> to vector<32x256xbf16>
    %c2 = arith.constant 2 : index
    %c0_21 = arith.constant 0 : index
    %c0_22 = arith.constant 0 : index
    %52 = vector.load %arg4[%c2, %c0_21, %c0_22] : memref<6x256x512xbf16, #tpu.memory_space<vmem>>, vector<1x256x512xbf16>
    %53 = vector.shape_cast %52 : vector<1x256x512xbf16> to vector<256x512xbf16>
    %cst_23 = arith.constant dense<0.000000e+00> : vector<32x512xf32>
    %54 = tpu.matmul %51, %53, %cst_23 {dimension_numbers = #tpu.dot_dimension_numbers<[1], [0], [0], [1], [0, 0, 1, 1], [], []>} : vector<32x256xbf16>, vector<256x512xbf16>, vector<32x512xf32> -> vector<32x512xf32>
    %55 = arith.addf %37, %54 : vector<32x512xf32>
    %c0_24 = arith.constant 0 : index
    %c768 = arith.constant 768 : index
    %56 = vector.load %arg1[%c0_24, %c768] : memref<32x1536xbf16, #tpu.memory_space<vmem>>, vector<32x256xbf16>
    %cst_25 = arith.constant dense<0.000000e+00> : vector<32x1024xf32>
    %57 = tpu.matmul %56, %0, %cst_25 {dimension_numbers = #tpu.dot_dimension_numbers<[1], [0], [0], [1], [0, 0, 1, 1], [], []>} : vector<32x256xbf16>, vector<256x1024xbf16>, vector<32x1024xf32> -> vector<32x1024xf32>
    %58 = vector.extract_strided_slice %57 {offsets = [0, 0], sizes = [32, 256], strides = [1, 1]} : vector<32x1024xf32> to vector<32x256xf32>
    %59 = vector.extract_strided_slice %57 {offsets = [0, 256], sizes = [32, 256], strides = [1, 1]} : vector<32x1024xf32> to vector<32x256xf32>
    %60 = arith.maximumf %58, %59 : vector<32x256xf32>
    %61 = vector.extract_strided_slice %57 {offsets = [0, 512], sizes = [32, 256], strides = [1, 1]} : vector<32x1024xf32> to vector<32x256xf32>
    %62 = vector.extract_strided_slice %57 {offsets = [0, 768], sizes = [32, 256], strides = [1, 1]} : vector<32x1024xf32> to vector<32x256xf32>
    %63 = arith.maximumf %61, %62 : vector<32x256xf32>
    %64 = arith.maximumf %60, %63 : vector<32x256xf32>
    %65 = vector.broadcast %1 : vector<1x256xf32> to vector<32x256xf32>
    %66 = arith.addf %64, %65 : vector<32x256xf32>
    %cst_26 = arith.constant 0.000000e+00 : f32
    %67 = vector.broadcast %cst_26 : f32 to vector<32x256xf32>
    %68 = arith.maximumf %66, %67 : vector<32x256xf32>
    %69 = arith.truncf %68 : vector<32x256xf32> to vector<32x256xbf16>
    %c3 = arith.constant 3 : index
    %c0_27 = arith.constant 0 : index
    %c0_28 = arith.constant 0 : index
    %70 = vector.load %arg4[%c3, %c0_27, %c0_28] : memref<6x256x512xbf16, #tpu.memory_space<vmem>>, vector<1x256x512xbf16>
    %71 = vector.shape_cast %70 : vector<1x256x512xbf16> to vector<256x512xbf16>
    %cst_29 = arith.constant dense<0.000000e+00> : vector<32x512xf32>
    %72 = tpu.matmul %69, %71, %cst_29 {dimension_numbers = #tpu.dot_dimension_numbers<[1], [0], [0], [1], [0, 0, 1, 1], [], []>} : vector<32x256xbf16>, vector<256x512xbf16>, vector<32x512xf32> -> vector<32x512xf32>
    %73 = arith.addf %55, %72 : vector<32x512xf32>
    %c0_30 = arith.constant 0 : index
    %c1024 = arith.constant 1024 : index
    %74 = vector.load %arg1[%c0_30, %c1024] : memref<32x1536xbf16, #tpu.memory_space<vmem>>, vector<32x256xbf16>
    %cst_31 = arith.constant dense<0.000000e+00> : vector<32x1024xf32>
    %75 = tpu.matmul %74, %0, %cst_31 {dimension_numbers = #tpu.dot_dimension_numbers<[1], [0], [0], [1], [0, 0, 1, 1], [], []>} : vector<32x256xbf16>, vector<256x1024xbf16>, vector<32x1024xf32> -> vector<32x1024xf32>
    %76 = vector.extract_strided_slice %75 {offsets = [0, 0], sizes = [32, 256], strides = [1, 1]} : vector<32x1024xf32> to vector<32x256xf32>
    %77 = vector.extract_strided_slice %75 {offsets = [0, 256], sizes = [32, 256], strides = [1, 1]} : vector<32x1024xf32> to vector<32x256xf32>
    %78 = arith.maximumf %76, %77 : vector<32x256xf32>
    %79 = vector.extract_strided_slice %75 {offsets = [0, 512], sizes = [32, 256], strides = [1, 1]} : vector<32x1024xf32> to vector<32x256xf32>
    %80 = vector.extract_strided_slice %75 {offsets = [0, 768], sizes = [32, 256], strides = [1, 1]} : vector<32x1024xf32> to vector<32x256xf32>
    %81 = arith.maximumf %79, %80 : vector<32x256xf32>
    %82 = arith.maximumf %78, %81 : vector<32x256xf32>
    %83 = vector.broadcast %1 : vector<1x256xf32> to vector<32x256xf32>
    %84 = arith.addf %82, %83 : vector<32x256xf32>
    %cst_32 = arith.constant 0.000000e+00 : f32
    %85 = vector.broadcast %cst_32 : f32 to vector<32x256xf32>
    %86 = arith.maximumf %84, %85 : vector<32x256xf32>
    %87 = arith.truncf %86 : vector<32x256xf32> to vector<32x256xbf16>
    %c4 = arith.constant 4 : index
    %c0_33 = arith.constant 0 : index
    %c0_34 = arith.constant 0 : index
    %88 = vector.load %arg4[%c4, %c0_33, %c0_34] : memref<6x256x512xbf16, #tpu.memory_space<vmem>>, vector<1x256x512xbf16>
    %89 = vector.shape_cast %88 : vector<1x256x512xbf16> to vector<256x512xbf16>
    %cst_35 = arith.constant dense<0.000000e+00> : vector<32x512xf32>
    %90 = tpu.matmul %87, %89, %cst_35 {dimension_numbers = #tpu.dot_dimension_numbers<[1], [0], [0], [1], [0, 0, 1, 1], [], []>} : vector<32x256xbf16>, vector<256x512xbf16>, vector<32x512xf32> -> vector<32x512xf32>
    %91 = arith.addf %73, %90 : vector<32x512xf32>
    %c0_36 = arith.constant 0 : index
    %c1280 = arith.constant 1280 : index
    %92 = vector.load %arg1[%c0_36, %c1280] : memref<32x1536xbf16, #tpu.memory_space<vmem>>, vector<32x256xbf16>
    %cst_37 = arith.constant dense<0.000000e+00> : vector<32x1024xf32>
    %93 = tpu.matmul %92, %0, %cst_37 {dimension_numbers = #tpu.dot_dimension_numbers<[1], [0], [0], [1], [0, 0, 1, 1], [], []>} : vector<32x256xbf16>, vector<256x1024xbf16>, vector<32x1024xf32> -> vector<32x1024xf32>
    %94 = vector.extract_strided_slice %93 {offsets = [0, 0], sizes = [32, 256], strides = [1, 1]} : vector<32x1024xf32> to vector<32x256xf32>
    %95 = vector.extract_strided_slice %93 {offsets = [0, 256], sizes = [32, 256], strides = [1, 1]} : vector<32x1024xf32> to vector<32x256xf32>
    %96 = arith.maximumf %94, %95 : vector<32x256xf32>
    %97 = vector.extract_strided_slice %93 {offsets = [0, 512], sizes = [32, 256], strides = [1, 1]} : vector<32x1024xf32> to vector<32x256xf32>
    %98 = vector.extract_strided_slice %93 {offsets = [0, 768], sizes = [32, 256], strides = [1, 1]} : vector<32x1024xf32> to vector<32x256xf32>
    %99 = arith.maximumf %97, %98 : vector<32x256xf32>
    %100 = arith.maximumf %96, %99 : vector<32x256xf32>
    %101 = vector.broadcast %1 : vector<1x256xf32> to vector<32x256xf32>
    %102 = arith.addf %100, %101 : vector<32x256xf32>
    %cst_38 = arith.constant 0.000000e+00 : f32
    %103 = vector.broadcast %cst_38 : f32 to vector<32x256xf32>
    %104 = arith.maximumf %102, %103 : vector<32x256xf32>
    %105 = arith.truncf %104 : vector<32x256xf32> to vector<32x256xbf16>
    %c5 = arith.constant 5 : index
    %c0_39 = arith.constant 0 : index
    %c0_40 = arith.constant 0 : index
    %106 = vector.load %arg4[%c5, %c0_39, %c0_40] : memref<6x256x512xbf16, #tpu.memory_space<vmem>>, vector<1x256x512xbf16>
    %107 = vector.shape_cast %106 : vector<1x256x512xbf16> to vector<256x512xbf16>
    %cst_41 = arith.constant dense<0.000000e+00> : vector<32x512xf32>
    %108 = tpu.matmul %105, %107, %cst_41 {dimension_numbers = #tpu.dot_dimension_numbers<[1], [0], [0], [1], [0, 0, 1, 1], [], []>} : vector<32x256xbf16>, vector<256x512xbf16>, vector<32x512xf32> -> vector<32x512xf32>
    %109 = arith.addf %91, %108 : vector<32x512xf32>
    %110 = vector.extract_strided_slice %109 {offsets = [0, 0], sizes = [32, 128], strides = [1, 1]} : vector<32x512xf32> to vector<32x128xf32>
    %111 = vector.extract_strided_slice %109 {offsets = [0, 128], sizes = [32, 128], strides = [1, 1]} : vector<32x512xf32> to vector<32x128xf32>
    %112 = arith.maximumf %110, %111 : vector<32x128xf32>
    %113 = vector.extract_strided_slice %109 {offsets = [0, 256], sizes = [32, 128], strides = [1, 1]} : vector<32x512xf32> to vector<32x128xf32>
    %114 = vector.extract_strided_slice %109 {offsets = [0, 384], sizes = [32, 128], strides = [1, 1]} : vector<32x512xf32> to vector<32x128xf32>
    %115 = arith.maximumf %113, %114 : vector<32x128xf32>
    %116 = arith.maximumf %112, %115 : vector<32x128xf32>
    %117 = vector.broadcast %2 : vector<1x128xf32> to vector<32x128xf32>
    %118 = arith.addf %116, %117 : vector<32x128xf32>
    %cst_42 = arith.constant 0.000000e+00 : f32
    %119 = vector.broadcast %cst_42 : f32 to vector<32x128xf32>
    %120 = arith.maximumf %118, %119 : vector<32x128xf32>
    %121 = arith.truncf %120 : vector<32x128xf32> to vector<32x128xbf16>
    %122 = vector.extract_strided_slice %121 {offsets = [0, 0], sizes = [8, 128], strides = [1, 1]} : vector<32x128xbf16> to vector<8x128xbf16>
    %c0_43 = arith.constant 0 : index
    %c0_44 = arith.constant 0 : index
    %c0_45 = arith.constant 0 : index
    %123 = vector.load %arg6[%c0_43, %c0_44, %c0_45] : memref<4x128x128xbf16, #tpu.memory_space<vmem>>, vector<1x128x128xbf16>
    %124 = vector.shape_cast %123 : vector<1x128x128xbf16> to vector<128x128xbf16>
    %cst_46 = arith.constant dense<0.000000e+00> : vector<8x128xf32>
    %125 = tpu.matmul %122, %124, %cst_46 {dimension_numbers = #tpu.dot_dimension_numbers<[1], [0], [0], [1], [0, 0, 1, 1], [], []>} : vector<8x128xbf16>, vector<128x128xbf16>, vector<8x128xf32> -> vector<8x128xf32>
    %126 = vector.extract_strided_slice %121 {offsets = [8, 0], sizes = [8, 128], strides = [1, 1]} : vector<32x128xbf16> to vector<8x128xbf16>
    %c1_47 = arith.constant 1 : index
    %c0_48 = arith.constant 0 : index
    %c0_49 = arith.constant 0 : index
    %127 = vector.load %arg6[%c1_47, %c0_48, %c0_49] : memref<4x128x128xbf16, #tpu.memory_space<vmem>>, vector<1x128x128xbf16>
    %128 = vector.shape_cast %127 : vector<1x128x128xbf16> to vector<128x128xbf16>
    %cst_50 = arith.constant dense<0.000000e+00> : vector<8x128xf32>
    %129 = tpu.matmul %126, %128, %cst_50 {dimension_numbers = #tpu.dot_dimension_numbers<[1], [0], [0], [1], [0, 0, 1, 1], [], []>} : vector<8x128xbf16>, vector<128x128xbf16>, vector<8x128xf32> -> vector<8x128xf32>
    %130 = arith.addf %125, %129 : vector<8x128xf32>
    %131 = vector.extract_strided_slice %121 {offsets = [16, 0], sizes = [8, 128], strides = [1, 1]} : vector<32x128xbf16> to vector<8x128xbf16>
    %c2_51 = arith.constant 2 : index
    %c0_52 = arith.constant 0 : index
    %c0_53 = arith.constant 0 : index
    %132 = vector.load %arg6[%c2_51, %c0_52, %c0_53] : memref<4x128x128xbf16, #tpu.memory_space<vmem>>, vector<1x128x128xbf16>
    %133 = vector.shape_cast %132 : vector<1x128x128xbf16> to vector<128x128xbf16>
    %cst_54 = arith.constant dense<0.000000e+00> : vector<8x128xf32>
    %134 = tpu.matmul %131, %133, %cst_54 {dimension_numbers = #tpu.dot_dimension_numbers<[1], [0], [0], [1], [0, 0, 1, 1], [], []>} : vector<8x128xbf16>, vector<128x128xbf16>, vector<8x128xf32> -> vector<8x128xf32>
    %135 = arith.addf %130, %134 : vector<8x128xf32>
    %136 = vector.extract_strided_slice %121 {offsets = [24, 0], sizes = [8, 128], strides = [1, 1]} : vector<32x128xbf16> to vector<8x128xbf16>
    %c3_55 = arith.constant 3 : index
    %c0_56 = arith.constant 0 : index
    %c0_57 = arith.constant 0 : index
    %137 = vector.load %arg6[%c3_55, %c0_56, %c0_57] : memref<4x128x128xbf16, #tpu.memory_space<vmem>>, vector<1x128x128xbf16>
    %138 = vector.shape_cast %137 : vector<1x128x128xbf16> to vector<128x128xbf16>
    %cst_58 = arith.constant dense<0.000000e+00> : vector<8x128xf32>
    %139 = tpu.matmul %136, %138, %cst_58 {dimension_numbers = #tpu.dot_dimension_numbers<[1], [0], [0], [1], [0, 0, 1, 1], [], []>} : vector<8x128xbf16>, vector<128x128xbf16>, vector<8x128xf32> -> vector<8x128xf32>
    %140 = arith.addf %135, %139 : vector<8x128xf32>
    %c0_59 = arith.constant 0 : index
    %c0_60 = arith.constant 0 : index
    %141 = vector.load %arg7[%c0_59, %c0_60] : memref<1x128xf32, #tpu.memory_space<vmem>>, vector<1x128xf32>
    %142 = vector.broadcast %141 : vector<1x128xf32> to vector<8x128xf32>
    %143 = arith.addf %140, %142 : vector<8x128xf32>
    %cst_61 = arith.constant 0.000000e+00 : f32
    %144 = vector.broadcast %cst_61 : f32 to vector<8x128xf32>
    %145 = arith.maximumf %143, %144 : vector<8x128xf32>
    %146 = arith.truncf %145 : vector<8x128xf32> to vector<8x128xbf16>
    %c0_62 = arith.constant 0 : index
    %c0_63 = arith.constant 0 : index
    %147 = vector.load %arg8[%c0_62, %c0_63] : memref<128x128xbf16, #tpu.memory_space<vmem>>, vector<128x128xbf16>
    %cst_64 = arith.constant dense<0.000000e+00> : vector<8x128xf32>
    %148 = tpu.matmul %146, %147, %cst_64 {dimension_numbers = #tpu.dot_dimension_numbers<[1], [0], [0], [1], [0, 0, 1, 1], [], []>} : vector<8x128xbf16>, vector<128x128xbf16>, vector<8x128xf32> -> vector<8x128xf32>
    %c0_65 = arith.constant 0 : index
    %c0_66 = arith.constant 0 : index
    %149 = vector.load %arg9[%c0_65, %c0_66] : memref<1x128xf32, #tpu.memory_space<vmem>>, vector<1x128xf32>
    %150 = vector.broadcast %149 : vector<1x128xf32> to vector<8x128xf32>
    %151 = arith.addf %148, %150 : vector<8x128xf32>
    %cst_67 = arith.constant dense<0xFF800000> : vector<8xf32>
    %152 = vector.multi_reduction <maximumf>, %151, %cst_67 [1] : vector<8x128xf32> to vector<8xf32>
    %153 = vector.shape_cast %152 : vector<8xf32> to vector<8x1xf32>
    %154 = vector.broadcast %153 : vector<8x1xf32> to vector<8x128xf32>
    %155 = arith.subf %151, %154 : vector<8x128xf32>
    %156 = math.exp %155 : vector<8x128xf32>
    %cst_68 = arith.constant dense<0.000000e+00> : vector<8xf32>
    %157 = vector.multi_reduction <add>, %156, %cst_68 [1] : vector<8x128xf32> to vector<8xf32>
    %158 = vector.shape_cast %157 : vector<8xf32> to vector<8x1xf32>
    %159 = math.log %158 : vector<8x1xf32>
    %160 = vector.broadcast %159 : vector<8x1xf32> to vector<8x128xf32>
    %161 = arith.subf %155, %160 : vector<8x128xf32>
    %c0_69 = arith.constant 0 : index
    %c0_70 = arith.constant 0 : index
    %162 = vector.load %arg10[%c0_69, %c0_70] : memref<8x128xf32, #tpu.memory_space<vmem>>, vector<8x128xf32>
    tpu.vector_store %arg10[%c0_69, %c0_70], %161 {strides = array<i32>} : memref<8x128xf32, #tpu.memory_space<vmem>>, vector<8x128xf32>,
    return
  }
  func.func @transform_0(%arg0: i32) -> (i32, i32) {
    %c0_i32 = arith.constant 0 : i32
    %c0_i32_0 = arith.constant 0 : i32
    return %arg0, %c0_i32 : i32, i32
  }
  func.func @transform_1(%arg0: i32) -> (i32, i32) {
    %c0_i32 = arith.constant 0 : i32
    %c0_i32_0 = arith.constant 0 : i32
    %c0_i32_1 = arith.constant 0 : i32
    return %c0_i32, %c0_i32_0 : i32, i32
  }
  func.func @transform_2(%arg0: i32) -> (i32, i32) {
    %c0_i32 = arith.constant 0 : i32
    %c0_i32_0 = arith.constant 0 : i32
    %c0_i32_1 = arith.constant 0 : i32
    return %c0_i32, %c0_i32_0 : i32, i32
  }
  func.func @transform_3(%arg0: i32) -> (i32, i32, i32) {
    %c0_i32 = arith.constant 0 : i32
    %c0_i32_0 = arith.constant 0 : i32
    %c0_i32_1 = arith.constant 0 : i32
    %c0_i32_2 = arith.constant 0 : i32
    return %c0_i32, %c0_i32_0, %c0_i32_1 : i32, i32, i32
  }
  func.func @transform_4(%arg0: i32) -> (i32, i32) {
    %c0_i32 = arith.constant 0 : i32
    %c0_i32_0 = arith.constant 0 : i32
    %c0_i32_1 = arith.constant 0 : i32
    return %c0_i32, %c0_i32_0 : i32, i32
  }
  func.func @transform_5(%arg0: i32) -> (i32, i32, i32) {
    %c0_i32 = arith.constant 0 : i32
    %c0_i32_0 = arith.constant 0 : i32
    %c0_i32_1 = arith.constant 0 : i32
    %c0_i32_2 = arith.constant 0 : i32
    return %c0_i32, %c0_i32_0, %c0_i32_1 : i32, i32, i32
  }
  func.func @transform_6(%arg0: i32) -> (i32, i32) {
    %c0_i32 = arith.constant 0 : i32
    %c0_i32_0 = arith.constant 0 : i32
    %c0_i32_1 = arith.constant 0 : i32
    return %c0_i32, %c0_i32_0 : i32, i32
  }
  func.func @transform_7(%arg0: i32) -> (i32, i32) {
    %c0_i32 = arith.constant 0 : i32
    %c0_i32_0 = arith.constant 0 : i32
    %c0_i32_1 = arith.constant 0 : i32
    return %c0_i32, %c0_i32_0 : i32, i32
  }
  func.func @transform_8(%arg0: i32) -> (i32, i32) {
    %c0_i32 = arith.constant 0 : i32
    %c0_i32_0 = arith.constant 0 : i32
    %c0_i32_1 = arith.constant 0 : i32
    return %c0_i32, %c0_i32_0 : i32, i32
  }
  func.func @transform_9(%arg0: i32) -> (i32, i32) {
    %c0_i32 = arith.constant 0 : i32
    %c0_i32_0 = arith.constant 0 : i32
    return %arg0, %c0_i32 : i32, i32
  }
}

</mosaic_0001>

<llo_original>
// kernel: forward.1
$region0: #{forward.1}
  #allocation0 [shape = 'u32[]', space=smem, size = 0x4, offset = 0x4, fixed_abs, tag = 'smem constant byte address 0x4 - core index']
  #allocation1 [shape = 'u32[72,128]{1,0:T(1,128)}', space=vmem, size = 0x9000, scoped, tag = 'internal scratch']
  %s0 = inlined_call_operand.vmem [shape: bf16[32,1536], index: 0, kind: input, shape index: {}]
  %s1 = inlined_call_operand.hbm [shape: bf16[256,1024], index: 1, kind: input, shape index: {}]
  %s2 = inlined_call_operand.hbm [shape: f32[1,256], index: 2, kind: input, shape index: {}]
  %s3 = inlined_call_operand.hbm [shape: bf16[6,256,512], index: 3, kind: input, shape index: {}]
  %s4 = inlined_call_operand.hbm [shape: f32[1,128], index: 4, kind: input, shape index: {}]
  %s5 = inlined_call_operand.hbm [shape: bf16[4,128,128], index: 5, kind: input, shape index: {}]
  %s6 = inlined_call_operand.hbm [shape: f32[1,128], index: 6, kind: input, shape index: {}]
  %s7 = inlined_call_operand.hbm [shape: bf16[128,128], index: 7, kind: input, shape index: {}]
  %s8 = inlined_call_operand.hbm [shape: f32[1,128], index: 8, kind: input, shape index: {}]
  %s9 = inlined_call_operand.vmem [shape: f32[8,128], index: 9, kind: output, shape index: {}]
  %s10 = sld [smem:[#allocation0]]
  $region78: #{forward.1} parent=0
    _
  %s12 = ssub.s32 1, %s10
  %s13 = scalar_select 0, %s12, %s10
  $region1: #{forward.1} parent=0
    #allocation2 [shape = 'u8[524288]{0}', space=vmem, size = 0x80000, scoped, tag = 'input window, operand 1, single buffered']
    #allocation3 [shape = 's32[1]{0}', space=sflag, size = 0x4, scoped, tag = 'scoped memory for forward.1']
    #allocation4 [shape = 'u8[1024]{0}', space=vmem, size = 0x400, scoped, tag = 'input window, operand 2, single buffered']
    #allocation5 [shape = 's32[1]{0}', space=sflag, size = 0x4, scoped, tag = 'scoped memory for forward.1']
    #allocation6 [shape = 'u8[1572864]{0}', space=vmem, size = 0x180000, scoped, tag = 'input window, operand 3, single buffered']
    #allocation7 [shape = 'u8[512]{0}', space=vmem, size = 0x400, scoped, tag = 'input window, operand 4, single buffered']
    #allocation8 [shape = 's32[1]{0}', space=sflag, size = 0x4, scoped, tag = 'scoped memory for forward.1']
    #allocation9 [shape = 'u8[131072]{0}', space=vmem, size = 0x20000, scoped, tag = 'input window, operand 5, single buffered']
    #allocation10 [shape = 'u8[512]{0}', space=vmem, size = 0x400, scoped, tag = 'input window, operand 6, single buffered']
    #allocation11 [shape = 's32[1]{0}', space=sflag, size = 0x4, scoped, tag = 'scoped memory for forward.1']
    #allocation12 [shape = 'u8[32768]{0}', space=vmem, size = 0x8000, scoped, tag = 'input window, operand 7, single buffered']
    #allocation13 [shape = 'u8[512]{0}', space=vmem, size = 0x400, scoped, tag = 'input window, operand 8, single buffered']
    #allocation14 [shape = 's32[1]{0}', space=sflag, size = 0x4, scoped, tag = 'scoped memory for forward.1']
    %14 = vsyncpa [#allocation3], 0
    %15 = vsyncpa [#allocation5], 0
    %16 = vsyncpa [#allocation8], 0
    %17 = vsyncpa [#allocation11], 0
    %18 = vsyncpa [#allocation14], 0
    // Predicated region
    $region2: #{forward.1} parent=1 // pred_check
      _
    $region3: #{forward.1} parent=1 // pred_check_branch
      %20 = sbr.rel (0) target = $region5
    $region4: #{forward.1} parent=1 // pred_region
      _
    $region5: #{forward.1} parent=1 // pred_fallthru
      _
    // Predicated region
    $region6: #{forward.1} parent=1 // pred_check
      _
    $region7: #{forward.1} parent=1 // pred_check_branch
      %22 = sbr.rel (0) target = $region9
    $region8: #{forward.1} parent=1 // pred_region
      %24 = vsyncadd [#allocation3], 0
      %s25 = sshll.u32 %s1, 4
      %s26 = int_to_ptr.hbm [resolvable:$true] %s25
      %s27 = sshll.u32 [#allocation2], 4
      %s28 = int_to_ptr.vmem [resolvable:$true] %s27
      %33 = dma.hbm_to_vmem [thread:$0]  %s26, 16384, %s28, [#allocation3], 512, 512, 32
    $region9: #{forward.1} parent=1 // pred_fallthru
      _
    // Predicated region
    $region10: #{forward.1} parent=1 // pred_check
      _
    $region11: #{forward.1} parent=1 // pred_check_branch
      %35 = sbr.rel (0) target = $region13
    $region12: #{forward.1} parent=1 // pred_region
      %37 = vsyncadd [#allocation5], 0
      %s39 = sshll.u32 %s2, 4
      %s40 = int_to_ptr.hbm [resolvable:$true] %s39
      %s41 = sshll.u32 [#allocation4], 4
      %s42 = int_to_ptr.vmem [resolvable:$true] %s41
      %44 = dma.hbm_to_vmem [thread:$0]  %s40, 32, %s42, [#allocation5]
    $region13: #{forward.1} parent=1 // pred_fallthru
      _
    // Predicated region
    $region14: #{forward.1} parent=1 // pred_check
      _
    $region15: #{forward.1} parent=1 // pred_check_branch
      %46 = sbr.rel (0) target = $region17
    $region16: #{forward.1} parent=1 // pred_region
      %48 = vsyncadd [#allocation5], 0
      %s49 = sshll.u32 %s3, 4
      %s50 = int_to_ptr.hbm [resolvable:$true] %s49
      %s51 = sshll.u32 [#allocation6], 4
      %s52 = int_to_ptr.vmem [resolvable:$true] %s51
      %57 = dma.hbm_to_vmem [thread:$0]  %s50, 49152, %s52, [#allocation5], 256, 256, 16
    $region17: #{forward.1} parent=1 // pred_fallthru
      _
    // Predicated region
    $region18: #{forward.1} parent=1 // pred_check
      _
    $region19: #{forward.1} parent=1 // pred_check_branch
      %59 = sbr.rel (0) target = $region21
    $region20: #{forward.1} parent=1 // pred_region
      %61 = vsyncadd [#allocation8], 0
      %s63 = sshll.u32 %s4, 4
      %s64 = int_to_ptr.hbm [resolvable:$true] %s63
      %s65 = sshll.u32 [#allocation7], 4
      %s66 = int_to_ptr.vmem [resolvable:$true] %s65
      %68 = dma.hbm_to_vmem [thread:$0]  %s64, 16, %s66, [#allocation8]
    $region21: #{forward.1} parent=1 // pred_fallthru
      _
    // Predicated region
    $region22: #{forward.1} parent=1 // pred_check
      _
    $region23: #{forward.1} parent=1 // pred_check_branch
      %70 = sbr.rel (0) target = $region25
    $region24: #{forward.1} parent=1 // pred_region
      %72 = vsyncadd [#allocation8], 0
      %s73 = sshll.u32 %s5, 4
      %s74 = int_to_ptr.hbm [resolvable:$true] %s73
      %s75 = sshll.u32 [#allocation9], 4
      %s76 = int_to_ptr.vmem [resolvable:$true] %s75
      %81 = dma.hbm_to_vmem [thread:$0]  %s74, 4096, %s76, [#allocation8], 64, 64, 4
    $region25: #{forward.1} parent=1 // pred_fallthru
      _
    // Predicated region
    $region26: #{forward.1} parent=1 // pred_check
      _
    $region27: #{forward.1} parent=1 // pred_check_branch
      %83 = sbr.rel (0) target = $region29
    $region28: #{forward.1} parent=1 // pred_region
      %85 = vsyncadd [#allocation11], 0
      %s87 = sshll.u32 %s6, 4
      %s88 = int_to_ptr.hbm [resolvable:$true] %s87
      %s89 = sshll.u32 [#allocation10], 4
      %s90 = int_to_ptr.vmem [resolvable:$true] %s89
      %92 = dma.hbm_to_vmem [thread:$0]  %s88, 16, %s90, [#allocation11]
    $region29: #{forward.1} parent=1 // pred_fallthru
      _
    // Predicated region
    $region30: #{forward.1} parent=1 // pred_check
      _
    $region31: #{forward.1} parent=1 // pred_check_branch
      %94 = sbr.rel (0) target = $region33
    $region32: #{forward.1} parent=1 // pred_region
      %96 = vsyncadd [#allocation11], 0
      %s97 = sshll.u32 %s7, 4
      %s98 = int_to_ptr.hbm [resolvable:$true] %s97
      %s99 = sshll.u32 [#allocation12], 4
      %s100 = int_to_ptr.vmem [resolvable:$true] %s99
      %105 = dma.hbm_to_vmem [thread:$0]  %s98, 1024, %s100, [#allocation11], 64, 64, 4
    $region33: #{forward.1} parent=1 // pred_fallthru
      _
    // Predicated region
    $region34: #{forward.1} parent=1 // pred_check
      _
    $region35: #{forward.1} parent=1 // pred_check_branch
      %107 = sbr.rel (0) target = $region37
    $region36: #{forward.1} parent=1 // pred_region
      %109 = vsyncadd [#allocation14], 0
      %s111 = sshll.u32 %s8, 4
      %s112 = int_to_ptr.hbm [resolvable:$true] %s111
      %s113 = sshll.u32 [#allocation13], 4
      %s114 = int_to_ptr.vmem [resolvable:$true] %s113
      %116 = dma.hbm_to_vmem [thread:$0]  %s112, 16, %s114, [#allocation14]
    $region37: #{forward.1} parent=1 // pred_fallthru
      _
    // Predicated region
    $region38: #{forward.1} parent=1 // pred_check
      _
    $region39: #{forward.1} parent=1 // pred_check_branch
      %118 = sbr.rel (0) target = $region41
    $region40: #{forward.1} parent=1 // pred_region
      %120 = dma.done [#allocation3], 16384
    $region41: #{forward.1} parent=1 // pred_fallthru
      _
    // Predicated region
    $region42: #{forward.1} parent=1 // pred_check
      _
    $region43: #{forward.1} parent=1 // pred_check_branch
      %122 = sbr.rel (0) target = $region45
    $region44: #{forward.1} parent=1 // pred_region
      %124 = dma.done [#allocation5], 32
    $region45: #{forward.1} parent=1 // pred_fallthru
      _
    // Predicated region
    $region46: #{forward.1} parent=1 // pred_check
      _
    $region47: #{forward.1} parent=1 // pred_check_branch
      %126 = sbr.rel (0) target = $region49
    $region48: #{forward.1} parent=1 // pred_region
      %128 = dma.done [#allocation5], 49152
    $region49: #{forward.1} parent=1 // pred_fallthru
      _
    // Predicated region
    $region50: #{forward.1} parent=1 // pred_check
      _
    $region51: #{forward.1} parent=1 // pred_check_branch
      %130 = sbr.rel (0) target = $region53
    $region52: #{forward.1} parent=1 // pred_region
      %132 = dma.done [#allocation8], 16
    $region53: #{forward.1} parent=1 // pred_fallthru
      _
    // Predicated region
    $region54: #{forward.1} parent=1 // pred_check
      _
    $region55: #{forward.1} parent=1 // pred_check_branch
      %134 = sbr.rel (0) target = $region57
    $region56: #{forward.1} parent=1 // pred_region
      %136 = dma.done [#allocation8], 4096
    $region57: #{forward.1} parent=1 // pred_fallthru
      _
    // Predicated region
    $region58: #{forward.1} parent=1 // pred_check
      _
    $region59: #{forward.1} parent=1 // pred_check_branch
      %138 = sbr.rel (0) target = $region61
    $region60: #{forward.1} parent=1 // pred_region
      %140 = dma.done [#allocation11], 16
    $region61: #{forward.1} parent=1 // pred_fallthru
      _
    // Predicated region
    $region62: #{forward.1} parent=1 // pred_check
      _
    $region63: #{forward.1} parent=1 // pred_check_branch
      %142 = sbr.rel (0) target = $region65
    $region64: #{forward.1} parent=1 // pred_region
      %144 = dma.done [#allocation11], 1024
    $region65: #{forward.1} parent=1 // pred_fallthru
      _
    // Predicated region
    $region66: #{forward.1} parent=1 // pred_check
      _
    $region67: #{forward.1} parent=1 // pred_check_branch
      %146 = sbr.rel (0) target = $region69
    $region68: #{forward.1} parent=1 // pred_region
      %148 = dma.done [#allocation14], 16
    $region69: #{forward.1} parent=1 // pred_fallthru
      _
    %v149 = vld [vmem:[#allocation2] sm:$0xff]
    %v150 = vld [vmem:[#allocation2 + $0x8] sm:$0xff]
    %v151 = vld [vmem:[#allocation2 + $0x10] sm:$0xff]
    %v152 = vld [vmem:[#allocation2 + $0x18] sm:$0xff]
    %v153 = vld [vmem:[#allocation2 + $0x20] sm:$0xff]
    %v154 = vld [vmem:[#allocation2 + $0x28] sm:$0xff]
    %v155 = vld [vmem:[#allocation2 + $0x30] sm:$0xff]
    %v156 = vld [vmem:[#allocation2 + $0x38] sm:$0xff]
    %v157 = vld [vmem:[#allocation2 + $0x40] sm:$0xff]
    %v158 = vld [vmem:[#allocation2 + $0x48] sm:$0xff]
    %v159 = vld [vmem:[#allocation2 + $0x50] sm:$0xff]
    %v160 = vld [vmem:[#allocation2 + $0x58] sm:$0xff]
    %v161 = vld [vmem:[#allocation2 + $0x60] sm:$0xff]
    %v162 = vld [vmem:[#allocation2 + $0x68] sm:$0xff]
    %v163 = vld [vmem:[#allocation2 + $0x70] sm:$0xff]
    %v164 = vld [vmem:[#allocation2 + $0x78] sm:$0xff]
    %v165 = vld [vmem:[#allocation2 + $0x80] sm:$0xff]
    %v166 = vld [vmem:[#allocation2 + $0x88] sm:$0xff]
    %v167 = vld [vmem:[#allocation2 + $0x90] sm:$0xff]
    %v168 = vld [vmem:[#allocation2 + $0x98] sm:$0xff]
    %v169 = vld [vmem:[#allocation2 + $0xa0] sm:$0xff]
    %v170 = vld [vmem:[#allocation2 + $0xa8] sm:$0xff]
    %v171 = vld [vmem:[#allocation2 + $0xb0] sm:$0xff]
    %v172 = vld [vmem:[#allocation2 + $0xb8] sm:$0xff]
    %v173 = vld [vmem:[#allocation2 + $0xc0] sm:$0xff]
    %v174 = vld [vmem:[#allocation2 + $0xc8] sm:$0xff]
    %v175 = vld [vmem:[#allocation2 + $0xd0] sm:$0xff]
    %v176 = vld [vmem:[#allocation2 + $0xd8] sm:$0xff]
    %v177 = vld [vmem:[#allocation2 + $0xe0] sm:$0xff]
    %v178 = vld [vmem:[#allocation2 + $0xe8] sm:$0xff]
    %v179 = vld [vmem:[#allocation2 + $0xf0] sm:$0xff]
    %v180 = vld [vmem:[#allocation2 + $0xf8] sm:$0xff]
    %v181 = vld [vmem:[#allocation2 + $0x100] sm:$0xff]
    %v182 = vld [vmem:[#allocation2 + $0x108] sm:$0xff]
    %v183 = vld [vmem:[#allocation2 + $0x110] sm:$0xff]
    %v184 = vld [vmem:[#allocation2 + $0x118] sm:$0xff]
    %v185 = vld [vmem:[#allocation2 + $0x120] sm:$0xff]
    %v186 = vld [vmem:[#allocation2 + $0x128] sm:$0xff]
    %v187 = vld [vmem:[#allocation2 + $0x130] sm:$0xff]
    %v188 = vld [vmem:[#allocation2 + $0x138] sm:$0xff]
    %v189 = vld [vmem:[#allocation2 + $0x140] sm:$0xff]
    %v190 = vld [vmem:[#allocation2 + $0x148] sm:$0xff]
    %v191 = vld [vmem:[#allocation2 + $0x150] sm:$0xff]
    %v192 = vld [vmem:[#allocation2 + $0x158] sm:$0xff]
    %v193 = vld [vmem:[#allocation2 + $0x160] sm:$0xff]
    %v194 = vld [vmem:[#allocation2 + $0x168] sm:$0xff]
    %v195 = vld [vmem:[#allocation2 + $0x170] sm:$0xff]
    %v196 = vld [vmem:[#allocation2 + $0x178] sm:$0xff]
    %v197 = vld [vmem:[#allocation2 + $0x180] sm:$0xff]
    %v198 = vld [vmem:[#allocation2 + $0x188] sm:$0xff]
    %v199 = vld [vmem:[#allocation2 + $0x190] sm:$0xff]
    %v200 = vld [vmem:[#allocation2 + $0x198] sm:$0xff]
    %v201 = vld [vmem:[#allocation2 + $0x1a0] sm:$0xff]
    %v202 = vld [vmem:[#allocation2 + $0x1a8] sm:$0xff]
    %v203 = vld [vmem:[#allocation2 + $0x1b0] sm:$0xff]
    %v204 = vld [vmem:[#allocation2 + $0x1b8] sm:$0xff]
    %v205 = vld [vmem:[#allocation2 + $0x1c0] sm:$0xff]
    %v206 = vld [vmem:[#allocation2 + $0x1c8] sm:$0xff]
    %v207 = vld [vmem:[#allocation2 + $0x1d0] sm:$0xff]
    %v208 = vld [vmem:[#allocation2 + $0x1d8] sm:$0xff]
    %v209 = vld [vmem:[#allocation2 + $0x1e0] sm:$0xff]
    %v210 = vld [vmem:[#allocation2 + $0x1e8] sm:$0xff]
    %v211 = vld [vmem:[#allocation2 + $0x1f0] sm:$0xff]
    %v212 = vld [vmem:[#allocation2 + $0x1f8] sm:$0xff]
    %v213 = vld [vmem:[#allocation2 + $0x200] sm:$0xff]
    %v214 = vld [vmem:[#allocation2 + $0x208] sm:$0xff]
    %v215 = vld [vmem:[#allocation2 + $0x210] sm:$0xff]
    %v216 = vld [vmem:[#allocation2 + $0x218] sm:$0xff]
    %v217 = vld [vmem:[#allocation2 + $0x220] sm:$0xff]
    %v218 = vld [vmem:[#allocation2 + $0x228] sm:$0xff]
    %v219 = vld [vmem:[#allocation2 + $0x230] sm:$0xff]
    %v220 = vld [vmem:[#allocation2 + $0x238] sm:$0xff]
    %v221 = vld [vmem:[#allocation2 + $0x240] sm:$0xff]
    %v222 = vld [vmem:[#allocation2 + $0x248] sm:$0xff]
    %v223 = vld [vmem:[#allocation2 + $0x250] sm:$0xff]
    %v224 = vld [vmem:[#allocation2 + $0x258] sm:$0xff]
    %v225 = vld [vmem:[#allocation2 + $0x260] sm:$0xff]
    %v226 = vld [vmem:[#allocation2 + $0x268] sm:$0xff]
    %v227 = vld [vmem:[#allocation2 + $0x270] sm:$0xff]
    %v228 = vld [vmem:[#allocation2 + $0x278] sm:$0xff]
    %v229 = vld [vmem:[#allocation2 + $0x280] sm:$0xff]
    %v230 = vld [vmem:[#allocation2 + $0x288] sm:$0xff]
    %v231 = vld [vmem:[#allocation2 + $0x290] sm:$0xff]
    %v232 = vld [vmem:[#allocation2 + $0x298] sm:$0xff]
    %v233 = vld [vmem:[#allocation2 + $0x2a0] sm:$0xff]
    %v234 = vld [vmem:[#allocation2 + $0x2a8] sm:$0xff]
    %v235 = vld [vmem:[#allocation2 + $0x2b0] sm:$0xff]
    %v236 = vld [vmem:[#allocation2 + $0x2b8] sm:$0xff]
    %v237 = vld [vmem:[#allocation2 + $0x2c0] sm:$0xff]
    %v238 = vld [vmem:[#allocation2 + $0x2c8] sm:$0xff]
    %v239 = vld [vmem:[#allocation2 + $0x2d0] sm:$0xff]
    %v240 = vld [vmem:[#allocation2 + $0x2d8] sm:$0xff]
    %v241 = vld [vmem:[#allocation2 + $0x2e0] sm:$0xff]
    %v242 = vld [vmem:[#allocation2 + $0x2e8] sm:$0xff]
    %v243 = vld [vmem:[#allocation2 + $0x2f0] sm:$0xff]
    %v244 = vld [vmem:[#allocation2 + $0x2f8] sm:$0xff]
    %v245 = vld [vmem:[#allocation2 + $0x300] sm:$0xff]
    %v246 = vld [vmem:[#allocation2 + $0x308] sm:$0xff]
    %v247 = vld [vmem:[#allocation2 + $0x310] sm:$0xff]
    %v248 = vld [vmem:[#allocation2 + $0x318] sm:$0xff]
    %v249 = vld [vmem:[#allocation2 + $0x320] sm:$0xff]
    %v250 = vld [vmem:[#allocation2 + $0x328] sm:$0xff]
    %v251 = vld [vmem:[#allocation2 + $0x330] sm:$0xff]
    %v252 = vld [vmem:[#allocation2 + $0x338] sm:$0xff]
    %v253 = vld [vmem:[#allocation2 + $0x340] sm:$0xff]
    %v254 = vld [vmem:[#allocation2 + $0x348] sm:$0xff]
    %v255 = vld [vmem:[#allocation2 + $0x350] sm:$0xff]
    %v256 = vld [vmem:[#allocation2 + $0x358] sm:$0xff]
    %v257 = vld [vmem:[#allocation2 + $0x360] sm:$0xff]
    %v258 = vld [vmem:[#allocation2 + $0x368] sm:$0xff]
    %v259 = vld [vmem:[#allocation2 + $0x370] sm:$0xff]
    %v260 = vld [vmem:[#allocation2 + $0x378] sm:$0xff]
    %v261 = vld [vmem:[#allocation2 + $0x380] sm:$0xff]
    %v262 = vld [vmem:[#allocation2 + $0x388] sm:$0xff]
    %v263 = vld [vmem:[#allocation2 + $0x390] sm:$0xff]
    %v264 = vld [vmem:[#allocation2 + $0x398] sm:$0xff]
    %v265 = vld [vmem:[#allocation2 + $0x3a0] sm:$0xff]
    %v266 = vld [vmem:[#allocation2 + $0x3a8] sm:$0xff]
    %v267 = vld [vmem:[#allocation2 + $0x3b0] sm:$0xff]
    %v268 = vld [vmem:[#allocation2 + $0x3b8] sm:$0xff]
    %v269 = vld [vmem:[#allocation2 + $0x3c0] sm:$0xff]
    %v270 = vld [vmem:[#allocation2 + $0x3c8] sm:$0xff]
    %v271 = vld [vmem:[#allocation2 + $0x3d0] sm:$0xff]
    %v272 = vld [vmem:[#allocation2 + $0x3d8] sm:$0xff]
    %v273 = vld [vmem:[#allocation2 + $0x3e0] sm:$0xff]
    %v274 = vld [vmem:[#allocation2 + $0x3e8] sm:$0xff]
    %v275 = vld [vmem:[#allocation2 + $0x3f0] sm:$0xff]
    %v276 = vld [vmem:[#allocation2 + $0x3f8] sm:$0xff]
    %v277 = vld [vmem:[#allocation4] sm:$0x3]
    %v278 = vld [vmem:[#allocation7] sm:$0x1]
    %v279 = vld [vmem:[%s0] sm:$0xff]
    %v280 = vld [vmem:[%s0 + $0x30] sm:$0xff]
    %v281 = vld [vmem:[%s0 + $0x60] sm:$0xff]
    %v282 = vld [vmem:[%s0 + $0x90] sm:$0xff]
    %v287 = vunpack.c.l.b16 %v279
    %v288 = vunpack.c.h.b16 %v279
    %v289 = vunpack.c.l.b16 %v280
    %v290 = vunpack.c.h.b16 %v280
    %v291 = vunpack.c.l.b16 %v281
    %v292 = vunpack.c.h.b16 %v281
    %v293 = vunpack.c.l.b16 %v282
    %v294 = vunpack.c.h.b16 %v282
    %v295 = vpack.c.b16 %v289, %v287
    %v296 = vpack.c.b16 %v290, %v288
    %v297 = vpack.c.b16 %v293, %v291
    %v298 = vpack.c.b16 %v294, %v292
    %v431 = vunpack.c.l.b16 %v149
    %v432 = vunpack.c.h.b16 %v149
    %v433 = vunpack.c.l.b16 %v150
    %v434 = vunpack.c.h.b16 %v150
    %v435 = vunpack.c.l.b16 %v151
    %v436 = vunpack.c.h.b16 %v151
    %v437 = vunpack.c.l.b16 %v152
    %v438 = vunpack.c.h.b16 %v152
    %v439 = vunpack.c.l.b16 %v153
    %v440 = vunpack.c.h.b16 %v153
    %v441 = vunpack.c.l.b16 %v154
    %v442 = vunpack.c.h.b16 %v154
    %v443 = vunpack.c.l.b16 %v155
    %v444 = vunpack.c.h.b16 %v155
    %v445 = vunpack.c.l.b16 %v156
    %v446 = vunpack.c.h.b16 %v156
    %v447 = vunpack.c.l.b16 %v157
    %v448 = vunpack.c.h.b16 %v157
    %v449 = vunpack.c.l.b16 %v158
    %v450 = vunpack.c.h.b16 %v158
    %v451 = vunpack.c.l.b16 %v159
    %v452 = vunpack.c.h.b16 %v159
    %v453 = vunpack.c.l.b16 %v160
    %v454 = vunpack.c.h.b16 %v160
    %v455 = vunpack.c.l.b16 %v161
    %v456 = vunpack.c.h.b16 %v161
    %v457 = vunpack.c.l.b16 %v162
    %v458 = vunpack.c.h.b16 %v162
    %v459 = vunpack.c.l.b16 %v163
    %v460 = vunpack.c.h.b16 %v163
    %v461 = vunpack.c.l.b16 %v164
    %v462 = vunpack.c.h.b16 %v164
    %v463 = vunpack.c.l.b16 %v165
    %v464 = vunpack.c.h.b16 %v165
    %v465 = vunpack.c.l.b16 %v166
    %v466 = vunpack.c.h.b16 %v166
    %v467 = vunpack.c.l.b16 %v167
    %v468 = vunpack.c.h.b16 %v167
    %v469 = vunpack.c.l.b16 %v168
    %v470 = vunpack.c.h.b16 %v168
    %v471 = vunpack.c.l.b16 %v169
    %v472 = vunpack.c.h.b16 %v169
    %v473 = vunpack.c.l.b16 %v170
    %v474 = vunpack.c.h.b16 %v170
    %v475 = vunpack.c.l.b16 %v171
    %v476 = vunpack.c.h.b16 %v171
    %v477 = vunpack.c.l.b16 %v172
    %v478 = vunpack.c.h.b16 %v172
    %v479 = vunpack.c.l.b16 %v173
    %v480 = vunpack.c.h.b16 %v173
    %v481 = vunpack.c.l.b16 %v174
    %v482 = vunpack.c.h.b16 %v174
    %v483 = vunpack.c.l.b16 %v175
    %v484 = vunpack.c.h.b16 %v175
    %v485 = vunpack.c.l.b16 %v176
    %v486 = vunpack.c.h.b16 %v176
    %v487 = vunpack.c.l.b16 %v177
    %v488 = vunpack.c.h.b16 %v177
    %v489 = vunpack.c.l.b16 %v178
    %v490 = vunpack.c.h.b16 %v178
    %v491 = vunpack.c.l.b16 %v179
    %v492 = vunpack.c.h.b16 %v179
    %v493 = vunpack.c.l.b16 %v180
    %v494 = vunpack.c.h.b16 %v180
    %v495 = vunpack.c.l.b16 %v181
    %v496 = vunpack.c.h.b16 %v181
    %v497 = vunpack.c.l.b16 %v182
    %v498 = vunpack.c.h.b16 %v182
    %v499 = vunpack.c.l.b16 %v183
    %v500 = vunpack.c.h.b16 %v183
    %v501 = vunpack.c.l.b16 %v184
    %v502 = vunpack.c.h.b16 %v184
    %v503 = vunpack.c.l.b16 %v185
    %v504 = vunpack.c.h.b16 %v185
    %v505 = vunpack.c.l.b16 %v186
    %v506 = vunpack.c.h.b16 %v186
    %v507 = vunpack.c.l.b16 %v187
    %v508 = vunpack.c.h.b16 %v187
    %v509 = vunpack.c.l.b16 %v188
    %v510 = vunpack.c.h.b16 %v188
    %v511 = vunpack.c.l.b16 %v189
    %v512 = vunpack.c.h.b16 %v189
    %v513 = vunpack.c.l.b16 %v190
    %v514 = vunpack.c.h.b16 %v190
    %v515 = vunpack.c.l.b16 %v191
    %v516 = vunpack.c.h.b16 %v191
    %v517 = vunpack.c.l.b16 %v192
    %v518 = vunpack.c.h.b16 %v192
    %v519 = vunpack.c.l.b16 %v193
    %v520 = vunpack.c.h.b16 %v193
    %v521 = vunpack.c.l.b16 %v194
    %v522 = vunpack.c.h.b16 %v194
    %v523 = vunpack.c.l.b16 %v195
    %v524 = vunpack.c.h.b16 %v195
    %v525 = vunpack.c.l.b16 %v196
    %v526 = vunpack.c.h.b16 %v196
    %v527 = vunpack.c.l.b16 %v197
    %v528 = vunpack.c.h.b16 %v197
    %v529 = vunpack.c.l.b16 %v198
    %v530 = vunpack.c.h.b16 %v198
    %v531 = vunpack.c.l.b16 %v199
    %v532 = vunpack.c.h.b16 %v199
    %v533 = vunpack.c.l.b16 %v200
    %v534 = vunpack.c.h.b16 %v200
    %v535 = vunpack.c.l.b16 %v201
    %v536 = vunpack.c.h.b16 %v201
    %v537 = vunpack.c.l.b16 %v202
    %v538 = vunpack.c.h.b16 %v202
    %v539 = vunpack.c.l.b16 %v203
    %v540 = vunpack.c.h.b16 %v203
    %v541 = vunpack.c.l.b16 %v204
    %v542 = vunpack.c.h.b16 %v204
    %v543 = vunpack.c.l.b16 %v205
    %v544 = vunpack.c.h.b16 %v205
    %v545 = vunpack.c.l.b16 %v206
    %v546 = vunpack.c.h.b16 %v206
    %v547 = vunpack.c.l.b16 %v207
    %v548 = vunpack.c.h.b16 %v207
    %v549 = vunpack.c.l.b16 %v208
    %v550 = vunpack.c.h.b16 %v208
    %v551 = vunpack.c.l.b16 %v209
    %v552 = vunpack.c.h.b16 %v209
    %v553 = vunpack.c.l.b16 %v210
    %v554 = vunpack.c.h.b16 %v210
    %v555 = vunpack.c.l.b16 %v211
    %v556 = vunpack.c.h.b16 %v211
    %v557 = vunpack.c.l.b16 %v212
    %v558 = vunpack.c.h.b16 %v212
    %v559 = vunpack.c.l.b16 %v213
    %v560 = vunpack.c.h.b16 %v213
    %v561 = vunpack.c.l.b16 %v214
    %v562 = vunpack.c.h.b16 %v214
    %v563 = vunpack.c.l.b16 %v215
    %v564 = vunpack.c.h.b16 %v215
    %v565 = vunpack.c.l.b16 %v216
    %v566 = vunpack.c.h.b16 %v216
    %v567 = vunpack.c.l.b16 %v217
    %v568 = vunpack.c.h.b16 %v217
    %v569 = vunpack.c.l.b16 %v218
    %v570 = vunpack.c.h.b16 %v218
    %v571 = vunpack.c.l.b16 %v219
    %v572 = vunpack.c.h.b16 %v219
    %v573 = vunpack.c.l.b16 %v220
    %v574 = vunpack.c.h.b16 %v220
    %v575 = vunpack.c.l.b16 %v221
    %v576 = vunpack.c.h.b16 %v221
    %v577 = vunpack.c.l.b16 %v222
    %v578 = vunpack.c.h.b16 %v222
    %v579 = vunpack.c.l.b16 %v223
    %v580 = vunpack.c.h.b16 %v223
    %v581 = vunpack.c.l.b16 %v224
    %v582 = vunpack.c.h.b16 %v224
    %v583 = vunpack.c.l.b16 %v225
    %v584 = vunpack.c.h.b16 %v225
    %v585 = vunpack.c.l.b16 %v226
    %v586 = vunpack.c.h.b16 %v226
    %v587 = vunpack.c.l.b16 %v227
    %v588 = vunpack.c.h.b16 %v227
    %v589 = vunpack.c.l.b16 %v228
    %v590 = vunpack.c.h.b16 %v228
    %v591 = vunpack.c.l.b16 %v229
    %v592 = vunpack.c.h.b16 %v229
    %v593 = vunpack.c.l.b16 %v230
    %v594 = vunpack.c.h.b16 %v230
    %v595 = vunpack.c.l.b16 %v231
    %v596 = vunpack.c.h.b16 %v231
    %v597 = vunpack.c.l.b16 %v232
    %v598 = vunpack.c.h.b16 %v232
    %v599 = vunpack.c.l.b16 %v233
    %v600 = vunpack.c.h.b16 %v233
    %v601 = vunpack.c.l.b16 %v234
    %v602 = vunpack.c.h.b16 %v234
    %v603 = vunpack.c.l.b16 %v235
    %v604 = vunpack.c.h.b16 %v235
    %v605 = vunpack.c.l.b16 %v236
    %v606 = vunpack.c.h.b16 %v236
    %v607 = vunpack.c.l.b16 %v237
    %v608 = vunpack.c.h.b16 %v237
    %v609 = vunpack.c.l.b16 %v238
    %v610 = vunpack.c.h.b16 %v238
    %v611 = vunpack.c.l.b16 %v239
    %v612 = vunpack.c.h.b16 %v239
    %v613 = vunpack.c.l.b16 %v240
    %v614 = vunpack.c.h.b16 %v240
    %v615 = vunpack.c.l.b16 %v241
    %v616 = vunpack.c.h.b16 %v241
    %v617 = vunpack.c.l.b16 %v242
    %v618 = vunpack.c.h.b16 %v242
    %v619 = vunpack.c.l.b16 %v243
    %v620 = vunpack.c.h.b16 %v243
    %v621 = vunpack.c.l.b16 %v244
    %v622 = vunpack.c.h.b16 %v244
    %v623 = vunpack.c.l.b16 %v245
    %v624 = vunpack.c.h.b16 %v245
    %v625 = vunpack.c.l.b16 %v246
    %v626 = vunpack.c.h.b16 %v246
    %v627 = vunpack.c.l.b16 %v247
    %v628 = vunpack.c.h.b16 %v247
    %v629 = vunpack.c.l.b16 %v248
    %v630 = vunpack.c.h.b16 %v248
    %v631 = vunpack.c.l.b16 %v249
    %v632 = vunpack.c.h.b16 %v249
    %v633 = vunpack.c.l.b16 %v250
    %v634 = vunpack.c.h.b16 %v250
    %v635 = vunpack.c.l.b16 %v251
    %v636 = vunpack.c.h.b16 %v251
    %v637 = vunpack.c.l.b16 %v252
    %v638 = vunpack.c.h.b16 %v252
    %v639 = vunpack.c.l.b16 %v253
    %v640 = vunpack.c.h.b16 %v253
    %v641 = vunpack.c.l.b16 %v254
    %v642 = vunpack.c.h.b16 %v254
    %v643 = vunpack.c.l.b16 %v255
    %v644 = vunpack.c.h.b16 %v255
    %v645 = vunpack.c.l.b16 %v256
    %v646 = vunpack.c.h.b16 %v256
    %v647 = vunpack.c.l.b16 %v257
    %v648 = vunpack.c.h.b16 %v257
    %v649 = vunpack.c.l.b16 %v258
    %v650 = vunpack.c.h.b16 %v258
    %v651 = vunpack.c.l.b16 %v259
    %v652 = vunpack.c.h.b16 %v259
    %v653 = vunpack.c.l.b16 %v260
    %v654 = vunpack.c.h.b16 %v260
    %v655 = vunpack.c.l.b16 %v261
    %v656 = vunpack.c.h.b16 %v261
    %v657 = vunpack.c.l.b16 %v262
    %v658 = vunpack.c.h.b16 %v262
    %v659 = vunpack.c.l.b16 %v263
    %v660 = vunpack.c.h.b16 %v263
    %v661 = vunpack.c.l.b16 %v264
    %v662 = vunpack.c.h.b16 %v264
    %v663 = vunpack.c.l.b16 %v265
    %v664 = vunpack.c.h.b16 %v265
    %v665 = vunpack.c.l.b16 %v266
    %v666 = vunpack.c.h.b16 %v266
    %v667 = vunpack.c.l.b16 %v267
    %v668 = vunpack.c.h.b16 %v267
    %v669 = vunpack.c.l.b16 %v268
    %v670 = vunpack.c.h.b16 %v268
    %v671 = vunpack.c.l.b16 %v269
    %v672 = vunpack.c.h.b16 %v269
    %v673 = vunpack.c.l.b16 %v270
    %v674 = vunpack.c.h.b16 %v270
    %v675 = vunpack.c.l.b16 %v271
    %v676 = vunpack.c.h.b16 %v271
    %v677 = vunpack.c.l.b16 %v272
    %v678 = vunpack.c.h.b16 %v272
    %v679 = vunpack.c.l.b16 %v273
    %v680 = vunpack.c.h.b16 %v273
    %v681 = vunpack.c.l.b16 %v274
    %v682 = vunpack.c.h.b16 %v274
    %v683 = vunpack.c.l.b16 %v275
    %v684 = vunpack.c.h.b16 %v275
    %v685 = vunpack.c.l.b16 %v276
    %v686 = vunpack.c.h.b16 %v276
    %v687 = vpack.c.b16 %v439, %v431
    %v688 = vpack.c.b16 %v440, %v432
    %v689 = vpack.c.b16 %v441, %v433
    %v690 = vpack.c.b16 %v442, %v434
    %v691 = vpack.c.b16 %v443, %v435
    %v692 = vpack.c.b16 %v444, %v436
    %v693 = vpack.c.b16 %v445, %v437
    %v694 = vpack.c.b16 %v446, %v438
    %v695 = vpack.c.b16 %v455, %v447
    %v696 = vpack.c.b16 %v456, %v448
    %v697 = vpack.c.b16 %v457, %v449
    %v698 = vpack.c.b16 %v458, %v450
    %v699 = vpack.c.b16 %v459, %v451
    %v700 = vpack.c.b16 %v460, %v452
    %v701 = vpack.c.b16 %v461, %v453
    %v702 = vpack.c.b16 %v462, %v454
    %v703 = vpack.c.b16 %v471, %v463
    %v704 = vpack.c.b16 %v472, %v464
    %v705 = vpack.c.b16 %v473, %v465
    %v706 = vpack.c.b16 %v474, %v466
    %v707 = vpack.c.b16 %v475, %v467
    %v708 = vpack.c.b16 %v476, %v468
    %v709 = vpack.c.b16 %v477, %v469
    %v710 = vpack.c.b16 %v478, %v470
    %v711 = vpack.c.b16 %v487, %v479
    %v712 = vpack.c.b16 %v488, %v480
    %v713 = vpack.c.b16 %v489, %v481
    %v714 = vpack.c.b16 %v490, %v482
    %v715 = vpack.c.b16 %v491, %v483
    %v716 = vpack.c.b16 %v492, %v484
    %v717 = vpack.c.b16 %v493, %v485
    %v718 = vpack.c.b16 %v494, %v486
    %v719 = vpack.c.b16 %v503, %v495
    %v720 = vpack.c.b16 %v504, %v496
    %v721 = vpack.c.b16 %v505, %v497
    %v722 = vpack.c.b16 %v506, %v498
    %v723 = vpack.c.b16 %v507, %v499
    %v724 = vpack.c.b16 %v508, %v500
    %v725 = vpack.c.b16 %v509, %v501
    %v726 = vpack.c.b16 %v510, %v502
    %v727 = vpack.c.b16 %v519, %v511
    %v728 = vpack.c.b16 %v520, %v512
    %v729 = vpack.c.b16 %v521, %v513
    %v730 = vpack.c.b16 %v522, %v514
    %v731 = vpack.c.b16 %v523, %v515
    %v732 = vpack.c.b16 %v524, %v516
    %v733 = vpack.c.b16 %v525, %v517
    %v734 = vpack.c.b16 %v526, %v518
    %v735 = vpack.c.b16 %v535, %v527
    %v736 = vpack.c.b16 %v536, %v528
    %v737 = vpack.c.b16 %v537, %v529
    %v738 = vpack.c.b16 %v538, %v530
    %v739 = vpack.c.b16 %v539, %v531
    %v740 = vpack.c.b16 %v540, %v532
    %v741 = vpack.c.b16 %v541, %v533
    %v742 = vpack.c.b16 %v542, %v534
    %v743 = vpack.c.b16 %v551, %v543
    %v744 = vpack.c.b16 %v552, %v544
    %v745 = vpack.c.b16 %v553, %v545
    %v746 = vpack.c.b16 %v554, %v546
    %v747 = vpack.c.b16 %v555, %v547
    %v748 = vpack.c.b16 %v556, %v548
    %v749 = vpack.c.b16 %v557, %v549
    %v750 = vpack.c.b16 %v558, %v550
    %v751 = vpack.c.b16 %v567, %v559
    %v752 = vpack.c.b16 %v568, %v560
    %v753 = vpack.c.b16 %v569, %v561
    %v754 = vpack.c.b16 %v570, %v562
    %v755 = vpack.c.b16 %v571, %v563
    %v756 = vpack.c.b16 %v572, %v564
    %v757 = vpack.c.b16 %v573, %v565
    %v758 = vpack.c.b16 %v574, %v566
    %v759 = vpack.c.b16 %v583, %v575
    %v760 = vpack.c.b16 %v584, %v576
    %v761 = vpack.c.b16 %v585, %v577
    %v762 = vpack.c.b16 %v586, %v578
    %v763 = vpack.c.b16 %v587, %v579
    %v764 = vpack.c.b16 %v588, %v580
    %v765 = vpack.c.b16 %v589, %v581
    %v766 = vpack.c.b16 %v590, %v582
    %v767 = vpack.c.b16 %v599, %v591
    %v768 = vpack.c.b16 %v600, %v592
    %v769 = vpack.c.b16 %v601, %v593
    %v770 = vpack.c.b16 %v602, %v594
    %v771 = vpack.c.b16 %v603, %v595
    %v772 = vpack.c.b16 %v604, %v596
    %v773 = vpack.c.b16 %v605, %v597
    %v774 = vpack.c.b16 %v606, %v598
    %v775 = vpack.c.b16 %v615, %v607
    %v776 = vpack.c.b16 %v616, %v608
    %v777 = vpack.c.b16 %v617, %v609
    %v778 = vpack.c.b16 %v618, %v610
    %v779 = vpack.c.b16 %v619, %v611
    %v780 = vpack.c.b16 %v620, %v612
    %v781 = vpack.c.b16 %v621, %v613
    %v782 = vpack.c.b16 %v622, %v614
    %v783 = vpack.c.b16 %v631, %v623
    %v784 = vpack.c.b16 %v632, %v624
    %v785 = vpack.c.b16 %v633, %v625
    %v786 = vpack.c.b16 %v634, %v626
    %v787 = vpack.c.b16 %v635, %v627
    %v788 = vpack.c.b16 %v636, %v628
    %v789 = vpack.c.b16 %v637, %v629
    %v790 = vpack.c.b16 %v638, %v630
    %v791 = vpack.c.b16 %v647, %v639
    %v792 = vpack.c.b16 %v648, %v640
    %v793 = vpack.c.b16 %v649, %v641
    %v794 = vpack.c.b16 %v650, %v642
    %v795 = vpack.c.b16 %v651, %v643
    %v796 = vpack.c.b16 %v652, %v644
    %v797 = vpack.c.b16 %v653, %v645
    %v798 = vpack.c.b16 %v654, %v646
    %v799 = vpack.c.b16 %v663, %v655
    %v800 = vpack.c.b16 %v664, %v656
    %v801 = vpack.c.b16 %v665, %v657
    %v802 = vpack.c.b16 %v666, %v658
    %v803 = vpack.c.b16 %v667, %v659
    %v804 = vpack.c.b16 %v668, %v660
    %v805 = vpack.c.b16 %v669, %v661
    %v806 = vpack.c.b16 %v670, %v662
    %v807 = vpack.c.b16 %v679, %v671
    %v808 = vpack.c.b16 %v680, %v672
    %v809 = vpack.c.b16 %v681, %v673
    %v810 = vpack.c.b16 %v682, %v674
    %v811 = vpack.c.b16 %v683, %v675
    %v812 = vpack.c.b16 %v684, %v676
    %v813 = vpack.c.b16 %v685, %v677
    %v814 = vpack.c.b16 %v686, %v678
    %943 = vmatpush.bf16.msra.mxu0 %v743
    %944 = vmatpush.bf16.msra.mxu0 %v735
    %945 = vmatpush.bf16.msra.mxu0 %v727
    %946 = vmatpush.bf16.msra.mxu0 %v719
    %947 = vmatpush.bf16.msra.mxu0 %v711
    %948 = vmatpush.bf16.msra.mxu0 %v703
    %949 = vmatpush.bf16.msra.mxu0 %v695
    %950 = vmatpush.bf16.msra.mxu0 %v687
    %951 = vmatmul.bf16.gmra.mxu0 %v295
    %v952 = vpop.f32.mrf.mxu0
    %v953 = vadd.f32 0.0, %v952
    %v954 = vpop.f32.mrf.mxu0
    %v955 = vadd.f32 0.0, %v954
    %956 = vmatmul.bf16.gmra.mxu0 %v297
    %v957 = vpop.f32.mrf.mxu0
    %v958 = vadd.f32 0.0, %v957
    %v959 = vpop.f32.mrf.mxu0
    %v960 = vadd.f32 0.0, %v959
    %961 = vdwg.mxu0
    %962 = vmatpush.bf16.msra.mxu0 %v807
    %963 = vmatpush.bf16.msra.mxu0 %v799
    %964 = vmatpush.bf16.msra.mxu0 %v791
    %965 = vmatpush.bf16.msra.mxu0 %v783
    %966 = vmatpush.bf16.msra.mxu0 %v775
    %967 = vmatpush.bf16.msra.mxu0 %v767
    %968 = vmatpush.bf16.msra.mxu0 %v759
    %969 = vmatpush.bf16.msra.mxu0 %v751
    %970 = vmatmul.bf16.gmra.mxu0 %v296
    %v971 = vpop.f32.mrf.mxu0
    %v972 = vadd.f32 %v953, %v971
    %v973 = vpop.f32.mrf.mxu0
    %v974 = vadd.f32 %v955, %v973
    %975 = vmatmul.bf16.gmra.mxu0 %v298
    %v976 = vpop.f32.mrf.mxu0
    %v977 = vadd.f32 %v958, %v976
    %v978 = vpop.f32.mrf.mxu0
    %v979 = vadd.f32 %v960, %v978
    %980 = vdwg.mxu0
    %981 = vmatpush.bf16.msra.mxu0 %v744
    %982 = vmatpush.bf16.msra.mxu0 %v736
    %983 = vmatpush.bf16.msra.mxu0 %v728
    %984 = vmatpush.bf16.msra.mxu0 %v720
    %985 = vmatpush.bf16.msra.mxu0 %v712
    %986 = vmatpush.bf16.msra.mxu0 %v704
    %987 = vmatpush.bf16.msra.mxu0 %v696
    %988 = vmatpush.bf16.msra.mxu0 %v688
    %989 = vmatmul.bf16.gmra.mxu0 %v295
    %v990 = vpop.f32.mrf.mxu0
    %v991 = vadd.f32 0.0, %v990
    %v992 = vpop.f32.mrf.mxu0
    %v993 = vadd.f32 0.0, %v992
    %994 = vmatmul.bf16.gmra.mxu0 %v297
    %v995 = vpop.f32.mrf.mxu0
    %v996 = vadd.f32 0.0, %v995
    %v997 = vpop.f32.mrf.mxu0
    %v998 = vadd.f32 0.0, %v997
    %999 = vdwg.mxu0
    %1000 = vmatpush.bf16.msra.mxu0 %v808
    %1001 = vmatpush.bf16.msra.mxu0 %v800
    %1002 = vmatpush.bf16.msra.mxu0 %v792
    %1003 = vmatpush.bf16.msra.mxu0 %v784
    %1004 = vmatpush.bf16.msra.mxu0 %v776
    %1005 = vmatpush.bf16.msra.mxu0 %v768
    %1006 = vmatpush.bf16.msra.mxu0 %v760
    %1007 = vmatpush.bf16.msra.mxu0 %v752
    %1008 = vmatmul.bf16.gmra.mxu0 %v296
    %v1009 = vpop.f32.mrf.mxu0
    %v1010 = vadd.f32 %v991, %v1009
    %v1011 = vpop.f32.mrf.mxu0
    %v1012 = vadd.f32 %v993, %v1011
    %1013 = vmatmul.bf16.gmra.mxu0 %v298
    %v1014 = vpop.f32.mrf.mxu0
    %v1015 = vadd.f32 %v996, %v1014
    %v1016 = vpop.f32.mrf.mxu0
    %v1017 = vadd.f32 %v998, %v1016
    %1018 = vdwg.mxu0
    %1019 = vmatpush.bf16.msra.mxu0 %v745
    %1020 = vmatpush.bf16.msra.mxu0 %v737
    %1021 = vmatpush.bf16.msra.mxu0 %v729
    %1022 = vmatpush.bf16.msra.mxu0 %v721
    %1023 = vmatpush.bf16.msra.mxu0 %v713
    %1024 = vmatpush.bf16.msra.mxu0 %v705
    %1025 = vmatpush.bf16.msra.mxu0 %v697
    %1026 = vmatpush.bf16.msra.mxu0 %v689
    %1027 = vmatmul.bf16.gmra.mxu0 %v295
    %v1028 = vpop.f32.mrf.mxu0
    %v1029 = vadd.f32 0.0, %v1028
    %v1030 = vpop.f32.mrf.mxu0
    %v1031 = vadd.f32 0.0, %v1030
    %1032 = vmatmul.bf16.gmra.mxu0 %v297
    %v1033 = vpop.f32.mrf.mxu0
    %v1034 = vadd.f32 0.0, %v1033
    %v1035 = vpop.f32.mrf.mxu0
    %v1036 = vadd.f32 0.0, %v1035
    %1037 = vdwg.mxu0
    %1038 = vmatpush.bf16.msra.mxu0 %v809
    %1039 = vmatpush.bf16.msra.mxu0 %v801
    %1040 = vmatpush.bf16.msra.mxu0 %v793
    %1041 = vmatpush.bf16.msra.mxu0 %v785
    %1042 = vmatpush.bf16.msra.mxu0 %v777
    %1043 = vmatpush.bf16.msra.mxu0 %v769
    %1044 = vmatpush.bf16.msra.mxu0 %v761
    %1045 = vmatpush.bf16.msra.mxu0 %v753
    %1046 = vmatmul.bf16.gmra.mxu0 %v296
    %v1047 = vpop.f32.mrf.mxu0
    %v1048 = vadd.f32 %v1029, %v1047
    %v1049 = vpop.f32.mrf.mxu0
    %v1050 = vadd.f32 %v1031, %v1049
    %1051 = vmatmul.bf16.gmra.mxu0 %v298
    %v1052 = vpop.f32.mrf.mxu0
    %v1053 = vadd.f32 %v1034, %v1052
    %v1054 = vpop.f32.mrf.mxu0
    %v1055 = vadd.f32 %v1036, %v1054
    %1056 = vdwg.mxu0
    %1057 = vmatpush.bf16.msra.mxu0 %v746
    %1058 = vmatpush.bf16.msra.mxu0 %v738
    %1059 = vmatpush.bf16.msra.mxu0 %v730
    %1060 = vmatpush.bf16.msra.mxu0 %v722
    %1061 = vmatpush.bf16.msra.mxu0 %v714
    %1062 = vmatpush.bf16.msra.mxu0 %v706
    %1063 = vmatpush.bf16.msra.mxu0 %v698
    %1064 = vmatpush.bf16.msra.mxu0 %v690
    %1065 = vmatmul.bf16.gmra.mxu0 %v295
    %v1066 = vpop.f32.mrf.mxu0
    %v1067 = vadd.f32 0.0, %v1066
    %v1068 = vpop.f32.mrf.mxu0
    %v1069 = vadd.f32 0.0, %v1068
    %1070 = vmatmul.bf16.gmra.mxu0 %v297
    %v1071 = vpop.f32.mrf.mxu0
    %v1072 = vadd.f32 0.0, %v1071
    %v1073 = vpop.f32.mrf.mxu0
    %v1074 = vadd.f32 0.0, %v1073
    %1075 = vdwg.mxu0
    %1076 = vmatpush.bf16.msra.mxu0 %v810
    %1077 = vmatpush.bf16.msra.mxu0 %v802
    %1078 = vmatpush.bf16.msra.mxu0 %v794
    %1079 = vmatpush.bf16.msra.mxu0 %v786
    %1080 = vmatpush.bf16.msra.mxu0 %v778
    %1081 = vmatpush.bf16.msra.mxu0 %v770
    %1082 = vmatpush.bf16.msra.mxu0 %v762
    %1083 = vmatpush.bf16.msra.mxu0 %v754
    %1084 = vmatmul.bf16.gmra.mxu0 %v296
    %v1085 = vpop.f32.mrf.mxu0
    %v1086 = vadd.f32 %v1067, %v1085
    %v1087 = vpop.f32.mrf.mxu0
    %v1088 = vadd.f32 %v1069, %v1087
    %1089 = vmatmul.bf16.gmra.mxu0 %v298
    %v1090 = vpop.f32.mrf.mxu0
    %v1091 = vadd.f32 %v1072, %v1090
    %v1092 = vpop.f32.mrf.mxu0
    %v1093 = vadd.f32 %v1074, %v1092
    %1094 = vdwg.mxu0
    %1095 = vmatpush.bf16.msra.mxu0 %v747
    %1096 = vmatpush.bf16.msra.mxu0 %v739
    %1097 = vmatpush.bf16.msra.mxu0 %v731
    %1098 = vmatpush.bf16.msra.mxu0 %v723
    %1099 = vmatpush.bf16.msra.mxu0 %v715
    %1100 = vmatpush.bf16.msra.mxu0 %v707
    %1101 = vmatpush.bf16.msra.mxu0 %v699
    %1102 = vmatpush.bf16.msra.mxu0 %v691
    %1103 = vmatmul.bf16.gmra.mxu0 %v295
    %v1104 = vpop.f32.mrf.mxu0
    %v1105 = vadd.f32 0.0, %v1104
    %v1106 = vpop.f32.mrf.mxu0
    %v1107 = vadd.f32 0.0, %v1106
    %1108 = vmatmul.bf16.gmra.mxu0 %v297
    %v1109 = vpop.f32.mrf.mxu0
    %v1110 = vadd.f32 0.0, %v1109
    %v1111 = vpop.f32.mrf.mxu0
    %v1112 = vadd.f32 0.0, %v1111
    %1113 = vdwg.mxu0
    %1114 = vmatpush.bf16.msra.mxu0 %v811
    %1115 = vmatpush.bf16.msra.mxu0 %v803
    %1116 = vmatpush.bf16.msra.mxu0 %v795
    %1117 = vmatpush.bf16.msra.mxu0 %v787
    %1118 = vmatpush.bf16.msra.mxu0 %v779
    %1119 = vmatpush.bf16.msra.mxu0 %v771
    %1120 = vmatpush.bf16.msra.mxu0 %v763
    %1121 = vmatpush.bf16.msra.mxu0 %v755
    %1122 = vmatmul.bf16.gmra.mxu0 %v296
    %v1123 = vpop.f32.mrf.mxu0
    %v1124 = vadd.f32 %v1105, %v1123
    %v1125 = vpop.f32.mrf.mxu0
    %v1126 = vadd.f32 %v1107, %v1125
    %1127 = vmatmul.bf16.gmra.mxu0 %v298
    %v1128 = vpop.f32.mrf.mxu0
    %v1129 = vadd.f32 %v1110, %v1128
    %v1130 = vpop.f32.mrf.mxu0
    %v1131 = vadd.f32 %v1112, %v1130
    %1132 = vdwg.mxu0
    %1133 = vmatpush.bf16.msra.mxu0 %v748
    %1134 = vmatpush.bf16.msra.mxu0 %v740
    %1135 = vmatpush.bf16.msra.mxu0 %v732
    %1136 = vmatpush.bf16.msra.mxu0 %v724
    %1137 = vmatpush.bf16.msra.mxu0 %v716
    %1138 = vmatpush.bf16.msra.mxu0 %v708
    %1139 = vmatpush.bf16.msra.mxu0 %v700
    %1140 = vmatpush.bf16.msra.mxu0 %v692
    %1141 = vmatmul.bf16.gmra.mxu0 %v295
    %v1142 = vpop.f32.mrf.mxu0
    %v1143 = vadd.f32 0.0, %v1142
    %v1144 = vpop.f32.mrf.mxu0
    %v1145 = vadd.f32 0.0, %v1144
    %1146 = vmatmul.bf16.gmra.mxu0 %v297
    %v1147 = vpop.f32.mrf.mxu0
    %v1148 = vadd.f32 0.0, %v1147
    %v1149 = vpop.f32.mrf.mxu0
    %v1150 = vadd.f32 0.0, %v1149
    %1151 = vdwg.mxu0
    %1152 = vmatpush.bf16.msra.mxu0 %v812
    %1153 = vmatpush.bf16.msra.mxu0 %v804
    %1154 = vmatpush.bf16.msra.mxu0 %v796
    %1155 = vmatpush.bf16.msra.mxu0 %v788
    %1156 = vmatpush.bf16.msra.mxu0 %v780
    %1157 = vmatpush.bf16.msra.mxu0 %v772
    %1158 = vmatpush.bf16.msra.mxu0 %v764
    %1159 = vmatpush.bf16.msra.mxu0 %v756
    %1160 = vmatmul.bf16.gmra.mxu0 %v296
    %v1161 = vpop.f32.mrf.mxu0
    %v1162 = vadd.f32 %v1143, %v1161
    %v1163 = vpop.f32.mrf.mxu0
    %v1164 = vadd.f32 %v1145, %v1163
    %1165 = vmatmul.bf16.gmra.mxu0 %v298
    %v1166 = vpop.f32.mrf.mxu0
    %v1167 = vadd.f32 %v1148, %v1166
    %v1168 = vpop.f32.mrf.mxu0
    %v1169 = vadd.f32 %v1150, %v1168
    %1170 = vdwg.mxu0
    %1171 = vmatpush.bf16.msra.mxu0 %v749
    %1172 = vmatpush.bf16.msra.mxu0 %v741
    %1173 = vmatpush.bf16.msra.mxu0 %v733
    %1174 = vmatpush.bf16.msra.mxu0 %v725
    %1175 = vmatpush.bf16.msra.mxu0 %v717
    %1176 = vmatpush.bf16.msra.mxu0 %v709
    %1177 = vmatpush.bf16.msra.mxu0 %v701
    %1178 = vmatpush.bf16.msra.mxu0 %v693
    %1179 = vmatmul.bf16.gmra.mxu0 %v295
    %v1180 = vpop.f32.mrf.mxu0
    %v1181 = vadd.f32 0.0, %v1180
    %v1182 = vpop.f32.mrf.mxu0
    %v1183 = vadd.f32 0.0, %v1182
    %1184 = vmatmul.bf16.gmra.mxu0 %v297
    %v1185 = vpop.f32.mrf.mxu0
    %v1186 = vadd.f32 0.0, %v1185
    %v1187 = vpop.f32.mrf.mxu0
    %v1188 = vadd.f32 0.0, %v1187
    %1189 = vdwg.mxu0
    %1190 = vmatpush.bf16.msra.mxu0 %v813
    %1191 = vmatpush.bf16.msra.mxu0 %v805
    %1192 = vmatpush.bf16.msra.mxu0 %v797
    %1193 = vmatpush.bf16.msra.mxu0 %v789
    %1194 = vmatpush.bf16.msra.mxu0 %v781
    %1195 = vmatpush.bf16.msra.mxu0 %v773
    %1196 = vmatpush.bf16.msra.mxu0 %v765
    %1197 = vmatpush.bf16.msra.mxu0 %v757
    %1198 = vmatmul.bf16.gmra.mxu0 %v296
    %v1199 = vpop.f32.mrf.mxu0
    %v1200 = vadd.f32 %v1181, %v1199
    %v1201 = vpop.f32.mrf.mxu0
    %v1202 = vadd.f32 %v1183, %v1201
    %1203 = vmatmul.bf16.gmra.mxu0 %v298
    %v1204 = vpop.f32.mrf.mxu0
    %v1205 = vadd.f32 %v1186, %v1204
    %v1206 = vpop.f32.mrf.mxu0
    %v1207 = vadd.f32 %v1188, %v1206
    %1208 = vdwg.mxu0
    %1209 = vmatpush.bf16.msra.mxu0 %v750
    %1210 = vmatpush.bf16.msra.mxu0 %v742
    %1211 = vmatpush.bf16.msra.mxu0 %v734
    %1212 = vmatpush.bf16.msra.mxu0 %v726
    %1213 = vmatpush.bf16.msra.mxu0 %v718
    %1214 = vmatpush.bf16.msra.mxu0 %v710
    %1215 = vmatpush.bf16.msra.mxu0 %v702
    %1216 = vmatpush.bf16.msra.mxu0 %v694
    %1217 = vmatmul.bf16.gmra.mxu0 %v295
    %v1218 = vpop.f32.mrf.mxu0
    %v1219 = vadd.f32 0.0, %v1218
    %v1220 = vpop.f32.mrf.mxu0
    %v1221 = vadd.f32 0.0, %v1220
    %1222 = vmatmul.bf16.gmra.mxu0 %v297
    %v1223 = vpop.f32.mrf.mxu0
    %v1224 = vadd.f32 0.0, %v1223
    %v1225 = vpop.f32.mrf.mxu0
    %v1226 = vadd.f32 0.0, %v1225
    %1227 = vdwg.mxu0
    %1228 = vmatpush.bf16.msra.mxu0 %v814
    %1229 = vmatpush.bf16.msra.mxu0 %v806
    %1230 = vmatpush.bf16.msra.mxu0 %v798
    %1231 = vmatpush.bf16.msra.mxu0 %v790
    %1232 = vmatpush.bf16.msra.mxu0 %v782
    %1233 = vmatpush.bf16.msra.mxu0 %v774
    %1234 = vmatpush.bf16.msra.mxu0 %v766
    %1235 = vmatpush.bf16.msra.mxu0 %v758
    %1236 = vmatmul.bf16.gmra.mxu0 %v296
    %v1237 = vpop.f32.mrf.mxu0
    %v1238 = vadd.f32 %v1219, %v1237
    %v1239 = vpop.f32.mrf.mxu0
    %v1240 = vadd.f32 %v1221, %v1239
    %1241 = vmatmul.bf16.gmra.mxu0 %v298
    %v1242 = vpop.f32.mrf.mxu0
    %v1243 = vadd.f32 %v1224, %v1242
    %v1244 = vpop.f32.mrf.mxu0
    %v1245 = vadd.f32 %v1226, %v1244
    %1246 = vdwg.mxu0
    %v1247 = vmax.f32 %v972, %v1048
    %v1248 = vmax.f32 %v1010, %v1086
    %v1249 = vmax.f32 %v974, %v1050
    %v1250 = vmax.f32 %v1012, %v1088
    %v1251 = vmax.f32 %v977, %v1053
    %v1252 = vmax.f32 %v1015, %v1091
    %v1253 = vmax.f32 %v979, %v1055
    %v1254 = vmax.f32 %v1017, %v1093
    %v1255 = vmax.f32 %v1124, %v1200
    %v1256 = vmax.f32 %v1162, %v1238
    %v1257 = vmax.f32 %v1126, %v1202
    %v1258 = vmax.f32 %v1164, %v1240
    %v1259 = vmax.f32 %v1129, %v1205
    %v1260 = vmax.f32 %v1167, %v1243
    %v1261 = vmax.f32 %v1131, %v1207
    %v1262 = vmax.f32 %v1169, %v1245
    %v1263 = vmax.f32 %v1247, %v1255
    %v1264 = vmax.f32 %v1248, %v1256
    %v1265 = vmax.f32 %v1249, %v1257
    %v1266 = vmax.f32 %v1250, %v1258
    %v1267 = vmax.f32 %v1251, %v1259
    %v1268 = vmax.f32 %v1252, %v1260
    %v1269 = vmax.f32 %v1253, %v1261
    %v1270 = vmax.f32 %v1254, %v1262
    %v1272 = vperm.slane %v277, 0
    %v1273 = vperm.slane %v277, 1
    %v1276 = vadd.f32 %v1263, %v1272
    %v1277 = vadd.f32 %v1264, %v1273
    %v1278 = vadd.f32 %v1265, %v1272
    %v1279 = vadd.f32 %v1266, %v1273
    %v1280 = vadd.f32 %v1267, %v1272
    %v1281 = vadd.f32 %v1268, %v1273
    %v1282 = vadd.f32 %v1269, %v1272
    %v1283 = vadd.f32 %v1270, %v1273
    %v1284 = vmax.f32 %v1276, 0.0
    %v1285 = vmax.f32 %v1277, 0.0
    %v1286 = vmax.f32 %v1278, 0.0
    %v1287 = vmax.f32 %v1279, 0.0
    %v1288 = vmax.f32 %v1280, 0.0
    %v1289 = vmax.f32 %v1281, 0.0
    %v1290 = vmax.f32 %v1282, 0.0
    %v1291 = vmax.f32 %v1283, 0.0
    %v1292 = vpack.c.bf16 %v1286, %v1284
    %v1293 = vpack.c.bf16 %v1287, %v1285
    %v1294 = vpack.c.bf16 %v1290, %v1288
    %v1295 = vpack.c.bf16 %v1291, %v1289
    %v1296 = vld [vmem:[#allocation6] sm:$0xff]
    %v1297 = vld [vmem:[#allocation6 + $0x8] sm:$0xff]
    %v1298 = vld [vmem:[#allocation6 + $0x10] sm:$0xff]
    %v1299 = vld [vmem:[#allocation6 + $0x18] sm:$0xff]
    %v1300 = vld [vmem:[#allocation6 + $0x20] sm:$0xff]
    %v1301 = vld [vmem:[#allocation6 + $0x28] sm:$0xff]
    %v1302 = vld [vmem:[#allocation6 + $0x30] sm:$0xff]
    %v1303 = vld [vmem:[#allocation6 + $0x38] sm:$0xff]
    %v1304 = vld [vmem:[#allocation6 + $0x40] sm:$0xff]
    %v1305 = vld [vmem:[#allocation6 + $0x48] sm:$0xff]
    %v1306 = vld [vmem:[#allocation6 + $0x50] sm:$0xff]
    %v1307 = vld [vmem:[#allocation6 + $0x58] sm:$0xff]
    %v1308 = vld [vmem:[#allocation6 + $0x60] sm:$0xff]
    %v1309 = vld [vmem:[#allocation6 + $0x68] sm:$0xff]
    %v1310 = vld [vmem:[#allocation6 + $0x70] sm:$0xff]
    %v1311 = vld [vmem:[#allocation6 + $0x78] sm:$0xff]
    %v1312 = vld [vmem:[#allocation6 + $0x80] sm:$0xff]
    %v1313 = vld [vmem:[#allocation6 + $0x88] sm:$0xff]
    %v1314 = vld [vmem:[#allocation6 + $0x90] sm:$0xff]
    %v1315 = vld [vmem:[#allocation6 + $0x98] sm:$0xff]
    %v1316 = vld [vmem:[#allocation6 + $0xa0] sm:$0xff]
    %v1317 = vld [vmem:[#allocation6 + $0xa8] sm:$0xff]
    %v1318 = vld [vmem:[#allocation6 + $0xb0] sm:$0xff]
    %v1319 = vld [vmem:[#allocation6 + $0xb8] sm:$0xff]
    %v1320 = vld [vmem:[#allocation6 + $0xc0] sm:$0xff]
    %v1321 = vld [vmem:[#allocation6 + $0xc8] sm:$0xff]
    %v1322 = vld [vmem:[#allocation6 + $0xd0] sm:$0xff]
    %v1323 = vld [vmem:[#allocation6 + $0xd8] sm:$0xff]
    %v1324 = vld [vmem:[#allocation6 + $0xe0] sm:$0xff]
    %v1325 = vld [vmem:[#allocation6 + $0xe8] sm:$0xff]
    %v1326 = vld [vmem:[#allocation6 + $0xf0] sm:$0xff]
    %v1327 = vld [vmem:[#allocation6 + $0xf8] sm:$0xff]
    %v1328 = vld [vmem:[#allocation6 + $0x100] sm:$0xff]
    %v1329 = vld [vmem:[#allocation6 + $0x108] sm:$0xff]
    %v1330 = vld [vmem:[#allocation6 + $0x110] sm:$0xff]
    %v1331 = vld [vmem:[#allocation6 + $0x118] sm:$0xff]
    %v1332 = vld [vmem:[#allocation6 + $0x120] sm:$0xff]
    %v1333 = vld [vmem:[#allocation6 + $0x128] sm:$0xff]
    %v1334 = vld [vmem:[#allocation6 + $0x130] sm:$0xff]
    %v1335 = vld [vmem:[#allocation6 + $0x138] sm:$0xff]
    %v1336 = vld [vmem:[#allocation6 + $0x140] sm:$0xff]
    %v1337 = vld [vmem:[#allocation6 + $0x148] sm:$0xff]
    %v1338 = vld [vmem:[#allocation6 + $0x150] sm:$0xff]
    %v1339 = vld [vmem:[#allocation6 + $0x158] sm:$0xff]
    %v1340 = vld [vmem:[#allocation6 + $0x160] sm:$0xff]
    %v1341 = vld [vmem:[#allocation6 + $0x168] sm:$0xff]
    %v1342 = vld [vmem:[#allocation6 + $0x170] sm:$0xff]
    %v1343 = vld [vmem:[#allocation6 + $0x178] sm:$0xff]
    %v1344 = vld [vmem:[#allocation6 + $0x180] sm:$0xff]
    %v1345 = vld [vmem:[#allocation6 + $0x188] sm:$0xff]
    %v1346 = vld [vmem:[#allocation6 + $0x190] sm:$0xff]
    %v1347 = vld [vmem:[#allocation6 + $0x198] sm:$0xff]
    %v1348 = vld [vmem:[#allocation6 + $0x1a0] sm:$0xff]
    %v1349 = vld [vmem:[#allocation6 + $0x1a8] sm:$0xff]
    %v1350 = vld [vmem:[#allocation6 + $0x1b0] sm:$0xff]
    %v1351 = vld [vmem:[#allocation6 + $0x1b8] sm:$0xff]
    %v1352 = vld [vmem:[#allocation6 + $0x1c0] sm:$0xff]
    %v1353 = vld [vmem:[#allocation6 + $0x1c8] sm:$0xff]
    %v1354 = vld [vmem:[#allocation6 + $0x1d0] sm:$0xff]
    %v1355 = vld [vmem:[#allocation6 + $0x1d8] sm:$0xff]
    %v1356 = vld [vmem:[#allocation6 + $0x1e0] sm:$0xff]
    %v1357 = vld [vmem:[#allocation6 + $0x1e8] sm:$0xff]
    %v1358 = vld [vmem:[#allocation6 + $0x1f0] sm:$0xff]
    %v1359 = vld [vmem:[#allocation6 + $0x1f8] sm:$0xff]
    %v1360 = vld [vmem:[%s0 + $0x8] sm:$0xff]
    %v1361 = vld [vmem:[%s0 + $0x38] sm:$0xff]
    %v1362 = vld [vmem:[%s0 + $0x68] sm:$0xff]
    %v1363 = vld [vmem:[%s0 + $0x98] sm:$0xff]
    %v1368 = vunpack.c.l.b16 %v1360
    %v1369 = vunpack.c.h.b16 %v1360
    %v1370 = vunpack.c.l.b16 %v1361
    %v1371 = vunpack.c.h.b16 %v1361
    %v1372 = vunpack.c.l.b16 %v1362
    %v1373 = vunpack.c.h.b16 %v1362
    %v1374 = vunpack.c.l.b16 %v1363
    %v1375 = vunpack.c.h.b16 %v1363
    %v1376 = vpack.c.b16 %v1370, %v1368
    %v1377 = vpack.c.b16 %v1371, %v1369
    %v1378 = vpack.c.b16 %v1374, %v1372
    %v1379 = vpack.c.b16 %v1375, %v1373
    %1384 = vmatpush.bf16.msra.mxu0 %v743
    %1385 = vmatpush.bf16.msra.mxu0 %v735
    %1386 = vmatpush.bf16.msra.mxu0 %v727
    %1387 = vmatpush.bf16.msra.mxu0 %v719
    %1388 = vmatpush.bf16.msra.mxu0 %v711
    %1389 = vmatpush.bf16.msra.mxu0 %v703
    %1390 = vmatpush.bf16.msra.mxu0 %v695
    %1391 = vmatpush.bf16.msra.mxu0 %v687
    %1392 = vmatmul.bf16.gmra.mxu0 %v1376
    %v1393 = vpop.f32.mrf.mxu0
    %v1394 = vadd.f32 0.0, %v1393
    %v1395 = vpop.f32.mrf.mxu0
    %v1396 = vadd.f32 0.0, %v1395
    %1397 = vmatmul.bf16.gmra.mxu0 %v1378
    %v1398 = vpop.f32.mrf.mxu0
    %v1399 = vadd.f32 0.0, %v1398
    %v1400 = vpop.f32.mrf.mxu0
    %v1401 = vadd.f32 0.0, %v1400
    %1402 = vdwg.mxu0
    %1403 = vmatpush.bf16.msra.mxu0 %v807
    %1404 = vmatpush.bf16.msra.mxu0 %v799
    %1405 = vmatpush.bf16.msra.mxu0 %v791
    %1406 = vmatpush.bf16.msra.mxu0 %v783
    %1407 = vmatpush.bf16.msra.mxu0 %v775
    %1408 = vmatpush.bf16.msra.mxu0 %v767
    %1409 = vmatpush.bf16.msra.mxu0 %v759
    %1410 = vmatpush.bf16.msra.mxu0 %v751
    %1411 = vmatmul.bf16.gmra.mxu0 %v1377
    %v1412 = vpop.f32.mrf.mxu0
    %v1413 = vadd.f32 %v1394, %v1412
    %v1414 = vpop.f32.mrf.mxu0
    %v1415 = vadd.f32 %v1396, %v1414
    %1416 = vmatmul.bf16.gmra.mxu0 %v1379
    %v1417 = vpop.f32.mrf.mxu0
    %v1418 = vadd.f32 %v1399, %v1417
    %v1419 = vpop.f32.mrf.mxu0
    %v1420 = vadd.f32 %v1401, %v1419
    %1421 = vdwg.mxu0
    %1422 = vmatpush.bf16.msra.mxu0 %v744
    %1423 = vmatpush.bf16.msra.mxu0 %v736
    %1424 = vmatpush.bf16.msra.mxu0 %v728
    %1425 = vmatpush.bf16.msra.mxu0 %v720
    %1426 = vmatpush.bf16.msra.mxu0 %v712
    %1427 = vmatpush.bf16.msra.mxu0 %v704
    %1428 = vmatpush.bf16.msra.mxu0 %v696
    %1429 = vmatpush.bf16.msra.mxu0 %v688
    %1430 = vmatmul.bf16.gmra.mxu0 %v1376
    %v1431 = vpop.f32.mrf.mxu0
    %v1432 = vadd.f32 0.0, %v1431
    %v1433 = vpop.f32.mrf.mxu0
    %v1434 = vadd.f32 0.0, %v1433
    %1435 = vmatmul.bf16.gmra.mxu0 %v1378
    %v1436 = vpop.f32.mrf.mxu0
    %v1437 = vadd.f32 0.0, %v1436
    %v1438 = vpop.f32.mrf.mxu0
    %v1439 = vadd.f32 0.0, %v1438
    %1440 = vdwg.mxu0
    %1441 = vmatpush.bf16.msra.mxu0 %v808
    %1442 = vmatpush.bf16.msra.mxu0 %v800
    %1443 = vmatpush.bf16.msra.mxu0 %v792
    %1444 = vmatpush.bf16.msra.mxu0 %v784
    %1445 = vmatpush.bf16.msra.mxu0 %v776
    %1446 = vmatpush.bf16.msra.mxu0 %v768
    %1447 = vmatpush.bf16.msra.mxu0 %v760
    %1448 = vmatpush.bf16.msra.mxu0 %v752
    %1449 = vmatmul.bf16.gmra.mxu0 %v1377
    %v1450 = vpop.f32.mrf.mxu0
    %v1451 = vadd.f32 %v1432, %v1450
    %v1452 = vpop.f32.mrf.mxu0
    %v1453 = vadd.f32 %v1434, %v1452
    %1454 = vmatmul.bf16.gmra.mxu0 %v1379
    %v1455 = vpop.f32.mrf.mxu0
    %v1456 = vadd.f32 %v1437, %v1455
    %v1457 = vpop.f32.mrf.mxu0
    %v1458 = vadd.f32 %v1439, %v1457
    %1459 = vdwg.mxu0
    %1460 = vmatpush.bf16.msra.mxu0 %v745
    %1461 = vmatpush.bf16.msra.mxu0 %v737
    %1462 = vmatpush.bf16.msra.mxu0 %v729
    %1463 = vmatpush.bf16.msra.mxu0 %v721
    %1464 = vmatpush.bf16.msra.mxu0 %v713
    %1465 = vmatpush.bf16.msra.mxu0 %v705
    %1466 = vmatpush.bf16.msra.mxu0 %v697
    %1467 = vmatpush.bf16.msra.mxu0 %v689
    %1468 = vmatmul.bf16.gmra.mxu0 %v1376
    %v1469 = vpop.f32.mrf.mxu0
    %v1470 = vadd.f32 0.0, %v1469
    %v1471 = vpop.f32.mrf.mxu0
    %v1472 = vadd.f32 0.0, %v1471
    %1473 = vmatmul.bf16.gmra.mxu0 %v1378
    %v1474 = vpop.f32.mrf.mxu0
    %v1475 = vadd.f32 0.0, %v1474
    %v1476 = vpop.f32.mrf.mxu0
    %v1477 = vadd.f32 0.0, %v1476
    %1478 = vdwg.mxu0
    %1479 = vmatpush.bf16.msra.mxu0 %v809
    %1480 = vmatpush.bf16.msra.mxu0 %v801
    %1481 = vmatpush.bf16.msra.mxu0 %v793
    %1482 = vmatpush.bf16.msra.mxu0 %v785
    %1483 = vmatpush.bf16.msra.mxu0 %v777
    %1484 = vmatpush.bf16.msra.mxu0 %v769
    %1485 = vmatpush.bf16.msra.mxu0 %v761
    %1486 = vmatpush.bf16.msra.mxu0 %v753
    %1487 = vmatmul.bf16.gmra.mxu0 %v1377
    %v1488 = vpop.f32.mrf.mxu0
    %v1489 = vadd.f32 %v1470, %v1488
    %v1490 = vpop.f32.mrf.mxu0
    %v1491 = vadd.f32 %v1472, %v1490
    %1492 = vmatmul.bf16.gmra.mxu0 %v1379
    %v1493 = vpop.f32.mrf.mxu0
    %v1494 = vadd.f32 %v1475, %v1493
    %v1495 = vpop.f32.mrf.mxu0
    %v1496 = vadd.f32 %v1477, %v1495
    %1497 = vdwg.mxu0
    %1498 = vmatpush.bf16.msra.mxu0 %v746
    %1499 = vmatpush.bf16.msra.mxu0 %v738
    %1500 = vmatpush.bf16.msra.mxu0 %v730
    %1501 = vmatpush.bf16.msra.mxu0 %v722
    %1502 = vmatpush.bf16.msra.mxu0 %v714
    %1503 = vmatpush.bf16.msra.mxu0 %v706
    %1504 = vmatpush.bf16.msra.mxu0 %v698
    %1505 = vmatpush.bf16.msra.mxu0 %v690
    %1506 = vmatmul.bf16.gmra.mxu0 %v1376
    %v1507 = vpop.f32.mrf.mxu0
    %v1508 = vadd.f32 0.0, %v1507
    %v1509 = vpop.f32.mrf.mxu0
    %v1510 = vadd.f32 0.0, %v1509
    %1511 = vmatmul.bf16.gmra.mxu0 %v1378
    %v1512 = vpop.f32.mrf.mxu0
    %v1513 = vadd.f32 0.0, %v1512
    %v1514 = vpop.f32.mrf.mxu0
    %v1515 = vadd.f32 0.0, %v1514
    %1516 = vdwg.mxu0
    %1517 = vmatpush.bf16.msra.mxu0 %v810
    %1518 = vmatpush.bf16.msra.mxu0 %v802
    %1519 = vmatpush.bf16.msra.mxu0 %v794
    %1520 = vmatpush.bf16.msra.mxu0 %v786
    %1521 = vmatpush.bf16.msra.mxu0 %v778
    %1522 = vmatpush.bf16.msra.mxu0 %v770
    %1523 = vmatpush.bf16.msra.mxu0 %v762
    %1524 = vmatpush.bf16.msra.mxu0 %v754
    %1525 = vmatmul.bf16.gmra.mxu0 %v1377
    %v1526 = vpop.f32.mrf.mxu0
    %v1527 = vadd.f32 %v1508, %v1526
    %v1528 = vpop.f32.mrf.mxu0
    %v1529 = vadd.f32 %v1510, %v1528
    %1530 = vmatmul.bf16.gmra.mxu0 %v1379
    %v1531 = vpop.f32.mrf.mxu0
    %v1532 = vadd.f32 %v1513, %v1531
    %v1533 = vpop.f32.mrf.mxu0
    %v1534 = vadd.f32 %v1515, %v1533
    %1535 = vdwg.mxu0
    %1536 = vmatpush.bf16.msra.mxu0 %v747
    %1537 = vmatpush.bf16.msra.mxu0 %v739
    %1538 = vmatpush.bf16.msra.mxu0 %v731
    %1539 = vmatpush.bf16.msra.mxu0 %v723
    %1540 = vmatpush.bf16.msra.mxu0 %v715
    %1541 = vmatpush.bf16.msra.mxu0 %v707
    %1542 = vmatpush.bf16.msra.mxu0 %v699
    %1543 = vmatpush.bf16.msra.mxu0 %v691
    %1544 = vmatmul.bf16.gmra.mxu0 %v1376
    %v1545 = vpop.f32.mrf.mxu0
    %v1546 = vadd.f32 0.0, %v1545
    %v1547 = vpop.f32.mrf.mxu0
    %v1548 = vadd.f32 0.0, %v1547
    %1549 = vmatmul.bf16.gmra.mxu0 %v1378
    %v1550 = vpop.f32.mrf.mxu0
    %v1551 = vadd.f32 0.0, %v1550
    %v1552 = vpop.f32.mrf.mxu0
    %v1553 = vadd.f32 0.0, %v1552
    %1554 = vdwg.mxu0
    %1555 = vmatpush.bf16.msra.mxu0 %v811
    %1556 = vmatpush.bf16.msra.mxu0 %v803
    %1557 = vmatpush.bf16.msra.mxu0 %v795
    %1558 = vmatpush.bf16.msra.mxu0 %v787
    %1559 = vmatpush.bf16.msra.mxu0 %v779
    %1560 = vmatpush.bf16.msra.mxu0 %v771
    %1561 = vmatpush.bf16.msra.mxu0 %v763
    %1562 = vmatpush.bf16.msra.mxu0 %v755
    %1563 = vmatmul.bf16.gmra.mxu0 %v1377
    %v1564 = vpop.f32.mrf.mxu0
    %v1565 = vadd.f32 %v1546, %v1564
    %v1566 = vpop.f32.mrf.mxu0
    %v1567 = vadd.f32 %v1548, %v1566
    %1568 = vmatmul.bf16.gmra.mxu0 %v1379
    %v1569 = vpop.f32.mrf.mxu0
    %v1570 = vadd.f32 %v1551, %v1569
    %v1571 = vpop.f32.mrf.mxu0
    %v1572 = vadd.f32 %v1553, %v1571
    %1573 = vdwg.mxu0
    %1574 = vmatpush.bf16.msra.mxu0 %v748
    %1575 = vmatpush.bf16.msra.mxu0 %v740
    %1576 = vmatpush.bf16.msra.mxu0 %v732
    %1577 = vmatpush.bf16.msra.mxu0 %v724
    %1578 = vmatpush.bf16.msra.mxu0 %v716
    %1579 = vmatpush.bf16.msra.mxu0 %v708
    %1580 = vmatpush.bf16.msra.mxu0 %v700
    %1581 = vmatpush.bf16.msra.mxu0 %v692
    %1582 = vmatmul.bf16.gmra.mxu0 %v1376
    %v1583 = vpop.f32.mrf.mxu0
    %v1584 = vadd.f32 0.0, %v1583
    %v1585 = vpop.f32.mrf.mxu0
    %v1586 = vadd.f32 0.0, %v1585
    %1587 = vmatmul.bf16.gmra.mxu0 %v1378
    %v1588 = vpop.f32.mrf.mxu0
    %v1589 = vadd.f32 0.0, %v1588
    %v1590 = vpop.f32.mrf.mxu0
    %v1591 = vadd.f32 0.0, %v1590
    %1592 = vdwg.mxu0
    %1593 = vmatpush.bf16.msra.mxu0 %v812
    %1594 = vmatpush.bf16.msra.mxu0 %v804
    %1595 = vmatpush.bf16.msra.mxu0 %v796
    %1596 = vmatpush.bf16.msra.mxu0 %v788
    %1597 = vmatpush.bf16.msra.mxu0 %v780
    %1598 = vmatpush.bf16.msra.mxu0 %v772
    %1599 = vmatpush.bf16.msra.mxu0 %v764
    %1600 = vmatpush.bf16.msra.mxu0 %v756
    %1601 = vmatmul.bf16.gmra.mxu0 %v1377
    %v1602 = vpop.f32.mrf.mxu0
    %v1603 = vadd.f32 %v1584, %v1602
    %v1604 = vpop.f32.mrf.mxu0
    %v1605 = vadd.f32 %v1586, %v1604
    %1606 = vmatmul.bf16.gmra.mxu0 %v1379
    %v1607 = vpop.f32.mrf.mxu0
    %v1608 = vadd.f32 %v1589, %v1607
    %v1609 = vpop.f32.mrf.mxu0
    %v1610 = vadd.f32 %v1591, %v1609
    %1611 = vdwg.mxu0
    %1612 = vmatpush.bf16.msra.mxu0 %v749
    %1613 = vmatpush.bf16.msra.mxu0 %v741
    %1614 = vmatpush.bf16.msra.mxu0 %v733
    %1615 = vmatpush.bf16.msra.mxu0 %v725
    %1616 = vmatpush.bf16.msra.mxu0 %v717
    %1617 = vmatpush.bf16.msra.mxu0 %v709
    %1618 = vmatpush.bf16.msra.mxu0 %v701
    %1619 = vmatpush.bf16.msra.mxu0 %v693
    %1620 = vmatmul.bf16.gmra.mxu0 %v1376
    %v1621 = vpop.f32.mrf.mxu0
    %v1622 = vadd.f32 0.0, %v1621
    %v1623 = vpop.f32.mrf.mxu0
    %v1624 = vadd.f32 0.0, %v1623
    %1625 = vmatmul.bf16.gmra.mxu0 %v1378
    %v1626 = vpop.f32.mrf.mxu0
    %v1627 = vadd.f32 0.0, %v1626
    %v1628 = vpop.f32.mrf.mxu0
    %v1629 = vadd.f32 0.0, %v1628
    %1630 = vdwg.mxu0
    %1631 = vmatpush.bf16.msra.mxu0 %v813
    %1632 = vmatpush.bf16.msra.mxu0 %v805
    %1633 = vmatpush.bf16.msra.mxu0 %v797
    %1634 = vmatpush.bf16.msra.mxu0 %v789
    %1635 = vmatpush.bf16.msra.mxu0 %v781
    %1636 = vmatpush.bf16.msra.mxu0 %v773
    %1637 = vmatpush.bf16.msra.mxu0 %v765
    %1638 = vmatpush.bf16.msra.mxu0 %v757
    %1639 = vmatmul.bf16.gmra.mxu0 %v1377
    %v1640 = vpop.f32.mrf.mxu0
    %v1641 = vadd.f32 %v1622, %v1640
    %v1642 = vpop.f32.mrf.mxu0
    %v1643 = vadd.f32 %v1624, %v1642
    %1644 = vmatmul.bf16.gmra.mxu0 %v1379
    %v1645 = vpop.f32.mrf.mxu0
    %v1646 = vadd.f32 %v1627, %v1645
    %v1647 = vpop.f32.mrf.mxu0
    %v1648 = vadd.f32 %v1629, %v1647
    %1649 = vdwg.mxu0
    %1650 = vmatpush.bf16.msra.mxu0 %v750
    %1651 = vmatpush.bf16.msra.mxu0 %v742
    %1652 = vmatpush.bf16.msra.mxu0 %v734
    %1653 = vmatpush.bf16.msra.mxu0 %v726
    %1654 = vmatpush.bf16.msra.mxu0 %v718
    %1655 = vmatpush.bf16.msra.mxu0 %v710
    %1656 = vmatpush.bf16.msra.mxu0 %v702
    %1657 = vmatpush.bf16.msra.mxu0 %v694
    %1658 = vmatmul.bf16.gmra.mxu0 %v1376
    %v1659 = vpop.f32.mrf.mxu0
    %v1660 = vadd.f32 0.0, %v1659
    %v1661 = vpop.f32.mrf.mxu0
    %v1662 = vadd.f32 0.0, %v1661
    %1663 = vmatmul.bf16.gmra.mxu0 %v1378
    %v1664 = vpop.f32.mrf.mxu0
    %v1665 = vadd.f32 0.0, %v1664
    %v1666 = vpop.f32.mrf.mxu0
    %v1667 = vadd.f32 0.0, %v1666
    %1668 = vdwg.mxu0
    %1669 = vmatpush.bf16.msra.mxu0 %v814
    %1670 = vmatpush.bf16.msra.mxu0 %v806
    %1671 = vmatpush.bf16.msra.mxu0 %v798
    %1672 = vmatpush.bf16.msra.mxu0 %v790
    %1673 = vmatpush.bf16.msra.mxu0 %v782
    %1674 = vmatpush.bf16.msra.mxu0 %v774
    %1675 = vmatpush.bf16.msra.mxu0 %v766
    %1676 = vmatpush.bf16.msra.mxu0 %v758
    %1677 = vmatmul.bf16.gmra.mxu0 %v1377
    %v1678 = vpop.f32.mrf.mxu0
    %v1679 = vadd.f32 %v1660, %v1678
    %v1680 = vpop.f32.mrf.mxu0
    %v1681 = vadd.f32 %v1662, %v1680
    %1682 = vmatmul.bf16.gmra.mxu0 %v1379
    %v1683 = vpop.f32.mrf.mxu0
    %v1684 = vadd.f32 %v1665, %v1683
    %v1685 = vpop.f32.mrf.mxu0
    %v1686 = vadd.f32 %v1667, %v1685
    %1687 = vdwg.mxu0
    %v1688 = vmax.f32 %v1413, %v1489
    %v1689 = vmax.f32 %v1451, %v1527
    %v1690 = vmax.f32 %v1415, %v1491
    %v1691 = vmax.f32 %v1453, %v1529
    %v1692 = vmax.f32 %v1418, %v1494
    %v1693 = vmax.f32 %v1456, %v1532
    %v1694 = vmax.f32 %v1420, %v1496
    %v1695 = vmax.f32 %v1458, %v1534
    %v1696 = vmax.f32 %v1565, %v1641
    %v1697 = vmax.f32 %v1603, %v1679
    %v1698 = vmax.f32 %v1567, %v1643
    %v1699 = vmax.f32 %v1605, %v1681
    %v1700 = vmax.f32 %v1570, %v1646
    %v1701 = vmax.f32 %v1608, %v1684
    %v1702 = vmax.f32 %v1572, %v1648
    %v1703 = vmax.f32 %v1610, %v1686
    %v1704 = vmax.f32 %v1688, %v1696
    %v1705 = vmax.f32 %v1689, %v1697
    %v1706 = vmax.f32 %v1690, %v1698
    %v1707 = vmax.f32 %v1691, %v1699
    %v1708 = vmax.f32 %v1692, %v1700
    %v1709 = vmax.f32 %v1693, %v1701
    %v1710 = vmax.f32 %v1694, %v1702
    %v1711 = vmax.f32 %v1695, %v1703
    %v1712 = vadd.f32 %v1704, %v1272
    %v1713 = vadd.f32 %v1705, %v1273
    %v1714 = vadd.f32 %v1706, %v1272
    %v1715 = vadd.f32 %v1707, %v1273
    %v1716 = vadd.f32 %v1708, %v1272
    %v1717 = vadd.f32 %v1709, %v1273
    %v1718 = vadd.f32 %v1710, %v1272
    %v1719 = vadd.f32 %v1711, %v1273
    %v1720 = vmax.f32 %v1712, 0.0
    %v1721 = vmax.f32 %v1713, 0.0
    %v1722 = vmax.f32 %v1714, 0.0
    %v1723 = vmax.f32 %v1715, 0.0
    %v1724 = vmax.f32 %v1716, 0.0
    %v1725 = vmax.f32 %v1717, 0.0
    %v1726 = vmax.f32 %v1718, 0.0
    %v1727 = vmax.f32 %v1719, 0.0
    %v1728 = vpack.c.bf16 %v1722, %v1720
    %v1729 = vpack.c.bf16 %v1723, %v1721
    %v1730 = vpack.c.bf16 %v1726, %v1724
    %v1731 = vpack.c.bf16 %v1727, %v1725
    %s1732 = scalar_lea.vmem [#allocation6], 512
    %v1733 = vld [vmem:[%s1732] sm:$0xff]
    %v1734 = vld [vmem:[%s1732 + $0x8] sm:$0xff]
    %v1735 = vld [vmem:[%s1732 + $0x10] sm:$0xff]
    %v1736 = vld [vmem:[%s1732 + $0x18] sm:$0xff]
    %v1737 = vld [vmem:[%s1732 + $0x20] sm:$0xff]
    %v1738 = vld [vmem:[%s1732 + $0x28] sm:$0xff]
    %v1739 = vld [vmem:[%s1732 + $0x30] sm:$0xff]
    %v1740 = vld [vmem:[%s1732 + $0x38] sm:$0xff]
    %v1741 = vld [vmem:[%s1732 + $0x40] sm:$0xff]
    %v1742 = vld [vmem:[%s1732 + $0x48] sm:$0xff]
    %v1743 = vld [vmem:[%s1732 + $0x50] sm:$0xff]
    %v1744 = vld [vmem:[%s1732 + $0x58] sm:$0xff]
    %v1745 = vld [vmem:[%s1732 + $0x60] sm:$0xff]
    %v1746 = vld [vmem:[%s1732 + $0x68] sm:$0xff]
    %v1747 = vld [vmem:[%s1732 + $0x70] sm:$0xff]
    %v1748 = vld [vmem:[%s1732 + $0x78] sm:$0xff]
    %v1749 = vld [vmem:[%s1732 + $0x80] sm:$0xff]
    %v1750 = vld [vmem:[%s1732 + $0x88] sm:$0xff]
    %v1751 = vld [vmem:[%s1732 + $0x90] sm:$0xff]
    %v1752 = vld [vmem:[%s1732 + $0x98] sm:$0xff]
    %v1753 = vld [vmem:[%s1732 + $0xa0] sm:$0xff]
    %v1754 = vld [vmem:[%s1732 + $0xa8] sm:$0xff]
    %v1755 = vld [vmem:[%s1732 + $0xb0] sm:$0xff]
    %v1756 = vld [vmem:[%s1732 + $0xb8] sm:$0xff]
    %v1757 = vld [vmem:[%s1732 + $0xc0] sm:$0xff]
    %v1758 = vld [vmem:[%s1732 + $0xc8] sm:$0xff]
    %v1759 = vld [vmem:[%s1732 + $0xd0] sm:$0xff]
    %v1760 = vld [vmem:[%s1732 + $0xd8] sm:$0xff]
    %v1761 = vld [vmem:[%s1732 + $0xe0] sm:$0xff]
    %v1762 = vld [vmem:[%s1732 + $0xe8] sm:$0xff]
    %v1763 = vld [vmem:[%s1732 + $0xf0] sm:$0xff]
    %v1764 = vld [vmem:[%s1732 + $0xf8] sm:$0xff]
    %v1765 = vld [vmem:[%s1732 + $0x100] sm:$0xff]
    %v1766 = vld [vmem:[%s1732 + $0x108] sm:$0xff]
    %v1767 = vld [vmem:[%s1732 + $0x110] sm:$0xff]
    %v1768 = vld [vmem:[%s1732 + $0x118] sm:$0xff]
    %v1769 = vld [vmem:[%s1732 + $0x120] sm:$0xff]
    %v1770 = vld [vmem:[%s1732 + $0x128] sm:$0xff]
    %v1771 = vld [vmem:[%s1732 + $0x130] sm:$0xff]
    %v1772 = vld [vmem:[%s1732 + $0x138] sm:$0xff]
    %v1773 = vld [vmem:[%s1732 + $0x140] sm:$0xff]
    %v1774 = vld [vmem:[%s1732 + $0x148] sm:$0xff]
    %v1775 = vld [vmem:[%s1732 + $0x150] sm:$0xff]
    %v1776 = vld [vmem:[%s1732 + $0x158] sm:$0xff]
    %v1777 = vld [vmem:[%s1732 + $0x160] sm:$0xff]
    %v1778 = vld [vmem:[%s1732 + $0x168] sm:$0xff]
    %v1779 = vld [vmem:[%s1732 + $0x170] sm:$0xff]
    %v1780 = vld [vmem:[%s1732 + $0x178] sm:$0xff]
    %v1781 = vld [vmem:[%s1732 + $0x180] sm:$0xff]
    %v1782 = vld [vmem:[%s1732 + $0x188] sm:$0xff]
    %v1783 = vld [vmem:[%s1732 + $0x190] sm:$0xff]
    %v1784 = vld [vmem:[%s1732 + $0x198] sm:$0xff]
    %v1785 = vld [vmem:[%s1732 + $0x1a0] sm:$0xff]
    %v1786 = vld [vmem:[%s1732 + $0x1a8] sm:$0xff]
    %v1787 = vld [vmem:[%s1732 + $0x1b0] sm:$0xff]
    %v1788 = vld [vmem:[%s1732 + $0x1b8] sm:$0xff]
    %v1789 = vld [vmem:[%s1732 + $0x1c0] sm:$0xff]
    %v1790 = vld [vmem:[%s1732 + $0x1c8] sm:$0xff]
    %v1791 = vld [vmem:[%s1732 + $0x1d0] sm:$0xff]
    %v1792 = vld [vmem:[%s1732 + $0x1d8] sm:$0xff]
    %v1793 = vld [vmem:[%s1732 + $0x1e0] sm:$0xff]
    %v1794 = vld [vmem:[%s1732 + $0x1e8] sm:$0xff]
    %v1795 = vld [vmem:[%s1732 + $0x1f0] sm:$0xff]
    %v1796 = vld [vmem:[%s1732 + $0x1f8] sm:$0xff]
    %v1861 = vunpack.c.l.b16 %v1733
    %v1862 = vunpack.c.h.b16 %v1733
    %v1863 = vunpack.c.l.b16 %v1734
    %v1864 = vunpack.c.h.b16 %v1734
    %v1865 = vunpack.c.l.b16 %v1735
    %v1866 = vunpack.c.h.b16 %v1735
    %v1867 = vunpack.c.l.b16 %v1736
    %v1868 = vunpack.c.h.b16 %v1736
    %v1869 = vunpack.c.l.b16 %v1737
    %v1870 = vunpack.c.h.b16 %v1737
    %v1871 = vunpack.c.l.b16 %v1738
    %v1872 = vunpack.c.h.b16 %v1738
    %v1873 = vunpack.c.l.b16 %v1739
    %v1874 = vunpack.c.h.b16 %v1739
    %v1875 = vunpack.c.l.b16 %v1740
    %v1876 = vunpack.c.h.b16 %v1740
    %v1877 = vunpack.c.l.b16 %v1741
    %v1878 = vunpack.c.h.b16 %v1741
    %v1879 = vunpack.c.l.b16 %v1742
    %v1880 = vunpack.c.h.b16 %v1742
    %v1881 = vunpack.c.l.b16 %v1743
    %v1882 = vunpack.c.h.b16 %v1743
    %v1883 = vunpack.c.l.b16 %v1744
    %v1884 = vunpack.c.h.b16 %v1744
    %v1885 = vunpack.c.l.b16 %v1745
    %v1886 = vunpack.c.h.b16 %v1745
    %v1887 = vunpack.c.l.b16 %v1746
    %v1888 = vunpack.c.h.b16 %v1746
    %v1889 = vunpack.c.l.b16 %v1747
    %v1890 = vunpack.c.h.b16 %v1747
    %v1891 = vunpack.c.l.b16 %v1748
    %v1892 = vunpack.c.h.b16 %v1748
    %v1893 = vunpack.c.l.b16 %v1749
    %v1894 = vunpack.c.h.b16 %v1749
    %v1895 = vunpack.c.l.b16 %v1750
    %v1896 = vunpack.c.h.b16 %v1750
    %v1897 = vunpack.c.l.b16 %v1751
    %v1898 = vunpack.c.h.b16 %v1751
    %v1899 = vunpack.c.l.b16 %v1752
    %v1900 = vunpack.c.h.b16 %v1752
    %v1901 = vunpack.c.l.b16 %v1753
    %v1902 = vunpack.c.h.b16 %v1753
    %v1903 = vunpack.c.l.b16 %v1754
    %v1904 = vunpack.c.h.b16 %v1754
    %v1905 = vunpack.c.l.b16 %v1755
    %v1906 = vunpack.c.h.b16 %v1755
    %v1907 = vunpack.c.l.b16 %v1756
    %v1908 = vunpack.c.h.b16 %v1756
    %v1909 = vunpack.c.l.b16 %v1757
    %v1910 = vunpack.c.h.b16 %v1757
    %v1911 = vunpack.c.l.b16 %v1758
    %v1912 = vunpack.c.h.b16 %v1758
    %v1913 = vunpack.c.l.b16 %v1759
    %v1914 = vunpack.c.h.b16 %v1759
    %v1915 = vunpack.c.l.b16 %v1760
    %v1916 = vunpack.c.h.b16 %v1760
    %v1917 = vunpack.c.l.b16 %v1761
    %v1918 = vunpack.c.h.b16 %v1761
    %v1919 = vunpack.c.l.b16 %v1762
    %v1920 = vunpack.c.h.b16 %v1762
    %v1921 = vunpack.c.l.b16 %v1763
    %v1922 = vunpack.c.h.b16 %v1763
    %v1923 = vunpack.c.l.b16 %v1764
    %v1924 = vunpack.c.h.b16 %v1764
    %v1925 = vunpack.c.l.b16 %v1765
    %v1926 = vunpack.c.h.b16 %v1765
    %v1927 = vunpack.c.l.b16 %v1766
    %v1928 = vunpack.c.h.b16 %v1766
    %v1929 = vunpack.c.l.b16 %v1767
    %v1930 = vunpack.c.h.b16 %v1767
    %v1931 = vunpack.c.l.b16 %v1768
    %v1932 = vunpack.c.h.b16 %v1768
    %v1933 = vunpack.c.l.b16 %v1769
    %v1934 = vunpack.c.h.b16 %v1769
    %v1935 = vunpack.c.l.b16 %v1770
    %v1936 = vunpack.c.h.b16 %v1770
    %v1937 = vunpack.c.l.b16 %v1771
    %v1938 = vunpack.c.h.b16 %v1771
    %v1939 = vunpack.c.l.b16 %v1772
    %v1940 = vunpack.c.h.b16 %v1772
    %v1941 = vunpack.c.l.b16 %v1773
    %v1942 = vunpack.c.h.b16 %v1773
    %v1943 = vunpack.c.l.b16 %v1774
    %v1944 = vunpack.c.h.b16 %v1774
    %v1945 = vunpack.c.l.b16 %v1775
    %v1946 = vunpack.c.h.b16 %v1775
    %v1947 = vunpack.c.l.b16 %v1776
    %v1948 = vunpack.c.h.b16 %v1776
    %v1949 = vunpack.c.l.b16 %v1777
    %v1950 = vunpack.c.h.b16 %v1777
    %v1951 = vunpack.c.l.b16 %v1778
    %v1952 = vunpack.c.h.b16 %v1778
    %v1953 = vunpack.c.l.b16 %v1779
    %v1954 = vunpack.c.h.b16 %v1779
    %v1955 = vunpack.c.l.b16 %v1780
    %v1956 = vunpack.c.h.b16 %v1780
    %v1957 = vunpack.c.l.b16 %v1781
    %v1958 = vunpack.c.h.b16 %v1781
    %v1959 = vunpack.c.l.b16 %v1782
    %v1960 = vunpack.c.h.b16 %v1782
    %v1961 = vunpack.c.l.b16 %v1783
    %v1962 = vunpack.c.h.b16 %v1783
    %v1963 = vunpack.c.l.b16 %v1784
    %v1964 = vunpack.c.h.b16 %v1784
    %v1965 = vunpack.c.l.b16 %v1785
    %v1966 = vunpack.c.h.b16 %v1785
    %v1967 = vunpack.c.l.b16 %v1786
    %v1968 = vunpack.c.h.b16 %v1786
    %v1969 = vunpack.c.l.b16 %v1787
    %v1970 = vunpack.c.h.b16 %v1787
    %v1971 = vunpack.c.l.b16 %v1788
    %v1972 = vunpack.c.h.b16 %v1788
    %v1973 = vunpack.c.l.b16 %v1789
    %v1974 = vunpack.c.h.b16 %v1789
    %v1975 = vunpack.c.l.b16 %v1790
    %v1976 = vunpack.c.h.b16 %v1790
    %v1977 = vunpack.c.l.b16 %v1791
    %v1978 = vunpack.c.h.b16 %v1791
    %v1979 = vunpack.c.l.b16 %v1792
    %v1980 = vunpack.c.h.b16 %v1792
    %v1981 = vunpack.c.l.b16 %v1793
    %v1982 = vunpack.c.h.b16 %v1793
    %v1983 = vunpack.c.l.b16 %v1794
    %v1984 = vunpack.c.h.b16 %v1794
    %v1985 = vunpack.c.l.b16 %v1795
    %v1986 = vunpack.c.h.b16 %v1795
    %v1987 = vunpack.c.l.b16 %v1796
    %v1988 = vunpack.c.h.b16 %v1796
    %v1989 = vpack.c.b16 %v1865, %v1861
    %v1990 = vpack.c.b16 %v1866, %v1862
    %v1991 = vpack.c.b16 %v1867, %v1863
    %v1992 = vpack.c.b16 %v1868, %v1864
    %v1993 = vpack.c.b16 %v1873, %v1869
    %v1994 = vpack.c.b16 %v1874, %v1870
    %v1995 = vpack.c.b16 %v1875, %v1871
    %v1996 = vpack.c.b16 %v1876, %v1872
    %v1997 = vpack.c.b16 %v1881, %v1877
    %v1998 = vpack.c.b16 %v1882, %v1878
    %v1999 = vpack.c.b16 %v1883, %v1879
    %v2000 = vpack.c.b16 %v1884, %v1880
    %v2001 = vpack.c.b16 %v1889, %v1885
    %v2002 = vpack.c.b16 %v1890, %v1886
    %v2003 = vpack.c.b16 %v1891, %v1887
    %v2004 = vpack.c.b16 %v1892, %v1888
    %v2005 = vpack.c.b16 %v1897, %v1893
    %v2006 = vpack.c.b16 %v1898, %v1894
    %v2007 = vpack.c.b16 %v1899, %v1895
    %v2008 = vpack.c.b16 %v1900, %v1896
    %v2009 = vpack.c.b16 %v1905, %v1901
    %v2010 = vpack.c.b16 %v1906, %v1902
    %v2011 = vpack.c.b16 %v1907, %v1903
    %v2012 = vpack.c.b16 %v1908, %v1904
    %v2013 = vpack.c.b16 %v1913, %v1909
    %v2014 = vpack.c.b16 %v1914, %v1910
    %v2015 = vpack.c.b16 %v1915, %v1911
    %v2016 = vpack.c.b16 %v1916, %v1912
    %v2017 = vpack.c.b16 %v1921, %v1917
    %v2018 = vpack.c.b16 %v1922, %v1918
    %v2019 = vpack.c.b16 %v1923, %v1919
    %v2020 = vpack.c.b16 %v1924, %v1920
    %v2021 = vpack.c.b16 %v1929, %v1925
    %v2022 = vpack.c.b16 %v1930, %v1926
    %v2023 = vpack.c.b16 %v1931, %v1927
    %v2024 = vpack.c.b16 %v1932, %v1928
    %v2025 = vpack.c.b16 %v1937, %v1933
    %v2026 = vpack.c.b16 %v1938, %v1934
    %v2027 = vpack.c.b16 %v1939, %v1935
    %v2028 = vpack.c.b16 %v1940, %v1936
    %v2029 = vpack.c.b16 %v1945, %v1941
    %v2030 = vpack.c.b16 %v1946, %v1942
    %v2031 = vpack.c.b16 %v1947, %v1943
    %v2032 = vpack.c.b16 %v1948, %v1944
    %v2033 = vpack.c.b16 %v1953, %v1949
    %v2034 = vpack.c.b16 %v1954, %v1950
    %v2035 = vpack.c.b16 %v1955, %v1951
    %v2036 = vpack.c.b16 %v1956, %v1952
    %v2037 = vpack.c.b16 %v1961, %v1957
    %v2038 = vpack.c.b16 %v1962, %v1958
    %v2039 = vpack.c.b16 %v1963, %v1959
    %v2040 = vpack.c.b16 %v1964, %v1960
    %v2041 = vpack.c.b16 %v1969, %v1965
    %v2042 = vpack.c.b16 %v1970, %v1966
    %v2043 = vpack.c.b16 %v1971, %v1967
    %v2044 = vpack.c.b16 %v1972, %v1968
    %v2045 = vpack.c.b16 %v1977, %v1973
    %v2046 = vpack.c.b16 %v1978, %v1974
    %v2047 = vpack.c.b16 %v1979, %v1975
    %v2048 = vpack.c.b16 %v1980, %v1976
    %v2049 = vpack.c.b16 %v1985, %v1981
    %v2050 = vpack.c.b16 %v1986, %v1982
    %v2051 = vpack.c.b16 %v1987, %v1983
    %v2052 = vpack.c.b16 %v1988, %v1984
    %2117 = vmatpush.bf16.msra.mxu0 %v2017
    %2118 = vmatpush.bf16.msra.mxu0 %v2013
    %2119 = vmatpush.bf16.msra.mxu0 %v2009
    %2120 = vmatpush.bf16.msra.mxu0 %v2005
    %2121 = vmatpush.bf16.msra.mxu0 %v2001
    %2122 = vmatpush.bf16.msra.mxu0 %v1997
    %2123 = vmatpush.bf16.msra.mxu0 %v1993
    %2124 = vmatpush.bf16.msra.mxu0 %v1989
    %2125 = vmatmul.bf16.gmra.mxu0 %v1728
    %v2126 = vpop.f32.mrf.mxu0
    %v2127 = vadd.f32 0.0, %v2126
    %v2128 = vpop.f32.mrf.mxu0
    %v2129 = vadd.f32 0.0, %v2128
    %2130 = vmatmul.bf16.gmra.mxu0 %v1730
    %v2131 = vpop.f32.mrf.mxu0
    %v2132 = vadd.f32 0.0, %v2131
    %v2133 = vpop.f32.mrf.mxu0
    %v2134 = vadd.f32 0.0, %v2133
    %2135 = vdwg.mxu0
    %2136 = vmatpush.bf16.msra.mxu0 %v2049
    %2137 = vmatpush.bf16.msra.mxu0 %v2045
    %2138 = vmatpush.bf16.msra.mxu0 %v2041
    %2139 = vmatpush.bf16.msra.mxu0 %v2037
    %2140 = vmatpush.bf16.msra.mxu0 %v2033
    %2141 = vmatpush.bf16.msra.mxu0 %v2029
    %2142 = vmatpush.bf16.msra.mxu0 %v2025
    %2143 = vmatpush.bf16.msra.mxu0 %v2021
    %2144 = vmatmul.bf16.gmra.mxu0 %v1729
    %v2145 = vpop.f32.mrf.mxu0
    %v2146 = vadd.f32 %v2127, %v2145
    %v2147 = vpop.f32.mrf.mxu0
    %v2148 = vadd.f32 %v2129, %v2147
    %2149 = vmatmul.bf16.gmra.mxu0 %v1731
    %v2150 = vpop.f32.mrf.mxu0
    %v2151 = vadd.f32 %v2132, %v2150
    %v2152 = vpop.f32.mrf.mxu0
    %v2153 = vadd.f32 %v2134, %v2152
    %2154 = vdwg.mxu0
    %2155 = vmatpush.bf16.msra.mxu0 %v2018
    %2156 = vmatpush.bf16.msra.mxu0 %v2014
    %2157 = vmatpush.bf16.msra.mxu0 %v2010
    %2158 = vmatpush.bf16.msra.mxu0 %v2006
    %2159 = vmatpush.bf16.msra.mxu0 %v2002
    %2160 = vmatpush.bf16.msra.mxu0 %v1998
    %2161 = vmatpush.bf16.msra.mxu0 %v1994
    %2162 = vmatpush.bf16.msra.mxu0 %v1990
    %2163 = vmatmul.bf16.gmra.mxu0 %v1728
    %v2164 = vpop.f32.mrf.mxu0
    %v2165 = vadd.f32 0.0, %v2164
    %v2166 = vpop.f32.mrf.mxu0
    %v2167 = vadd.f32 0.0, %v2166
    %2168 = vmatmul.bf16.gmra.mxu0 %v1730
    %v2169 = vpop.f32.mrf.mxu0
    %v2170 = vadd.f32 0.0, %v2169
    %v2171 = vpop.f32.mrf.mxu0
    %v2172 = vadd.f32 0.0, %v2171
    %2173 = vdwg.mxu0
    %2174 = vmatpush.bf16.msra.mxu0 %v2050
    %2175 = vmatpush.bf16.msra.mxu0 %v2046
    %2176 = vmatpush.bf16.msra.mxu0 %v2042
    %2177 = vmatpush.bf16.msra.mxu0 %v2038
    %2178 = vmatpush.bf16.msra.mxu0 %v2034
    %2179 = vmatpush.bf16.msra.mxu0 %v2030
    %2180 = vmatpush.bf16.msra.mxu0 %v2026
    %2181 = vmatpush.bf16.msra.mxu0 %v2022
    %2182 = vmatmul.bf16.gmra.mxu0 %v1729
    %v2183 = vpop.f32.mrf.mxu0
    %v2184 = vadd.f32 %v2165, %v2183
    %v2185 = vpop.f32.mrf.mxu0
    %v2186 = vadd.f32 %v2167, %v2185
    %2187 = vmatmul.bf16.gmra.mxu0 %v1731
    %v2188 = vpop.f32.mrf.mxu0
    %v2189 = vadd.f32 %v2170, %v2188
    %v2190 = vpop.f32.mrf.mxu0
    %v2191 = vadd.f32 %v2172, %v2190
    %2192 = vdwg.mxu0
    %2193 = vmatpush.bf16.msra.mxu0 %v2019
    %2194 = vmatpush.bf16.msra.mxu0 %v2015
    %2195 = vmatpush.bf16.msra.mxu0 %v2011
    %2196 = vmatpush.bf16.msra.mxu0 %v2007
    %2197 = vmatpush.bf16.msra.mxu0 %v2003
    %2198 = vmatpush.bf16.msra.mxu0 %v1999
    %2199 = vmatpush.bf16.msra.mxu0 %v1995
    %2200 = vmatpush.bf16.msra.mxu0 %v1991
    %2201 = vmatmul.bf16.gmra.mxu0 %v1728
    %v2202 = vpop.f32.mrf.mxu0
    %v2203 = vadd.f32 0.0, %v2202
    %v2204 = vpop.f32.mrf.mxu0
    %v2205 = vadd.f32 0.0, %v2204
    %2206 = vmatmul.bf16.gmra.mxu0 %v1730
    %v2207 = vpop.f32.mrf.mxu0
    %v2208 = vadd.f32 0.0, %v2207
    %v2209 = vpop.f32.mrf.mxu0
    %v2210 = vadd.f32 0.0, %v2209
    %2211 = vdwg.mxu0
    %2212 = vmatpush.bf16.msra.mxu0 %v2051
    %2213 = vmatpush.bf16.msra.mxu0 %v2047
    %2214 = vmatpush.bf16.msra.mxu0 %v2043
    %2215 = vmatpush.bf16.msra.mxu0 %v2039
    %2216 = vmatpush.bf16.msra.mxu0 %v2035
    %2217 = vmatpush.bf16.msra.mxu0 %v2031
    %2218 = vmatpush.bf16.msra.mxu0 %v2027
    %2219 = vmatpush.bf16.msra.mxu0 %v2023
    %2220 = vmatmul.bf16.gmra.mxu0 %v1729
    %v2221 = vpop.f32.mrf.mxu0
    %v2222 = vadd.f32 %v2203, %v2221
    %v2223 = vpop.f32.mrf.mxu0
    %v2224 = vadd.f32 %v2205, %v2223
    %2225 = vmatmul.bf16.gmra.mxu0 %v1731
    %v2226 = vpop.f32.mrf.mxu0
    %v2227 = vadd.f32 %v2208, %v2226
    %v2228 = vpop.f32.mrf.mxu0
    %v2229 = vadd.f32 %v2210, %v2228
    %2230 = vdwg.mxu0
    %2231 = vmatpush.bf16.msra.mxu0 %v2020
    %2232 = vmatpush.bf16.msra.mxu0 %v2016
    %2233 = vmatpush.bf16.msra.mxu0 %v2012
    %2234 = vmatpush.bf16.msra.mxu0 %v2008
    %2235 = vmatpush.bf16.msra.mxu0 %v2004
    %2236 = vmatpush.bf16.msra.mxu0 %v2000
    %2237 = vmatpush.bf16.msra.mxu0 %v1996
    %2238 = vmatpush.bf16.msra.mxu0 %v1992
    %2239 = vmatmul.bf16.gmra.mxu0 %v1728
    %v2240 = vpop.f32.mrf.mxu0
    %v2241 = vadd.f32 0.0, %v2240
    %v2242 = vpop.f32.mrf.mxu0
    %v2243 = vadd.f32 0.0, %v2242
    %2244 = vmatmul.bf16.gmra.mxu0 %v1730
    %v2245 = vpop.f32.mrf.mxu0
    %v2246 = vadd.f32 0.0, %v2245
    %v2247 = vpop.f32.mrf.mxu0
    %v2248 = vadd.f32 0.0, %v2247
    %2249 = vdwg.mxu0
    %2250 = vmatpush.bf16.msra.mxu0 %v2052
    %2251 = vmatpush.bf16.msra.mxu0 %v2048
    %2252 = vmatpush.bf16.msra.mxu0 %v2044
    %2253 = vmatpush.bf16.msra.mxu0 %v2040
    %2254 = vmatpush.bf16.msra.mxu0 %v2036
    %2255 = vmatpush.bf16.msra.mxu0 %v2032
    %2256 = vmatpush.bf16.msra.mxu0 %v2028
    %2257 = vmatpush.bf16.msra.mxu0 %v2024
    %2258 = vmatmul.bf16.gmra.mxu0 %v1729
    %v2259 = vpop.f32.mrf.mxu0
    %v2260 = vadd.f32 %v2241, %v2259
    %v2261 = vpop.f32.mrf.mxu0
    %v2262 = vadd.f32 %v2243, %v2261
    %2263 = vmatmul.bf16.gmra.mxu0 %v1731
    %v2264 = vpop.f32.mrf.mxu0
    %v2265 = vadd.f32 %v2246, %v2264
    %v2266 = vpop.f32.mrf.mxu0
    %v2267 = vadd.f32 %v2248, %v2266
    %2268 = vdwg.mxu0
    %v2333 = vunpack.c.l.b16 %v1296
    %v2334 = vunpack.c.h.b16 %v1296
    %v2335 = vunpack.c.l.b16 %v1297
    %v2336 = vunpack.c.h.b16 %v1297
    %v2337 = vunpack.c.l.b16 %v1298
    %v2338 = vunpack.c.h.b16 %v1298
    %v2339 = vunpack.c.l.b16 %v1299
    %v2340 = vunpack.c.h.b16 %v1299
    %v2341 = vunpack.c.l.b16 %v1300
    %v2342 = vunpack.c.h.b16 %v1300
    %v2343 = vunpack.c.l.b16 %v1301
    %v2344 = vunpack.c.h.b16 %v1301
    %v2345 = vunpack.c.l.b16 %v1302
    %v2346 = vunpack.c.h.b16 %v1302
    %v2347 = vunpack.c.l.b16 %v1303
    %v2348 = vunpack.c.h.b16 %v1303
    %v2349 = vunpack.c.l.b16 %v1304
    %v2350 = vunpack.c.h.b16 %v1304
    %v2351 = vunpack.c.l.b16 %v1305
    %v2352 = vunpack.c.h.b16 %v1305
    %v2353 = vunpack.c.l.b16 %v1306
    %v2354 = vunpack.c.h.b16 %v1306
    %v2355 = vunpack.c.l.b16 %v1307
    %v2356 = vunpack.c.h.b16 %v1307
    %v2357 = vunpack.c.l.b16 %v1308
    %v2358 = vunpack.c.h.b16 %v1308
    %v2359 = vunpack.c.l.b16 %v1309
    %v2360 = vunpack.c.h.b16 %v1309
    %v2361 = vunpack.c.l.b16 %v1310
    %v2362 = vunpack.c.h.b16 %v1310
    %v2363 = vunpack.c.l.b16 %v1311
    %v2364 = vunpack.c.h.b16 %v1311
    %v2365 = vunpack.c.l.b16 %v1312
    %v2366 = vunpack.c.h.b16 %v1312
    %v2367 = vunpack.c.l.b16 %v1313
    %v2368 = vunpack.c.h.b16 %v1313
    %v2369 = vunpack.c.l.b16 %v1314
    %v2370 = vunpack.c.h.b16 %v1314
    %v2371 = vunpack.c.l.b16 %v1315
    %v2372 = vunpack.c.h.b16 %v1315
    %v2373 = vunpack.c.l.b16 %v1316
    %v2374 = vunpack.c.h.b16 %v1316
    %v2375 = vunpack.c.l.b16 %v1317
    %v2376 = vunpack.c.h.b16 %v1317
    %v2377 = vunpack.c.l.b16 %v1318
    %v2378 = vunpack.c.h.b16 %v1318
    %v2379 = vunpack.c.l.b16 %v1319
    %v2380 = vunpack.c.h.b16 %v1319
    %v2381 = vunpack.c.l.b16 %v1320
    %v2382 = vunpack.c.h.b16 %v1320
    %v2383 = vunpack.c.l.b16 %v1321
    %v2384 = vunpack.c.h.b16 %v1321
    %v2385 = vunpack.c.l.b16 %v1322
    %v2386 = vunpack.c.h.b16 %v1322
    %v2387 = vunpack.c.l.b16 %v1323
    %v2388 = vunpack.c.h.b16 %v1323
    %v2389 = vunpack.c.l.b16 %v1324
    %v2390 = vunpack.c.h.b16 %v1324
    %v2391 = vunpack.c.l.b16 %v1325
    %v2392 = vunpack.c.h.b16 %v1325
    %v2393 = vunpack.c.l.b16 %v1326
    %v2394 = vunpack.c.h.b16 %v1326
    %v2395 = vunpack.c.l.b16 %v1327
    %v2396 = vunpack.c.h.b16 %v1327
    %v2397 = vunpack.c.l.b16 %v1328
    %v2398 = vunpack.c.h.b16 %v1328
    %v2399 = vunpack.c.l.b16 %v1329
    %v2400 = vunpack.c.h.b16 %v1329
    %v2401 = vunpack.c.l.b16 %v1330
    %v2402 = vunpack.c.h.b16 %v1330
    %v2403 = vunpack.c.l.b16 %v1331
    %v2404 = vunpack.c.h.b16 %v1331
    %v2405 = vunpack.c.l.b16 %v1332
    %v2406 = vunpack.c.h.b16 %v1332
    %v2407 = vunpack.c.l.b16 %v1333
    %v2408 = vunpack.c.h.b16 %v1333
    %v2409 = vunpack.c.l.b16 %v1334
    %v2410 = vunpack.c.h.b16 %v1334
    %v2411 = vunpack.c.l.b16 %v1335
    %v2412 = vunpack.c.h.b16 %v1335
    %v2413 = vunpack.c.l.b16 %v1336
    %v2414 = vunpack.c.h.b16 %v1336
    %v2415 = vunpack.c.l.b16 %v1337
    %v2416 = vunpack.c.h.b16 %v1337
    %v2417 = vunpack.c.l.b16 %v1338
    %v2418 = vunpack.c.h.b16 %v1338
    %v2419 = vunpack.c.l.b16 %v1339
    %v2420 = vunpack.c.h.b16 %v1339
    %v2421 = vunpack.c.l.b16 %v1340
    %v2422 = vunpack.c.h.b16 %v1340
    %v2423 = vunpack.c.l.b16 %v1341
    %v2424 = vunpack.c.h.b16 %v1341
    %v2425 = vunpack.c.l.b16 %v1342
    %v2426 = vunpack.c.h.b16 %v1342
    %v2427 = vunpack.c.l.b16 %v1343
    %v2428 = vunpack.c.h.b16 %v1343
    %v2429 = vunpack.c.l.b16 %v1344
    %v2430 = vunpack.c.h.b16 %v1344
    %v2431 = vunpack.c.l.b16 %v1345
    %v2432 = vunpack.c.h.b16 %v1345
    %v2433 = vunpack.c.l.b16 %v1346
    %v2434 = vunpack.c.h.b16 %v1346
    %v2435 = vunpack.c.l.b16 %v1347
    %v2436 = vunpack.c.h.b16 %v1347
    %v2437 = vunpack.c.l.b16 %v1348
    %v2438 = vunpack.c.h.b16 %v1348
    %v2439 = vunpack.c.l.b16 %v1349
    %v2440 = vunpack.c.h.b16 %v1349
    %v2441 = vunpack.c.l.b16 %v1350
    %v2442 = vunpack.c.h.b16 %v1350
    %v2443 = vunpack.c.l.b16 %v1351
    %v2444 = vunpack.c.h.b16 %v1351
    %v2445 = vunpack.c.l.b16 %v1352
    %v2446 = vunpack.c.h.b16 %v1352
    %v2447 = vunpack.c.l.b16 %v1353
    %v2448 = vunpack.c.h.b16 %v1353
    %v2449 = vunpack.c.l.b16 %v1354
    %v2450 = vunpack.c.h.b16 %v1354
    %v2451 = vunpack.c.l.b16 %v1355
    %v2452 = vunpack.c.h.b16 %v1355
    %v2453 = vunpack.c.l.b16 %v1356
    %v2454 = vunpack.c.h.b16 %v1356
    %v2455 = vunpack.c.l.b16 %v1357
    %v2456 = vunpack.c.h.b16 %v1357
    %v2457 = vunpack.c.l.b16 %v1358
    %v2458 = vunpack.c.h.b16 %v1358
    %v2459 = vunpack.c.l.b16 %v1359
    %v2460 = vunpack.c.h.b16 %v1359
    %v2461 = vpack.c.b16 %v2337, %v2333
    %v2462 = vpack.c.b16 %v2338, %v2334
    %v2463 = vpack.c.b16 %v2339, %v2335
    %v2464 = vpack.c.b16 %v2340, %v2336
    %v2465 = vpack.c.b16 %v2345, %v2341
    %v2466 = vpack.c.b16 %v2346, %v2342
    %v2467 = vpack.c.b16 %v2347, %v2343
    %v2468 = vpack.c.b16 %v2348, %v2344
    %v2469 = vpack.c.b16 %v2353, %v2349
    %v2470 = vpack.c.b16 %v2354, %v2350
    %v2471 = vpack.c.b16 %v2355, %v2351
    %v2472 = vpack.c.b16 %v2356, %v2352
    %v2473 = vpack.c.b16 %v2361, %v2357
    %v2474 = vpack.c.b16 %v2362, %v2358
    %v2475 = vpack.c.b16 %v2363, %v2359
    %v2476 = vpack.c.b16 %v2364, %v2360
    %v2477 = vpack.c.b16 %v2369, %v2365
    %v2478 = vpack.c.b16 %v2370, %v2366
    %v2479 = vpack.c.b16 %v2371, %v2367
    %v2480 = vpack.c.b16 %v2372, %v2368
    %v2481 = vpack.c.b16 %v2377, %v2373
    %v2482 = vpack.c.b16 %v2378, %v2374
    %v2483 = vpack.c.b16 %v2379, %v2375
    %v2484 = vpack.c.b16 %v2380, %v2376
    %v2485 = vpack.c.b16 %v2385, %v2381
    %v2486 = vpack.c.b16 %v2386, %v2382
    %v2487 = vpack.c.b16 %v2387, %v2383
    %v2488 = vpack.c.b16 %v2388, %v2384
    %v2489 = vpack.c.b16 %v2393, %v2389
    %v2490 = vpack.c.b16 %v2394, %v2390
    %v2491 = vpack.c.b16 %v2395, %v2391
    %v2492 = vpack.c.b16 %v2396, %v2392
    %v2493 = vpack.c.b16 %v2401, %v2397
    %v2494 = vpack.c.b16 %v2402, %v2398
    %v2495 = vpack.c.b16 %v2403, %v2399
    %v2496 = vpack.c.b16 %v2404, %v2400
    %v2497 = vpack.c.b16 %v2409, %v2405
    %v2498 = vpack.c.b16 %v2410, %v2406
    %v2499 = vpack.c.b16 %v2411, %v2407
    %v2500 = vpack.c.b16 %v2412, %v2408
    %v2501 = vpack.c.b16 %v2417, %v2413
    %v2502 = vpack.c.b16 %v2418, %v2414
    %v2503 = vpack.c.b16 %v2419, %v2415
    %v2504 = vpack.c.b16 %v2420, %v2416
    %v2505 = vpack.c.b16 %v2425, %v2421
    %v2506 = vpack.c.b16 %v2426, %v2422
    %v2507 = vpack.c.b16 %v2427, %v2423
    %v2508 = vpack.c.b16 %v2428, %v2424
    %v2509 = vpack.c.b16 %v2433, %v2429
    %v2510 = vpack.c.b16 %v2434, %v2430
    %v2511 = vpack.c.b16 %v2435, %v2431
    %v2512 = vpack.c.b16 %v2436, %v2432
    %v2513 = vpack.c.b16 %v2441, %v2437
    %v2514 = vpack.c.b16 %v2442, %v2438
    %v2515 = vpack.c.b16 %v2443, %v2439
    %v2516 = vpack.c.b16 %v2444, %v2440
    %v2517 = vpack.c.b16 %v2449, %v2445
    %v2518 = vpack.c.b16 %v2450, %v2446
    %v2519 = vpack.c.b16 %v2451, %v2447
    %v2520 = vpack.c.b16 %v2452, %v2448
    %v2521 = vpack.c.b16 %v2457, %v2453
    %v2522 = vpack.c.b16 %v2458, %v2454
    %v2523 = vpack.c.b16 %v2459, %v2455
    %v2524 = vpack.c.b16 %v2460, %v2456
    %2589 = vmatpush.bf16.msra.mxu0 %v2489
    %2590 = vmatpush.bf16.msra.mxu0 %v2485
    %2591 = vmatpush.bf16.msra.mxu0 %v2481
    %2592 = vmatpush.bf16.msra.mxu0 %v2477
    %2593 = vmatpush.bf16.msra.mxu0 %v2473
    %2594 = vmatpush.bf16.msra.mxu0 %v2469
    %2595 = vmatpush.bf16.msra.mxu0 %v2465
    %2596 = vmatpush.bf16.msra.mxu0 %v2461
    %2597 = vmatmul.bf16.gmra.mxu0 %v1292
    %v2598 = vpop.f32.mrf.mxu0
    %v2599 = vadd.f32 %v2146, %v2598
    %v2600 = vpop.f32.mrf.mxu0
    %v2601 = vadd.f32 %v2148, %v2600
    %2602 = vmatmul.bf16.gmra.mxu0 %v1294
    %v2603 = vpop.f32.mrf.mxu0
    %v2604 = vadd.f32 %v2151, %v2603
    %v2605 = vpop.f32.mrf.mxu0
    %v2606 = vadd.f32 %v2153, %v2605
    %2607 = vdwg.mxu0
    %2608 = vmatpush.bf16.msra.mxu0 %v2521
    %2609 = vmatpush.bf16.msra.mxu0 %v2517
    %2610 = vmatpush.bf16.msra.mxu0 %v2513
    %2611 = vmatpush.bf16.msra.mxu0 %v2509
    %2612 = vmatpush.bf16.msra.mxu0 %v2505
    %2613 = vmatpush.bf16.msra.mxu0 %v2501
    %2614 = vmatpush.bf16.msra.mxu0 %v2497
    %2615 = vmatpush.bf16.msra.mxu0 %v2493
    %2616 = vmatmul.bf16.gmra.mxu0 %v1293
    %v2617 = vpop.f32.mrf.mxu0
    %v2618 = vadd.f32 %v2599, %v2617
    %v2619 = vpop.f32.mrf.mxu0
    %v2620 = vadd.f32 %v2601, %v2619
    %2621 = vmatmul.bf16.gmra.mxu0 %v1295
    %v2622 = vpop.f32.mrf.mxu0
    %v2623 = vadd.f32 %v2604, %v2622
    %v2624 = vpop.f32.mrf.mxu0
    %v2625 = vadd.f32 %v2606, %v2624
    %2626 = vdwg.mxu0
    %2627 = vmatpush.bf16.msra.mxu0 %v2490
    %2628 = vmatpush.bf16.msra.mxu0 %v2486
    %2629 = vmatpush.bf16.msra.mxu0 %v2482
    %2630 = vmatpush.bf16.msra.mxu0 %v2478
    %2631 = vmatpush.bf16.msra.mxu0 %v2474
    %2632 = vmatpush.bf16.msra.mxu0 %v2470
    %2633 = vmatpush.bf16.msra.mxu0 %v2466
    %2634 = vmatpush.bf16.msra.mxu0 %v2462
    %2635 = vmatmul.bf16.gmra.mxu0 %v1292
    %v2636 = vpop.f32.mrf.mxu0
    %v2637 = vadd.f32 %v2184, %v2636
    %v2638 = vpop.f32.mrf.mxu0
    %v2639 = vadd.f32 %v2186, %v2638
    %2640 = vmatmul.bf16.gmra.mxu0 %v1294
    %v2641 = vpop.f32.mrf.mxu0
    %v2642 = vadd.f32 %v2189, %v2641
    %v2643 = vpop.f32.mrf.mxu0
    %v2644 = vadd.f32 %v2191, %v2643
    %2645 = vdwg.mxu0
    %2646 = vmatpush.bf16.msra.mxu0 %v2522
    %2647 = vmatpush.bf16.msra.mxu0 %v2518
    %2648 = vmatpush.bf16.msra.mxu0 %v2514
    %2649 = vmatpush.bf16.msra.mxu0 %v2510
    %2650 = vmatpush.bf16.msra.mxu0 %v2506
    %2651 = vmatpush.bf16.msra.mxu0 %v2502
    %2652 = vmatpush.bf16.msra.mxu0 %v2498
    %2653 = vmatpush.bf16.msra.mxu0 %v2494
    %2654 = vmatmul.bf16.gmra.mxu0 %v1293
    %v2655 = vpop.f32.mrf.mxu0
    %v2656 = vadd.f32 %v2637, %v2655
    %v2657 = vpop.f32.mrf.mxu0
    %v2658 = vadd.f32 %v2639, %v2657
    %2659 = vmatmul.bf16.gmra.mxu0 %v1295
    %v2660 = vpop.f32.mrf.mxu0
    %v2661 = vadd.f32 %v2642, %v2660
    %v2662 = vpop.f32.mrf.mxu0
    %v2663 = vadd.f32 %v2644, %v2662
    %2664 = vdwg.mxu0
    %2665 = vmatpush.bf16.msra.mxu0 %v2491
    %2666 = vmatpush.bf16.msra.mxu0 %v2487
    %2667 = vmatpush.bf16.msra.mxu0 %v2483
    %2668 = vmatpush.bf16.msra.mxu0 %v2479
    %2669 = vmatpush.bf16.msra.mxu0 %v2475
    %2670 = vmatpush.bf16.msra.mxu0 %v2471
    %2671 = vmatpush.bf16.msra.mxu0 %v2467
    %2672 = vmatpush.bf16.msra.mxu0 %v2463
    %2673 = vmatmul.bf16.gmra.mxu0 %v1292
    %v2674 = vpop.f32.mrf.mxu0
    %v2675 = vadd.f32 %v2222, %v2674
    %v2676 = vpop.f32.mrf.mxu0
    %v2677 = vadd.f32 %v2224, %v2676
    %2678 = vmatmul.bf16.gmra.mxu0 %v1294
    %v2679 = vpop.f32.mrf.mxu0
    %v2680 = vadd.f32 %v2227, %v2679
    %v2681 = vpop.f32.mrf.mxu0
    %v2682 = vadd.f32 %v2229, %v2681
    %2683 = vdwg.mxu0
    %2684 = vmatpush.bf16.msra.mxu0 %v2523
    %2685 = vmatpush.bf16.msra.mxu0 %v2519
    %2686 = vmatpush.bf16.msra.mxu0 %v2515
    %2687 = vmatpush.bf16.msra.mxu0 %v2511
    %2688 = vmatpush.bf16.msra.mxu0 %v2507
    %2689 = vmatpush.bf16.msra.mxu0 %v2503
    %2690 = vmatpush.bf16.msra.mxu0 %v2499
    %2691 = vmatpush.bf16.msra.mxu0 %v2495
    %2692 = vmatmul.bf16.gmra.mxu0 %v1293
    %v2693 = vpop.f32.mrf.mxu0
    %v2694 = vadd.f32 %v2675, %v2693
    %v2695 = vpop.f32.mrf.mxu0
    %v2696 = vadd.f32 %v2677, %v2695
    %2697 = vmatmul.bf16.gmra.mxu0 %v1295
    %v2698 = vpop.f32.mrf.mxu0
    %v2699 = vadd.f32 %v2680, %v2698
    %v2700 = vpop.f32.mrf.mxu0
    %v2701 = vadd.f32 %v2682, %v2700
    %2702 = vdwg.mxu0
    %2703 = vmatpush.bf16.msra.mxu0 %v2492
    %2704 = vmatpush.bf16.msra.mxu0 %v2488
    %2705 = vmatpush.bf16.msra.mxu0 %v2484
    %2706 = vmatpush.bf16.msra.mxu0 %v2480
    %2707 = vmatpush.bf16.msra.mxu0 %v2476
    %2708 = vmatpush.bf16.msra.mxu0 %v2472
    %2709 = vmatpush.bf16.msra.mxu0 %v2468
    %2710 = vmatpush.bf16.msra.mxu0 %v2464
    %2711 = vmatmul.bf16.gmra.mxu0 %v1292
    %v2712 = vpop.f32.mrf.mxu0
    %v2713 = vadd.f32 %v2260, %v2712
    %v2714 = vpop.f32.mrf.mxu0
    %v2715 = vadd.f32 %v2262, %v2714
    %2716 = vmatmul.bf16.gmra.mxu0 %v1294
    %v2717 = vpop.f32.mrf.mxu0
    %v2718 = vadd.f32 %v2265, %v2717
    %v2719 = vpop.f32.mrf.mxu0
    %v2720 = vadd.f32 %v2267, %v2719
    %2721 = vdwg.mxu0
    %2722 = vmatpush.bf16.msra.mxu0 %v2524
    %2723 = vmatpush.bf16.msra.mxu0 %v2520
    %2724 = vmatpush.bf16.msra.mxu0 %v2516
    %2725 = vmatpush.bf16.msra.mxu0 %v2512
    %2726 = vmatpush.bf16.msra.mxu0 %v2508
    %2727 = vmatpush.bf16.msra.mxu0 %v2504
    %2728 = vmatpush.bf16.msra.mxu0 %v2500
    %2729 = vmatpush.bf16.msra.mxu0 %v2496
    %2730 = vmatmul.bf16.gmra.mxu0 %v1293
    %v2731 = vpop.f32.mrf.mxu0
    %v2732 = vadd.f32 %v2713, %v2731
    %v2733 = vpop.f32.mrf.mxu0
    %v2734 = vadd.f32 %v2715, %v2733
    %2735 = vmatmul.bf16.gmra.mxu0 %v1295
    %v2736 = vpop.f32.mrf.mxu0
    %v2737 = vadd.f32 %v2718, %v2736
    %v2738 = vpop.f32.mrf.mxu0
    %v2739 = vadd.f32 %v2720, %v2738
    %2740 = vdwg.mxu0
    %v2741 = vld [vmem:[%s0 + $0x10] sm:$0xff]
    %v2742 = vld [vmem:[%s0 + $0x40] sm:$0xff]
    %v2743 = vld [vmem:[%s0 + $0x70] sm:$0xff]
    %v2744 = vld [vmem:[%s0 + $0xa0] sm:$0xff]
    %v2749 = vunpack.c.l.b16 %v2741
    %v2750 = vunpack.c.h.b16 %v2741
    %v2751 = vunpack.c.l.b16 %v2742
    %v2752 = vunpack.c.h.b16 %v2742
    %v2753 = vunpack.c.l.b16 %v2743
    %v2754 = vunpack.c.h.b16 %v2743
    %v2755 = vunpack.c.l.b16 %v2744
    %v2756 = vunpack.c.h.b16 %v2744
    %v2757 = vpack.c.b16 %v2751, %v2749
    %v2758 = vpack.c.b16 %v2752, %v2750
    %v2759 = vpack.c.b16 %v2755, %v2753
    %v2760 = vpack.c.b16 %v2756, %v2754
    %2765 = vmatpush.bf16.msra.mxu0 %v743
    %2766 = vmatpush.bf16.msra.mxu0 %v735
    %2767 = vmatpush.bf16.msra.mxu0 %v727
    %2768 = vmatpush.bf16.msra.mxu0 %v719
    %2769 = vmatpush.bf16.msra.mxu0 %v711
    %2770 = vmatpush.bf16.msra.mxu0 %v703
    %2771 = vmatpush.bf16.msra.mxu0 %v695
    %2772 = vmatpush.bf16.msra.mxu0 %v687
    %2773 = vmatmul.bf16.gmra.mxu0 %v2757
    %v2774 = vpop.f32.mrf.mxu0
    %v2775 = vadd.f32 0.0, %v2774
    %v2776 = vpop.f32.mrf.mxu0
    %v2777 = vadd.f32 0.0, %v2776
    %2778 = vmatmul.bf16.gmra.mxu0 %v2759
    %v2779 = vpop.f32.mrf.mxu0
    %v2780 = vadd.f32 0.0, %v2779
    %v2781 = vpop.f32.mrf.mxu0
    %v2782 = vadd.f32 0.0, %v2781
    %2783 = vdwg.mxu0
    %2784 = vmatpush.bf16.msra.mxu0 %v807
    %2785 = vmatpush.bf16.msra.mxu0 %v799
    %2786 = vmatpush.bf16.msra.mxu0 %v791
    %2787 = vmatpush.bf16.msra.mxu0 %v783
    %2788 = vmatpush.bf16.msra.mxu0 %v775
    %2789 = vmatpush.bf16.msra.mxu0 %v767
    %2790 = vmatpush.bf16.msra.mxu0 %v759
    %2791 = vmatpush.bf16.msra.mxu0 %v751
    %2792 = vmatmul.bf16.gmra.mxu0 %v2758
    %v2793 = vpop.f32.mrf.mxu0
    %v2794 = vadd.f32 %v2775, %v2793
    %v2795 = vpop.f32.mrf.mxu0
    %v2796 = vadd.f32 %v2777, %v2795
    %2797 = vmatmul.bf16.gmra.mxu0 %v2760
    %v2798 = vpop.f32.mrf.mxu0
    %v2799 = vadd.f32 %v2780, %v2798
    %v2800 = vpop.f32.mrf.mxu0
    %v2801 = vadd.f32 %v2782, %v2800
    %2802 = vdwg.mxu0
    %2803 = vmatpush.bf16.msra.mxu0 %v744
    %2804 = vmatpush.bf16.msra.mxu0 %v736
    %2805 = vmatpush.bf16.msra.mxu0 %v728
    %2806 = vmatpush.bf16.msra.mxu0 %v720
    %2807 = vmatpush.bf16.msra.mxu0 %v712
    %2808 = vmatpush.bf16.msra.mxu0 %v704
    %2809 = vmatpush.bf16.msra.mxu0 %v696
    %2810 = vmatpush.bf16.msra.mxu0 %v688
    %2811 = vmatmul.bf16.gmra.mxu0 %v2757
    %v2812 = vpop.f32.mrf.mxu0
    %v2813 = vadd.f32 0.0, %v2812
    %v2814 = vpop.f32.mrf.mxu0
    %v2815 = vadd.f32 0.0, %v2814
    %2816 = vmatmul.bf16.gmra.mxu0 %v2759
    %v2817 = vpop.f32.mrf.mxu0
    %v2818 = vadd.f32 0.0, %v2817
    %v2819 = vpop.f32.mrf.mxu0
    %v2820 = vadd.f32 0.0, %v2819
    %2821 = vdwg.mxu0
    %2822 = vmatpush.bf16.msra.mxu0 %v808
    %2823 = vmatpush.bf16.msra.mxu0 %v800
    %2824 = vmatpush.bf16.msra.mxu0 %v792
    %2825 = vmatpush.bf16.msra.mxu0 %v784
    %2826 = vmatpush.bf16.msra.mxu0 %v776
    %2827 = vmatpush.bf16.msra.mxu0 %v768
    %2828 = vmatpush.bf16.msra.mxu0 %v760
    %2829 = vmatpush.bf16.msra.mxu0 %v752
    %2830 = vmatmul.bf16.gmra.mxu0 %v2758
    %v2831 = vpop.f32.mrf.mxu0
    %v2832 = vadd.f32 %v2813, %v2831
    %v2833 = vpop.f32.mrf.mxu0
    %v2834 = vadd.f32 %v2815, %v2833
    %2835 = vmatmul.bf16.gmra.mxu0 %v2760
    %v2836 = vpop.f32.mrf.mxu0
    %v2837 = vadd.f32 %v2818, %v2836
    %v2838 = vpop.f32.mrf.mxu0
    %v2839 = vadd.f32 %v2820, %v2838
    %2840 = vdwg.mxu0
    %2841 = vmatpush.bf16.msra.mxu0 %v745
    %2842 = vmatpush.bf16.msra.mxu0 %v737
    %2843 = vmatpush.bf16.msra.mxu0 %v729
    %2844 = vmatpush.bf16.msra.mxu0 %v721
    %2845 = vmatpush.bf16.msra.mxu0 %v713
    %2846 = vmatpush.bf16.msra.mxu0 %v705
    %2847 = vmatpush.bf16.msra.mxu0 %v697
    %2848 = vmatpush.bf16.msra.mxu0 %v689
    %2849 = vmatmul.bf16.gmra.mxu0 %v2757
    %v2850 = vpop.f32.mrf.mxu0
    %v2851 = vadd.f32 0.0, %v2850
    %v2852 = vpop.f32.mrf.mxu0
    %v2853 = vadd.f32 0.0, %v2852
    %2854 = vmatmul.bf16.gmra.mxu0 %v2759
    %v2855 = vpop.f32.mrf.mxu0
    %v2856 = vadd.f32 0.0, %v2855
    %v2857 = vpop.f32.mrf.mxu0
    %v2858 = vadd.f32 0.0, %v2857
    %2859 = vdwg.mxu0
    %2860 = vmatpush.bf16.msra.mxu0 %v809
    %2861 = vmatpush.bf16.msra.mxu0 %v801
    %2862 = vmatpush.bf16.msra.mxu0 %v793
    %2863 = vmatpush.bf16.msra.mxu0 %v785
    %2864 = vmatpush.bf16.msra.mxu0 %v777
    %2865 = vmatpush.bf16.msra.mxu0 %v769
    %2866 = vmatpush.bf16.msra.mxu0 %v761
    %2867 = vmatpush.bf16.msra.mxu0 %v753
    %2868 = vmatmul.bf16.gmra.mxu0 %v2758
    %v2869 = vpop.f32.mrf.mxu0
    %v2870 = vadd.f32 %v2851, %v2869
    %v2871 = vpop.f32.mrf.mxu0
    %v2872 = vadd.f32 %v2853, %v2871
    %2873 = vmatmul.bf16.gmra.mxu0 %v2760
    %v2874 = vpop.f32.mrf.mxu0
    %v2875 = vadd.f32 %v2856, %v2874
    %v2876 = vpop.f32.mrf.mxu0
    %v2877 = vadd.f32 %v2858, %v2876
    %2878 = vdwg.mxu0
    %2879 = vmatpush.bf16.msra.mxu0 %v746
    %2880 = vmatpush.bf16.msra.mxu0 %v738
    %2881 = vmatpush.bf16.msra.mxu0 %v730
    %2882 = vmatpush.bf16.msra.mxu0 %v722
    %2883 = vmatpush.bf16.msra.mxu0 %v714
    %2884 = vmatpush.bf16.msra.mxu0 %v706
    %2885 = vmatpush.bf16.msra.mxu0 %v698
    %2886 = vmatpush.bf16.msra.mxu0 %v690
    %2887 = vmatmul.bf16.gmra.mxu0 %v2757
    %v2888 = vpop.f32.mrf.mxu0
    %v2889 = vadd.f32 0.0, %v2888
    %v2890 = vpop.f32.mrf.mxu0
    %v2891 = vadd.f32 0.0, %v2890
    %2892 = vmatmul.bf16.gmra.mxu0 %v2759
    %v2893 = vpop.f32.mrf.mxu0
    %v2894 = vadd.f32 0.0, %v2893
    %v2895 = vpop.f32.mrf.mxu0
    %v2896 = vadd.f32 0.0, %v2895
    %2897 = vdwg.mxu0
    %2898 = vmatpush.bf16.msra.mxu0 %v810
    %2899 = vmatpush.bf16.msra.mxu0 %v802
    %2900 = vmatpush.bf16.msra.mxu0 %v794
    %2901 = vmatpush.bf16.msra.mxu0 %v786
    %2902 = vmatpush.bf16.msra.mxu0 %v778
    %2903 = vmatpush.bf16.msra.mxu0 %v770
    %2904 = vmatpush.bf16.msra.mxu0 %v762
    %2905 = vmatpush.bf16.msra.mxu0 %v754
    %2906 = vmatmul.bf16.gmra.mxu0 %v2758
    %v2907 = vpop.f32.mrf.mxu0
    %v2908 = vadd.f32 %v2889, %v2907
    %v2909 = vpop.f32.mrf.mxu0
    %v2910 = vadd.f32 %v2891, %v2909
    %2911 = vmatmul.bf16.gmra.mxu0 %v2760
    %v2912 = vpop.f32.mrf.mxu0
    %v2913 = vadd.f32 %v2894, %v2912
    %v2914 = vpop.f32.mrf.mxu0
    %v2915 = vadd.f32 %v2896, %v2914
    %2916 = vdwg.mxu0
    %2917 = vmatpush.bf16.msra.mxu0 %v747
    %2918 = vmatpush.bf16.msra.mxu0 %v739
    %2919 = vmatpush.bf16.msra.mxu0 %v731
    %2920 = vmatpush.bf16.msra.mxu0 %v723
    %2921 = vmatpush.bf16.msra.mxu0 %v715
    %2922 = vmatpush.bf16.msra.mxu0 %v707
    %2923 = vmatpush.bf16.msra.mxu0 %v699
    %2924 = vmatpush.bf16.msra.mxu0 %v691
    %2925 = vmatmul.bf16.gmra.mxu0 %v2757
    %v2926 = vpop.f32.mrf.mxu0
    %v2927 = vadd.f32 0.0, %v2926
    %v2928 = vpop.f32.mrf.mxu0
    %v2929 = vadd.f32 0.0, %v2928
    %2930 = vmatmul.bf16.gmra.mxu0 %v2759
    %v2931 = vpop.f32.mrf.mxu0
    %v2932 = vadd.f32 0.0, %v2931
    %v2933 = vpop.f32.mrf.mxu0
    %v2934 = vadd.f32 0.0, %v2933
    %2935 = vdwg.mxu0
    %2936 = vmatpush.bf16.msra.mxu0 %v811
    %2937 = vmatpush.bf16.msra.mxu0 %v803
    %2938 = vmatpush.bf16.msra.mxu0 %v795
    %2939 = vmatpush.bf16.msra.mxu0 %v787
    %2940 = vmatpush.bf16.msra.mxu0 %v779
    %2941 = vmatpush.bf16.msra.mxu0 %v771
    %2942 = vmatpush.bf16.msra.mxu0 %v763
    %2943 = vmatpush.bf16.msra.mxu0 %v755
    %2944 = vmatmul.bf16.gmra.mxu0 %v2758
    %v2945 = vpop.f32.mrf.mxu0
    %v2946 = vadd.f32 %v2927, %v2945
    %v2947 = vpop.f32.mrf.mxu0
    %v2948 = vadd.f32 %v2929, %v2947
    %2949 = vmatmul.bf16.gmra.mxu0 %v2760
    %v2950 = vpop.f32.mrf.mxu0
    %v2951 = vadd.f32 %v2932, %v2950
    %v2952 = vpop.f32.mrf.mxu0
    %v2953 = vadd.f32 %v2934, %v2952
    %2954 = vdwg.mxu0
    %2955 = vmatpush.bf16.msra.mxu0 %v748
    %2956 = vmatpush.bf16.msra.mxu0 %v740
    %2957 = vmatpush.bf16.msra.mxu0 %v732
    %2958 = vmatpush.bf16.msra.mxu0 %v724
    %2959 = vmatpush.bf16.msra.mxu0 %v716
    %2960 = vmatpush.bf16.msra.mxu0 %v708
    %2961 = vmatpush.bf16.msra.mxu0 %v700
    %2962 = vmatpush.bf16.msra.mxu0 %v692
    %2963 = vmatmul.bf16.gmra.mxu0 %v2757
    %v2964 = vpop.f32.mrf.mxu0
    %v2965 = vadd.f32 0.0, %v2964
    %v2966 = vpop.f32.mrf.mxu0
    %v2967 = vadd.f32 0.0, %v2966
    %2968 = vmatmul.bf16.gmra.mxu0 %v2759
    %v2969 = vpop.f32.mrf.mxu0
    %v2970 = vadd.f32 0.0, %v2969
    %v2971 = vpop.f32.mrf.mxu0
    %v2972 = vadd.f32 0.0, %v2971
    %2973 = vdwg.mxu0
    %2974 = vmatpush.bf16.msra.mxu0 %v812
    %2975 = vmatpush.bf16.msra.mxu0 %v804
    %2976 = vmatpush.bf16.msra.mxu0 %v796
    %2977 = vmatpush.bf16.msra.mxu0 %v788
    %2978 = vmatpush.bf16.msra.mxu0 %v780
    %2979 = vmatpush.bf16.msra.mxu0 %v772
    %2980 = vmatpush.bf16.msra.mxu0 %v764
    %2981 = vmatpush.bf16.msra.mxu0 %v756
    %2982 = vmatmul.bf16.gmra.mxu0 %v2758
    %v2983 = vpop.f32.mrf.mxu0
    %v2984 = vadd.f32 %v2965, %v2983
    %v2985 = vpop.f32.mrf.mxu0
    %v2986 = vadd.f32 %v2967, %v2985
    %2987 = vmatmul.bf16.gmra.mxu0 %v2760
    %v2988 = vpop.f32.mrf.mxu0
    %v2989 = vadd.f32 %v2970, %v2988
    %v2990 = vpop.f32.mrf.mxu0
    %v2991 = vadd.f32 %v2972, %v2990
    %2992 = vdwg.mxu0
    %2993 = vmatpush.bf16.msra.mxu0 %v749
    %2994 = vmatpush.bf16.msra.mxu0 %v741
    %2995 = vmatpush.bf16.msra.mxu0 %v733
    %2996 = vmatpush.bf16.msra.mxu0 %v725
    %2997 = vmatpush.bf16.msra.mxu0 %v717
    %2998 = vmatpush.bf16.msra.mxu0 %v709
    %2999 = vmatpush.bf16.msra.mxu0 %v701
    %3000 = vmatpush.bf16.msra.mxu0 %v693
    %3001 = vmatmul.bf16.gmra.mxu0 %v2757
    %v3002 = vpop.f32.mrf.mxu0
    %v3003 = vadd.f32 0.0, %v3002
    %v3004 = vpop.f32.mrf.mxu0
    %v3005 = vadd.f32 0.0, %v3004
    %3006 = vmatmul.bf16.gmra.mxu0 %v2759
    %v3007 = vpop.f32.mrf.mxu0
    %v3008 = vadd.f32 0.0, %v3007
    %v3009 = vpop.f32.mrf.mxu0
    %v3010 = vadd.f32 0.0, %v3009
    %3011 = vdwg.mxu0
    %3012 = vmatpush.bf16.msra.mxu0 %v813
    %3013 = vmatpush.bf16.msra.mxu0 %v805
    %3014 = vmatpush.bf16.msra.mxu0 %v797
    %3015 = vmatpush.bf16.msra.mxu0 %v789
    %3016 = vmatpush.bf16.msra.mxu0 %v781
    %3017 = vmatpush.bf16.msra.mxu0 %v773
    %3018 = vmatpush.bf16.msra.mxu0 %v765
    %3019 = vmatpush.bf16.msra.mxu0 %v757
    %3020 = vmatmul.bf16.gmra.mxu0 %v2758
    %v3021 = vpop.f32.mrf.mxu0
    %v3022 = vadd.f32 %v3003, %v3021
    %v3023 = vpop.f32.mrf.mxu0
    %v3024 = vadd.f32 %v3005, %v3023
    %3025 = vmatmul.bf16.gmra.mxu0 %v2760
    %v3026 = vpop.f32.mrf.mxu0
    %v3027 = vadd.f32 %v3008, %v3026
    %v3028 = vpop.f32.mrf.mxu0
    %v3029 = vadd.f32 %v3010, %v3028
    %3030 = vdwg.mxu0
    %3031 = vmatpush.bf16.msra.mxu0 %v750
    %3032 = vmatpush.bf16.msra.mxu0 %v742
    %3033 = vmatpush.bf16.msra.mxu0 %v734
    %3034 = vmatpush.bf16.msra.mxu0 %v726
    %3035 = vmatpush.bf16.msra.mxu0 %v718
    %3036 = vmatpush.bf16.msra.mxu0 %v710
    %3037 = vmatpush.bf16.msra.mxu0 %v702
    %3038 = vmatpush.bf16.msra.mxu0 %v694
    %3039 = vmatmul.bf16.gmra.mxu0 %v2757
    %v3040 = vpop.f32.mrf.mxu0
    %v3041 = vadd.f32 0.0, %v3040
    %v3042 = vpop.f32.mrf.mxu0
    %v3043 = vadd.f32 0.0, %v3042
    %3044 = vmatmul.bf16.gmra.mxu0 %v2759
    %v3045 = vpop.f32.mrf.mxu0
    %v3046 = vadd.f32 0.0, %v3045
    %v3047 = vpop.f32.mrf.mxu0
    %v3048 = vadd.f32 0.0, %v3047
    %3049 = vdwg.mxu0
    %3050 = vmatpush.bf16.msra.mxu0 %v814
    %3051 = vmatpush.bf16.msra.mxu0 %v806
    %3052 = vmatpush.bf16.msra.mxu0 %v798
    %3053 = vmatpush.bf16.msra.mxu0 %v790
    %3054 = vmatpush.bf16.msra.mxu0 %v782
    %3055 = vmatpush.bf16.msra.mxu0 %v774
    %3056 = vmatpush.bf16.msra.mxu0 %v766
    %3057 = vmatpush.bf16.msra.mxu0 %v758
    %3058 = vmatmul.bf16.gmra.mxu0 %v2758
    %v3059 = vpop.f32.mrf.mxu0
    %v3060 = vadd.f32 %v3041, %v3059
    %v3061 = vpop.f32.mrf.mxu0
    %v3062 = vadd.f32 %v3043, %v3061
    %3063 = vmatmul.bf16.gmra.mxu0 %v2760
    %v3064 = vpop.f32.mrf.mxu0
    %v3065 = vadd.f32 %v3046, %v3064
    %v3066 = vpop.f32.mrf.mxu0
    %v3067 = vadd.f32 %v3048, %v3066
    %3068 = vdwg.mxu0
    %v3069 = vmax.f32 %v2794, %v2870
    %v3070 = vmax.f32 %v2832, %v2908
    %v3071 = vmax.f32 %v2796, %v2872
    %v3072 = vmax.f32 %v2834, %v2910
    %v3073 = vmax.f32 %v2799, %v2875
    %v3074 = vmax.f32 %v2837, %v2913
    %v3075 = vmax.f32 %v2801, %v2877
    %v3076 = vmax.f32 %v2839, %v2915
    %v3077 = vmax.f32 %v2946, %v3022
    %v3078 = vmax.f32 %v2984, %v3060
    %v3079 = vmax.f32 %v2948, %v3024
    %v3080 = vmax.f32 %v2986, %v3062
    %v3081 = vmax.f32 %v2951, %v3027
    %v3082 = vmax.f32 %v2989, %v3065
    %v3083 = vmax.f32 %v2953, %v3029
    %v3084 = vmax.f32 %v2991, %v3067
    %v3085 = vmax.f32 %v3069, %v3077
    %v3086 = vmax.f32 %v3070, %v3078
    %v3087 = vmax.f32 %v3071, %v3079
    %v3088 = vmax.f32 %v3072, %v3080
    %v3089 = vmax.f32 %v3073, %v3081
    %v3090 = vmax.f32 %v3074, %v3082
    %v3091 = vmax.f32 %v3075, %v3083
    %v3092 = vmax.f32 %v3076, %v3084
    %v3093 = vadd.f32 %v3085, %v1272
    %v3094 = vadd.f32 %v3086, %v1273
    %v3095 = vadd.f32 %v3087, %v1272
    %v3096 = vadd.f32 %v3088, %v1273
    %v3097 = vadd.f32 %v3089, %v1272
    %v3098 = vadd.f32 %v3090, %v1273
    %v3099 = vadd.f32 %v3091, %v1272
    %v3100 = vadd.f32 %v3092, %v1273
    %v3101 = vmax.f32 %v3093, 0.0
    %v3102 = vmax.f32 %v3094, 0.0
    %v3103 = vmax.f32 %v3095, 0.0
    %v3104 = vmax.f32 %v3096, 0.0
    %v3105 = vmax.f32 %v3097, 0.0
    %v3106 = vmax.f32 %v3098, 0.0
    %v3107 = vmax.f32 %v3099, 0.0
    %v3108 = vmax.f32 %v3100, 0.0
    %v3109 = vpack.c.bf16 %v3103, %v3101
    %v3110 = vpack.c.bf16 %v3104, %v3102
    %v3111 = vpack.c.bf16 %v3107, %v3105
    %v3112 = vpack.c.bf16 %v3108, %v3106
    %s3113 = scalar_lea.vmem [#allocation6], 1024
    %v3114 = vld [vmem:[%s3113] sm:$0xff]
    %v3115 = vld [vmem:[%s3113 + $0x8] sm:$0xff]
    %v3116 = vld [vmem:[%s3113 + $0x10] sm:$0xff]
    %v3117 = vld [vmem:[%s3113 + $0x18] sm:$0xff]
    %v3118 = vld [vmem:[%s3113 + $0x20] sm:$0xff]
    %v3119 = vld [vmem:[%s3113 + $0x28] sm:$0xff]
    %v3120 = vld [vmem:[%s3113 + $0x30] sm:$0xff]
    %v3121 = vld [vmem:[%s3113 + $0x38] sm:$0xff]
    %v3122 = vld [vmem:[%s3113 + $0x40] sm:$0xff]
    %v3123 = vld [vmem:[%s3113 + $0x48] sm:$0xff]
    %v3124 = vld [vmem:[%s3113 + $0x50] sm:$0xff]
    %v3125 = vld [vmem:[%s3113 + $0x58] sm:$0xff]
    %v3126 = vld [vmem:[%s3113 + $0x60] sm:$0xff]
    %v3127 = vld [vmem:[%s3113 + $0x68] sm:$0xff]
    %v3128 = vld [vmem:[%s3113 + $0x70] sm:$0xff]
    %v3129 = vld [vmem:[%s3113 + $0x78] sm:$0xff]
    %v3130 = vld [vmem:[%s3113 + $0x80] sm:$0xff]
    %v3131 = vld [vmem:[%s3113 + $0x88] sm:$0xff]
    %v3132 = vld [vmem:[%s3113 + $0x90] sm:$0xff]
    %v3133 = vld [vmem:[%s3113 + $0x98] sm:$0xff]
    %v3134 = vld [vmem:[%s3113 + $0xa0] sm:$0xff]
    %v3135 = vld [vmem:[%s3113 + $0xa8] sm:$0xff]
    %v3136 = vld [vmem:[%s3113 + $0xb0] sm:$0xff]
    %v3137 = vld [vmem:[%s3113 + $0xb8] sm:$0xff]
    %v3138 = vld [vmem:[%s3113 + $0xc0] sm:$0xff]
    %v3139 = vld [vmem:[%s3113 + $0xc8] sm:$0xff]
    %v3140 = vld [vmem:[%s3113 + $0xd0] sm:$0xff]
    %v3141 = vld [vmem:[%s3113 + $0xd8] sm:$0xff]
    %v3142 = vld [vmem:[%s3113 + $0xe0] sm:$0xff]
    %v3143 = vld [vmem:[%s3113 + $0xe8] sm:$0xff]
    %v3144 = vld [vmem:[%s3113 + $0xf0] sm:$0xff]
    %v3145 = vld [vmem:[%s3113 + $0xf8] sm:$0xff]
    %v3146 = vld [vmem:[%s3113 + $0x100] sm:$0xff]
    %v3147 = vld [vmem:[%s3113 + $0x108] sm:$0xff]
    %v3148 = vld [vmem:[%s3113 + $0x110] sm:$0xff]
    %v3149 = vld [vmem:[%s3113 + $0x118] sm:$0xff]
    %v3150 = vld [vmem:[%s3113 + $0x120] sm:$0xff]
    %v3151 = vld [vmem:[%s3113 + $0x128] sm:$0xff]
    %v3152 = vld [vmem:[%s3113 + $0x130] sm:$0xff]
    %v3153 = vld [vmem:[%s3113 + $0x138] sm:$0xff]
    %v3154 = vld [vmem:[%s3113 + $0x140] sm:$0xff]
    %v3155 = vld [vmem:[%s3113 + $0x148] sm:$0xff]
    %v3156 = vld [vmem:[%s3113 + $0x150] sm:$0xff]
    %v3157 = vld [vmem:[%s3113 + $0x158] sm:$0xff]
    %v3158 = vld [vmem:[%s3113 + $0x160] sm:$0xff]
    %v3159 = vld [vmem:[%s3113 + $0x168] sm:$0xff]
    %v3160 = vld [vmem:[%s3113 + $0x170] sm:$0xff]
    %v3161 = vld [vmem:[%s3113 + $0x178] sm:$0xff]
    %v3162 = vld [vmem:[%s3113 + $0x180] sm:$0xff]
    %v3163 = vld [vmem:[%s3113 + $0x188] sm:$0xff]
    %v3164 = vld [vmem:[%s3113 + $0x190] sm:$0xff]
    %v3165 = vld [vmem:[%s3113 + $0x198] sm:$0xff]
    %v3166 = vld [vmem:[%s3113 + $0x1a0] sm:$0xff]
    %v3167 = vld [vmem:[%s3113 + $0x1a8] sm:$0xff]
    %v3168 = vld [vmem:[%s3113 + $0x1b0] sm:$0xff]
    %v3169 = vld [vmem:[%s3113 + $0x1b8] sm:$0xff]
    %v3170 = vld [vmem:[%s3113 + $0x1c0] sm:$0xff]
    %v3171 = vld [vmem:[%s3113 + $0x1c8] sm:$0xff]
    %v3172 = vld [vmem:[%s3113 + $0x1d0] sm:$0xff]
    %v3173 = vld [vmem:[%s3113 + $0x1d8] sm:$0xff]
    %v3174 = vld [vmem:[%s3113 + $0x1e0] sm:$0xff]
    %v3175 = vld [vmem:[%s3113 + $0x1e8] sm:$0xff]
    %v3176 = vld [vmem:[%s3113 + $0x1f0] sm:$0xff]
    %v3177 = vld [vmem:[%s3113 + $0x1f8] sm:$0xff]
    %v3242 = vunpack.c.l.b16 %v3114
    %v3243 = vunpack.c.h.b16 %v3114
    %v3244 = vunpack.c.l.b16 %v3115
    %v3245 = vunpack.c.h.b16 %v3115
    %v3246 = vunpack.c.l.b16 %v3116
    %v3247 = vunpack.c.h.b16 %v3116
    %v3248 = vunpack.c.l.b16 %v3117
    %v3249 = vunpack.c.h.b16 %v3117
    %v3250 = vunpack.c.l.b16 %v3118
    %v3251 = vunpack.c.h.b16 %v3118
    %v3252 = vunpack.c.l.b16 %v3119
    %v3253 = vunpack.c.h.b16 %v3119
    %v3254 = vunpack.c.l.b16 %v3120
    %v3255 = vunpack.c.h.b16 %v3120
    %v3256 = vunpack.c.l.b16 %v3121
    %v3257 = vunpack.c.h.b16 %v3121
    %v3258 = vunpack.c.l.b16 %v3122
    %v3259 = vunpack.c.h.b16 %v3122
    %v3260 = vunpack.c.l.b16 %v3123
    %v3261 = vunpack.c.h.b16 %v3123
    %v3262 = vunpack.c.l.b16 %v3124
    %v3263 = vunpack.c.h.b16 %v3124
    %v3264 = vunpack.c.l.b16 %v3125
    %v3265 = vunpack.c.h.b16 %v3125
    %v3266 = vunpack.c.l.b16 %v3126
    %v3267 = vunpack.c.h.b16 %v3126
    %v3268 = vunpack.c.l.b16 %v3127
    %v3269 = vunpack.c.h.b16 %v3127
    %v3270 = vunpack.c.l.b16 %v3128
    %v3271 = vunpack.c.h.b16 %v3128
    %v3272 = vunpack.c.l.b16 %v3129
    %v3273 = vunpack.c.h.b16 %v3129
    %v3274 = vunpack.c.l.b16 %v3130
    %v3275 = vunpack.c.h.b16 %v3130
    %v3276 = vunpack.c.l.b16 %v3131
    %v3277 = vunpack.c.h.b16 %v3131
    %v3278 = vunpack.c.l.b16 %v3132
    %v3279 = vunpack.c.h.b16 %v3132
    %v3280 = vunpack.c.l.b16 %v3133
    %v3281 = vunpack.c.h.b16 %v3133
    %v3282 = vunpack.c.l.b16 %v3134
    %v3283 = vunpack.c.h.b16 %v3134
    %v3284 = vunpack.c.l.b16 %v3135
    %v3285 = vunpack.c.h.b16 %v3135
    %v3286 = vunpack.c.l.b16 %v3136
    %v3287 = vunpack.c.h.b16 %v3136
    %v3288 = vunpack.c.l.b16 %v3137
    %v3289 = vunpack.c.h.b16 %v3137
    %v3290 = vunpack.c.l.b16 %v3138
    %v3291 = vunpack.c.h.b16 %v3138
    %v3292 = vunpack.c.l.b16 %v3139
    %v3293 = vunpack.c.h.b16 %v3139
    %v3294 = vunpack.c.l.b16 %v3140
    %v3295 = vunpack.c.h.b16 %v3140
    %v3296 = vunpack.c.l.b16 %v3141
    %v3297 = vunpack.c.h.b16 %v3141
    %v3298 = vunpack.c.l.b16 %v3142
    %v3299 = vunpack.c.h.b16 %v3142
    %v3300 = vunpack.c.l.b16 %v3143
    %v3301 = vunpack.c.h.b16 %v3143
    %v3302 = vunpack.c.l.b16 %v3144
    %v3303 = vunpack.c.h.b16 %v3144
    %v3304 = vunpack.c.l.b16 %v3145
    %v3305 = vunpack.c.h.b16 %v3145
    %v3306 = vunpack.c.l.b16 %v3146
    %v3307 = vunpack.c.h.b16 %v3146
    %v3308 = vunpack.c.l.b16 %v3147
    %v3309 = vunpack.c.h.b16 %v3147
    %v3310 = vunpack.c.l.b16 %v3148
    %v3311 = vunpack.c.h.b16 %v3148
    %v3312 = vunpack.c.l.b16 %v3149
    %v3313 = vunpack.c.h.b16 %v3149
    %v3314 = vunpack.c.l.b16 %v3150
    %v3315 = vunpack.c.h.b16 %v3150
    %v3316 = vunpack.c.l.b16 %v3151
    %v3317 = vunpack.c.h.b16 %v3151
    %v3318 = vunpack.c.l.b16 %v3152
    %v3319 = vunpack.c.h.b16 %v3152
    %v3320 = vunpack.c.l.b16 %v3153
    %v3321 = vunpack.c.h.b16 %v3153
    %v3322 = vunpack.c.l.b16 %v3154
    %v3323 = vunpack.c.h.b16 %v3154
    %v3324 = vunpack.c.l.b16 %v3155
    %v3325 = vunpack.c.h.b16 %v3155
    %v3326 = vunpack.c.l.b16 %v3156
    %v3327 = vunpack.c.h.b16 %v3156
    %v3328 = vunpack.c.l.b16 %v3157
    %v3329 = vunpack.c.h.b16 %v3157
    %v3330 = vunpack.c.l.b16 %v3158
    %v3331 = vunpack.c.h.b16 %v3158
    %v3332 = vunpack.c.l.b16 %v3159
    %v3333 = vunpack.c.h.b16 %v3159
    %v3334 = vunpack.c.l.b16 %v3160
    %v3335 = vunpack.c.h.b16 %v3160
    %v3336 = vunpack.c.l.b16 %v3161
    %v3337 = vunpack.c.h.b16 %v3161
    %v3338 = vunpack.c.l.b16 %v3162
    %v3339 = vunpack.c.h.b16 %v3162
    %v3340 = vunpack.c.l.b16 %v3163
    %v3341 = vunpack.c.h.b16 %v3163
    %v3342 = vunpack.c.l.b16 %v3164
    %v3343 = vunpack.c.h.b16 %v3164
    %v3344 = vunpack.c.l.b16 %v3165
    %v3345 = vunpack.c.h.b16 %v3165
    %v3346 = vunpack.c.l.b16 %v3166
    %v3347 = vunpack.c.h.b16 %v3166
    %v3348 = vunpack.c.l.b16 %v3167
    %v3349 = vunpack.c.h.b16 %v3167
    %v3350 = vunpack.c.l.b16 %v3168
    %v3351 = vunpack.c.h.b16 %v3168
    %v3352 = vunpack.c.l.b16 %v3169
    %v3353 = vunpack.c.h.b16 %v3169
    %v3354 = vunpack.c.l.b16 %v3170
    %v3355 = vunpack.c.h.b16 %v3170
    %v3356 = vunpack.c.l.b16 %v3171
    %v3357 = vunpack.c.h.b16 %v3171
    %v3358 = vunpack.c.l.b16 %v3172
    %v3359 = vunpack.c.h.b16 %v3172
    %v3360 = vunpack.c.l.b16 %v3173
    %v3361 = vunpack.c.h.b16 %v3173
    %v3362 = vunpack.c.l.b16 %v3174
    %v3363 = vunpack.c.h.b16 %v3174
    %v3364 = vunpack.c.l.b16 %v3175
    %v3365 = vunpack.c.h.b16 %v3175
    %v3366 = vunpack.c.l.b16 %v3176
    %v3367 = vunpack.c.h.b16 %v3176
    %v3368 = vunpack.c.l.b16 %v3177
    %v3369 = vunpack.c.h.b16 %v3177
    %v3370 = vpack.c.b16 %v3246, %v3242
    %v3371 = vpack.c.b16 %v3247, %v3243
    %v3372 = vpack.c.b16 %v3248, %v3244
    %v3373 = vpack.c.b16 %v3249, %v3245
    %v3374 = vpack.c.b16 %v3254, %v3250
    %v3375 = vpack.c.b16 %v3255, %v3251
    %v3376 = vpack.c.b16 %v3256, %v3252
    %v3377 = vpack.c.b16 %v3257, %v3253
    %v3378 = vpack.c.b16 %v3262, %v3258
    %v3379 = vpack.c.b16 %v3263, %v3259
    %v3380 = vpack.c.b16 %v3264, %v3260
    %v3381 = vpack.c.b16 %v3265, %v3261
    %v3382 = vpack.c.b16 %v3270, %v3266
    %v3383 = vpack.c.b16 %v3271, %v3267
    %v3384 = vpack.c.b16 %v3272, %v3268
    %v3385 = vpack.c.b16 %v3273, %v3269
    %v3386 = vpack.c.b16 %v3278, %v3274
    %v3387 = vpack.c.b16 %v3279, %v3275
    %v3388 = vpack.c.b16 %v3280, %v3276
    %v3389 = vpack.c.b16 %v3281, %v3277
    %v3390 = vpack.c.b16 %v3286, %v3282
    %v3391 = vpack.c.b16 %v3287, %v3283
    %v3392 = vpack.c.b16 %v3288, %v3284
    %v3393 = vpack.c.b16 %v3289, %v3285
    %v3394 = vpack.c.b16 %v3294, %v3290
    %v3395 = vpack.c.b16 %v3295, %v3291
    %v3396 = vpack.c.b16 %v3296, %v3292
    %v3397 = vpack.c.b16 %v3297, %v3293
    %v3398 = vpack.c.b16 %v3302, %v3298
    %v3399 = vpack.c.b16 %v3303, %v3299
    %v3400 = vpack.c.b16 %v3304, %v3300
    %v3401 = vpack.c.b16 %v3305, %v3301
    %v3402 = vpack.c.b16 %v3310, %v3306
    %v3403 = vpack.c.b16 %v3311, %v3307
    %v3404 = vpack.c.b16 %v3312, %v3308
    %v3405 = vpack.c.b16 %v3313, %v3309
    %v3406 = vpack.c.b16 %v3318, %v3314
    %v3407 = vpack.c.b16 %v3319, %v3315
    %v3408 = vpack.c.b16 %v3320, %v3316
    %v3409 = vpack.c.b16 %v3321, %v3317
    %v3410 = vpack.c.b16 %v3326, %v3322
    %v3411 = vpack.c.b16 %v3327, %v3323
    %v3412 = vpack.c.b16 %v3328, %v3324
    %v3413 = vpack.c.b16 %v3329, %v3325
    %v3414 = vpack.c.b16 %v3334, %v3330
    %v3415 = vpack.c.b16 %v3335, %v3331
    %v3416 = vpack.c.b16 %v3336, %v3332
    %v3417 = vpack.c.b16 %v3337, %v3333
    %v3418 = vpack.c.b16 %v3342, %v3338
    %v3419 = vpack.c.b16 %v3343, %v3339
    %v3420 = vpack.c.b16 %v3344, %v3340
    %v3421 = vpack.c.b16 %v3345, %v3341
    %v3422 = vpack.c.b16 %v3350, %v3346
    %v3423 = vpack.c.b16 %v3351, %v3347
    %v3424 = vpack.c.b16 %v3352, %v3348
    %v3425 = vpack.c.b16 %v3353, %v3349
    %v3426 = vpack.c.b16 %v3358, %v3354
    %v3427 = vpack.c.b16 %v3359, %v3355
    %v3428 = vpack.c.b16 %v3360, %v3356
    %v3429 = vpack.c.b16 %v3361, %v3357
    %v3430 = vpack.c.b16 %v3366, %v3362
    %v3431 = vpack.c.b16 %v3367, %v3363
    %v3432 = vpack.c.b16 %v3368, %v3364
    %v3433 = vpack.c.b16 %v3369, %v3365
    %3498 = vmatpush.bf16.msra.mxu0 %v3398
    %3499 = vmatpush.bf16.msra.mxu0 %v3394
    %3500 = vmatpush.bf16.msra.mxu0 %v3390
    %3501 = vmatpush.bf16.msra.mxu0 %v3386
    %3502 = vmatpush.bf16.msra.mxu0 %v3382
    %3503 = vmatpush.bf16.msra.mxu0 %v3378
    %3504 = vmatpush.bf16.msra.mxu0 %v3374
    %3505 = vmatpush.bf16.msra.mxu0 %v3370
    %3506 = vmatmul.bf16.gmra.mxu0 %v3109
    %v3507 = vpop.f32.mrf.mxu0
    %v3508 = vadd.f32 0.0, %v3507
    %v3509 = vpop.f32.mrf.mxu0
    %v3510 = vadd.f32 0.0, %v3509
    %3511 = vmatmul.bf16.gmra.mxu0 %v3111
    %v3512 = vpop.f32.mrf.mxu0
    %v3513 = vadd.f32 0.0, %v3512
    %v3514 = vpop.f32.mrf.mxu0
    %v3515 = vadd.f32 0.0, %v3514
    %3516 = vdwg.mxu0
    %3517 = vmatpush.bf16.msra.mxu0 %v3430
    %3518 = vmatpush.bf16.msra.mxu0 %v3426
    %3519 = vmatpush.bf16.msra.mxu0 %v3422
    %3520 = vmatpush.bf16.msra.mxu0 %v3418
    %3521 = vmatpush.bf16.msra.mxu0 %v3414
    %3522 = vmatpush.bf16.msra.mxu0 %v3410
    %3523 = vmatpush.bf16.msra.mxu0 %v3406
    %3524 = vmatpush.bf16.msra.mxu0 %v3402
    %3525 = vmatmul.bf16.gmra.mxu0 %v3110
    %v3526 = vpop.f32.mrf.mxu0
    %v3527 = vadd.f32 %v3508, %v3526
    %v3528 = vpop.f32.mrf.mxu0
    %v3529 = vadd.f32 %v3510, %v3528
    %3530 = vmatmul.bf16.gmra.mxu0 %v3112
    %v3531 = vpop.f32.mrf.mxu0
    %v3532 = vadd.f32 %v3513, %v3531
    %v3533 = vpop.f32.mrf.mxu0
    %v3534 = vadd.f32 %v3515, %v3533
    %3535 = vdwg.mxu0
    %3536 = vmatpush.bf16.msra.mxu0 %v3399
    %3537 = vmatpush.bf16.msra.mxu0 %v3395
    %3538 = vmatpush.bf16.msra.mxu0 %v3391
    %3539 = vmatpush.bf16.msra.mxu0 %v3387
    %3540 = vmatpush.bf16.msra.mxu0 %v3383
    %3541 = vmatpush.bf16.msra.mxu0 %v3379
    %3542 = vmatpush.bf16.msra.mxu0 %v3375
    %3543 = vmatpush.bf16.msra.mxu0 %v3371
    %3544 = vmatmul.bf16.gmra.mxu0 %v3109
    %v3545 = vpop.f32.mrf.mxu0
    %v3546 = vadd.f32 0.0, %v3545
    %v3547 = vpop.f32.mrf.mxu0
    %v3548 = vadd.f32 0.0, %v3547
    %3549 = vmatmul.bf16.gmra.mxu0 %v3111
    %v3550 = vpop.f32.mrf.mxu0
    %v3551 = vadd.f32 0.0, %v3550
    %v3552 = vpop.f32.mrf.mxu0
    %v3553 = vadd.f32 0.0, %v3552
    %3554 = vdwg.mxu0
    %3555 = vmatpush.bf16.msra.mxu0 %v3431
    %3556 = vmatpush.bf16.msra.mxu0 %v3427
    %3557 = vmatpush.bf16.msra.mxu0 %v3423
    %3558 = vmatpush.bf16.msra.mxu0 %v3419
    %3559 = vmatpush.bf16.msra.mxu0 %v3415
    %3560 = vmatpush.bf16.msra.mxu0 %v3411
    %3561 = vmatpush.bf16.msra.mxu0 %v3407
    %3562 = vmatpush.bf16.msra.mxu0 %v3403
    %3563 = vmatmul.bf16.gmra.mxu0 %v3110
    %v3564 = vpop.f32.mrf.mxu0
    %v3565 = vadd.f32 %v3546, %v3564
    %v3566 = vpop.f32.mrf.mxu0
    %v3567 = vadd.f32 %v3548, %v3566
    %3568 = vmatmul.bf16.gmra.mxu0 %v3112
    %v3569 = vpop.f32.mrf.mxu0
    %v3570 = vadd.f32 %v3551, %v3569
    %v3571 = vpop.f32.mrf.mxu0
    %v3572 = vadd.f32 %v3553, %v3571
    %3573 = vdwg.mxu0
    %3574 = vmatpush.bf16.msra.mxu0 %v3400
    %3575 = vmatpush.bf16.msra.mxu0 %v3396
    %3576 = vmatpush.bf16.msra.mxu0 %v3392
    %3577 = vmatpush.bf16.msra.mxu0 %v3388
    %3578 = vmatpush.bf16.msra.mxu0 %v3384
    %3579 = vmatpush.bf16.msra.mxu0 %v3380
    %3580 = vmatpush.bf16.msra.mxu0 %v3376
    %3581 = vmatpush.bf16.msra.mxu0 %v3372
    %3582 = vmatmul.bf16.gmra.mxu0 %v3109
    %v3583 = vpop.f32.mrf.mxu0
    %v3584 = vadd.f32 0.0, %v3583
    %v3585 = vpop.f32.mrf.mxu0
    %v3586 = vadd.f32 0.0, %v3585
    %3587 = vmatmul.bf16.gmra.mxu0 %v3111
    %v3588 = vpop.f32.mrf.mxu0
    %v3589 = vadd.f32 0.0, %v3588
    %v3590 = vpop.f32.mrf.mxu0
    %v3591 = vadd.f32 0.0, %v3590
    %3592 = vdwg.mxu0
    %3593 = vmatpush.bf16.msra.mxu0 %v3432
    %3594 = vmatpush.bf16.msra.mxu0 %v3428
    %3595 = vmatpush.bf16.msra.mxu0 %v3424
    %3596 = vmatpush.bf16.msra.mxu0 %v3420
    %3597 = vmatpush.bf16.msra.mxu0 %v3416
    %3598 = vmatpush.bf16.msra.mxu0 %v3412
    %3599 = vmatpush.bf16.msra.mxu0 %v3408
    %3600 = vmatpush.bf16.msra.mxu0 %v3404
    %3601 = vmatmul.bf16.gmra.mxu0 %v3110
    %v3602 = vpop.f32.mrf.mxu0
    %v3603 = vadd.f32 %v3584, %v3602
    %v3604 = vpop.f32.mrf.mxu0
    %v3605 = vadd.f32 %v3586, %v3604
    %3606 = vmatmul.bf16.gmra.mxu0 %v3112
    %v3607 = vpop.f32.mrf.mxu0
    %v3608 = vadd.f32 %v3589, %v3607
    %v3609 = vpop.f32.mrf.mxu0
    %v3610 = vadd.f32 %v3591, %v3609
    %3611 = vdwg.mxu0
    %3612 = vmatpush.bf16.msra.mxu0 %v3401
    %3613 = vmatpush.bf16.msra.mxu0 %v3397
    %3614 = vmatpush.bf16.msra.mxu0 %v3393
    %3615 = vmatpush.bf16.msra.mxu0 %v3389
    %3616 = vmatpush.bf16.msra.mxu0 %v3385
    %3617 = vmatpush.bf16.msra.mxu0 %v3381
    %3618 = vmatpush.bf16.msra.mxu0 %v3377
    %3619 = vmatpush.bf16.msra.mxu0 %v3373
    %3620 = vmatmul.bf16.gmra.mxu0 %v3109
    %v3621 = vpop.f32.mrf.mxu0
    %v3622 = vadd.f32 0.0, %v3621
    %v3623 = vpop.f32.mrf.mxu0
    %v3624 = vadd.f32 0.0, %v3623
    %3625 = vmatmul.bf16.gmra.mxu0 %v3111
    %v3626 = vpop.f32.mrf.mxu0
    %v3627 = vadd.f32 0.0, %v3626
    %v3628 = vpop.f32.mrf.mxu0
    %v3629 = vadd.f32 0.0, %v3628
    %3630 = vdwg.mxu0
    %3631 = vmatpush.bf16.msra.mxu0 %v3433
    %3632 = vmatpush.bf16.msra.mxu0 %v3429
    %3633 = vmatpush.bf16.msra.mxu0 %v3425
    %3634 = vmatpush.bf16.msra.mxu0 %v3421
    %3635 = vmatpush.bf16.msra.mxu0 %v3417
    %3636 = vmatpush.bf16.msra.mxu0 %v3413
    %3637 = vmatpush.bf16.msra.mxu0 %v3409
    %3638 = vmatpush.bf16.msra.mxu0 %v3405
    %3639 = vmatmul.bf16.gmra.mxu0 %v3110
    %v3640 = vpop.f32.mrf.mxu0
    %v3641 = vadd.f32 %v3622, %v3640
    %v3642 = vpop.f32.mrf.mxu0
    %v3643 = vadd.f32 %v3624, %v3642
    %3644 = vmatmul.bf16.gmra.mxu0 %v3112
    %v3645 = vpop.f32.mrf.mxu0
    %v3646 = vadd.f32 %v3627, %v3645
    %v3647 = vpop.f32.mrf.mxu0
    %v3648 = vadd.f32 %v3629, %v3647
    %3649 = vdwg.mxu0
    %v3650 = vadd.f32 %v2618, %v3527
    %v3651 = vadd.f32 %v2656, %v3565
    %v3652 = vadd.f32 %v2694, %v3603
    %v3653 = vadd.f32 %v2732, %v3641
    %v3654 = vadd.f32 %v2620, %v3529
    %v3655 = vadd.f32 %v2658, %v3567
    %v3656 = vadd.f32 %v2696, %v3605
    %v3657 = vadd.f32 %v2734, %v3643
    %v3658 = vadd.f32 %v2623, %v3532
    %v3659 = vadd.f32 %v2661, %v3570
    %v3660 = vadd.f32 %v2699, %v3608
    %v3661 = vadd.f32 %v2737, %v3646
    %v3662 = vadd.f32 %v2625, %v3534
    %v3663 = vadd.f32 %v2663, %v3572
    %v3664 = vadd.f32 %v2701, %v3610
    %v3665 = vadd.f32 %v2739, %v3648
    %v3666 = vld [vmem:[%s0 + $0x18] sm:$0xff]
    %v3667 = vld [vmem:[%s0 + $0x48] sm:$0xff]
    %v3668 = vld [vmem:[%s0 + $0x78] sm:$0xff]
    %v3669 = vld [vmem:[%s0 + $0xa8] sm:$0xff]
    %v3674 = vunpack.c.l.b16 %v3666
    %v3675 = vunpack.c.h.b16 %v3666
    %v3676 = vunpack.c.l.b16 %v3667
    %v3677 = vunpack.c.h.b16 %v3667
    %v3678 = vunpack.c.l.b16 %v3668
    %v3679 = vunpack.c.h.b16 %v3668
    %v3680 = vunpack.c.l.b16 %v3669
    %v3681 = vunpack.c.h.b16 %v3669
    %v3682 = vpack.c.b16 %v3676, %v3674
    %v3683 = vpack.c.b16 %v3677, %v3675
    %v3684 = vpack.c.b16 %v3680, %v3678
    %v3685 = vpack.c.b16 %v3681, %v3679
    %3690 = vmatpush.bf16.msra.mxu0 %v743
    %3691 = vmatpush.bf16.msra.mxu0 %v735
    %3692 = vmatpush.bf16.msra.mxu0 %v727
    %3693 = vmatpush.bf16.msra.mxu0 %v719
    %3694 = vmatpush.bf16.msra.mxu0 %v711
    %3695 = vmatpush.bf16.msra.mxu0 %v703
    %3696 = vmatpush.bf16.msra.mxu0 %v695
    %3697 = vmatpush.bf16.msra.mxu0 %v687
    %3698 = vmatmul.bf16.gmra.mxu0 %v3682
    %v3699 = vpop.f32.mrf.mxu0
    %v3700 = vadd.f32 0.0, %v3699
    %v3701 = vpop.f32.mrf.mxu0
    %v3702 = vadd.f32 0.0, %v3701
    %3703 = vmatmul.bf16.gmra.mxu0 %v3684
    %v3704 = vpop.f32.mrf.mxu0
    %v3705 = vadd.f32 0.0, %v3704
    %v3706 = vpop.f32.mrf.mxu0
    %v3707 = vadd.f32 0.0, %v3706
    %3708 = vdwg.mxu0
    %3709 = vmatpush.bf16.msra.mxu0 %v807
    %3710 = vmatpush.bf16.msra.mxu0 %v799
    %3711 = vmatpush.bf16.msra.mxu0 %v791
    %3712 = vmatpush.bf16.msra.mxu0 %v783
    %3713 = vmatpush.bf16.msra.mxu0 %v775
    %3714 = vmatpush.bf16.msra.mxu0 %v767
    %3715 = vmatpush.bf16.msra.mxu0 %v759
    %3716 = vmatpush.bf16.msra.mxu0 %v751
    %3717 = vmatmul.bf16.gmra.mxu0 %v3683
    %v3718 = vpop.f32.mrf.mxu0
    %v3719 = vadd.f32 %v3700, %v3718
    %v3720 = vpop.f32.mrf.mxu0
    %v3721 = vadd.f32 %v3702, %v3720
    %3722 = vmatmul.bf16.gmra.mxu0 %v3685
    %v3723 = vpop.f32.mrf.mxu0
    %v3724 = vadd.f32 %v3705, %v3723
    %v3725 = vpop.f32.mrf.mxu0
    %v3726 = vadd.f32 %v3707, %v3725
    %3727 = vdwg.mxu0
    %3728 = vmatpush.bf16.msra.mxu0 %v744
    %3729 = vmatpush.bf16.msra.mxu0 %v736
    %3730 = vmatpush.bf16.msra.mxu0 %v728
    %3731 = vmatpush.bf16.msra.mxu0 %v720
    %3732 = vmatpush.bf16.msra.mxu0 %v712
    %3733 = vmatpush.bf16.msra.mxu0 %v704
    %3734 = vmatpush.bf16.msra.mxu0 %v696
    %3735 = vmatpush.bf16.msra.mxu0 %v688
    %3736 = vmatmul.bf16.gmra.mxu0 %v3682
    %v3737 = vpop.f32.mrf.mxu0
    %v3738 = vadd.f32 0.0, %v3737
    %v3739 = vpop.f32.mrf.mxu0
    %v3740 = vadd.f32 0.0, %v3739
    %3741 = vmatmul.bf16.gmra.mxu0 %v3684
    %v3742 = vpop.f32.mrf.mxu0
    %v3743 = vadd.f32 0.0, %v3742
    %v3744 = vpop.f32.mrf.mxu0
    %v3745 = vadd.f32 0.0, %v3744
    %3746 = vdwg.mxu0
    %3747 = vmatpush.bf16.msra.mxu0 %v808
    %3748 = vmatpush.bf16.msra.mxu0 %v800
    %3749 = vmatpush.bf16.msra.mxu0 %v792
    %3750 = vmatpush.bf16.msra.mxu0 %v784
    %3751 = vmatpush.bf16.msra.mxu0 %v776
    %3752 = vmatpush.bf16.msra.mxu0 %v768
    %3753 = vmatpush.bf16.msra.mxu0 %v760
    %3754 = vmatpush.bf16.msra.mxu0 %v752
    %3755 = vmatmul.bf16.gmra.mxu0 %v3683
    %v3756 = vpop.f32.mrf.mxu0
    %v3757 = vadd.f32 %v3738, %v3756
    %v3758 = vpop.f32.mrf.mxu0
    %v3759 = vadd.f32 %v3740, %v3758
    %3760 = vmatmul.bf16.gmra.mxu0 %v3685
    %v3761 = vpop.f32.mrf.mxu0
    %v3762 = vadd.f32 %v3743, %v3761
    %v3763 = vpop.f32.mrf.mxu0
    %v3764 = vadd.f32 %v3745, %v3763
    %3765 = vdwg.mxu0
    %3766 = vmatpush.bf16.msra.mxu0 %v745
    %3767 = vmatpush.bf16.msra.mxu0 %v737
    %3768 = vmatpush.bf16.msra.mxu0 %v729
    %3769 = vmatpush.bf16.msra.mxu0 %v721
    %3770 = vmatpush.bf16.msra.mxu0 %v713
    %3771 = vmatpush.bf16.msra.mxu0 %v705
    %3772 = vmatpush.bf16.msra.mxu0 %v697
    %3773 = vmatpush.bf16.msra.mxu0 %v689
    %3774 = vmatmul.bf16.gmra.mxu0 %v3682
    %v3775 = vpop.f32.mrf.mxu0
    %v3776 = vadd.f32 0.0, %v3775
    %v3777 = vpop.f32.mrf.mxu0
    %v3778 = vadd.f32 0.0, %v3777
    %3779 = vmatmul.bf16.gmra.mxu0 %v3684
    %v3780 = vpop.f32.mrf.mxu0
    %v3781 = vadd.f32 0.0, %v3780
    %v3782 = vpop.f32.mrf.mxu0
    %v3783 = vadd.f32 0.0, %v3782
    %3784 = vdwg.mxu0
    %3785 = vmatpush.bf16.msra.mxu0 %v809
    %3786 = vmatpush.bf16.msra.mxu0 %v801
    %3787 = vmatpush.bf16.msra.mxu0 %v793
    %3788 = vmatpush.bf16.msra.mxu0 %v785
    %3789 = vmatpush.bf16.msra.mxu0 %v777
    %3790 = vmatpush.bf16.msra.mxu0 %v769
    %3791 = vmatpush.bf16.msra.mxu0 %v761
    %3792 = vmatpush.bf16.msra.mxu0 %v753
    %3793 = vmatmul.bf16.gmra.mxu0 %v3683
    %v3794 = vpop.f32.mrf.mxu0
    %v3795 = vadd.f32 %v3776, %v3794
    %v3796 = vpop.f32.mrf.mxu0
    %v3797 = vadd.f32 %v3778, %v3796
    %3798 = vmatmul.bf16.gmra.mxu0 %v3685
    %v3799 = vpop.f32.mrf.mxu0
    %v3800 = vadd.f32 %v3781, %v3799
    %v3801 = vpop.f32.mrf.mxu0
    %v3802 = vadd.f32 %v3783, %v3801
    %3803 = vdwg.mxu0
    %3804 = vmatpush.bf16.msra.mxu0 %v746
    %3805 = vmatpush.bf16.msra.mxu0 %v738
    %3806 = vmatpush.bf16.msra.mxu0 %v730
    %3807 = vmatpush.bf16.msra.mxu0 %v722
    %3808 = vmatpush.bf16.msra.mxu0 %v714
    %3809 = vmatpush.bf16.msra.mxu0 %v706
    %3810 = vmatpush.bf16.msra.mxu0 %v698
    %3811 = vmatpush.bf16.msra.mxu0 %v690
    %3812 = vmatmul.bf16.gmra.mxu0 %v3682
    %v3813 = vpop.f32.mrf.mxu0
    %v3814 = vadd.f32 0.0, %v3813
    %v3815 = vpop.f32.mrf.mxu0
    %v3816 = vadd.f32 0.0, %v3815
    %3817 = vmatmul.bf16.gmra.mxu0 %v3684
    %v3818 = vpop.f32.mrf.mxu0
    %v3819 = vadd.f32 0.0, %v3818
    %v3820 = vpop.f32.mrf.mxu0
    %v3821 = vadd.f32 0.0, %v3820
    %3822 = vdwg.mxu0
    %3823 = vmatpush.bf16.msra.mxu0 %v810
    %3824 = vmatpush.bf16.msra.mxu0 %v802
    %3825 = vmatpush.bf16.msra.mxu0 %v794
    %3826 = vmatpush.bf16.msra.mxu0 %v786
    %3827 = vmatpush.bf16.msra.mxu0 %v778
    %3828 = vmatpush.bf16.msra.mxu0 %v770
    %3829 = vmatpush.bf16.msra.mxu0 %v762
    %3830 = vmatpush.bf16.msra.mxu0 %v754
    %3831 = vmatmul.bf16.gmra.mxu0 %v3683
    %v3832 = vpop.f32.mrf.mxu0
    %v3833 = vadd.f32 %v3814, %v3832
    %v3834 = vpop.f32.mrf.mxu0
    %v3835 = vadd.f32 %v3816, %v3834
    %3836 = vmatmul.bf16.gmra.mxu0 %v3685
    %v3837 = vpop.f32.mrf.mxu0
    %v3838 = vadd.f32 %v3819, %v3837
    %v3839 = vpop.f32.mrf.mxu0
    %v3840 = vadd.f32 %v3821, %v3839
    %3841 = vdwg.mxu0
    %3842 = vmatpush.bf16.msra.mxu0 %v747
    %3843 = vmatpush.bf16.msra.mxu0 %v739
    %3844 = vmatpush.bf16.msra.mxu0 %v731
    %3845 = vmatpush.bf16.msra.mxu0 %v723
    %3846 = vmatpush.bf16.msra.mxu0 %v715
    %3847 = vmatpush.bf16.msra.mxu0 %v707
    %3848 = vmatpush.bf16.msra.mxu0 %v699
    %3849 = vmatpush.bf16.msra.mxu0 %v691
    %3850 = vmatmul.bf16.gmra.mxu0 %v3682
    %v3851 = vpop.f32.mrf.mxu0
    %v3852 = vadd.f32 0.0, %v3851
    %v3853 = vpop.f32.mrf.mxu0
    %v3854 = vadd.f32 0.0, %v3853
    %3855 = vmatmul.bf16.gmra.mxu0 %v3684
    %v3856 = vpop.f32.mrf.mxu0
    %v3857 = vadd.f32 0.0, %v3856
    %v3858 = vpop.f32.mrf.mxu0
    %v3859 = vadd.f32 0.0, %v3858
    %3860 = vdwg.mxu0
    %3861 = vmatpush.bf16.msra.mxu0 %v811
    %3862 = vmatpush.bf16.msra.mxu0 %v803
    %3863 = vmatpush.bf16.msra.mxu0 %v795
    %3864 = vmatpush.bf16.msra.mxu0 %v787
    %3865 = vmatpush.bf16.msra.mxu0 %v779
    %3866 = vmatpush.bf16.msra.mxu0 %v771
    %3867 = vmatpush.bf16.msra.mxu0 %v763
    %3868 = vmatpush.bf16.msra.mxu0 %v755
    %3869 = vmatmul.bf16.gmra.mxu0 %v3683
    %v3870 = vpop.f32.mrf.mxu0
    %v3871 = vadd.f32 %v3852, %v3870
    %v3872 = vpop.f32.mrf.mxu0
    %v3873 = vadd.f32 %v3854, %v3872
    %3874 = vmatmul.bf16.gmra.mxu0 %v3685
    %v3875 = vpop.f32.mrf.mxu0
    %v3876 = vadd.f32 %v3857, %v3875
    %v3877 = vpop.f32.mrf.mxu0
    %v3878 = vadd.f32 %v3859, %v3877
    %3879 = vdwg.mxu0
    %3880 = vmatpush.bf16.msra.mxu0 %v748
    %3881 = vmatpush.bf16.msra.mxu0 %v740
    %3882 = vmatpush.bf16.msra.mxu0 %v732
    %3883 = vmatpush.bf16.msra.mxu0 %v724
    %3884 = vmatpush.bf16.msra.mxu0 %v716
    %3885 = vmatpush.bf16.msra.mxu0 %v708
    %3886 = vmatpush.bf16.msra.mxu0 %v700
    %3887 = vmatpush.bf16.msra.mxu0 %v692
    %3888 = vmatmul.bf16.gmra.mxu0 %v3682
    %v3889 = vpop.f32.mrf.mxu0
    %v3890 = vadd.f32 0.0, %v3889
    %v3891 = vpop.f32.mrf.mxu0
    %v3892 = vadd.f32 0.0, %v3891
    %3893 = vmatmul.bf16.gmra.mxu0 %v3684
    %v3894 = vpop.f32.mrf.mxu0
    %v3895 = vadd.f32 0.0, %v3894
    %v3896 = vpop.f32.mrf.mxu0
    %v3897 = vadd.f32 0.0, %v3896
    %3898 = vdwg.mxu0
    %3899 = vmatpush.bf16.msra.mxu0 %v812
    %3900 = vmatpush.bf16.msra.mxu0 %v804
    %3901 = vmatpush.bf16.msra.mxu0 %v796
    %3902 = vmatpush.bf16.msra.mxu0 %v788
    %3903 = vmatpush.bf16.msra.mxu0 %v780
    %3904 = vmatpush.bf16.msra.mxu0 %v772
    %3905 = vmatpush.bf16.msra.mxu0 %v764
    %3906 = vmatpush.bf16.msra.mxu0 %v756
    %3907 = vmatmul.bf16.gmra.mxu0 %v3683
    %v3908 = vpop.f32.mrf.mxu0
    %v3909 = vadd.f32 %v3890, %v3908
    %v3910 = vpop.f32.mrf.mxu0
    %v3911 = vadd.f32 %v3892, %v3910
    %3912 = vmatmul.bf16.gmra.mxu0 %v3685
    %v3913 = vpop.f32.mrf.mxu0
    %v3914 = vadd.f32 %v3895, %v3913
    %v3915 = vpop.f32.mrf.mxu0
    %v3916 = vadd.f32 %v3897, %v3915
    %3917 = vdwg.mxu0
    %3918 = vmatpush.bf16.msra.mxu0 %v749
    %3919 = vmatpush.bf16.msra.mxu0 %v741
    %3920 = vmatpush.bf16.msra.mxu0 %v733
    %3921 = vmatpush.bf16.msra.mxu0 %v725
    %3922 = vmatpush.bf16.msra.mxu0 %v717
    %3923 = vmatpush.bf16.msra.mxu0 %v709
    %3924 = vmatpush.bf16.msra.mxu0 %v701
    %3925 = vmatpush.bf16.msra.mxu0 %v693
    %3926 = vmatmul.bf16.gmra.mxu0 %v3682
    %v3927 = vpop.f32.mrf.mxu0
    %v3928 = vadd.f32 0.0, %v3927
    %v3929 = vpop.f32.mrf.mxu0
    %v3930 = vadd.f32 0.0, %v3929
    %3931 = vmatmul.bf16.gmra.mxu0 %v3684
    %v3932 = vpop.f32.mrf.mxu0
    %v3933 = vadd.f32 0.0, %v3932
    %v3934 = vpop.f32.mrf.mxu0
    %v3935 = vadd.f32 0.0, %v3934
    %3936 = vdwg.mxu0
    %3937 = vmatpush.bf16.msra.mxu0 %v813
    %3938 = vmatpush.bf16.msra.mxu0 %v805
    %3939 = vmatpush.bf16.msra.mxu0 %v797
    %3940 = vmatpush.bf16.msra.mxu0 %v789
    %3941 = vmatpush.bf16.msra.mxu0 %v781
    %3942 = vmatpush.bf16.msra.mxu0 %v773
    %3943 = vmatpush.bf16.msra.mxu0 %v765
    %3944 = vmatpush.bf16.msra.mxu0 %v757
    %3945 = vmatmul.bf16.gmra.mxu0 %v3683
    %v3946 = vpop.f32.mrf.mxu0
    %v3947 = vadd.f32 %v3928, %v3946
    %v3948 = vpop.f32.mrf.mxu0
    %v3949 = vadd.f32 %v3930, %v3948
    %3950 = vmatmul.bf16.gmra.mxu0 %v3685
    %v3951 = vpop.f32.mrf.mxu0
    %v3952 = vadd.f32 %v3933, %v3951
    %v3953 = vpop.f32.mrf.mxu0
    %v3954 = vadd.f32 %v3935, %v3953
    %3955 = vdwg.mxu0
    %3956 = vmatpush.bf16.msra.mxu0 %v750
    %3957 = vmatpush.bf16.msra.mxu0 %v742
    %3958 = vmatpush.bf16.msra.mxu0 %v734
    %3959 = vmatpush.bf16.msra.mxu0 %v726
    %3960 = vmatpush.bf16.msra.mxu0 %v718
    %3961 = vmatpush.bf16.msra.mxu0 %v710
    %3962 = vmatpush.bf16.msra.mxu0 %v702
    %3963 = vmatpush.bf16.msra.mxu0 %v694
    %3964 = vmatmul.bf16.gmra.mxu0 %v3682
    %v3965 = vpop.f32.mrf.mxu0
    %v3966 = vadd.f32 0.0, %v3965
    %v3967 = vpop.f32.mrf.mxu0
    %v3968 = vadd.f32 0.0, %v3967
    %3969 = vmatmul.bf16.gmra.mxu0 %v3684
    %v3970 = vpop.f32.mrf.mxu0
    %v3971 = vadd.f32 0.0, %v3970
    %v3972 = vpop.f32.mrf.mxu0
    %v3973 = vadd.f32 0.0, %v3972
    %3974 = vdwg.mxu0
    %3975 = vmatpush.bf16.msra.mxu0 %v814
    %3976 = vmatpush.bf16.msra.mxu0 %v806
    %3977 = vmatpush.bf16.msra.mxu0 %v798
    %3978 = vmatpush.bf16.msra.mxu0 %v790
    %3979 = vmatpush.bf16.msra.mxu0 %v782
    %3980 = vmatpush.bf16.msra.mxu0 %v774
    %3981 = vmatpush.bf16.msra.mxu0 %v766
    %3982 = vmatpush.bf16.msra.mxu0 %v758
    %3983 = vmatmul.bf16.gmra.mxu0 %v3683
    %v3984 = vpop.f32.mrf.mxu0
    %v3985 = vadd.f32 %v3966, %v3984
    %v3986 = vpop.f32.mrf.mxu0
    %v3987 = vadd.f32 %v3968, %v3986
    %3988 = vmatmul.bf16.gmra.mxu0 %v3685
    %v3989 = vpop.f32.mrf.mxu0
    %v3990 = vadd.f32 %v3971, %v3989
    %v3991 = vpop.f32.mrf.mxu0
    %v3992 = vadd.f32 %v3973, %v3991
    %3993 = vdwg.mxu0
    %v3994 = vmax.f32 %v3719, %v3795
    %v3995 = vmax.f32 %v3757, %v3833
    %v3996 = vmax.f32 %v3721, %v3797
    %v3997 = vmax.f32 %v3759, %v3835
    %v3998 = vmax.f32 %v3724, %v3800
    %v3999 = vmax.f32 %v3762, %v3838
    %v4000 = vmax.f32 %v3726, %v3802
    %v4001 = vmax.f32 %v3764, %v3840
    %v4002 = vmax.f32 %v3871, %v3947
    %v4003 = vmax.f32 %v3909, %v3985
    %v4004 = vmax.f32 %v3873, %v3949
    %v4005 = vmax.f32 %v3911, %v3987
    %v4006 = vmax.f32 %v3876, %v3952
    %v4007 = vmax.f32 %v3914, %v3990
    %v4008 = vmax.f32 %v3878, %v3954
    %v4009 = vmax.f32 %v3916, %v3992
    %v4010 = vmax.f32 %v3994, %v4002
    %v4011 = vmax.f32 %v3995, %v4003
    %v4012 = vmax.f32 %v3996, %v4004
    %v4013 = vmax.f32 %v3997, %v4005
    %v4014 = vmax.f32 %v3998, %v4006
    %v4015 = vmax.f32 %v3999, %v4007
    %v4016 = vmax.f32 %v4000, %v4008
    %v4017 = vmax.f32 %v4001, %v4009
    %v4018 = vadd.f32 %v4010, %v1272
    %v4019 = vadd.f32 %v4011, %v1273
    %v4020 = vadd.f32 %v4012, %v1272
    %v4021 = vadd.f32 %v4013, %v1273
    %v4022 = vadd.f32 %v4014, %v1272
    %v4023 = vadd.f32 %v4015, %v1273
    %v4024 = vadd.f32 %v4016, %v1272
    %v4025 = vadd.f32 %v4017, %v1273
    %v4026 = vmax.f32 %v4018, 0.0
    %v4027 = vmax.f32 %v4019, 0.0
    %v4028 = vmax.f32 %v4020, 0.0
    %v4029 = vmax.f32 %v4021, 0.0
    %v4030 = vmax.f32 %v4022, 0.0
    %v4031 = vmax.f32 %v4023, 0.0
    %v4032 = vmax.f32 %v4024, 0.0
    %v4033 = vmax.f32 %v4025, 0.0
    %v4034 = vpack.c.bf16 %v4028, %v4026
    %v4035 = vpack.c.bf16 %v4029, %v4027
    %v4036 = vpack.c.bf16 %v4032, %v4030
    %v4037 = vpack.c.bf16 %v4033, %v4031
    %s4038 = scalar_lea.vmem [#allocation6], 1536
    %v4039 = vld [vmem:[%s4038] sm:$0xff]
    %v4040 = vld [vmem:[%s4038 + $0x8] sm:$0xff]
    %v4041 = vld [vmem:[%s4038 + $0x10] sm:$0xff]
    %v4042 = vld [vmem:[%s4038 + $0x18] sm:$0xff]
    %v4043 = vld [vmem:[%s4038 + $0x20] sm:$0xff]
    %v4044 = vld [vmem:[%s4038 + $0x28] sm:$0xff]
    %v4045 = vld [vmem:[%s4038 + $0x30] sm:$0xff]
    %v4046 = vld [vmem:[%s4038 + $0x38] sm:$0xff]
    %v4047 = vld [vmem:[%s4038 + $0x40] sm:$0xff]
    %v4048 = vld [vmem:[%s4038 + $0x48] sm:$0xff]
    %v4049 = vld [vmem:[%s4038 + $0x50] sm:$0xff]
    %v4050 = vld [vmem:[%s4038 + $0x58] sm:$0xff]
    %v4051 = vld [vmem:[%s4038 + $0x60] sm:$0xff]
    %v4052 = vld [vmem:[%s4038 + $0x68] sm:$0xff]
    %v4053 = vld [vmem:[%s4038 + $0x70] sm:$0xff]
    %v4054 = vld [vmem:[%s4038 + $0x78] sm:$0xff]
    %v4055 = vld [vmem:[%s4038 + $0x80] sm:$0xff]
    %v4056 = vld [vmem:[%s4038 + $0x88] sm:$0xff]
    %v4057 = vld [vmem:[%s4038 + $0x90] sm:$0xff]
    %v4058 = vld [vmem:[%s4038 + $0x98] sm:$0xff]
    %v4059 = vld [vmem:[%s4038 + $0xa0] sm:$0xff]
    %v4060 = vld [vmem:[%s4038 + $0xa8] sm:$0xff]
    %v4061 = vld [vmem:[%s4038 + $0xb0] sm:$0xff]
    %v4062 = vld [vmem:[%s4038 + $0xb8] sm:$0xff]
    %v4063 = vld [vmem:[%s4038 + $0xc0] sm:$0xff]
    %v4064 = vld [vmem:[%s4038 + $0xc8] sm:$0xff]
    %v4065 = vld [vmem:[%s4038 + $0xd0] sm:$0xff]
    %v4066 = vld [vmem:[%s4038 + $0xd8] sm:$0xff]
    %v4067 = vld [vmem:[%s4038 + $0xe0] sm:$0xff]
    %v4068 = vld [vmem:[%s4038 + $0xe8] sm:$0xff]
    %v4069 = vld [vmem:[%s4038 + $0xf0] sm:$0xff]
    %v4070 = vld [vmem:[%s4038 + $0xf8] sm:$0xff]
    %v4071 = vld [vmem:[%s4038 + $0x100] sm:$0xff]
    %v4072 = vld [vmem:[%s4038 + $0x108] sm:$0xff]
    %v4073 = vld [vmem:[%s4038 + $0x110] sm:$0xff]
    %v4074 = vld [vmem:[%s4038 + $0x118] sm:$0xff]
    %v4075 = vld [vmem:[%s4038 + $0x120] sm:$0xff]
    %v4076 = vld [vmem:[%s4038 + $0x128] sm:$0xff]
    %v4077 = vld [vmem:[%s4038 + $0x130] sm:$0xff]
    %v4078 = vld [vmem:[%s4038 + $0x138] sm:$0xff]
    %v4079 = vld [vmem:[%s4038 + $0x140] sm:$0xff]
    %v4080 = vld [vmem:[%s4038 + $0x148] sm:$0xff]
    %v4081 = vld [vmem:[%s4038 + $0x150] sm:$0xff]
    %v4082 = vld [vmem:[%s4038 + $0x158] sm:$0xff]
    %v4083 = vld [vmem:[%s4038 + $0x160] sm:$0xff]
    %v4084 = vld [vmem:[%s4038 + $0x168] sm:$0xff]
    %v4085 = vld [vmem:[%s4038 + $0x170] sm:$0xff]
    %v4086 = vld [vmem:[%s4038 + $0x178] sm:$0xff]
    %v4087 = vld [vmem:[%s4038 + $0x180] sm:$0xff]
    %v4088 = vld [vmem:[%s4038 + $0x188] sm:$0xff]
    %v4089 = vld [vmem:[%s4038 + $0x190] sm:$0xff]
    %v4090 = vld [vmem:[%s4038 + $0x198] sm:$0xff]
    %v4091 = vld [vmem:[%s4038 + $0x1a0] sm:$0xff]
    %v4092 = vld [vmem:[%s4038 + $0x1a8] sm:$0xff]
    %v4093 = vld [vmem:[%s4038 + $0x1b0] sm:$0xff]
    %v4094 = vld [vmem:[%s4038 + $0x1b8] sm:$0xff]
    %v4095 = vld [vmem:[%s4038 + $0x1c0] sm:$0xff]
    %v4096 = vld [vmem:[%s4038 + $0x1c8] sm:$0xff]
    %v4097 = vld [vmem:[%s4038 + $0x1d0] sm:$0xff]
    %v4098 = vld [vmem:[%s4038 + $0x1d8] sm:$0xff]
    %v4099 = vld [vmem:[%s4038 + $0x1e0] sm:$0xff]
    %v4100 = vld [vmem:[%s4038 + $0x1e8] sm:$0xff]
    %v4101 = vld [vmem:[%s4038 + $0x1f0] sm:$0xff]
    %v4102 = vld [vmem:[%s4038 + $0x1f8] sm:$0xff]
    %v4167 = vunpack.c.l.b16 %v4039
    %v4168 = vunpack.c.h.b16 %v4039
    %v4169 = vunpack.c.l.b16 %v4040
    %v4170 = vunpack.c.h.b16 %v4040
    %v4171 = vunpack.c.l.b16 %v4041
    %v4172 = vunpack.c.h.b16 %v4041
    %v4173 = vunpack.c.l.b16 %v4042
    %v4174 = vunpack.c.h.b16 %v4042
    %v4175 = vunpack.c.l.b16 %v4043
    %v4176 = vunpack.c.h.b16 %v4043
    %v4177 = vunpack.c.l.b16 %v4044
    %v4178 = vunpack.c.h.b16 %v4044
    %v4179 = vunpack.c.l.b16 %v4045
    %v4180 = vunpack.c.h.b16 %v4045
    %v4181 = vunpack.c.l.b16 %v4046
    %v4182 = vunpack.c.h.b16 %v4046
    %v4183 = vunpack.c.l.b16 %v4047
    %v4184 = vunpack.c.h.b16 %v4047
    %v4185 = vunpack.c.l.b16 %v4048
    %v4186 = vunpack.c.h.b16 %v4048
    %v4187 = vunpack.c.l.b16 %v4049
    %v4188 = vunpack.c.h.b16 %v4049
    %v4189 = vunpack.c.l.b16 %v4050
    %v4190 = vunpack.c.h.b16 %v4050
    %v4191 = vunpack.c.l.b16 %v4051
    %v4192 = vunpack.c.h.b16 %v4051
    %v4193 = vunpack.c.l.b16 %v4052
    %v4194 = vunpack.c.h.b16 %v4052
    %v4195 = vunpack.c.l.b16 %v4053
    %v4196 = vunpack.c.h.b16 %v4053
    %v4197 = vunpack.c.l.b16 %v4054
    %v4198 = vunpack.c.h.b16 %v4054
    %v4199 = vunpack.c.l.b16 %v4055
    %v4200 = vunpack.c.h.b16 %v4055
    %v4201 = vunpack.c.l.b16 %v4056
    %v4202 = vunpack.c.h.b16 %v4056
    %v4203 = vunpack.c.l.b16 %v4057
    %v4204 = vunpack.c.h.b16 %v4057
    %v4205 = vunpack.c.l.b16 %v4058
    %v4206 = vunpack.c.h.b16 %v4058
    %v4207 = vunpack.c.l.b16 %v4059
    %v4208 = vunpack.c.h.b16 %v4059
    %v4209 = vunpack.c.l.b16 %v4060
    %v4210 = vunpack.c.h.b16 %v4060
    %v4211 = vunpack.c.l.b16 %v4061
    %v4212 = vunpack.c.h.b16 %v4061
    %v4213 = vunpack.c.l.b16 %v4062
    %v4214 = vunpack.c.h.b16 %v4062
    %v4215 = vunpack.c.l.b16 %v4063
    %v4216 = vunpack.c.h.b16 %v4063
    %v4217 = vunpack.c.l.b16 %v4064
    %v4218 = vunpack.c.h.b16 %v4064
    %v4219 = vunpack.c.l.b16 %v4065
    %v4220 = vunpack.c.h.b16 %v4065
    %v4221 = vunpack.c.l.b16 %v4066
    %v4222 = vunpack.c.h.b16 %v4066
    %v4223 = vunpack.c.l.b16 %v4067
    %v4224 = vunpack.c.h.b16 %v4067
    %v4225 = vunpack.c.l.b16 %v4068
    %v4226 = vunpack.c.h.b16 %v4068
    %v4227 = vunpack.c.l.b16 %v4069
    %v4228 = vunpack.c.h.b16 %v4069
    %v4229 = vunpack.c.l.b16 %v4070
    %v4230 = vunpack.c.h.b16 %v4070
    %v4231 = vunpack.c.l.b16 %v4071
    %v4232 = vunpack.c.h.b16 %v4071
    %v4233 = vunpack.c.l.b16 %v4072
    %v4234 = vunpack.c.h.b16 %v4072
    %v4235 = vunpack.c.l.b16 %v4073
    %v4236 = vunpack.c.h.b16 %v4073
    %v4237 = vunpack.c.l.b16 %v4074
    %v4238 = vunpack.c.h.b16 %v4074
    %v4239 = vunpack.c.l.b16 %v4075
    %v4240 = vunpack.c.h.b16 %v4075
    %v4241 = vunpack.c.l.b16 %v4076
    %v4242 = vunpack.c.h.b16 %v4076
    %v4243 = vunpack.c.l.b16 %v4077
    %v4244 = vunpack.c.h.b16 %v4077
    %v4245 = vunpack.c.l.b16 %v4078
    %v4246 = vunpack.c.h.b16 %v4078
    %v4247 = vunpack.c.l.b16 %v4079
    %v4248 = vunpack.c.h.b16 %v4079
    %v4249 = vunpack.c.l.b16 %v4080
    %v4250 = vunpack.c.h.b16 %v4080
    %v4251 = vunpack.c.l.b16 %v4081
    %v4252 = vunpack.c.h.b16 %v4081
    %v4253 = vunpack.c.l.b16 %v4082
    %v4254 = vunpack.c.h.b16 %v4082
    %v4255 = vunpack.c.l.b16 %v4083
    %v4256 = vunpack.c.h.b16 %v4083
    %v4257 = vunpack.c.l.b16 %v4084
    %v4258 = vunpack.c.h.b16 %v4084
    %v4259 = vunpack.c.l.b16 %v4085
    %v4260 = vunpack.c.h.b16 %v4085
    %v4261 = vunpack.c.l.b16 %v4086
    %v4262 = vunpack.c.h.b16 %v4086
    %v4263 = vunpack.c.l.b16 %v4087
    %v4264 = vunpack.c.h.b16 %v4087
    %v4265 = vunpack.c.l.b16 %v4088
    %v4266 = vunpack.c.h.b16 %v4088
    %v4267 = vunpack.c.l.b16 %v4089
    %v4268 = vunpack.c.h.b16 %v4089
    %v4269 = vunpack.c.l.b16 %v4090
    %v4270 = vunpack.c.h.b16 %v4090
    %v4271 = vunpack.c.l.b16 %v4091
    %v4272 = vunpack.c.h.b16 %v4091
    %v4273 = vunpack.c.l.b16 %v4092
    %v4274 = vunpack.c.h.b16 %v4092
    %v4275 = vunpack.c.l.b16 %v4093
    %v4276 = vunpack.c.h.b16 %v4093
    %v4277 = vunpack.c.l.b16 %v4094
    %v4278 = vunpack.c.h.b16 %v4094
    %v4279 = vunpack.c.l.b16 %v4095
    %v4280 = vunpack.c.h.b16 %v4095
    %v4281 = vunpack.c.l.b16 %v4096
    %v4282 = vunpack.c.h.b16 %v4096
    %v4283 = vunpack.c.l.b16 %v4097
    %v4284 = vunpack.c.h.b16 %v4097
    %v4285 = vunpack.c.l.b16 %v4098
    %v4286 = vunpack.c.h.b16 %v4098
    %v4287 = vunpack.c.l.b16 %v4099
    %v4288 = vunpack.c.h.b16 %v4099
    %v4289 = vunpack.c.l.b16 %v4100
    %v4290 = vunpack.c.h.b16 %v4100
    %v4291 = vunpack.c.l.b16 %v4101
    %v4292 = vunpack.c.h.b16 %v4101
    %v4293 = vunpack.c.l.b16 %v4102
    %v4294 = vunpack.c.h.b16 %v4102
    %v4295 = vpack.c.b16 %v4171, %v4167
    %v4296 = vpack.c.b16 %v4172, %v4168
    %v4297 = vpack.c.b16 %v4173, %v4169
    %v4298 = vpack.c.b16 %v4174, %v4170
    %v4299 = vpack.c.b16 %v4179, %v4175
    %v4300 = vpack.c.b16 %v4180, %v4176
    %v4301 = vpack.c.b16 %v4181, %v4177
    %v4302 = vpack.c.b16 %v4182, %v4178
    %v4303 = vpack.c.b16 %v4187, %v4183
    %v4304 = vpack.c.b16 %v4188, %v4184
    %v4305 = vpack.c.b16 %v4189, %v4185
    %v4306 = vpack.c.b16 %v4190, %v4186
    %v4307 = vpack.c.b16 %v4195, %v4191
    %v4308 = vpack.c.b16 %v4196, %v4192
    %v4309 = vpack.c.b16 %v4197, %v4193
    %v4310 = vpack.c.b16 %v4198, %v4194
    %v4311 = vpack.c.b16 %v4203, %v4199
    %v4312 = vpack.c.b16 %v4204, %v4200
    %v4313 = vpack.c.b16 %v4205, %v4201
    %v4314 = vpack.c.b16 %v4206, %v4202
    %v4315 = vpack.c.b16 %v4211, %v4207
    %v4316 = vpack.c.b16 %v4212, %v4208
    %v4317 = vpack.c.b16 %v4213, %v4209
    %v4318 = vpack.c.b16 %v4214, %v4210
    %v4319 = vpack.c.b16 %v4219, %v4215
    %v4320 = vpack.c.b16 %v4220, %v4216
    %v4321 = vpack.c.b16 %v4221, %v4217
    %v4322 = vpack.c.b16 %v4222, %v4218
    %v4323 = vpack.c.b16 %v4227, %v4223
    %v4324 = vpack.c.b16 %v4228, %v4224
    %v4325 = vpack.c.b16 %v4229, %v4225
    %v4326 = vpack.c.b16 %v4230, %v4226
    %v4327 = vpack.c.b16 %v4235, %v4231
    %v4328 = vpack.c.b16 %v4236, %v4232
    %v4329 = vpack.c.b16 %v4237, %v4233
    %v4330 = vpack.c.b16 %v4238, %v4234
    %v4331 = vpack.c.b16 %v4243, %v4239
    %v4332 = vpack.c.b16 %v4244, %v4240
    %v4333 = vpack.c.b16 %v4245, %v4241
    %v4334 = vpack.c.b16 %v4246, %v4242
    %v4335 = vpack.c.b16 %v4251, %v4247
    %v4336 = vpack.c.b16 %v4252, %v4248
    %v4337 = vpack.c.b16 %v4253, %v4249
    %v4338 = vpack.c.b16 %v4254, %v4250
    %v4339 = vpack.c.b16 %v4259, %v4255
    %v4340 = vpack.c.b16 %v4260, %v4256
    %v4341 = vpack.c.b16 %v4261, %v4257
    %v4342 = vpack.c.b16 %v4262, %v4258
    %v4343 = vpack.c.b16 %v4267, %v4263
    %v4344 = vpack.c.b16 %v4268, %v4264
    %v4345 = vpack.c.b16 %v4269, %v4265
    %v4346 = vpack.c.b16 %v4270, %v4266
    %v4347 = vpack.c.b16 %v4275, %v4271
    %v4348 = vpack.c.b16 %v4276, %v4272
    %v4349 = vpack.c.b16 %v4277, %v4273
    %v4350 = vpack.c.b16 %v4278, %v4274
    %v4351 = vpack.c.b16 %v4283, %v4279
    %v4352 = vpack.c.b16 %v4284, %v4280
    %v4353 = vpack.c.b16 %v4285, %v4281
    %v4354 = vpack.c.b16 %v4286, %v4282
    %v4355 = vpack.c.b16 %v4291, %v4287
    %v4356 = vpack.c.b16 %v4292, %v4288
    %v4357 = vpack.c.b16 %v4293, %v4289
    %v4358 = vpack.c.b16 %v4294, %v4290
    %4423 = vmatpush.bf16.msra.mxu0 %v4323
    %4424 = vmatpush.bf16.msra.mxu0 %v4319
    %4425 = vmatpush.bf16.msra.mxu0 %v4315
    %4426 = vmatpush.bf16.msra.mxu0 %v4311
    %4427 = vmatpush.bf16.msra.mxu0 %v4307
    %4428 = vmatpush.bf16.msra.mxu0 %v4303
    %4429 = vmatpush.bf16.msra.mxu0 %v4299
    %4430 = vmatpush.bf16.msra.mxu0 %v4295
    %4431 = vmatmul.bf16.gmra.mxu0 %v4034
    %v4432 = vpop.f32.mrf.mxu0
    %v4433 = vadd.f32 0.0, %v4432
    %v4434 = vpop.f32.mrf.mxu0
    %v4435 = vadd.f32 0.0, %v4434
    %4436 = vmatmul.bf16.gmra.mxu0 %v4036
    %v4437 = vpop.f32.mrf.mxu0
    %v4438 = vadd.f32 0.0, %v4437
    %v4439 = vpop.f32.mrf.mxu0
    %v4440 = vadd.f32 0.0, %v4439
    %4441 = vdwg.mxu0
    %4442 = vmatpush.bf16.msra.mxu0 %v4355
    %4443 = vmatpush.bf16.msra.mxu0 %v4351
    %4444 = vmatpush.bf16.msra.mxu0 %v4347
    %4445 = vmatpush.bf16.msra.mxu0 %v4343
    %4446 = vmatpush.bf16.msra.mxu0 %v4339
    %4447 = vmatpush.bf16.msra.mxu0 %v4335
    %4448 = vmatpush.bf16.msra.mxu0 %v4331
    %4449 = vmatpush.bf16.msra.mxu0 %v4327
    %4450 = vmatmul.bf16.gmra.mxu0 %v4035
    %v4451 = vpop.f32.mrf.mxu0
    %v4452 = vadd.f32 %v4433, %v4451
    %v4453 = vpop.f32.mrf.mxu0
    %v4454 = vadd.f32 %v4435, %v4453
    %4455 = vmatmul.bf16.gmra.mxu0 %v4037
    %v4456 = vpop.f32.mrf.mxu0
    %v4457 = vadd.f32 %v4438, %v4456
    %v4458 = vpop.f32.mrf.mxu0
    %v4459 = vadd.f32 %v4440, %v4458
    %4460 = vdwg.mxu0
    %4461 = vmatpush.bf16.msra.mxu0 %v4324
    %4462 = vmatpush.bf16.msra.mxu0 %v4320
    %4463 = vmatpush.bf16.msra.mxu0 %v4316
    %4464 = vmatpush.bf16.msra.mxu0 %v4312
    %4465 = vmatpush.bf16.msra.mxu0 %v4308
    %4466 = vmatpush.bf16.msra.mxu0 %v4304
    %4467 = vmatpush.bf16.msra.mxu0 %v4300
    %4468 = vmatpush.bf16.msra.mxu0 %v4296
    %4469 = vmatmul.bf16.gmra.mxu0 %v4034
    %v4470 = vpop.f32.mrf.mxu0
    %v4471 = vadd.f32 0.0, %v4470
    %v4472 = vpop.f32.mrf.mxu0
    %v4473 = vadd.f32 0.0, %v4472
    %4474 = vmatmul.bf16.gmra.mxu0 %v4036
    %v4475 = vpop.f32.mrf.mxu0
    %v4476 = vadd.f32 0.0, %v4475
    %v4477 = vpop.f32.mrf.mxu0
    %v4478 = vadd.f32 0.0, %v4477
    %4479 = vdwg.mxu0
    %4480 = vmatpush.bf16.msra.mxu0 %v4356
    %4481 = vmatpush.bf16.msra.mxu0 %v4352
    %4482 = vmatpush.bf16.msra.mxu0 %v4348
    %4483 = vmatpush.bf16.msra.mxu0 %v4344
    %4484 = vmatpush.bf16.msra.mxu0 %v4340
    %4485 = vmatpush.bf16.msra.mxu0 %v4336
    %4486 = vmatpush.bf16.msra.mxu0 %v4332
    %4487 = vmatpush.bf16.msra.mxu0 %v4328
    %4488 = vmatmul.bf16.gmra.mxu0 %v4035
    %v4489 = vpop.f32.mrf.mxu0
    %v4490 = vadd.f32 %v4471, %v4489
    %v4491 = vpop.f32.mrf.mxu0
    %v4492 = vadd.f32 %v4473, %v4491
    %4493 = vmatmul.bf16.gmra.mxu0 %v4037
    %v4494 = vpop.f32.mrf.mxu0
    %v4495 = vadd.f32 %v4476, %v4494
    %v4496 = vpop.f32.mrf.mxu0
    %v4497 = vadd.f32 %v4478, %v4496
    %4498 = vdwg.mxu0
    %4499 = vmatpush.bf16.msra.mxu0 %v4325
    %4500 = vmatpush.bf16.msra.mxu0 %v4321
    %4501 = vmatpush.bf16.msra.mxu0 %v4317
    %4502 = vmatpush.bf16.msra.mxu0 %v4313
    %4503 = vmatpush.bf16.msra.mxu0 %v4309
    %4504 = vmatpush.bf16.msra.mxu0 %v4305
    %4505 = vmatpush.bf16.msra.mxu0 %v4301
    %4506 = vmatpush.bf16.msra.mxu0 %v4297
    %4507 = vmatmul.bf16.gmra.mxu0 %v4034
    %v4508 = vpop.f32.mrf.mxu0
    %v4509 = vadd.f32 0.0, %v4508
    %v4510 = vpop.f32.mrf.mxu0
    %v4511 = vadd.f32 0.0, %v4510
    %4512 = vmatmul.bf16.gmra.mxu0 %v4036
    %v4513 = vpop.f32.mrf.mxu0
    %v4514 = vadd.f32 0.0, %v4513
    %v4515 = vpop.f32.mrf.mxu0
    %v4516 = vadd.f32 0.0, %v4515
    %4517 = vdwg.mxu0
    %4518 = vmatpush.bf16.msra.mxu0 %v4357
    %4519 = vmatpush.bf16.msra.mxu0 %v4353
    %4520 = vmatpush.bf16.msra.mxu0 %v4349
    %4521 = vmatpush.bf16.msra.mxu0 %v4345
    %4522 = vmatpush.bf16.msra.mxu0 %v4341
    %4523 = vmatpush.bf16.msra.mxu0 %v4337
    %4524 = vmatpush.bf16.msra.mxu0 %v4333
    %4525 = vmatpush.bf16.msra.mxu0 %v4329
    %4526 = vmatmul.bf16.gmra.mxu0 %v4035
    %v4527 = vpop.f32.mrf.mxu0
    %v4528 = vadd.f32 %v4509, %v4527
    %v4529 = vpop.f32.mrf.mxu0
    %v4530 = vadd.f32 %v4511, %v4529
    %4531 = vmatmul.bf16.gmra.mxu0 %v4037
    %v4532 = vpop.f32.mrf.mxu0
    %v4533 = vadd.f32 %v4514, %v4532
    %v4534 = vpop.f32.mrf.mxu0
    %v4535 = vadd.f32 %v4516, %v4534
    %4536 = vdwg.mxu0
    %4537 = vmatpush.bf16.msra.mxu0 %v4326
    %4538 = vmatpush.bf16.msra.mxu0 %v4322
    %4539 = vmatpush.bf16.msra.mxu0 %v4318
    %4540 = vmatpush.bf16.msra.mxu0 %v4314
    %4541 = vmatpush.bf16.msra.mxu0 %v4310
    %4542 = vmatpush.bf16.msra.mxu0 %v4306
    %4543 = vmatpush.bf16.msra.mxu0 %v4302
    %4544 = vmatpush.bf16.msra.mxu0 %v4298
    %4545 = vmatmul.bf16.gmra.mxu0 %v4034
    %v4546 = vpop.f32.mrf.mxu0
    %v4547 = vadd.f32 0.0, %v4546
    %v4548 = vpop.f32.mrf.mxu0
    %v4549 = vadd.f32 0.0, %v4548
    %4550 = vmatmul.bf16.gmra.mxu0 %v4036
    %v4551 = vpop.f32.mrf.mxu0
    %v4552 = vadd.f32 0.0, %v4551
    %v4553 = vpop.f32.mrf.mxu0
    %v4554 = vadd.f32 0.0, %v4553
    %4555 = vdwg.mxu0
    %4556 = vmatpush.bf16.msra.mxu0 %v4358
    %4557 = vmatpush.bf16.msra.mxu0 %v4354
    %4558 = vmatpush.bf16.msra.mxu0 %v4350
    %4559 = vmatpush.bf16.msra.mxu0 %v4346
    %4560 = vmatpush.bf16.msra.mxu0 %v4342
    %4561 = vmatpush.bf16.msra.mxu0 %v4338
    %4562 = vmatpush.bf16.msra.mxu0 %v4334
    %4563 = vmatpush.bf16.msra.mxu0 %v4330
    %4564 = vmatmul.bf16.gmra.mxu0 %v4035
    %v4565 = vpop.f32.mrf.mxu0
    %v4566 = vadd.f32 %v4547, %v4565
    %v4567 = vpop.f32.mrf.mxu0
    %v4568 = vadd.f32 %v4549, %v4567
    %4569 = vmatmul.bf16.gmra.mxu0 %v4037
    %v4570 = vpop.f32.mrf.mxu0
    %v4571 = vadd.f32 %v4552, %v4570
    %v4572 = vpop.f32.mrf.mxu0
    %v4573 = vadd.f32 %v4554, %v4572
    %4574 = vdwg.mxu0
    %v4575 = vadd.f32 %v3650, %v4452
    %v4576 = vadd.f32 %v3651, %v4490
    %v4577 = vadd.f32 %v3652, %v4528
    %v4578 = vadd.f32 %v3653, %v4566
    %v4579 = vadd.f32 %v3654, %v4454
    %v4580 = vadd.f32 %v3655, %v4492
    %v4581 = vadd.f32 %v3656, %v4530
    %v4582 = vadd.f32 %v3657, %v4568
    %v4583 = vadd.f32 %v3658, %v4457
    %v4584 = vadd.f32 %v3659, %v4495
    %v4585 = vadd.f32 %v3660, %v4533
    %v4586 = vadd.f32 %v3661, %v4571
    %v4587 = vadd.f32 %v3662, %v4459
    %v4588 = vadd.f32 %v3663, %v4497
    %v4589 = vadd.f32 %v3664, %v4535
    %v4590 = vadd.f32 %v3665, %v4573
    %v4591 = vld [vmem:[%s0 + $0x20] sm:$0xff]
    %v4592 = vld [vmem:[%s0 + $0x50] sm:$0xff]
    %v4593 = vld [vmem:[%s0 + $0x80] sm:$0xff]
    %v4594 = vld [vmem:[%s0 + $0xb0] sm:$0xff]
    %v4599 = vunpack.c.l.b16 %v4591
    %v4600 = vunpack.c.h.b16 %v4591
    %v4601 = vunpack.c.l.b16 %v4592
    %v4602 = vunpack.c.h.b16 %v4592
    %v4603 = vunpack.c.l.b16 %v4593
    %v4604 = vunpack.c.h.b16 %v4593
    %v4605 = vunpack.c.l.b16 %v4594
    %v4606 = vunpack.c.h.b16 %v4594
    %v4607 = vpack.c.b16 %v4601, %v4599
    %v4608 = vpack.c.b16 %v4602, %v4600
    %v4609 = vpack.c.b16 %v4605, %v4603
    %v4610 = vpack.c.b16 %v4606, %v4604
    %4615 = vmatpush.bf16.msra.mxu0 %v743
    %4616 = vmatpush.bf16.msra.mxu0 %v735
    %4617 = vmatpush.bf16.msra.mxu0 %v727
    %4618 = vmatpush.bf16.msra.mxu0 %v719
    %4619 = vmatpush.bf16.msra.mxu0 %v711
    %4620 = vmatpush.bf16.msra.mxu0 %v703
    %4621 = vmatpush.bf16.msra.mxu0 %v695
    %4622 = vmatpush.bf16.msra.mxu0 %v687
    %4623 = vmatmul.bf16.gmra.mxu0 %v4607
    %v4624 = vpop.f32.mrf.mxu0
    %v4625 = vadd.f32 0.0, %v4624
    %v4626 = vpop.f32.mrf.mxu0
    %v4627 = vadd.f32 0.0, %v4626
    %4628 = vmatmul.bf16.gmra.mxu0 %v4609
    %v4629 = vpop.f32.mrf.mxu0
    %v4630 = vadd.f32 0.0, %v4629
    %v4631 = vpop.f32.mrf.mxu0
    %v4632 = vadd.f32 0.0, %v4631
    %4633 = vdwg.mxu0
    %4634 = vmatpush.bf16.msra.mxu0 %v807
    %4635 = vmatpush.bf16.msra.mxu0 %v799
    %4636 = vmatpush.bf16.msra.mxu0 %v791
    %4637 = vmatpush.bf16.msra.mxu0 %v783
    %4638 = vmatpush.bf16.msra.mxu0 %v775
    %4639 = vmatpush.bf16.msra.mxu0 %v767
    %4640 = vmatpush.bf16.msra.mxu0 %v759
    %4641 = vmatpush.bf16.msra.mxu0 %v751
    %4642 = vmatmul.bf16.gmra.mxu0 %v4608
    %v4643 = vpop.f32.mrf.mxu0
    %v4644 = vadd.f32 %v4625, %v4643
    %v4645 = vpop.f32.mrf.mxu0
    %v4646 = vadd.f32 %v4627, %v4645
    %4647 = vmatmul.bf16.gmra.mxu0 %v4610
    %v4648 = vpop.f32.mrf.mxu0
    %v4649 = vadd.f32 %v4630, %v4648
    %v4650 = vpop.f32.mrf.mxu0
    %v4651 = vadd.f32 %v4632, %v4650
    %4652 = vdwg.mxu0
    %4653 = vmatpush.bf16.msra.mxu0 %v744
    %4654 = vmatpush.bf16.msra.mxu0 %v736
    %4655 = vmatpush.bf16.msra.mxu0 %v728
    %4656 = vmatpush.bf16.msra.mxu0 %v720
    %4657 = vmatpush.bf16.msra.mxu0 %v712
    %4658 = vmatpush.bf16.msra.mxu0 %v704
    %4659 = vmatpush.bf16.msra.mxu0 %v696
    %4660 = vmatpush.bf16.msra.mxu0 %v688
    %4661 = vmatmul.bf16.gmra.mxu0 %v4607
    %v4662 = vpop.f32.mrf.mxu0
    %v4663 = vadd.f32 0.0, %v4662
    %v4664 = vpop.f32.mrf.mxu0
    %v4665 = vadd.f32 0.0, %v4664
    %4666 = vmatmul.bf16.gmra.mxu0 %v4609
    %v4667 = vpop.f32.mrf.mxu0
    %v4668 = vadd.f32 0.0, %v4667
    %v4669 = vpop.f32.mrf.mxu0
    %v4670 = vadd.f32 0.0, %v4669
    %4671 = vdwg.mxu0
    %4672 = vmatpush.bf16.msra.mxu0 %v808
    %4673 = vmatpush.bf16.msra.mxu0 %v800
    %4674 = vmatpush.bf16.msra.mxu0 %v792
    %4675 = vmatpush.bf16.msra.mxu0 %v784
    %4676 = vmatpush.bf16.msra.mxu0 %v776
    %4677 = vmatpush.bf16.msra.mxu0 %v768
    %4678 = vmatpush.bf16.msra.mxu0 %v760
    %4679 = vmatpush.bf16.msra.mxu0 %v752
    %4680 = vmatmul.bf16.gmra.mxu0 %v4608
    %v4681 = vpop.f32.mrf.mxu0
    %v4682 = vadd.f32 %v4663, %v4681
    %v4683 = vpop.f32.mrf.mxu0
    %v4684 = vadd.f32 %v4665, %v4683
    %4685 = vmatmul.bf16.gmra.mxu0 %v4610
    %v4686 = vpop.f32.mrf.mxu0
    %v4687 = vadd.f32 %v4668, %v4686
    %v4688 = vpop.f32.mrf.mxu0
    %v4689 = vadd.f32 %v4670, %v4688
    %4690 = vdwg.mxu0
    %4691 = vmatpush.bf16.msra.mxu0 %v745
    %4692 = vmatpush.bf16.msra.mxu0 %v737
    %4693 = vmatpush.bf16.msra.mxu0 %v729
    %4694 = vmatpush.bf16.msra.mxu0 %v721
    %4695 = vmatpush.bf16.msra.mxu0 %v713
    %4696 = vmatpush.bf16.msra.mxu0 %v705
    %4697 = vmatpush.bf16.msra.mxu0 %v697
    %4698 = vmatpush.bf16.msra.mxu0 %v689
    %4699 = vmatmul.bf16.gmra.mxu0 %v4607
    %v4700 = vpop.f32.mrf.mxu0
    %v4701 = vadd.f32 0.0, %v4700
    %v4702 = vpop.f32.mrf.mxu0
    %v4703 = vadd.f32 0.0, %v4702
    %4704 = vmatmul.bf16.gmra.mxu0 %v4609
    %v4705 = vpop.f32.mrf.mxu0
    %v4706 = vadd.f32 0.0, %v4705
    %v4707 = vpop.f32.mrf.mxu0
    %v4708 = vadd.f32 0.0, %v4707
    %4709 = vdwg.mxu0
    %4710 = vmatpush.bf16.msra.mxu0 %v809
    %4711 = vmatpush.bf16.msra.mxu0 %v801
    %4712 = vmatpush.bf16.msra.mxu0 %v793
    %4713 = vmatpush.bf16.msra.mxu0 %v785
    %4714 = vmatpush.bf16.msra.mxu0 %v777
    %4715 = vmatpush.bf16.msra.mxu0 %v769
    %4716 = vmatpush.bf16.msra.mxu0 %v761
    %4717 = vmatpush.bf16.msra.mxu0 %v753
    %4718 = vmatmul.bf16.gmra.mxu0 %v4608
    %v4719 = vpop.f32.mrf.mxu0
    %v4720 = vadd.f32 %v4701, %v4719
    %v4721 = vpop.f32.mrf.mxu0
    %v4722 = vadd.f32 %v4703, %v4721
    %4723 = vmatmul.bf16.gmra.mxu0 %v4610
    %v4724 = vpop.f32.mrf.mxu0
    %v4725 = vadd.f32 %v4706, %v4724
    %v4726 = vpop.f32.mrf.mxu0
    %v4727 = vadd.f32 %v4708, %v4726
    %4728 = vdwg.mxu0
    %4729 = vmatpush.bf16.msra.mxu0 %v746
    %4730 = vmatpush.bf16.msra.mxu0 %v738
    %4731 = vmatpush.bf16.msra.mxu0 %v730
    %4732 = vmatpush.bf16.msra.mxu0 %v722
    %4733 = vmatpush.bf16.msra.mxu0 %v714
    %4734 = vmatpush.bf16.msra.mxu0 %v706
    %4735 = vmatpush.bf16.msra.mxu0 %v698
    %4736 = vmatpush.bf16.msra.mxu0 %v690
    %4737 = vmatmul.bf16.gmra.mxu0 %v4607
    %v4738 = vpop.f32.mrf.mxu0
    %v4739 = vadd.f32 0.0, %v4738
    %v4740 = vpop.f32.mrf.mxu0
    %v4741 = vadd.f32 0.0, %v4740
    %4742 = vmatmul.bf16.gmra.mxu0 %v4609
    %v4743 = vpop.f32.mrf.mxu0
    %v4744 = vadd.f32 0.0, %v4743
    %v4745 = vpop.f32.mrf.mxu0
    %v4746 = vadd.f32 0.0, %v4745
    %4747 = vdwg.mxu0
    %4748 = vmatpush.bf16.msra.mxu0 %v810
    %4749 = vmatpush.bf16.msra.mxu0 %v802
    %4750 = vmatpush.bf16.msra.mxu0 %v794
    %4751 = vmatpush.bf16.msra.mxu0 %v786
    %4752 = vmatpush.bf16.msra.mxu0 %v778
    %4753 = vmatpush.bf16.msra.mxu0 %v770
    %4754 = vmatpush.bf16.msra.mxu0 %v762
    %4755 = vmatpush.bf16.msra.mxu0 %v754
    %4756 = vmatmul.bf16.gmra.mxu0 %v4608
    %v4757 = vpop.f32.mrf.mxu0
    %v4758 = vadd.f32 %v4739, %v4757
    %v4759 = vpop.f32.mrf.mxu0
    %v4760 = vadd.f32 %v4741, %v4759
    %4761 = vmatmul.bf16.gmra.mxu0 %v4610
    %v4762 = vpop.f32.mrf.mxu0
    %v4763 = vadd.f32 %v4744, %v4762
    %v4764 = vpop.f32.mrf.mxu0
    %v4765 = vadd.f32 %v4746, %v4764
    %4766 = vdwg.mxu0
    %4767 = vmatpush.bf16.msra.mxu0 %v747
    %4768 = vmatpush.bf16.msra.mxu0 %v739
    %4769 = vmatpush.bf16.msra.mxu0 %v731
    %4770 = vmatpush.bf16.msra.mxu0 %v723
    %4771 = vmatpush.bf16.msra.mxu0 %v715
    %4772 = vmatpush.bf16.msra.mxu0 %v707
    %4773 = vmatpush.bf16.msra.mxu0 %v699
    %4774 = vmatpush.bf16.msra.mxu0 %v691
    %4775 = vmatmul.bf16.gmra.mxu0 %v4607
    %v4776 = vpop.f32.mrf.mxu0
    %v4777 = vadd.f32 0.0, %v4776
    %v4778 = vpop.f32.mrf.mxu0
    %v4779 = vadd.f32 0.0, %v4778
    %4780 = vmatmul.bf16.gmra.mxu0 %v4609
    %v4781 = vpop.f32.mrf.mxu0
    %v4782 = vadd.f32 0.0, %v4781
    %v4783 = vpop.f32.mrf.mxu0
    %v4784 = vadd.f32 0.0, %v4783
    %4785 = vdwg.mxu0
    %4786 = vmatpush.bf16.msra.mxu0 %v811
    %4787 = vmatpush.bf16.msra.mxu0 %v803
    %4788 = vmatpush.bf16.msra.mxu0 %v795
    %4789 = vmatpush.bf16.msra.mxu0 %v787
    %4790 = vmatpush.bf16.msra.mxu0 %v779
    %4791 = vmatpush.bf16.msra.mxu0 %v771
    %4792 = vmatpush.bf16.msra.mxu0 %v763
    %4793 = vmatpush.bf16.msra.mxu0 %v755
    %4794 = vmatmul.bf16.gmra.mxu0 %v4608
    %v4795 = vpop.f32.mrf.mxu0
    %v4796 = vadd.f32 %v4777, %v4795
    %v4797 = vpop.f32.mrf.mxu0
    %v4798 = vadd.f32 %v4779, %v4797
    %4799 = vmatmul.bf16.gmra.mxu0 %v4610
    %v4800 = vpop.f32.mrf.mxu0
    %v4801 = vadd.f32 %v4782, %v4800
    %v4802 = vpop.f32.mrf.mxu0
    %v4803 = vadd.f32 %v4784, %v4802
    %4804 = vdwg.mxu0
    %4805 = vmatpush.bf16.msra.mxu0 %v748
    %4806 = vmatpush.bf16.msra.mxu0 %v740
    %4807 = vmatpush.bf16.msra.mxu0 %v732
    %4808 = vmatpush.bf16.msra.mxu0 %v724
    %4809 = vmatpush.bf16.msra.mxu0 %v716
    %4810 = vmatpush.bf16.msra.mxu0 %v708
    %4811 = vmatpush.bf16.msra.mxu0 %v700
    %4812 = vmatpush.bf16.msra.mxu0 %v692
    %4813 = vmatmul.bf16.gmra.mxu0 %v4607
    %v4814 = vpop.f32.mrf.mxu0
    %v4815 = vadd.f32 0.0, %v4814
    %v4816 = vpop.f32.mrf.mxu0
    %v4817 = vadd.f32 0.0, %v4816
    %4818 = vmatmul.bf16.gmra.mxu0 %v4609
    %v4819 = vpop.f32.mrf.mxu0
    %v4820 = vadd.f32 0.0, %v4819
    %v4821 = vpop.f32.mrf.mxu0
    %v4822 = vadd.f32 0.0, %v4821
    %4823 = vdwg.mxu0
    %4824 = vmatpush.bf16.msra.mxu0 %v812
    %4825 = vmatpush.bf16.msra.mxu0 %v804
    %4826 = vmatpush.bf16.msra.mxu0 %v796
    %4827 = vmatpush.bf16.msra.mxu0 %v788
    %4828 = vmatpush.bf16.msra.mxu0 %v780
    %4829 = vmatpush.bf16.msra.mxu0 %v772
    %4830 = vmatpush.bf16.msra.mxu0 %v764
    %4831 = vmatpush.bf16.msra.mxu0 %v756
    %4832 = vmatmul.bf16.gmra.mxu0 %v4608
    %v4833 = vpop.f32.mrf.mxu0
    %v4834 = vadd.f32 %v4815, %v4833
    %v4835 = vpop.f32.mrf.mxu0
    %v4836 = vadd.f32 %v4817, %v4835
    %4837 = vmatmul.bf16.gmra.mxu0 %v4610
    %v4838 = vpop.f32.mrf.mxu0
    %v4839 = vadd.f32 %v4820, %v4838
    %v4840 = vpop.f32.mrf.mxu0
    %v4841 = vadd.f32 %v4822, %v4840
    %4842 = vdwg.mxu0
    %4843 = vmatpush.bf16.msra.mxu0 %v749
    %4844 = vmatpush.bf16.msra.mxu0 %v741
    %4845 = vmatpush.bf16.msra.mxu0 %v733
    %4846 = vmatpush.bf16.msra.mxu0 %v725
    %4847 = vmatpush.bf16.msra.mxu0 %v717
    %4848 = vmatpush.bf16.msra.mxu0 %v709
    %4849 = vmatpush.bf16.msra.mxu0 %v701
    %4850 = vmatpush.bf16.msra.mxu0 %v693
    %4851 = vmatmul.bf16.gmra.mxu0 %v4607
    %v4852 = vpop.f32.mrf.mxu0
    %v4853 = vadd.f32 0.0, %v4852
    %v4854 = vpop.f32.mrf.mxu0
    %v4855 = vadd.f32 0.0, %v4854
    %4856 = vmatmul.bf16.gmra.mxu0 %v4609
    %v4857 = vpop.f32.mrf.mxu0
    %v4858 = vadd.f32 0.0, %v4857
    %v4859 = vpop.f32.mrf.mxu0
    %v4860 = vadd.f32 0.0, %v4859
    %4861 = vdwg.mxu0
    %4862 = vmatpush.bf16.msra.mxu0 %v813
    %4863 = vmatpush.bf16.msra.mxu0 %v805
    %4864 = vmatpush.bf16.msra.mxu0 %v797
    %4865 = vmatpush.bf16.msra.mxu0 %v789
    %4866 = vmatpush.bf16.msra.mxu0 %v781
    %4867 = vmatpush.bf16.msra.mxu0 %v773
    %4868 = vmatpush.bf16.msra.mxu0 %v765
    %4869 = vmatpush.bf16.msra.mxu0 %v757
    %4870 = vmatmul.bf16.gmra.mxu0 %v4608
    %v4871 = vpop.f32.mrf.mxu0
    %v4872 = vadd.f32 %v4853, %v4871
    %v4873 = vpop.f32.mrf.mxu0
    %v4874 = vadd.f32 %v4855, %v4873
    %4875 = vmatmul.bf16.gmra.mxu0 %v4610
    %v4876 = vpop.f32.mrf.mxu0
    %v4877 = vadd.f32 %v4858, %v4876
    %v4878 = vpop.f32.mrf.mxu0
    %v4879 = vadd.f32 %v4860, %v4878
    %4880 = vdwg.mxu0
    %4881 = vmatpush.bf16.msra.mxu0 %v750
    %4882 = vmatpush.bf16.msra.mxu0 %v742
    %4883 = vmatpush.bf16.msra.mxu0 %v734
    %4884 = vmatpush.bf16.msra.mxu0 %v726
    %4885 = vmatpush.bf16.msra.mxu0 %v718
    %4886 = vmatpush.bf16.msra.mxu0 %v710
    %4887 = vmatpush.bf16.msra.mxu0 %v702
    %4888 = vmatpush.bf16.msra.mxu0 %v694
    %4889 = vmatmul.bf16.gmra.mxu0 %v4607
    %v4890 = vpop.f32.mrf.mxu0
    %v4891 = vadd.f32 0.0, %v4890
    %v4892 = vpop.f32.mrf.mxu0
    %v4893 = vadd.f32 0.0, %v4892
    %4894 = vmatmul.bf16.gmra.mxu0 %v4609
    %v4895 = vpop.f32.mrf.mxu0
    %v4896 = vadd.f32 0.0, %v4895
    %v4897 = vpop.f32.mrf.mxu0
    %v4898 = vadd.f32 0.0, %v4897
    %4899 = vdwg.mxu0
    %4900 = vmatpush.bf16.msra.mxu0 %v814
    %4901 = vmatpush.bf16.msra.mxu0 %v806
    %4902 = vmatpush.bf16.msra.mxu0 %v798
    %4903 = vmatpush.bf16.msra.mxu0 %v790
    %4904 = vmatpush.bf16.msra.mxu0 %v782
    %4905 = vmatpush.bf16.msra.mxu0 %v774
    %4906 = vmatpush.bf16.msra.mxu0 %v766
    %4907 = vmatpush.bf16.msra.mxu0 %v758
    %4908 = vmatmul.bf16.gmra.mxu0 %v4608
    %v4909 = vpop.f32.mrf.mxu0
    %v4910 = vadd.f32 %v4891, %v4909
    %v4911 = vpop.f32.mrf.mxu0
    %v4912 = vadd.f32 %v4893, %v4911
    %4913 = vmatmul.bf16.gmra.mxu0 %v4610
    %v4914 = vpop.f32.mrf.mxu0
    %v4915 = vadd.f32 %v4896, %v4914
    %v4916 = vpop.f32.mrf.mxu0
    %v4917 = vadd.f32 %v4898, %v4916
    %4918 = vdwg.mxu0
    %v4919 = vmax.f32 %v4644, %v4720
    %v4920 = vmax.f32 %v4682, %v4758
    %v4921 = vmax.f32 %v4646, %v4722
    %v4922 = vmax.f32 %v4684, %v4760
    %v4923 = vmax.f32 %v4649, %v4725
    %v4924 = vmax.f32 %v4687, %v4763
    %v4925 = vmax.f32 %v4651, %v4727
    %v4926 = vmax.f32 %v4689, %v4765
    %v4927 = vmax.f32 %v4796, %v4872
    %v4928 = vmax.f32 %v4834, %v4910
    %v4929 = vmax.f32 %v4798, %v4874
    %v4930 = vmax.f32 %v4836, %v4912
    %v4931 = vmax.f32 %v4801, %v4877
    %v4932 = vmax.f32 %v4839, %v4915
    %v4933 = vmax.f32 %v4803, %v4879
    %v4934 = vmax.f32 %v4841, %v4917
    %v4935 = vmax.f32 %v4919, %v4927
    %v4936 = vmax.f32 %v4920, %v4928
    %v4937 = vmax.f32 %v4921, %v4929
    %v4938 = vmax.f32 %v4922, %v4930
    %v4939 = vmax.f32 %v4923, %v4931
    %v4940 = vmax.f32 %v4924, %v4932
    %v4941 = vmax.f32 %v4925, %v4933
    %v4942 = vmax.f32 %v4926, %v4934
    %v4943 = vadd.f32 %v4935, %v1272
    %v4944 = vadd.f32 %v4936, %v1273
    %v4945 = vadd.f32 %v4937, %v1272
    %v4946 = vadd.f32 %v4938, %v1273
    %v4947 = vadd.f32 %v4939, %v1272
    %v4948 = vadd.f32 %v4940, %v1273
    %v4949 = vadd.f32 %v4941, %v1272
    %v4950 = vadd.f32 %v4942, %v1273
    %v4951 = vmax.f32 %v4943, 0.0
    %v4952 = vmax.f32 %v4944, 0.0
    %v4953 = vmax.f32 %v4945, 0.0
    %v4954 = vmax.f32 %v4946, 0.0
    %v4955 = vmax.f32 %v4947, 0.0
    %v4956 = vmax.f32 %v4948, 0.0
    %v4957 = vmax.f32 %v4949, 0.0
    %v4958 = vmax.f32 %v4950, 0.0
    %v4959 = vpack.c.bf16 %v4953, %v4951
    %v4960 = vpack.c.bf16 %v4954, %v4952
    %v4961 = vpack.c.bf16 %v4957, %v4955
    %v4962 = vpack.c.bf16 %v4958, %v4956
    %s4963 = scalar_lea.vmem [#allocation6], 2048
    %v4964 = vld [vmem:[%s4963] sm:$0xff]
    %v4965 = vld [vmem:[%s4963 + $0x8] sm:$0xff]
    %v4966 = vld [vmem:[%s4963 + $0x10] sm:$0xff]
    %v4967 = vld [vmem:[%s4963 + $0x18] sm:$0xff]
    %v4968 = vld [vmem:[%s4963 + $0x20] sm:$0xff]
    %v4969 = vld [vmem:[%s4963 + $0x28] sm:$0xff]
    %v4970 = vld [vmem:[%s4963 + $0x30] sm:$0xff]
    %v4971 = vld [vmem:[%s4963 + $0x38] sm:$0xff]
    %v4972 = vld [vmem:[%s4963 + $0x40] sm:$0xff]
    %v4973 = vld [vmem:[%s4963 + $0x48] sm:$0xff]
    %v4974 = vld [vmem:[%s4963 + $0x50] sm:$0xff]
    %v4975 = vld [vmem:[%s4963 + $0x58] sm:$0xff]
    %v4976 = vld [vmem:[%s4963 + $0x60] sm:$0xff]
    %v4977 = vld [vmem:[%s4963 + $0x68] sm:$0xff]
    %v4978 = vld [vmem:[%s4963 + $0x70] sm:$0xff]
    %v4979 = vld [vmem:[%s4963 + $0x78] sm:$0xff]
    %v4980 = vld [vmem:[%s4963 + $0x80] sm:$0xff]
    %v4981 = vld [vmem:[%s4963 + $0x88] sm:$0xff]
    %v4982 = vld [vmem:[%s4963 + $0x90] sm:$0xff]
    %v4983 = vld [vmem:[%s4963 + $0x98] sm:$0xff]
    %v4984 = vld [vmem:[%s4963 + $0xa0] sm:$0xff]
    %v4985 = vld [vmem:[%s4963 + $0xa8] sm:$0xff]
    %v4986 = vld [vmem:[%s4963 + $0xb0] sm:$0xff]
    %v4987 = vld [vmem:[%s4963 + $0xb8] sm:$0xff]
    %v4988 = vld [vmem:[%s4963 + $0xc0] sm:$0xff]
    %v4989 = vld [vmem:[%s4963 + $0xc8] sm:$0xff]
    %v4990 = vld [vmem:[%s4963 + $0xd0] sm:$0xff]
    %v4991 = vld [vmem:[%s4963 + $0xd8] sm:$0xff]
    %v4992 = vld [vmem:[%s4963 + $0xe0] sm:$0xff]
    %v4993 = vld [vmem:[%s4963 + $0xe8] sm:$0xff]
    %v4994 = vld [vmem:[%s4963 + $0xf0] sm:$0xff]
    %v4995 = vld [vmem:[%s4963 + $0xf8] sm:$0xff]
    %v4996 = vld [vmem:[%s4963 + $0x100] sm:$0xff]
    %v4997 = vld [vmem:[%s4963 + $0x108] sm:$0xff]
    %v4998 = vld [vmem:[%s4963 + $0x110] sm:$0xff]
    %v4999 = vld [vmem:[%s4963 + $0x118] sm:$0xff]
    %v5000 = vld [vmem:[%s4963 + $0x120] sm:$0xff]
    %v5001 = vld [vmem:[%s4963 + $0x128] sm:$0xff]
    %v5002 = vld [vmem:[%s4963 + $0x130] sm:$0xff]
    %v5003 = vld [vmem:[%s4963 + $0x138] sm:$0xff]
    %v5004 = vld [vmem:[%s4963 + $0x140] sm:$0xff]
    %v5005 = vld [vmem:[%s4963 + $0x148] sm:$0xff]
    %v5006 = vld [vmem:[%s4963 + $0x150] sm:$0xff]
    %v5007 = vld [vmem:[%s4963 + $0x158] sm:$0xff]
    %v5008 = vld [vmem:[%s4963 + $0x160] sm:$0xff]
    %v5009 = vld [vmem:[%s4963 + $0x168] sm:$0xff]
    %v5010 = vld [vmem:[%s4963 + $0x170] sm:$0xff]
    %v5011 = vld [vmem:[%s4963 + $0x178] sm:$0xff]
    %v5012 = vld [vmem:[%s4963 + $0x180] sm:$0xff]
    %v5013 = vld [vmem:[%s4963 + $0x188] sm:$0xff]
    %v5014 = vld [vmem:[%s4963 + $0x190] sm:$0xff]
    %v5015 = vld [vmem:[%s4963 + $0x198] sm:$0xff]
    %v5016 = vld [vmem:[%s4963 + $0x1a0] sm:$0xff]
    %v5017 = vld [vmem:[%s4963 + $0x1a8] sm:$0xff]
    %v5018 = vld [vmem:[%s4963 + $0x1b0] sm:$0xff]
    %v5019 = vld [vmem:[%s4963 + $0x1b8] sm:$0xff]
    %v5020 = vld [vmem:[%s4963 + $0x1c0] sm:$0xff]
    %v5021 = vld [vmem:[%s4963 + $0x1c8] sm:$0xff]
    %v5022 = vld [vmem:[%s4963 + $0x1d0] sm:$0xff]
    %v5023 = vld [vmem:[%s4963 + $0x1d8] sm:$0xff]
    %v5024 = vld [vmem:[%s4963 + $0x1e0] sm:$0xff]
    %v5025 = vld [vmem:[%s4963 + $0x1e8] sm:$0xff]
    %v5026 = vld [vmem:[%s4963 + $0x1f0] sm:$0xff]
    %v5027 = vld [vmem:[%s4963 + $0x1f8] sm:$0xff]
    %v5092 = vunpack.c.l.b16 %v4964
    %v5093 = vunpack.c.h.b16 %v4964
    %v5094 = vunpack.c.l.b16 %v4965
    %v5095 = vunpack.c.h.b16 %v4965
    %v5096 = vunpack.c.l.b16 %v4966
    %v5097 = vunpack.c.h.b16 %v4966
    %v5098 = vunpack.c.l.b16 %v4967
    %v5099 = vunpack.c.h.b16 %v4967
    %v5100 = vunpack.c.l.b16 %v4968
    %v5101 = vunpack.c.h.b16 %v4968
    %v5102 = vunpack.c.l.b16 %v4969
    %v5103 = vunpack.c.h.b16 %v4969
    %v5104 = vunpack.c.l.b16 %v4970
    %v5105 = vunpack.c.h.b16 %v4970
    %v5106 = vunpack.c.l.b16 %v4971
    %v5107 = vunpack.c.h.b16 %v4971
    %v5108 = vunpack.c.l.b16 %v4972
    %v5109 = vunpack.c.h.b16 %v4972
    %v5110 = vunpack.c.l.b16 %v4973
    %v5111 = vunpack.c.h.b16 %v4973
    %v5112 = vunpack.c.l.b16 %v4974
    %v5113 = vunpack.c.h.b16 %v4974
    %v5114 = vunpack.c.l.b16 %v4975
    %v5115 = vunpack.c.h.b16 %v4975
    %v5116 = vunpack.c.l.b16 %v4976
    %v5117 = vunpack.c.h.b16 %v4976
    %v5118 = vunpack.c.l.b16 %v4977
    %v5119 = vunpack.c.h.b16 %v4977
    %v5120 = vunpack.c.l.b16 %v4978
    %v5121 = vunpack.c.h.b16 %v4978
    %v5122 = vunpack.c.l.b16 %v4979
    %v5123 = vunpack.c.h.b16 %v4979
    %v5124 = vunpack.c.l.b16 %v4980
    %v5125 = vunpack.c.h.b16 %v4980
    %v5126 = vunpack.c.l.b16 %v4981
    %v5127 = vunpack.c.h.b16 %v4981
    %v5128 = vunpack.c.l.b16 %v4982
    %v5129 = vunpack.c.h.b16 %v4982
    %v5130 = vunpack.c.l.b16 %v4983
    %v5131 = vunpack.c.h.b16 %v4983
    %v5132 = vunpack.c.l.b16 %v4984
    %v5133 = vunpack.c.h.b16 %v4984
    %v5134 = vunpack.c.l.b16 %v4985
    %v5135 = vunpack.c.h.b16 %v4985
    %v5136 = vunpack.c.l.b16 %v4986
    %v5137 = vunpack.c.h.b16 %v4986
    %v5138 = vunpack.c.l.b16 %v4987
    %v5139 = vunpack.c.h.b16 %v4987
    %v5140 = vunpack.c.l.b16 %v4988
    %v5141 = vunpack.c.h.b16 %v4988
    %v5142 = vunpack.c.l.b16 %v4989
    %v5143 = vunpack.c.h.b16 %v4989
    %v5144 = vunpack.c.l.b16 %v4990
    %v5145 = vunpack.c.h.b16 %v4990
    %v5146 = vunpack.c.l.b16 %v4991
    %v5147 = vunpack.c.h.b16 %v4991
    %v5148 = vunpack.c.l.b16 %v4992
    %v5149 = vunpack.c.h.b16 %v4992
    %v5150 = vunpack.c.l.b16 %v4993
    %v5151 = vunpack.c.h.b16 %v4993
    %v5152 = vunpack.c.l.b16 %v4994
    %v5153 = vunpack.c.h.b16 %v4994
    %v5154 = vunpack.c.l.b16 %v4995
    %v5155 = vunpack.c.h.b16 %v4995
    %v5156 = vunpack.c.l.b16 %v4996
    %v5157 = vunpack.c.h.b16 %v4996
    %v5158 = vunpack.c.l.b16 %v4997
    %v5159 = vunpack.c.h.b16 %v4997
    %v5160 = vunpack.c.l.b16 %v4998
    %v5161 = vunpack.c.h.b16 %v4998
    %v5162 = vunpack.c.l.b16 %v4999
    %v5163 = vunpack.c.h.b16 %v4999
    %v5164 = vunpack.c.l.b16 %v5000
    %v5165 = vunpack.c.h.b16 %v5000
    %v5166 = vunpack.c.l.b16 %v5001
    %v5167 = vunpack.c.h.b16 %v5001
    %v5168 = vunpack.c.l.b16 %v5002
    %v5169 = vunpack.c.h.b16 %v5002
    %v5170 = vunpack.c.l.b16 %v5003
    %v5171 = vunpack.c.h.b16 %v5003
    %v5172 = vunpack.c.l.b16 %v5004
    %v5173 = vunpack.c.h.b16 %v5004
    %v5174 = vunpack.c.l.b16 %v5005
    %v5175 = vunpack.c.h.b16 %v5005
    %v5176 = vunpack.c.l.b16 %v5006
    %v5177 = vunpack.c.h.b16 %v5006
    %v5178 = vunpack.c.l.b16 %v5007
    %v5179 = vunpack.c.h.b16 %v5007
    %v5180 = vunpack.c.l.b16 %v5008
    %v5181 = vunpack.c.h.b16 %v5008
    %v5182 = vunpack.c.l.b16 %v5009
    %v5183 = vunpack.c.h.b16 %v5009
    %v5184 = vunpack.c.l.b16 %v5010
    %v5185 = vunpack.c.h.b16 %v5010
    %v5186 = vunpack.c.l.b16 %v5011
    %v5187 = vunpack.c.h.b16 %v5011
    %v5188 = vunpack.c.l.b16 %v5012
    %v5189 = vunpack.c.h.b16 %v5012
    %v5190 = vunpack.c.l.b16 %v5013
    %v5191 = vunpack.c.h.b16 %v5013
    %v5192 = vunpack.c.l.b16 %v5014
    %v5193 = vunpack.c.h.b16 %v5014
    %v5194 = vunpack.c.l.b16 %v5015
    %v5195 = vunpack.c.h.b16 %v5015
    %v5196 = vunpack.c.l.b16 %v5016
    %v5197 = vunpack.c.h.b16 %v5016
    %v5198 = vunpack.c.l.b16 %v5017
    %v5199 = vunpack.c.h.b16 %v5017
    %v5200 = vunpack.c.l.b16 %v5018
    %v5201 = vunpack.c.h.b16 %v5018
    %v5202 = vunpack.c.l.b16 %v5019
    %v5203 = vunpack.c.h.b16 %v5019
    %v5204 = vunpack.c.l.b16 %v5020
    %v5205 = vunpack.c.h.b16 %v5020
    %v5206 = vunpack.c.l.b16 %v5021
    %v5207 = vunpack.c.h.b16 %v5021
    %v5208 = vunpack.c.l.b16 %v5022
    %v5209 = vunpack.c.h.b16 %v5022
    %v5210 = vunpack.c.l.b16 %v5023
    %v5211 = vunpack.c.h.b16 %v5023
    %v5212 = vunpack.c.l.b16 %v5024
    %v5213 = vunpack.c.h.b16 %v5024
    %v5214 = vunpack.c.l.b16 %v5025
    %v5215 = vunpack.c.h.b16 %v5025
    %v5216 = vunpack.c.l.b16 %v5026
    %v5217 = vunpack.c.h.b16 %v5026
    %v5218 = vunpack.c.l.b16 %v5027
    %v5219 = vunpack.c.h.b16 %v5027
    %v5220 = vpack.c.b16 %v5096, %v5092
    %v5221 = vpack.c.b16 %v5097, %v5093
    %v5222 = vpack.c.b16 %v5098, %v5094
    %v5223 = vpack.c.b16 %v5099, %v5095
    %v5224 = vpack.c.b16 %v5104, %v5100
    %v5225 = vpack.c.b16 %v5105, %v5101
    %v5226 = vpack.c.b16 %v5106, %v5102
    %v5227 = vpack.c.b16 %v5107, %v5103
    %v5228 = vpack.c.b16 %v5112, %v5108
    %v5229 = vpack.c.b16 %v5113, %v5109
    %v5230 = vpack.c.b16 %v5114, %v5110
    %v5231 = vpack.c.b16 %v5115, %v5111
    %v5232 = vpack.c.b16 %v5120, %v5116
    %v5233 = vpack.c.b16 %v5121, %v5117
    %v5234 = vpack.c.b16 %v5122, %v5118
    %v5235 = vpack.c.b16 %v5123, %v5119
    %v5236 = vpack.c.b16 %v5128, %v5124
    %v5237 = vpack.c.b16 %v5129, %v5125
    %v5238 = vpack.c.b16 %v5130, %v5126
    %v5239 = vpack.c.b16 %v5131, %v5127
    %v5240 = vpack.c.b16 %v5136, %v5132
    %v5241 = vpack.c.b16 %v5137, %v5133
    %v5242 = vpack.c.b16 %v5138, %v5134
    %v5243 = vpack.c.b16 %v5139, %v5135
    %v5244 = vpack.c.b16 %v5144, %v5140
    %v5245 = vpack.c.b16 %v5145, %v5141
    %v5246 = vpack.c.b16 %v5146, %v5142
    %v5247 = vpack.c.b16 %v5147, %v5143
    %v5248 = vpack.c.b16 %v5152, %v5148
    %v5249 = vpack.c.b16 %v5153, %v5149
    %v5250 = vpack.c.b16 %v5154, %v5150
    %v5251 = vpack.c.b16 %v5155, %v5151
    %v5252 = vpack.c.b16 %v5160, %v5156
    %v5253 = vpack.c.b16 %v5161, %v5157
    %v5254 = vpack.c.b16 %v5162, %v5158
    %v5255 = vpack.c.b16 %v5163, %v5159
    %v5256 = vpack.c.b16 %v5168, %v5164
    %v5257 = vpack.c.b16 %v5169, %v5165
    %v5258 = vpack.c.b16 %v5170, %v5166
    %v5259 = vpack.c.b16 %v5171, %v5167
    %v5260 = vpack.c.b16 %v5176, %v5172
    %v5261 = vpack.c.b16 %v5177, %v5173
    %v5262 = vpack.c.b16 %v5178, %v5174
    %v5263 = vpack.c.b16 %v5179, %v5175
    %v5264 = vpack.c.b16 %v5184, %v5180
    %v5265 = vpack.c.b16 %v5185, %v5181
    %v5266 = vpack.c.b16 %v5186, %v5182
    %v5267 = vpack.c.b16 %v5187, %v5183
    %v5268 = vpack.c.b16 %v5192, %v5188
    %v5269 = vpack.c.b16 %v5193, %v5189
    %v5270 = vpack.c.b16 %v5194, %v5190
    %v5271 = vpack.c.b16 %v5195, %v5191
    %v5272 = vpack.c.b16 %v5200, %v5196
    %v5273 = vpack.c.b16 %v5201, %v5197
    %v5274 = vpack.c.b16 %v5202, %v5198
    %v5275 = vpack.c.b16 %v5203, %v5199
    %v5276 = vpack.c.b16 %v5208, %v5204
    %v5277 = vpack.c.b16 %v5209, %v5205
    %v5278 = vpack.c.b16 %v5210, %v5206
    %v5279 = vpack.c.b16 %v5211, %v5207
    %v5280 = vpack.c.b16 %v5216, %v5212
    %v5281 = vpack.c.b16 %v5217, %v5213
    %v5282 = vpack.c.b16 %v5218, %v5214
    %v5283 = vpack.c.b16 %v5219, %v5215
    %5348 = vmatpush.bf16.msra.mxu0 %v5248
    %5349 = vmatpush.bf16.msra.mxu0 %v5244
    %5350 = vmatpush.bf16.msra.mxu0 %v5240
    %5351 = vmatpush.bf16.msra.mxu0 %v5236
    %5352 = vmatpush.bf16.msra.mxu0 %v5232
    %5353 = vmatpush.bf16.msra.mxu0 %v5228
    %5354 = vmatpush.bf16.msra.mxu0 %v5224
    %5355 = vmatpush.bf16.msra.mxu0 %v5220
    %5356 = vmatmul.bf16.gmra.mxu0 %v4959
    %v5357 = vpop.f32.mrf.mxu0
    %v5358 = vadd.f32 0.0, %v5357
    %v5359 = vpop.f32.mrf.mxu0
    %v5360 = vadd.f32 0.0, %v5359
    %5361 = vmatmul.bf16.gmra.mxu0 %v4961
    %v5362 = vpop.f32.mrf.mxu0
    %v5363 = vadd.f32 0.0, %v5362
    %v5364 = vpop.f32.mrf.mxu0
    %v5365 = vadd.f32 0.0, %v5364
    %5366 = vdwg.mxu0
    %5367 = vmatpush.bf16.msra.mxu0 %v5280
    %5368 = vmatpush.bf16.msra.mxu0 %v5276
    %5369 = vmatpush.bf16.msra.mxu0 %v5272
    %5370 = vmatpush.bf16.msra.mxu0 %v5268
    %5371 = vmatpush.bf16.msra.mxu0 %v5264
    %5372 = vmatpush.bf16.msra.mxu0 %v5260
    %5373 = vmatpush.bf16.msra.mxu0 %v5256
    %5374 = vmatpush.bf16.msra.mxu0 %v5252
    %5375 = vmatmul.bf16.gmra.mxu0 %v4960
    %v5376 = vpop.f32.mrf.mxu0
    %v5377 = vadd.f32 %v5358, %v5376
    %v5378 = vpop.f32.mrf.mxu0
    %v5379 = vadd.f32 %v5360, %v5378
    %5380 = vmatmul.bf16.gmra.mxu0 %v4962
    %v5381 = vpop.f32.mrf.mxu0
    %v5382 = vadd.f32 %v5363, %v5381
    %v5383 = vpop.f32.mrf.mxu0
    %v5384 = vadd.f32 %v5365, %v5383
    %5385 = vdwg.mxu0
    %5386 = vmatpush.bf16.msra.mxu0 %v5249
    %5387 = vmatpush.bf16.msra.mxu0 %v5245
    %5388 = vmatpush.bf16.msra.mxu0 %v5241
    %5389 = vmatpush.bf16.msra.mxu0 %v5237
    %5390 = vmatpush.bf16.msra.mxu0 %v5233
    %5391 = vmatpush.bf16.msra.mxu0 %v5229
    %5392 = vmatpush.bf16.msra.mxu0 %v5225
    %5393 = vmatpush.bf16.msra.mxu0 %v5221
    %5394 = vmatmul.bf16.gmra.mxu0 %v4959
    %v5395 = vpop.f32.mrf.mxu0
    %v5396 = vadd.f32 0.0, %v5395
    %v5397 = vpop.f32.mrf.mxu0
    %v5398 = vadd.f32 0.0, %v5397
    %5399 = vmatmul.bf16.gmra.mxu0 %v4961
    %v5400 = vpop.f32.mrf.mxu0
    %v5401 = vadd.f32 0.0, %v5400
    %v5402 = vpop.f32.mrf.mxu0
    %v5403 = vadd.f32 0.0, %v5402
    %5404 = vdwg.mxu0
    %5405 = vmatpush.bf16.msra.mxu0 %v5281
    %5406 = vmatpush.bf16.msra.mxu0 %v5277
    %5407 = vmatpush.bf16.msra.mxu0 %v5273
    %5408 = vmatpush.bf16.msra.mxu0 %v5269
    %5409 = vmatpush.bf16.msra.mxu0 %v5265
    %5410 = vmatpush.bf16.msra.mxu0 %v5261
    %5411 = vmatpush.bf16.msra.mxu0 %v5257
    %5412 = vmatpush.bf16.msra.mxu0 %v5253
    %5413 = vmatmul.bf16.gmra.mxu0 %v4960
    %v5414 = vpop.f32.mrf.mxu0
    %v5415 = vadd.f32 %v5396, %v5414
    %v5416 = vpop.f32.mrf.mxu0
    %v5417 = vadd.f32 %v5398, %v5416
    %5418 = vmatmul.bf16.gmra.mxu0 %v4962
    %v5419 = vpop.f32.mrf.mxu0
    %v5420 = vadd.f32 %v5401, %v5419
    %v5421 = vpop.f32.mrf.mxu0
    %v5422 = vadd.f32 %v5403, %v5421
    %5423 = vdwg.mxu0
    %5424 = vmatpush.bf16.msra.mxu0 %v5250
    %5425 = vmatpush.bf16.msra.mxu0 %v5246
    %5426 = vmatpush.bf16.msra.mxu0 %v5242
    %5427 = vmatpush.bf16.msra.mxu0 %v5238
    %5428 = vmatpush.bf16.msra.mxu0 %v5234
    %5429 = vmatpush.bf16.msra.mxu0 %v5230
    %5430 = vmatpush.bf16.msra.mxu0 %v5226
    %5431 = vmatpush.bf16.msra.mxu0 %v5222
    %5432 = vmatmul.bf16.gmra.mxu0 %v4959
    %v5433 = vpop.f32.mrf.mxu0
    %v5434 = vadd.f32 0.0, %v5433
    %v5435 = vpop.f32.mrf.mxu0
    %v5436 = vadd.f32 0.0, %v5435
    %5437 = vmatmul.bf16.gmra.mxu0 %v4961
    %v5438 = vpop.f32.mrf.mxu0
    %v5439 = vadd.f32 0.0, %v5438
    %v5440 = vpop.f32.mrf.mxu0
    %v5441 = vadd.f32 0.0, %v5440
    %5442 = vdwg.mxu0
    %5443 = vmatpush.bf16.msra.mxu0 %v5282
    %5444 = vmatpush.bf16.msra.mxu0 %v5278
    %5445 = vmatpush.bf16.msra.mxu0 %v5274
    %5446 = vmatpush.bf16.msra.mxu0 %v5270
    %5447 = vmatpush.bf16.msra.mxu0 %v5266
    %5448 = vmatpush.bf16.msra.mxu0 %v5262
    %5449 = vmatpush.bf16.msra.mxu0 %v5258
    %5450 = vmatpush.bf16.msra.mxu0 %v5254
    %5451 = vmatmul.bf16.gmra.mxu0 %v4960
    %v5452 = vpop.f32.mrf.mxu0
    %v5453 = vadd.f32 %v5434, %v5452
    %v5454 = vpop.f32.mrf.mxu0
    %v5455 = vadd.f32 %v5436, %v5454
    %5456 = vmatmul.bf16.gmra.mxu0 %v4962
    %v5457 = vpop.f32.mrf.mxu0
    %v5458 = vadd.f32 %v5439, %v5457
    %v5459 = vpop.f32.mrf.mxu0
    %v5460 = vadd.f32 %v5441, %v5459
    %5461 = vdwg.mxu0
    %5462 = vmatpush.bf16.msra.mxu0 %v5251
    %5463 = vmatpush.bf16.msra.mxu0 %v5247
    %5464 = vmatpush.bf16.msra.mxu0 %v5243
    %5465 = vmatpush.bf16.msra.mxu0 %v5239
    %5466 = vmatpush.bf16.msra.mxu0 %v5235
    %5467 = vmatpush.bf16.msra.mxu0 %v5231
    %5468 = vmatpush.bf16.msra.mxu0 %v5227
    %5469 = vmatpush.bf16.msra.mxu0 %v5223
    %5470 = vmatmul.bf16.gmra.mxu0 %v4959
    %v5471 = vpop.f32.mrf.mxu0
    %v5472 = vadd.f32 0.0, %v5471
    %v5473 = vpop.f32.mrf.mxu0
    %v5474 = vadd.f32 0.0, %v5473
    %5475 = vmatmul.bf16.gmra.mxu0 %v4961
    %v5476 = vpop.f32.mrf.mxu0
    %v5477 = vadd.f32 0.0, %v5476
    %v5478 = vpop.f32.mrf.mxu0
    %v5479 = vadd.f32 0.0, %v5478
    %5480 = vdwg.mxu0
    %5481 = vmatpush.bf16.msra.mxu0 %v5283
    %5482 = vmatpush.bf16.msra.mxu0 %v5279
    %5483 = vmatpush.bf16.msra.mxu0 %v5275
    %5484 = vmatpush.bf16.msra.mxu0 %v5271
    %5485 = vmatpush.bf16.msra.mxu0 %v5267
    %5486 = vmatpush.bf16.msra.mxu0 %v5263
    %5487 = vmatpush.bf16.msra.mxu0 %v5259
    %5488 = vmatpush.bf16.msra.mxu0 %v5255
    %5489 = vmatmul.bf16.gmra.mxu0 %v4960
    %v5490 = vpop.f32.mrf.mxu0
    %v5491 = vadd.f32 %v5472, %v5490
    %v5492 = vpop.f32.mrf.mxu0
    %v5493 = vadd.f32 %v5474, %v5492
    %5494 = vmatmul.bf16.gmra.mxu0 %v4962
    %v5495 = vpop.f32.mrf.mxu0
    %v5496 = vadd.f32 %v5477, %v5495
    %v5497 = vpop.f32.mrf.mxu0
    %v5498 = vadd.f32 %v5479, %v5497
    %5499 = vdwg.mxu0
    %v5500 = vadd.f32 %v4575, %v5377
    %v5501 = vadd.f32 %v4576, %v5415
    %v5502 = vadd.f32 %v4577, %v5453
    %v5503 = vadd.f32 %v4578, %v5491
    %v5504 = vadd.f32 %v4579, %v5379
    %v5505 = vadd.f32 %v4580, %v5417
    %v5506 = vadd.f32 %v4581, %v5455
    %v5507 = vadd.f32 %v4582, %v5493
    %v5508 = vadd.f32 %v4583, %v5382
    %v5509 = vadd.f32 %v4584, %v5420
    %v5510 = vadd.f32 %v4585, %v5458
    %v5511 = vadd.f32 %v4586, %v5496
    %v5512 = vadd.f32 %v4587, %v5384
    %v5513 = vadd.f32 %v4588, %v5422
    %v5514 = vadd.f32 %v4589, %v5460
    %v5515 = vadd.f32 %v4590, %v5498
    %v5516 = vld [vmem:[%s0 + $0x28] sm:$0xff]
    %v5517 = vld [vmem:[%s0 + $0x58] sm:$0xff]
    %v5518 = vld [vmem:[%s0 + $0x88] sm:$0xff]
    %v5519 = vld [vmem:[%s0 + $0xb8] sm:$0xff]
    %v5524 = vunpack.c.l.b16 %v5516
    %v5525 = vunpack.c.h.b16 %v5516
    %v5526 = vunpack.c.l.b16 %v5517
    %v5527 = vunpack.c.h.b16 %v5517
    %v5528 = vunpack.c.l.b16 %v5518
    %v5529 = vunpack.c.h.b16 %v5518
    %v5530 = vunpack.c.l.b16 %v5519
    %v5531 = vunpack.c.h.b16 %v5519
    %v5532 = vpack.c.b16 %v5526, %v5524
    %v5533 = vpack.c.b16 %v5527, %v5525
    %v5534 = vpack.c.b16 %v5530, %v5528
    %v5535 = vpack.c.b16 %v5531, %v5529
    %5540 = vmatpush.bf16.msra.mxu0 %v743
    %5541 = vmatpush.bf16.msra.mxu0 %v735
    %5542 = vmatpush.bf16.msra.mxu0 %v727
    %5543 = vmatpush.bf16.msra.mxu0 %v719
    %5544 = vmatpush.bf16.msra.mxu0 %v711
    %5545 = vmatpush.bf16.msra.mxu0 %v703
    %5546 = vmatpush.bf16.msra.mxu0 %v695
    %5547 = vmatpush.bf16.msra.mxu0 %v687
    %5548 = vmatmul.bf16.gmra.mxu0 %v5532
    %v5549 = vpop.f32.mrf.mxu0
    %v5550 = vadd.f32 0.0, %v5549
    %v5551 = vpop.f32.mrf.mxu0
    %v5552 = vadd.f32 0.0, %v5551
    %5553 = vmatmul.bf16.gmra.mxu0 %v5534
    %v5554 = vpop.f32.mrf.mxu0
    %v5555 = vadd.f32 0.0, %v5554
    %v5556 = vpop.f32.mrf.mxu0
    %v5557 = vadd.f32 0.0, %v5556
    %5558 = vdwg.mxu0
    %5559 = vmatpush.bf16.msra.mxu0 %v807
    %5560 = vmatpush.bf16.msra.mxu0 %v799
    %5561 = vmatpush.bf16.msra.mxu0 %v791
    %5562 = vmatpush.bf16.msra.mxu0 %v783
    %5563 = vmatpush.bf16.msra.mxu0 %v775
    %5564 = vmatpush.bf16.msra.mxu0 %v767
    %5565 = vmatpush.bf16.msra.mxu0 %v759
    %5566 = vmatpush.bf16.msra.mxu0 %v751
    %5567 = vmatmul.bf16.gmra.mxu0 %v5533
    %v5568 = vpop.f32.mrf.mxu0
    %v5569 = vadd.f32 %v5550, %v5568
    %v5570 = vpop.f32.mrf.mxu0
    %v5571 = vadd.f32 %v5552, %v5570
    %5572 = vmatmul.bf16.gmra.mxu0 %v5535
    %v5573 = vpop.f32.mrf.mxu0
    %v5574 = vadd.f32 %v5555, %v5573
    %v5575 = vpop.f32.mrf.mxu0
    %v5576 = vadd.f32 %v5557, %v5575
    %5577 = vdwg.mxu0
    %5578 = vmatpush.bf16.msra.mxu0 %v744
    %5579 = vmatpush.bf16.msra.mxu0 %v736
    %5580 = vmatpush.bf16.msra.mxu0 %v728
    %5581 = vmatpush.bf16.msra.mxu0 %v720
    %5582 = vmatpush.bf16.msra.mxu0 %v712
    %5583 = vmatpush.bf16.msra.mxu0 %v704
    %5584 = vmatpush.bf16.msra.mxu0 %v696
    %5585 = vmatpush.bf16.msra.mxu0 %v688
    %5586 = vmatmul.bf16.gmra.mxu0 %v5532
    %v5587 = vpop.f32.mrf.mxu0
    %v5588 = vadd.f32 0.0, %v5587
    %v5589 = vpop.f32.mrf.mxu0
    %v5590 = vadd.f32 0.0, %v5589
    %5591 = vmatmul.bf16.gmra.mxu0 %v5534
    %v5592 = vpop.f32.mrf.mxu0
    %v5593 = vadd.f32 0.0, %v5592
    %v5594 = vpop.f32.mrf.mxu0
    %v5595 = vadd.f32 0.0, %v5594
    %5596 = vdwg.mxu0
    %5597 = vmatpush.bf16.msra.mxu0 %v808
    %5598 = vmatpush.bf16.msra.mxu0 %v800
    %5599 = vmatpush.bf16.msra.mxu0 %v792
    %5600 = vmatpush.bf16.msra.mxu0 %v784
    %5601 = vmatpush.bf16.msra.mxu0 %v776
    %5602 = vmatpush.bf16.msra.mxu0 %v768
    %5603 = vmatpush.bf16.msra.mxu0 %v760
    %5604 = vmatpush.bf16.msra.mxu0 %v752
    %5605 = vmatmul.bf16.gmra.mxu0 %v5533
    %v5606 = vpop.f32.mrf.mxu0
    %v5607 = vadd.f32 %v5588, %v5606
    %v5608 = vpop.f32.mrf.mxu0
    %v5609 = vadd.f32 %v5590, %v5608
    %5610 = vmatmul.bf16.gmra.mxu0 %v5535
    %v5611 = vpop.f32.mrf.mxu0
    %v5612 = vadd.f32 %v5593, %v5611
    %v5613 = vpop.f32.mrf.mxu0
    %v5614 = vadd.f32 %v5595, %v5613
    %5615 = vdwg.mxu0
    %5616 = vmatpush.bf16.msra.mxu0 %v745
    %5617 = vmatpush.bf16.msra.mxu0 %v737
    %5618 = vmatpush.bf16.msra.mxu0 %v729
    %5619 = vmatpush.bf16.msra.mxu0 %v721
    %5620 = vmatpush.bf16.msra.mxu0 %v713
    %5621 = vmatpush.bf16.msra.mxu0 %v705
    %5622 = vmatpush.bf16.msra.mxu0 %v697
    %5623 = vmatpush.bf16.msra.mxu0 %v689
    %5624 = vmatmul.bf16.gmra.mxu0 %v5532
    %v5625 = vpop.f32.mrf.mxu0
    %v5626 = vadd.f32 0.0, %v5625
    %v5627 = vpop.f32.mrf.mxu0
    %v5628 = vadd.f32 0.0, %v5627
    %5629 = vmatmul.bf16.gmra.mxu0 %v5534
    %v5630 = vpop.f32.mrf.mxu0
    %v5631 = vadd.f32 0.0, %v5630
    %v5632 = vpop.f32.mrf.mxu0
    %v5633 = vadd.f32 0.0, %v5632
    %5634 = vdwg.mxu0
    %5635 = vmatpush.bf16.msra.mxu0 %v809
    %5636 = vmatpush.bf16.msra.mxu0 %v801
    %5637 = vmatpush.bf16.msra.mxu0 %v793
    %5638 = vmatpush.bf16.msra.mxu0 %v785
    %5639 = vmatpush.bf16.msra.mxu0 %v777
    %5640 = vmatpush.bf16.msra.mxu0 %v769
    %5641 = vmatpush.bf16.msra.mxu0 %v761
    %5642 = vmatpush.bf16.msra.mxu0 %v753
    %5643 = vmatmul.bf16.gmra.mxu0 %v5533
    %v5644 = vpop.f32.mrf.mxu0
    %v5645 = vadd.f32 %v5626, %v5644
    %v5646 = vpop.f32.mrf.mxu0
    %v5647 = vadd.f32 %v5628, %v5646
    %5648 = vmatmul.bf16.gmra.mxu0 %v5535
    %v5649 = vpop.f32.mrf.mxu0
    %v5650 = vadd.f32 %v5631, %v5649
    %v5651 = vpop.f32.mrf.mxu0
    %v5652 = vadd.f32 %v5633, %v5651
    %5653 = vdwg.mxu0
    %5654 = vmatpush.bf16.msra.mxu0 %v746
    %5655 = vmatpush.bf16.msra.mxu0 %v738
    %5656 = vmatpush.bf16.msra.mxu0 %v730
    %5657 = vmatpush.bf16.msra.mxu0 %v722
    %5658 = vmatpush.bf16.msra.mxu0 %v714
    %5659 = vmatpush.bf16.msra.mxu0 %v706
    %5660 = vmatpush.bf16.msra.mxu0 %v698
    %5661 = vmatpush.bf16.msra.mxu0 %v690
    %5662 = vmatmul.bf16.gmra.mxu0 %v5532
    %v5663 = vpop.f32.mrf.mxu0
    %v5664 = vadd.f32 0.0, %v5663
    %v5665 = vpop.f32.mrf.mxu0
    %v5666 = vadd.f32 0.0, %v5665
    %5667 = vmatmul.bf16.gmra.mxu0 %v5534
    %v5668 = vpop.f32.mrf.mxu0
    %v5669 = vadd.f32 0.0, %v5668
    %v5670 = vpop.f32.mrf.mxu0
    %v5671 = vadd.f32 0.0, %v5670
    %5672 = vdwg.mxu0
    %5673 = vmatpush.bf16.msra.mxu0 %v810
    %5674 = vmatpush.bf16.msra.mxu0 %v802
    %5675 = vmatpush.bf16.msra.mxu0 %v794
    %5676 = vmatpush.bf16.msra.mxu0 %v786
    %5677 = vmatpush.bf16.msra.mxu0 %v778
    %5678 = vmatpush.bf16.msra.mxu0 %v770
    %5679 = vmatpush.bf16.msra.mxu0 %v762
    %5680 = vmatpush.bf16.msra.mxu0 %v754
    %5681 = vmatmul.bf16.gmra.mxu0 %v5533
    %v5682 = vpop.f32.mrf.mxu0
    %v5683 = vadd.f32 %v5664, %v5682
    %v5684 = vpop.f32.mrf.mxu0
    %v5685 = vadd.f32 %v5666, %v5684
    %5686 = vmatmul.bf16.gmra.mxu0 %v5535
    %v5687 = vpop.f32.mrf.mxu0
    %v5688 = vadd.f32 %v5669, %v5687
    %v5689 = vpop.f32.mrf.mxu0
    %v5690 = vadd.f32 %v5671, %v5689
    %5691 = vdwg.mxu0
    %5692 = vmatpush.bf16.msra.mxu0 %v747
    %5693 = vmatpush.bf16.msra.mxu0 %v739
    %5694 = vmatpush.bf16.msra.mxu0 %v731
    %5695 = vmatpush.bf16.msra.mxu0 %v723
    %5696 = vmatpush.bf16.msra.mxu0 %v715
    %5697 = vmatpush.bf16.msra.mxu0 %v707
    %5698 = vmatpush.bf16.msra.mxu0 %v699
    %5699 = vmatpush.bf16.msra.mxu0 %v691
    %5700 = vmatmul.bf16.gmra.mxu0 %v5532
    %v5701 = vpop.f32.mrf.mxu0
    %v5702 = vadd.f32 0.0, %v5701
    %v5703 = vpop.f32.mrf.mxu0
    %v5704 = vadd.f32 0.0, %v5703
    %5705 = vmatmul.bf16.gmra.mxu0 %v5534
    %v5706 = vpop.f32.mrf.mxu0
    %v5707 = vadd.f32 0.0, %v5706
    %v5708 = vpop.f32.mrf.mxu0
    %v5709 = vadd.f32 0.0, %v5708
    %5710 = vdwg.mxu0
    %5711 = vmatpush.bf16.msra.mxu0 %v811
    %5712 = vmatpush.bf16.msra.mxu0 %v803
    %5713 = vmatpush.bf16.msra.mxu0 %v795
    %5714 = vmatpush.bf16.msra.mxu0 %v787
    %5715 = vmatpush.bf16.msra.mxu0 %v779
    %5716 = vmatpush.bf16.msra.mxu0 %v771
    %5717 = vmatpush.bf16.msra.mxu0 %v763
    %5718 = vmatpush.bf16.msra.mxu0 %v755
    %5719 = vmatmul.bf16.gmra.mxu0 %v5533
    %v5720 = vpop.f32.mrf.mxu0
    %v5721 = vadd.f32 %v5702, %v5720
    %v5722 = vpop.f32.mrf.mxu0
    %v5723 = vadd.f32 %v5704, %v5722
    %5724 = vmatmul.bf16.gmra.mxu0 %v5535
    %v5725 = vpop.f32.mrf.mxu0
    %v5726 = vadd.f32 %v5707, %v5725
    %v5727 = vpop.f32.mrf.mxu0
    %v5728 = vadd.f32 %v5709, %v5727
    %5729 = vdwg.mxu0
    %5730 = vmatpush.bf16.msra.mxu0 %v748
    %5731 = vmatpush.bf16.msra.mxu0 %v740
    %5732 = vmatpush.bf16.msra.mxu0 %v732
    %5733 = vmatpush.bf16.msra.mxu0 %v724
    %5734 = vmatpush.bf16.msra.mxu0 %v716
    %5735 = vmatpush.bf16.msra.mxu0 %v708
    %5736 = vmatpush.bf16.msra.mxu0 %v700
    %5737 = vmatpush.bf16.msra.mxu0 %v692
    %5738 = vmatmul.bf16.gmra.mxu0 %v5532
    %v5739 = vpop.f32.mrf.mxu0
    %v5740 = vadd.f32 0.0, %v5739
    %v5741 = vpop.f32.mrf.mxu0
    %v5742 = vadd.f32 0.0, %v5741
    %5743 = vmatmul.bf16.gmra.mxu0 %v5534
    %v5744 = vpop.f32.mrf.mxu0
    %v5745 = vadd.f32 0.0, %v5744
    %v5746 = vpop.f32.mrf.mxu0
    %v5747 = vadd.f32 0.0, %v5746
    %5748 = vdwg.mxu0
    %5749 = vmatpush.bf16.msra.mxu0 %v812
    %5750 = vmatpush.bf16.msra.mxu0 %v804
    %5751 = vmatpush.bf16.msra.mxu0 %v796
    %5752 = vmatpush.bf16.msra.mxu0 %v788
    %5753 = vmatpush.bf16.msra.mxu0 %v780
    %5754 = vmatpush.bf16.msra.mxu0 %v772
    %5755 = vmatpush.bf16.msra.mxu0 %v764
    %5756 = vmatpush.bf16.msra.mxu0 %v756
    %5757 = vmatmul.bf16.gmra.mxu0 %v5533
    %v5758 = vpop.f32.mrf.mxu0
    %v5759 = vadd.f32 %v5740, %v5758
    %v5760 = vpop.f32.mrf.mxu0
    %v5761 = vadd.f32 %v5742, %v5760
    %5762 = vmatmul.bf16.gmra.mxu0 %v5535
    %v5763 = vpop.f32.mrf.mxu0
    %v5764 = vadd.f32 %v5745, %v5763
    %v5765 = vpop.f32.mrf.mxu0
    %v5766 = vadd.f32 %v5747, %v5765
    %5767 = vdwg.mxu0
    %5768 = vmatpush.bf16.msra.mxu0 %v749
    %5769 = vmatpush.bf16.msra.mxu0 %v741
    %5770 = vmatpush.bf16.msra.mxu0 %v733
    %5771 = vmatpush.bf16.msra.mxu0 %v725
    %5772 = vmatpush.bf16.msra.mxu0 %v717
    %5773 = vmatpush.bf16.msra.mxu0 %v709
    %5774 = vmatpush.bf16.msra.mxu0 %v701
    %5775 = vmatpush.bf16.msra.mxu0 %v693
    %5776 = vmatmul.bf16.gmra.mxu0 %v5532
    %v5777 = vpop.f32.mrf.mxu0
    %v5778 = vadd.f32 0.0, %v5777
    %v5779 = vpop.f32.mrf.mxu0
    %v5780 = vadd.f32 0.0, %v5779
    %5781 = vmatmul.bf16.gmra.mxu0 %v5534
    %v5782 = vpop.f32.mrf.mxu0
    %v5783 = vadd.f32 0.0, %v5782
    %v5784 = vpop.f32.mrf.mxu0
    %v5785 = vadd.f32 0.0, %v5784
    %5786 = vdwg.mxu0
    %5787 = vmatpush.bf16.msra.mxu0 %v813
    %5788 = vmatpush.bf16.msra.mxu0 %v805
    %5789 = vmatpush.bf16.msra.mxu0 %v797
    %5790 = vmatpush.bf16.msra.mxu0 %v789
    %5791 = vmatpush.bf16.msra.mxu0 %v781
    %5792 = vmatpush.bf16.msra.mxu0 %v773
    %5793 = vmatpush.bf16.msra.mxu0 %v765
    %5794 = vmatpush.bf16.msra.mxu0 %v757
    %5795 = vmatmul.bf16.gmra.mxu0 %v5533
    %v5796 = vpop.f32.mrf.mxu0
    %v5797 = vadd.f32 %v5778, %v5796
    %v5798 = vpop.f32.mrf.mxu0
    %v5799 = vadd.f32 %v5780, %v5798
    %5800 = vmatmul.bf16.gmra.mxu0 %v5535
    %v5801 = vpop.f32.mrf.mxu0
    %v5802 = vadd.f32 %v5783, %v5801
    %v5803 = vpop.f32.mrf.mxu0
    %v5804 = vadd.f32 %v5785, %v5803
    %5805 = vdwg.mxu0
    %5806 = vmatpush.bf16.msra.mxu0 %v750
    %5807 = vmatpush.bf16.msra.mxu0 %v742
    %5808 = vmatpush.bf16.msra.mxu0 %v734
    %5809 = vmatpush.bf16.msra.mxu0 %v726
    %5810 = vmatpush.bf16.msra.mxu0 %v718
    %5811 = vmatpush.bf16.msra.mxu0 %v710
    %5812 = vmatpush.bf16.msra.mxu0 %v702
    %5813 = vmatpush.bf16.msra.mxu0 %v694
    %5814 = vmatmul.bf16.gmra.mxu0 %v5532
    %v5815 = vpop.f32.mrf.mxu0
    %v5816 = vadd.f32 0.0, %v5815
    %v5817 = vpop.f32.mrf.mxu0
    %v5818 = vadd.f32 0.0, %v5817
    %5819 = vmatmul.bf16.gmra.mxu0 %v5534
    %v5820 = vpop.f32.mrf.mxu0
    %v5821 = vadd.f32 0.0, %v5820
    %v5822 = vpop.f32.mrf.mxu0
    %v5823 = vadd.f32 0.0, %v5822
    %5824 = vdwg.mxu0
    %5825 = vmatpush.bf16.msra.mxu0 %v814
    %5826 = vmatpush.bf16.msra.mxu0 %v806
    %5827 = vmatpush.bf16.msra.mxu0 %v798
    %5828 = vmatpush.bf16.msra.mxu0 %v790
    %5829 = vmatpush.bf16.msra.mxu0 %v782
    %5830 = vmatpush.bf16.msra.mxu0 %v774
    %5831 = vmatpush.bf16.msra.mxu0 %v766
    %5832 = vmatpush.bf16.msra.mxu0 %v758
    %5833 = vmatmul.bf16.gmra.mxu0 %v5533
    %v5834 = vpop.f32.mrf.mxu0
    %v5835 = vadd.f32 %v5816, %v5834
    %v5836 = vpop.f32.mrf.mxu0
    %v5837 = vadd.f32 %v5818, %v5836
    %5838 = vmatmul.bf16.gmra.mxu0 %v5535
    %v5839 = vpop.f32.mrf.mxu0
    %v5840 = vadd.f32 %v5821, %v5839
    %v5841 = vpop.f32.mrf.mxu0
    %v5842 = vadd.f32 %v5823, %v5841
    %5843 = vdwg.mxu0
    %v5844 = vmax.f32 %v5569, %v5645
    %v5845 = vmax.f32 %v5607, %v5683
    %v5846 = vmax.f32 %v5571, %v5647
    %v5847 = vmax.f32 %v5609, %v5685
    %v5848 = vmax.f32 %v5574, %v5650
    %v5849 = vmax.f32 %v5612, %v5688
    %v5850 = vmax.f32 %v5576, %v5652
    %v5851 = vmax.f32 %v5614, %v5690
    %v5852 = vmax.f32 %v5721, %v5797
    %v5853 = vmax.f32 %v5759, %v5835
    %v5854 = vmax.f32 %v5723, %v5799
    %v5855 = vmax.f32 %v5761, %v5837
    %v5856 = vmax.f32 %v5726, %v5802
    %v5857 = vmax.f32 %v5764, %v5840
    %v5858 = vmax.f32 %v5728, %v5804
    %v5859 = vmax.f32 %v5766, %v5842
    %v5860 = vmax.f32 %v5844, %v5852
    %v5861 = vmax.f32 %v5845, %v5853
    %v5862 = vmax.f32 %v5846, %v5854
    %v5863 = vmax.f32 %v5847, %v5855
    %v5864 = vmax.f32 %v5848, %v5856
    %v5865 = vmax.f32 %v5849, %v5857
    %v5866 = vmax.f32 %v5850, %v5858
    %v5867 = vmax.f32 %v5851, %v5859
    %v5868 = vadd.f32 %v5860, %v1272
    %v5869 = vadd.f32 %v5861, %v1273
    %v5870 = vadd.f32 %v5862, %v1272
    %v5871 = vadd.f32 %v5863, %v1273
    %v5872 = vadd.f32 %v5864, %v1272
    %v5873 = vadd.f32 %v5865, %v1273
    %v5874 = vadd.f32 %v5866, %v1272
    %v5875 = vadd.f32 %v5867, %v1273
    %v5876 = vmax.f32 %v5868, 0.0
    %v5877 = vmax.f32 %v5869, 0.0
    %v5878 = vmax.f32 %v5870, 0.0
    %v5879 = vmax.f32 %v5871, 0.0
    %v5880 = vmax.f32 %v5872, 0.0
    %v5881 = vmax.f32 %v5873, 0.0
    %v5882 = vmax.f32 %v5874, 0.0
    %v5883 = vmax.f32 %v5875, 0.0
    %v5884 = vpack.c.bf16 %v5878, %v5876
    %v5885 = vpack.c.bf16 %v5879, %v5877
    %v5886 = vpack.c.bf16 %v5882, %v5880
    %v5887 = vpack.c.bf16 %v5883, %v5881
    %s5888 = scalar_lea.vmem [#allocation6], 2560
    %v5889 = vld [vmem:[%s5888] sm:$0xff]
    %v5890 = vld [vmem:[%s5888 + $0x8] sm:$0xff]
    %v5891 = vld [vmem:[%s5888 + $0x10] sm:$0xff]
    %v5892 = vld [vmem:[%s5888 + $0x18] sm:$0xff]
    %v5893 = vld [vmem:[%s5888 + $0x20] sm:$0xff]
    %v5894 = vld [vmem:[%s5888 + $0x28] sm:$0xff]
    %v5895 = vld [vmem:[%s5888 + $0x30] sm:$0xff]
    %v5896 = vld [vmem:[%s5888 + $0x38] sm:$0xff]
    %v5897 = vld [vmem:[%s5888 + $0x40] sm:$0xff]
    %v5898 = vld [vmem:[%s5888 + $0x48] sm:$0xff]
    %v5899 = vld [vmem:[%s5888 + $0x50] sm:$0xff]
    %v5900 = vld [vmem:[%s5888 + $0x58] sm:$0xff]
    %v5901 = vld [vmem:[%s5888 + $0x60] sm:$0xff]
    %v5902 = vld [vmem:[%s5888 + $0x68] sm:$0xff]
    %v5903 = vld [vmem:[%s5888 + $0x70] sm:$0xff]
    %v5904 = vld [vmem:[%s5888 + $0x78] sm:$0xff]
    %v5905 = vld [vmem:[%s5888 + $0x80] sm:$0xff]
    %v5906 = vld [vmem:[%s5888 + $0x88] sm:$0xff]
    %v5907 = vld [vmem:[%s5888 + $0x90] sm:$0xff]
    %v5908 = vld [vmem:[%s5888 + $0x98] sm:$0xff]
    %v5909 = vld [vmem:[%s5888 + $0xa0] sm:$0xff]
    %v5910 = vld [vmem:[%s5888 + $0xa8] sm:$0xff]
    %v5911 = vld [vmem:[%s5888 + $0xb0] sm:$0xff]
    %v5912 = vld [vmem:[%s5888 + $0xb8] sm:$0xff]
    %v5913 = vld [vmem:[%s5888 + $0xc0] sm:$0xff]
    %v5914 = vld [vmem:[%s5888 + $0xc8] sm:$0xff]
    %v5915 = vld [vmem:[%s5888 + $0xd0] sm:$0xff]
    %v5916 = vld [vmem:[%s5888 + $0xd8] sm:$0xff]
    %v5917 = vld [vmem:[%s5888 + $0xe0] sm:$0xff]
    %v5918 = vld [vmem:[%s5888 + $0xe8] sm:$0xff]
    %v5919 = vld [vmem:[%s5888 + $0xf0] sm:$0xff]
    %v5920 = vld [vmem:[%s5888 + $0xf8] sm:$0xff]
    %v5921 = vld [vmem:[%s5888 + $0x100] sm:$0xff]
    %v5922 = vld [vmem:[%s5888 + $0x108] sm:$0xff]
    %v5923 = vld [vmem:[%s5888 + $0x110] sm:$0xff]
    %v5924 = vld [vmem:[%s5888 + $0x118] sm:$0xff]
    %v5925 = vld [vmem:[%s5888 + $0x120] sm:$0xff]
    %v5926 = vld [vmem:[%s5888 + $0x128] sm:$0xff]
    %v5927 = vld [vmem:[%s5888 + $0x130] sm:$0xff]
    %v5928 = vld [vmem:[%s5888 + $0x138] sm:$0xff]
    %v5929 = vld [vmem:[%s5888 + $0x140] sm:$0xff]
    %v5930 = vld [vmem:[%s5888 + $0x148] sm:$0xff]
    %v5931 = vld [vmem:[%s5888 + $0x150] sm:$0xff]
    %v5932 = vld [vmem:[%s5888 + $0x158] sm:$0xff]
    %v5933 = vld [vmem:[%s5888 + $0x160] sm:$0xff]
    %v5934 = vld [vmem:[%s5888 + $0x168] sm:$0xff]
    %v5935 = vld [vmem:[%s5888 + $0x170] sm:$0xff]
    %v5936 = vld [vmem:[%s5888 + $0x178] sm:$0xff]
    %v5937 = vld [vmem:[%s5888 + $0x180] sm:$0xff]
    %v5938 = vld [vmem:[%s5888 + $0x188] sm:$0xff]
    %v5939 = vld [vmem:[%s5888 + $0x190] sm:$0xff]
    %v5940 = vld [vmem:[%s5888 + $0x198] sm:$0xff]
    %v5941 = vld [vmem:[%s5888 + $0x1a0] sm:$0xff]
    %v5942 = vld [vmem:[%s5888 + $0x1a8] sm:$0xff]
    %v5943 = vld [vmem:[%s5888 + $0x1b0] sm:$0xff]
    %v5944 = vld [vmem:[%s5888 + $0x1b8] sm:$0xff]
    %v5945 = vld [vmem:[%s5888 + $0x1c0] sm:$0xff]
    %v5946 = vld [vmem:[%s5888 + $0x1c8] sm:$0xff]
    %v5947 = vld [vmem:[%s5888 + $0x1d0] sm:$0xff]
    %v5948 = vld [vmem:[%s5888 + $0x1d8] sm:$0xff]
    %v5949 = vld [vmem:[%s5888 + $0x1e0] sm:$0xff]
    %v5950 = vld [vmem:[%s5888 + $0x1e8] sm:$0xff]
    %v5951 = vld [vmem:[%s5888 + $0x1f0] sm:$0xff]
    %v5952 = vld [vmem:[%s5888 + $0x1f8] sm:$0xff]
    %v6017 = vunpack.c.l.b16 %v5889
    %v6018 = vunpack.c.h.b16 %v5889
    %v6019 = vunpack.c.l.b16 %v5890
    %v6020 = vunpack.c.h.b16 %v5890
    %v6021 = vunpack.c.l.b16 %v5891
    %v6022 = vunpack.c.h.b16 %v5891
    %v6023 = vunpack.c.l.b16 %v5892
    %v6024 = vunpack.c.h.b16 %v5892
    %v6025 = vunpack.c.l.b16 %v5893
    %v6026 = vunpack.c.h.b16 %v5893
    %v6027 = vunpack.c.l.b16 %v5894
    %v6028 = vunpack.c.h.b16 %v5894
    %v6029 = vunpack.c.l.b16 %v5895
    %v6030 = vunpack.c.h.b16 %v5895
    %v6031 = vunpack.c.l.b16 %v5896
    %v6032 = vunpack.c.h.b16 %v5896
    %v6033 = vunpack.c.l.b16 %v5897
    %v6034 = vunpack.c.h.b16 %v5897
    %v6035 = vunpack.c.l.b16 %v5898
    %v6036 = vunpack.c.h.b16 %v5898
    %v6037 = vunpack.c.l.b16 %v5899
    %v6038 = vunpack.c.h.b16 %v5899
    %v6039 = vunpack.c.l.b16 %v5900
    %v6040 = vunpack.c.h.b16 %v5900
    %v6041 = vunpack.c.l.b16 %v5901
    %v6042 = vunpack.c.h.b16 %v5901
    %v6043 = vunpack.c.l.b16 %v5902
    %v6044 = vunpack.c.h.b16 %v5902
    %v6045 = vunpack.c.l.b16 %v5903
    %v6046 = vunpack.c.h.b16 %v5903
    %v6047 = vunpack.c.l.b16 %v5904
    %v6048 = vunpack.c.h.b16 %v5904
    %v6049 = vunpack.c.l.b16 %v5905
    %v6050 = vunpack.c.h.b16 %v5905
    %v6051 = vunpack.c.l.b16 %v5906
    %v6052 = vunpack.c.h.b16 %v5906
    %v6053 = vunpack.c.l.b16 %v5907
    %v6054 = vunpack.c.h.b16 %v5907
    %v6055 = vunpack.c.l.b16 %v5908
    %v6056 = vunpack.c.h.b16 %v5908
    %v6057 = vunpack.c.l.b16 %v5909
    %v6058 = vunpack.c.h.b16 %v5909
    %v6059 = vunpack.c.l.b16 %v5910
    %v6060 = vunpack.c.h.b16 %v5910
    %v6061 = vunpack.c.l.b16 %v5911
    %v6062 = vunpack.c.h.b16 %v5911
    %v6063 = vunpack.c.l.b16 %v5912
    %v6064 = vunpack.c.h.b16 %v5912
    %v6065 = vunpack.c.l.b16 %v5913
    %v6066 = vunpack.c.h.b16 %v5913
    %v6067 = vunpack.c.l.b16 %v5914
    %v6068 = vunpack.c.h.b16 %v5914
    %v6069 = vunpack.c.l.b16 %v5915
    %v6070 = vunpack.c.h.b16 %v5915
    %v6071 = vunpack.c.l.b16 %v5916
    %v6072 = vunpack.c.h.b16 %v5916
    %v6073 = vunpack.c.l.b16 %v5917
    %v6074 = vunpack.c.h.b16 %v5917
    %v6075 = vunpack.c.l.b16 %v5918
    %v6076 = vunpack.c.h.b16 %v5918
    %v6077 = vunpack.c.l.b16 %v5919
    %v6078 = vunpack.c.h.b16 %v5919
    %v6079 = vunpack.c.l.b16 %v5920
    %v6080 = vunpack.c.h.b16 %v5920
    %v6081 = vunpack.c.l.b16 %v5921
    %v6082 = vunpack.c.h.b16 %v5921
    %v6083 = vunpack.c.l.b16 %v5922
    %v6084 = vunpack.c.h.b16 %v5922
    %v6085 = vunpack.c.l.b16 %v5923
    %v6086 = vunpack.c.h.b16 %v5923
    %v6087 = vunpack.c.l.b16 %v5924
    %v6088 = vunpack.c.h.b16 %v5924
    %v6089 = vunpack.c.l.b16 %v5925
    %v6090 = vunpack.c.h.b16 %v5925
    %v6091 = vunpack.c.l.b16 %v5926
    %v6092 = vunpack.c.h.b16 %v5926
    %v6093 = vunpack.c.l.b16 %v5927
    %v6094 = vunpack.c.h.b16 %v5927
    %v6095 = vunpack.c.l.b16 %v5928
    %v6096 = vunpack.c.h.b16 %v5928
    %v6097 = vunpack.c.l.b16 %v5929
    %v6098 = vunpack.c.h.b16 %v5929
    %v6099 = vunpack.c.l.b16 %v5930
    %v6100 = vunpack.c.h.b16 %v5930
    %v6101 = vunpack.c.l.b16 %v5931
    %v6102 = vunpack.c.h.b16 %v5931
    %v6103 = vunpack.c.l.b16 %v5932
    %v6104 = vunpack.c.h.b16 %v5932
    %v6105 = vunpack.c.l.b16 %v5933
    %v6106 = vunpack.c.h.b16 %v5933
    %v6107 = vunpack.c.l.b16 %v5934
    %v6108 = vunpack.c.h.b16 %v5934
    %v6109 = vunpack.c.l.b16 %v5935
    %v6110 = vunpack.c.h.b16 %v5935
    %v6111 = vunpack.c.l.b16 %v5936
    %v6112 = vunpack.c.h.b16 %v5936
    %v6113 = vunpack.c.l.b16 %v5937
    %v6114 = vunpack.c.h.b16 %v5937
    %v6115 = vunpack.c.l.b16 %v5938
    %v6116 = vunpack.c.h.b16 %v5938
    %v6117 = vunpack.c.l.b16 %v5939
    %v6118 = vunpack.c.h.b16 %v5939
    %v6119 = vunpack.c.l.b16 %v5940
    %v6120 = vunpack.c.h.b16 %v5940
    %v6121 = vunpack.c.l.b16 %v5941
    %v6122 = vunpack.c.h.b16 %v5941
    %v6123 = vunpack.c.l.b16 %v5942
    %v6124 = vunpack.c.h.b16 %v5942
    %v6125 = vunpack.c.l.b16 %v5943
    %v6126 = vunpack.c.h.b16 %v5943
    %v6127 = vunpack.c.l.b16 %v5944
    %v6128 = vunpack.c.h.b16 %v5944
    %v6129 = vunpack.c.l.b16 %v5945
    %v6130 = vunpack.c.h.b16 %v5945
    %v6131 = vunpack.c.l.b16 %v5946
    %v6132 = vunpack.c.h.b16 %v5946
    %v6133 = vunpack.c.l.b16 %v5947
    %v6134 = vunpack.c.h.b16 %v5947
    %v6135 = vunpack.c.l.b16 %v5948
    %v6136 = vunpack.c.h.b16 %v5948
    %v6137 = vunpack.c.l.b16 %v5949
    %v6138 = vunpack.c.h.b16 %v5949
    %v6139 = vunpack.c.l.b16 %v5950
    %v6140 = vunpack.c.h.b16 %v5950
    %v6141 = vunpack.c.l.b16 %v5951
    %v6142 = vunpack.c.h.b16 %v5951
    %v6143 = vunpack.c.l.b16 %v5952
    %v6144 = vunpack.c.h.b16 %v5952
    %v6145 = vpack.c.b16 %v6021, %v6017
    %v6146 = vpack.c.b16 %v6022, %v6018
    %v6147 = vpack.c.b16 %v6023, %v6019
    %v6148 = vpack.c.b16 %v6024, %v6020
    %v6149 = vpack.c.b16 %v6029, %v6025
    %v6150 = vpack.c.b16 %v6030, %v6026
    %v6151 = vpack.c.b16 %v6031, %v6027
    %v6152 = vpack.c.b16 %v6032, %v6028
    %v6153 = vpack.c.b16 %v6037, %v6033
    %v6154 = vpack.c.b16 %v6038, %v6034
    %v6155 = vpack.c.b16 %v6039, %v6035
    %v6156 = vpack.c.b16 %v6040, %v6036
    %v6157 = vpack.c.b16 %v6045, %v6041
    %v6158 = vpack.c.b16 %v6046, %v6042
    %v6159 = vpack.c.b16 %v6047, %v6043
    %v6160 = vpack.c.b16 %v6048, %v6044
    %v6161 = vpack.c.b16 %v6053, %v6049
    %v6162 = vpack.c.b16 %v6054, %v6050
    %v6163 = vpack.c.b16 %v6055, %v6051
    %v6164 = vpack.c.b16 %v6056, %v6052
    %v6165 = vpack.c.b16 %v6061, %v6057
    %v6166 = vpack.c.b16 %v6062, %v6058
    %v6167 = vpack.c.b16 %v6063, %v6059
    %v6168 = vpack.c.b16 %v6064, %v6060
    %v6169 = vpack.c.b16 %v6069, %v6065
    %v6170 = vpack.c.b16 %v6070, %v6066
    %v6171 = vpack.c.b16 %v6071, %v6067
    %v6172 = vpack.c.b16 %v6072, %v6068
    %v6173 = vpack.c.b16 %v6077, %v6073
    %v6174 = vpack.c.b16 %v6078, %v6074
    %v6175 = vpack.c.b16 %v6079, %v6075
    %v6176 = vpack.c.b16 %v6080, %v6076
    %v6177 = vpack.c.b16 %v6085, %v6081
    %v6178 = vpack.c.b16 %v6086, %v6082
    %v6179 = vpack.c.b16 %v6087, %v6083
    %v6180 = vpack.c.b16 %v6088, %v6084
    %v6181 = vpack.c.b16 %v6093, %v6089
    %v6182 = vpack.c.b16 %v6094, %v6090
    %v6183 = vpack.c.b16 %v6095, %v6091
    %v6184 = vpack.c.b16 %v6096, %v6092
    %v6185 = vpack.c.b16 %v6101, %v6097
    %v6186 = vpack.c.b16 %v6102, %v6098
    %v6187 = vpack.c.b16 %v6103, %v6099
    %v6188 = vpack.c.b16 %v6104, %v6100
    %v6189 = vpack.c.b16 %v6109, %v6105
    %v6190 = vpack.c.b16 %v6110, %v6106
    %v6191 = vpack.c.b16 %v6111, %v6107
    %v6192 = vpack.c.b16 %v6112, %v6108
    %v6193 = vpack.c.b16 %v6117, %v6113
    %v6194 = vpack.c.b16 %v6118, %v6114
    %v6195 = vpack.c.b16 %v6119, %v6115
    %v6196 = vpack.c.b16 %v6120, %v6116
    %v6197 = vpack.c.b16 %v6125, %v6121
    %v6198 = vpack.c.b16 %v6126, %v6122
    %v6199 = vpack.c.b16 %v6127, %v6123
    %v6200 = vpack.c.b16 %v6128, %v6124
    %v6201 = vpack.c.b16 %v6133, %v6129
    %v6202 = vpack.c.b16 %v6134, %v6130
    %v6203 = vpack.c.b16 %v6135, %v6131
    %v6204 = vpack.c.b16 %v6136, %v6132
    %v6205 = vpack.c.b16 %v6141, %v6137
    %v6206 = vpack.c.b16 %v6142, %v6138
    %v6207 = vpack.c.b16 %v6143, %v6139
    %v6208 = vpack.c.b16 %v6144, %v6140
    %6273 = vmatpush.bf16.msra.mxu0 %v6173
    %6274 = vmatpush.bf16.msra.mxu0 %v6169
    %6275 = vmatpush.bf16.msra.mxu0 %v6165
    %6276 = vmatpush.bf16.msra.mxu0 %v6161
    %6277 = vmatpush.bf16.msra.mxu0 %v6157
    %6278 = vmatpush.bf16.msra.mxu0 %v6153
    %6279 = vmatpush.bf16.msra.mxu0 %v6149
    %6280 = vmatpush.bf16.msra.mxu0 %v6145
    %6281 = vmatmul.bf16.gmra.mxu0 %v5884
    %v6282 = vpop.f32.mrf.mxu0
    %v6283 = vadd.f32 0.0, %v6282
    %v6284 = vpop.f32.mrf.mxu0
    %v6285 = vadd.f32 0.0, %v6284
    %6286 = vmatmul.bf16.gmra.mxu0 %v5886
    %v6287 = vpop.f32.mrf.mxu0
    %v6288 = vadd.f32 0.0, %v6287
    %v6289 = vpop.f32.mrf.mxu0
    %v6290 = vadd.f32 0.0, %v6289
    %6291 = vdwg.mxu0
    %6292 = vmatpush.bf16.msra.mxu0 %v6205
    %6293 = vmatpush.bf16.msra.mxu0 %v6201
    %6294 = vmatpush.bf16.msra.mxu0 %v6197
    %6295 = vmatpush.bf16.msra.mxu0 %v6193
    %6296 = vmatpush.bf16.msra.mxu0 %v6189
    %6297 = vmatpush.bf16.msra.mxu0 %v6185
    %6298 = vmatpush.bf16.msra.mxu0 %v6181
    %6299 = vmatpush.bf16.msra.mxu0 %v6177
    %6300 = vmatmul.bf16.gmra.mxu0 %v5885
    %v6301 = vpop.f32.mrf.mxu0
    %v6302 = vadd.f32 %v6283, %v6301
    %v6303 = vpop.f32.mrf.mxu0
    %v6304 = vadd.f32 %v6285, %v6303
    %6305 = vmatmul.bf16.gmra.mxu0 %v5887
    %v6306 = vpop.f32.mrf.mxu0
    %v6307 = vadd.f32 %v6288, %v6306
    %v6308 = vpop.f32.mrf.mxu0
    %v6309 = vadd.f32 %v6290, %v6308
    %6310 = vdwg.mxu0
    %6311 = vmatpush.bf16.msra.mxu0 %v6174
    %6312 = vmatpush.bf16.msra.mxu0 %v6170
    %6313 = vmatpush.bf16.msra.mxu0 %v6166
    %6314 = vmatpush.bf16.msra.mxu0 %v6162
    %6315 = vmatpush.bf16.msra.mxu0 %v6158
    %6316 = vmatpush.bf16.msra.mxu0 %v6154
    %6317 = vmatpush.bf16.msra.mxu0 %v6150
    %6318 = vmatpush.bf16.msra.mxu0 %v6146
    %6319 = vmatmul.bf16.gmra.mxu0 %v5884
    %v6320 = vpop.f32.mrf.mxu0
    %v6321 = vadd.f32 0.0, %v6320
    %v6322 = vpop.f32.mrf.mxu0
    %v6323 = vadd.f32 0.0, %v6322
    %6324 = vmatmul.bf16.gmra.mxu0 %v5886
    %v6325 = vpop.f32.mrf.mxu0
    %v6326 = vadd.f32 0.0, %v6325
    %v6327 = vpop.f32.mrf.mxu0
    %v6328 = vadd.f32 0.0, %v6327
    %6329 = vdwg.mxu0
    %6330 = vmatpush.bf16.msra.mxu0 %v6206
    %6331 = vmatpush.bf16.msra.mxu0 %v6202
    %6332 = vmatpush.bf16.msra.mxu0 %v6198
    %6333 = vmatpush.bf16.msra.mxu0 %v6194
    %6334 = vmatpush.bf16.msra.mxu0 %v6190
    %6335 = vmatpush.bf16.msra.mxu0 %v6186
    %6336 = vmatpush.bf16.msra.mxu0 %v6182
    %6337 = vmatpush.bf16.msra.mxu0 %v6178
    %6338 = vmatmul.bf16.gmra.mxu0 %v5885
    %v6339 = vpop.f32.mrf.mxu0
    %v6340 = vadd.f32 %v6321, %v6339
    %v6341 = vpop.f32.mrf.mxu0
    %v6342 = vadd.f32 %v6323, %v6341
    %6343 = vmatmul.bf16.gmra.mxu0 %v5887
    %v6344 = vpop.f32.mrf.mxu0
    %v6345 = vadd.f32 %v6326, %v6344
    %v6346 = vpop.f32.mrf.mxu0
    %v6347 = vadd.f32 %v6328, %v6346
    %6348 = vdwg.mxu0
    %6349 = vmatpush.bf16.msra.mxu0 %v6175
    %6350 = vmatpush.bf16.msra.mxu0 %v6171
    %6351 = vmatpush.bf16.msra.mxu0 %v6167
    %6352 = vmatpush.bf16.msra.mxu0 %v6163
    %6353 = vmatpush.bf16.msra.mxu0 %v6159
    %6354 = vmatpush.bf16.msra.mxu0 %v6155
    %6355 = vmatpush.bf16.msra.mxu0 %v6151
    %6356 = vmatpush.bf16.msra.mxu0 %v6147
    %6357 = vmatmul.bf16.gmra.mxu0 %v5884
    %v6358 = vpop.f32.mrf.mxu0
    %v6359 = vadd.f32 0.0, %v6358
    %v6360 = vpop.f32.mrf.mxu0
    %v6361 = vadd.f32 0.0, %v6360
    %6362 = vmatmul.bf16.gmra.mxu0 %v5886
    %v6363 = vpop.f32.mrf.mxu0
    %v6364 = vadd.f32 0.0, %v6363
    %v6365 = vpop.f32.mrf.mxu0
    %v6366 = vadd.f32 0.0, %v6365
    %6367 = vdwg.mxu0
    %6368 = vmatpush.bf16.msra.mxu0 %v6207
    %6369 = vmatpush.bf16.msra.mxu0 %v6203
    %6370 = vmatpush.bf16.msra.mxu0 %v6199
    %6371 = vmatpush.bf16.msra.mxu0 %v6195
    %6372 = vmatpush.bf16.msra.mxu0 %v6191
    %6373 = vmatpush.bf16.msra.mxu0 %v6187
    %6374 = vmatpush.bf16.msra.mxu0 %v6183
    %6375 = vmatpush.bf16.msra.mxu0 %v6179
    %6376 = vmatmul.bf16.gmra.mxu0 %v5885
    %v6377 = vpop.f32.mrf.mxu0
    %v6378 = vadd.f32 %v6359, %v6377
    %v6379 = vpop.f32.mrf.mxu0
    %v6380 = vadd.f32 %v6361, %v6379
    %6381 = vmatmul.bf16.gmra.mxu0 %v5887
    %v6382 = vpop.f32.mrf.mxu0
    %v6383 = vadd.f32 %v6364, %v6382
    %v6384 = vpop.f32.mrf.mxu0
    %v6385 = vadd.f32 %v6366, %v6384
    %6386 = vdwg.mxu0
    %6387 = vmatpush.bf16.msra.mxu0 %v6176
    %6388 = vmatpush.bf16.msra.mxu0 %v6172
    %6389 = vmatpush.bf16.msra.mxu0 %v6168
    %6390 = vmatpush.bf16.msra.mxu0 %v6164
    %6391 = vmatpush.bf16.msra.mxu0 %v6160
    %6392 = vmatpush.bf16.msra.mxu0 %v6156
    %6393 = vmatpush.bf16.msra.mxu0 %v6152
    %6394 = vmatpush.bf16.msra.mxu0 %v6148
    %6395 = vmatmul.bf16.gmra.mxu0 %v5884
    %v6396 = vpop.f32.mrf.mxu0
    %v6397 = vadd.f32 0.0, %v6396
    %v6398 = vpop.f32.mrf.mxu0
    %v6399 = vadd.f32 0.0, %v6398
    %6400 = vmatmul.bf16.gmra.mxu0 %v5886
    %v6401 = vpop.f32.mrf.mxu0
    %v6402 = vadd.f32 0.0, %v6401
    %v6403 = vpop.f32.mrf.mxu0
    %v6404 = vadd.f32 0.0, %v6403
    %6405 = vdwg.mxu0
    %6406 = vmatpush.bf16.msra.mxu0 %v6208
    %6407 = vmatpush.bf16.msra.mxu0 %v6204
    %6408 = vmatpush.bf16.msra.mxu0 %v6200
    %6409 = vmatpush.bf16.msra.mxu0 %v6196
    %6410 = vmatpush.bf16.msra.mxu0 %v6192
    %6411 = vmatpush.bf16.msra.mxu0 %v6188
    %6412 = vmatpush.bf16.msra.mxu0 %v6184
    %6413 = vmatpush.bf16.msra.mxu0 %v6180
    %6414 = vmatmul.bf16.gmra.mxu0 %v5885
    %v6415 = vpop.f32.mrf.mxu0
    %v6416 = vadd.f32 %v6397, %v6415
    %v6417 = vpop.f32.mrf.mxu0
    %v6418 = vadd.f32 %v6399, %v6417
    %6419 = vmatmul.bf16.gmra.mxu0 %v5887
    %v6420 = vpop.f32.mrf.mxu0
    %v6421 = vadd.f32 %v6402, %v6420
    %v6422 = vpop.f32.mrf.mxu0
    %v6423 = vadd.f32 %v6404, %v6422
    %6424 = vdwg.mxu0
    %v6425 = vadd.f32 %v5500, %v6302
    %v6426 = vadd.f32 %v5501, %v6340
    %v6427 = vadd.f32 %v5502, %v6378
    %v6428 = vadd.f32 %v5503, %v6416
    %v6429 = vadd.f32 %v5504, %v6304
    %v6430 = vadd.f32 %v5505, %v6342
    %v6431 = vadd.f32 %v5506, %v6380
    %v6432 = vadd.f32 %v5507, %v6418
    %v6433 = vadd.f32 %v5508, %v6307
    %v6434 = vadd.f32 %v5509, %v6345
    %v6435 = vadd.f32 %v5510, %v6383
    %v6436 = vadd.f32 %v5511, %v6421
    %v6437 = vadd.f32 %v5512, %v6309
    %v6438 = vadd.f32 %v5513, %v6347
    %v6439 = vadd.f32 %v5514, %v6385
    %v6440 = vadd.f32 %v5515, %v6423
    %v6441 = vmax.f32 %v6425, %v6426
    %v6442 = vmax.f32 %v6429, %v6430
    %v6443 = vmax.f32 %v6433, %v6434
    %v6444 = vmax.f32 %v6437, %v6438
    %v6445 = vmax.f32 %v6427, %v6428
    %v6446 = vmax.f32 %v6431, %v6432
    %v6447 = vmax.f32 %v6435, %v6436
    %v6448 = vmax.f32 %v6439, %v6440
    %v6449 = vmax.f32 %v6441, %v6445
    %v6450 = vmax.f32 %v6442, %v6446
    %v6451 = vmax.f32 %v6443, %v6447
    %v6452 = vmax.f32 %v6444, %v6448
    %v6454 = vperm.slane %v278, 0
    %v6456 = vadd.f32 %v6449, %v6454
    %v6457 = vadd.f32 %v6450, %v6454
    %v6458 = vadd.f32 %v6451, %v6454
    %v6459 = vadd.f32 %v6452, %v6454
    %v6460 = vmax.f32 %v6456, 0.0
    %v6461 = vmax.f32 %v6457, 0.0
    %v6462 = vmax.f32 %v6458, 0.0
    %v6463 = vmax.f32 %v6459, 0.0
    %v6464 = vpack.c.bf16 %v6460, %v6460
    %v6465 = vpack.c.bf16 %v6461, %v6461
    %v6466 = vpack.c.bf16 %v6462, %v6462
    %v6467 = vpack.c.bf16 %v6463, %v6463
    %v6468 = vld [vmem:[#allocation9] sm:$0xf]
    %v6469 = vld [vmem:[#allocation9 + $0x4] sm:$0xf]
    %v6470 = vld [vmem:[#allocation9 + $0x8] sm:$0xf]
    %v6471 = vld [vmem:[#allocation9 + $0xc] sm:$0xf]
    %v6472 = vld [vmem:[#allocation9 + $0x10] sm:$0xf]
    %v6473 = vld [vmem:[#allocation9 + $0x14] sm:$0xf]
    %v6474 = vld [vmem:[#allocation9 + $0x18] sm:$0xf]
    %v6475 = vld [vmem:[#allocation9 + $0x1c] sm:$0xf]
    %v6476 = vld [vmem:[#allocation9 + $0x20] sm:$0xf]
    %v6477 = vld [vmem:[#allocation9 + $0x24] sm:$0xf]
    %v6478 = vld [vmem:[#allocation9 + $0x28] sm:$0xf]
    %v6479 = vld [vmem:[#allocation9 + $0x2c] sm:$0xf]
    %v6480 = vld [vmem:[#allocation9 + $0x30] sm:$0xf]
    %v6481 = vld [vmem:[#allocation9 + $0x34] sm:$0xf]
    %v6482 = vld [vmem:[#allocation9 + $0x38] sm:$0xf]
    %v6483 = vld [vmem:[#allocation9 + $0x3c] sm:$0xf]
    %s6484 = scalar_lea.vmem [#allocation9], 64
    %v6485 = vld [vmem:[%s6484] sm:$0xf]
    %v6486 = vld [vmem:[%s6484 + $0x4] sm:$0xf]
    %v6487 = vld [vmem:[%s6484 + $0x8] sm:$0xf]
    %v6488 = vld [vmem:[%s6484 + $0xc] sm:$0xf]
    %v6489 = vld [vmem:[%s6484 + $0x10] sm:$0xf]
    %v6490 = vld [vmem:[%s6484 + $0x14] sm:$0xf]
    %v6491 = vld [vmem:[%s6484 + $0x18] sm:$0xf]
    %v6492 = vld [vmem:[%s6484 + $0x1c] sm:$0xf]
    %v6493 = vld [vmem:[%s6484 + $0x20] sm:$0xf]
    %v6494 = vld [vmem:[%s6484 + $0x24] sm:$0xf]
    %v6495 = vld [vmem:[%s6484 + $0x28] sm:$0xf]
    %v6496 = vld [vmem:[%s6484 + $0x2c] sm:$0xf]
    %v6497 = vld [vmem:[%s6484 + $0x30] sm:$0xf]
    %v6498 = vld [vmem:[%s6484 + $0x34] sm:$0xf]
    %v6499 = vld [vmem:[%s6484 + $0x38] sm:$0xf]
    %v6500 = vld [vmem:[%s6484 + $0x3c] sm:$0xf]
    %v6517 = vunpack.c.l.b16 %v6485
    %v6518 = vunpack.c.l.b16 %v6486
    %v6519 = vunpack.c.l.b16 %v6487
    %v6520 = vunpack.c.l.b16 %v6488
    %v6521 = vunpack.c.l.b16 %v6489
    %v6522 = vunpack.c.l.b16 %v6490
    %v6523 = vunpack.c.l.b16 %v6491
    %v6524 = vunpack.c.l.b16 %v6492
    %v6525 = vunpack.c.l.b16 %v6493
    %v6526 = vunpack.c.l.b16 %v6494
    %v6527 = vunpack.c.l.b16 %v6495
    %v6528 = vunpack.c.l.b16 %v6496
    %v6529 = vunpack.c.l.b16 %v6497
    %v6530 = vunpack.c.l.b16 %v6498
    %v6531 = vunpack.c.l.b16 %v6499
    %v6532 = vunpack.c.l.b16 %v6500
    %v6533 = vpack.c.b16 %v6518, %v6517
    %v6534 = vpack.c.b16 %v6520, %v6519
    %v6535 = vpack.c.b16 %v6522, %v6521
    %v6536 = vpack.c.b16 %v6524, %v6523
    %v6537 = vpack.c.b16 %v6526, %v6525
    %v6538 = vpack.c.b16 %v6528, %v6527
    %v6539 = vpack.c.b16 %v6530, %v6529
    %v6540 = vpack.c.b16 %v6532, %v6531
    %6549 = vmatpush.bf16.msra.mxu0 %v6540
    %6550 = vmatpush.bf16.msra.mxu0 %v6539
    %6551 = vmatpush.bf16.msra.mxu0 %v6538
    %6552 = vmatpush.bf16.msra.mxu0 %v6537
    %6553 = vmatpush.bf16.msra.mxu0 %v6536
    %6554 = vmatpush.bf16.msra.mxu0 %v6535
    %6555 = vmatpush.bf16.msra.mxu0 %v6534
    %6556 = vmatpush.bf16.msra.mxu0 %v6533
    %6557 = vmatmul.bf16.gmra.mxu0 %v6465
    %v6558 = vpop.f32.mrf.mxu0
    %v6559 = vadd.f32 0.0, %v6558
    %v6560 = vpop.f32.mrf.mxu0
    %6561 = vdwg.mxu0
    %v6578 = vunpack.c.l.b16 %v6468
    %v6579 = vunpack.c.l.b16 %v6469
    %v6580 = vunpack.c.l.b16 %v6470
    %v6581 = vunpack.c.l.b16 %v6471
    %v6582 = vunpack.c.l.b16 %v6472
    %v6583 = vunpack.c.l.b16 %v6473
    %v6584 = vunpack.c.l.b16 %v6474
    %v6585 = vunpack.c.l.b16 %v6475
    %v6586 = vunpack.c.l.b16 %v6476
    %v6587 = vunpack.c.l.b16 %v6477
    %v6588 = vunpack.c.l.b16 %v6478
    %v6589 = vunpack.c.l.b16 %v6479
    %v6590 = vunpack.c.l.b16 %v6480
    %v6591 = vunpack.c.l.b16 %v6481
    %v6592 = vunpack.c.l.b16 %v6482
    %v6593 = vunpack.c.l.b16 %v6483
    %v6594 = vpack.c.b16 %v6579, %v6578
    %v6595 = vpack.c.b16 %v6581, %v6580
    %v6596 = vpack.c.b16 %v6583, %v6582
    %v6597 = vpack.c.b16 %v6585, %v6584
    %v6598 = vpack.c.b16 %v6587, %v6586
    %v6599 = vpack.c.b16 %v6589, %v6588
    %v6600 = vpack.c.b16 %v6591, %v6590
    %v6601 = vpack.c.b16 %v6593, %v6592
    %6610 = vmatpush.bf16.msra.mxu0 %v6601
    %6611 = vmatpush.bf16.msra.mxu0 %v6600
    %6612 = vmatpush.bf16.msra.mxu0 %v6599
    %6613 = vmatpush.bf16.msra.mxu0 %v6598
    %6614 = vmatpush.bf16.msra.mxu0 %v6597
    %6615 = vmatpush.bf16.msra.mxu0 %v6596
    %6616 = vmatpush.bf16.msra.mxu0 %v6595
    %6617 = vmatpush.bf16.msra.mxu0 %v6594
    %6618 = vmatmul.bf16.gmra.mxu0 %v6464
    %v6619 = vpop.f32.mrf.mxu0
    %v6620 = vadd.f32 %v6559, %v6619
    %v6621 = vpop.f32.mrf.mxu0
    %6622 = vdwg.mxu0
    %s6623 = scalar_lea.vmem [#allocation9], 128
    %v6624 = vld [vmem:[%s6623] sm:$0xf]
    %v6625 = vld [vmem:[%s6623 + $0x4] sm:$0xf]
    %v6626 = vld [vmem:[%s6623 + $0x8] sm:$0xf]
    %v6627 = vld [vmem:[%s6623 + $0xc] sm:$0xf]
    %v6628 = vld [vmem:[%s6623 + $0x10] sm:$0xf]
    %v6629 = vld [vmem:[%s6623 + $0x14] sm:$0xf]
    %v6630 = vld [vmem:[%s6623 + $0x18] sm:$0xf]
    %v6631 = vld [vmem:[%s6623 + $0x1c] sm:$0xf]
    %v6632 = vld [vmem:[%s6623 + $0x20] sm:$0xf]
    %v6633 = vld [vmem:[%s6623 + $0x24] sm:$0xf]
    %v6634 = vld [vmem:[%s6623 + $0x28] sm:$0xf]
    %v6635 = vld [vmem:[%s6623 + $0x2c] sm:$0xf]
    %v6636 = vld [vmem:[%s6623 + $0x30] sm:$0xf]
    %v6637 = vld [vmem:[%s6623 + $0x34] sm:$0xf]
    %v6638 = vld [vmem:[%s6623 + $0x38] sm:$0xf]
    %v6639 = vld [vmem:[%s6623 + $0x3c] sm:$0xf]
    %v6656 = vunpack.c.l.b16 %v6624
    %v6657 = vunpack.c.l.b16 %v6625
    %v6658 = vunpack.c.l.b16 %v6626
    %v6659 = vunpack.c.l.b16 %v6627
    %v6660 = vunpack.c.l.b16 %v6628
    %v6661 = vunpack.c.l.b16 %v6629
    %v6662 = vunpack.c.l.b16 %v6630
    %v6663 = vunpack.c.l.b16 %v6631
    %v6664 = vunpack.c.l.b16 %v6632
    %v6665 = vunpack.c.l.b16 %v6633
    %v6666 = vunpack.c.l.b16 %v6634
    %v6667 = vunpack.c.l.b16 %v6635
    %v6668 = vunpack.c.l.b16 %v6636
    %v6669 = vunpack.c.l.b16 %v6637
    %v6670 = vunpack.c.l.b16 %v6638
    %v6671 = vunpack.c.l.b16 %v6639
    %v6672 = vpack.c.b16 %v6657, %v6656
    %v6673 = vpack.c.b16 %v6659, %v6658
    %v6674 = vpack.c.b16 %v6661, %v6660
    %v6675 = vpack.c.b16 %v6663, %v6662
    %v6676 = vpack.c.b16 %v6665, %v6664
    %v6677 = vpack.c.b16 %v6667, %v6666
    %v6678 = vpack.c.b16 %v6669, %v6668
    %v6679 = vpack.c.b16 %v6671, %v6670
    %6688 = vmatpush.bf16.msra.mxu0 %v6679
    %6689 = vmatpush.bf16.msra.mxu0 %v6678
    %6690 = vmatpush.bf16.msra.mxu0 %v6677
    %6691 = vmatpush.bf16.msra.mxu0 %v6676
    %6692 = vmatpush.bf16.msra.mxu0 %v6675
    %6693 = vmatpush.bf16.msra.mxu0 %v6674
    %6694 = vmatpush.bf16.msra.mxu0 %v6673
    %6695 = vmatpush.bf16.msra.mxu0 %v6672
    %6696 = vmatmul.bf16.gmra.mxu0 %v6466
    %v6697 = vpop.f32.mrf.mxu0
    %v6698 = vadd.f32 0.0, %v6697
    %v6699 = vpop.f32.mrf.mxu0
    %6700 = vdwg.mxu0
    %v6701 = vadd.f32 %v6620, %v6698
    %s6702 = scalar_lea.vmem [#allocation9], 192
    %v6703 = vld [vmem:[%s6702] sm:$0xf]
    %v6704 = vld [vmem:[%s6702 + $0x4] sm:$0xf]
    %v6705 = vld [vmem:[%s6702 + $0x8] sm:$0xf]
    %v6706 = vld [vmem:[%s6702 + $0xc] sm:$0xf]
    %v6707 = vld [vmem:[%s6702 + $0x10] sm:$0xf]
    %v6708 = vld [vmem:[%s6702 + $0x14] sm:$0xf]
    %v6709 = vld [vmem:[%s6702 + $0x18] sm:$0xf]
    %v6710 = vld [vmem:[%s6702 + $0x1c] sm:$0xf]
    %v6711 = vld [vmem:[%s6702 + $0x20] sm:$0xf]
    %v6712 = vld [vmem:[%s6702 + $0x24] sm:$0xf]
    %v6713 = vld [vmem:[%s6702 + $0x28] sm:$0xf]
    %v6714 = vld [vmem:[%s6702 + $0x2c] sm:$0xf]
    %v6715 = vld [vmem:[%s6702 + $0x30] sm:$0xf]
    %v6716 = vld [vmem:[%s6702 + $0x34] sm:$0xf]
    %v6717 = vld [vmem:[%s6702 + $0x38] sm:$0xf]
    %v6718 = vld [vmem:[%s6702 + $0x3c] sm:$0xf]
    %v6735 = vunpack.c.l.b16 %v6703
    %v6736 = vunpack.c.l.b16 %v6704
    %v6737 = vunpack.c.l.b16 %v6705
    %v6738 = vunpack.c.l.b16 %v6706
    %v6739 = vunpack.c.l.b16 %v6707
    %v6740 = vunpack.c.l.b16 %v6708
    %v6741 = vunpack.c.l.b16 %v6709
    %v6742 = vunpack.c.l.b16 %v6710
    %v6743 = vunpack.c.l.b16 %v6711
    %v6744 = vunpack.c.l.b16 %v6712
    %v6745 = vunpack.c.l.b16 %v6713
    %v6746 = vunpack.c.l.b16 %v6714
    %v6747 = vunpack.c.l.b16 %v6715
    %v6748 = vunpack.c.l.b16 %v6716
    %v6749 = vunpack.c.l.b16 %v6717
    %v6750 = vunpack.c.l.b16 %v6718
    %v6751 = vpack.c.b16 %v6736, %v6735
    %v6752 = vpack.c.b16 %v6738, %v6737
    %v6753 = vpack.c.b16 %v6740, %v6739
    %v6754 = vpack.c.b16 %v6742, %v6741
    %v6755 = vpack.c.b16 %v6744, %v6743
    %v6756 = vpack.c.b16 %v6746, %v6745
    %v6757 = vpack.c.b16 %v6748, %v6747
    %v6758 = vpack.c.b16 %v6750, %v6749
    %6767 = vmatpush.bf16.msra.mxu0 %v6758
    %6768 = vmatpush.bf16.msra.mxu0 %v6757
    %6769 = vmatpush.bf16.msra.mxu0 %v6756
    %6770 = vmatpush.bf16.msra.mxu0 %v6755
    %6771 = vmatpush.bf16.msra.mxu0 %v6754
    %6772 = vmatpush.bf16.msra.mxu0 %v6753
    %6773 = vmatpush.bf16.msra.mxu0 %v6752
    %6774 = vmatpush.bf16.msra.mxu0 %v6751
    %6775 = vmatmul.bf16.gmra.mxu0 %v6467
    %v6776 = vpop.f32.mrf.mxu0
    %v6777 = vadd.f32 0.0, %v6776
    %v6778 = vpop.f32.mrf.mxu0
    %6779 = vdwg.mxu0
    %v6780 = vadd.f32 %v6701, %v6777
    %v6781 = vld [vmem:[#allocation10] sm:$0x1]
    %v6783 = vperm.slane %v6781, 0
    %v6785 = vadd.f32 %v6780, %v6783
    %v6786 = vmax.f32 %v6785, 0.0
    %v6787 = vpack.c.bf16 %v6786, %v6786
    %v6788 = vld [vmem:[#allocation12] sm:$0xf]
    %v6789 = vld [vmem:[#allocation12 + $0x4] sm:$0xf]
    %v6790 = vld [vmem:[#allocation12 + $0x8] sm:$0xf]
    %v6791 = vld [vmem:[#allocation12 + $0xc] sm:$0xf]
    %v6792 = vld [vmem:[#allocation12 + $0x10] sm:$0xf]
    %v6793 = vld [vmem:[#allocation12 + $0x14] sm:$0xf]
    %v6794 = vld [vmem:[#allocation12 + $0x18] sm:$0xf]
    %v6795 = vld [vmem:[#allocation12 + $0x1c] sm:$0xf]
    %v6796 = vld [vmem:[#allocation12 + $0x20] sm:$0xf]
    %v6797 = vld [vmem:[#allocation12 + $0x24] sm:$0xf]
    %v6798 = vld [vmem:[#allocation12 + $0x28] sm:$0xf]
    %v6799 = vld [vmem:[#allocation12 + $0x2c] sm:$0xf]
    %v6800 = vld [vmem:[#allocation12 + $0x30] sm:$0xf]
    %v6801 = vld [vmem:[#allocation12 + $0x34] sm:$0xf]
    %v6802 = vld [vmem:[#allocation12 + $0x38] sm:$0xf]
    %v6803 = vld [vmem:[#allocation12 + $0x3c] sm:$0xf]
    %v6804 = vld [vmem:[#allocation13] sm:$0x1]
    %v6806 = vperm.slane %v6804, 0
    %v6824 = vunpack.c.l.b16 %v6788
    %v6825 = vunpack.c.l.b16 %v6789
    %v6826 = vunpack.c.l.b16 %v6790
    %v6827 = vunpack.c.l.b16 %v6791
    %v6828 = vunpack.c.l.b16 %v6792
    %v6829 = vunpack.c.l.b16 %v6793
    %v6830 = vunpack.c.l.b16 %v6794
    %v6831 = vunpack.c.l.b16 %v6795
    %v6832 = vunpack.c.l.b16 %v6796
    %v6833 = vunpack.c.l.b16 %v6797
    %v6834 = vunpack.c.l.b16 %v6798
    %v6835 = vunpack.c.l.b16 %v6799
    %v6836 = vunpack.c.l.b16 %v6800
    %v6837 = vunpack.c.l.b16 %v6801
    %v6838 = vunpack.c.l.b16 %v6802
    %v6839 = vunpack.c.l.b16 %v6803
    %v6840 = vpack.c.b16 %v6825, %v6824
    %v6841 = vpack.c.b16 %v6827, %v6826
    %v6842 = vpack.c.b16 %v6829, %v6828
    %v6843 = vpack.c.b16 %v6831, %v6830
    %v6844 = vpack.c.b16 %v6833, %v6832
    %v6845 = vpack.c.b16 %v6835, %v6834
    %v6846 = vpack.c.b16 %v6837, %v6836
    %v6847 = vpack.c.b16 %v6839, %v6838
    %6856 = vmatpush.bf16.msra.mxu0 %v6847
    %6857 = vmatpush.bf16.msra.mxu0 %v6846
    %6858 = vmatpush.bf16.msra.mxu0 %v6845
    %6859 = vmatpush.bf16.msra.mxu0 %v6844
    %6860 = vmatpush.bf16.msra.mxu0 %v6843
    %6861 = vmatpush.bf16.msra.mxu0 %v6842
    %6862 = vmatpush.bf16.msra.mxu0 %v6841
    %6863 = vmatpush.bf16.msra.mxu0 %v6840
    %6864 = vmatmul.bf16.gmra.mxu0 %v6787
    %v6865 = vpop.f32.mrf.mxu0
    %v6866 = vadd.f32 %v6806, %v6865
    %v6867 = vpop.f32.mrf.mxu0
    %6868 = vdwg.mxu0
    %6869 = vmax.xlane.f32.xlu0 %v6866
    %v6870 = vpop.xlane.xlu0 %6869
    %v6871 = vsub.f32 %v6866, %v6870
    %v6872 = vmul.f32 %v6871, 1.442695
    %v6873 = vpow.pop %v6872
    %6874 = vadd.xlane.f32.xlu0 %v6873
    %v6875 = vpop.xlane.xlu0 %6874
    %v6876 = vlog2.pop %v6875
    %v6877 = vmul.f32 %v6876, 0.6931472
    %v6878 = vsub.f32 %v6871, %v6877
    %6879 = vst [vmem:[%s9] sm:$0xff] %v6878
    // Predicated region
    $region70: #{forward.1} parent=1 // pred_check
      _
    $region71: #{forward.1} parent=1 // pred_check_branch
      %6881 = sbr.rel (0) target = $region73
    $region72: #{forward.1} parent=1 // pred_region
      _
    $region73: #{forward.1} parent=1 // pred_fallthru
      _
    // Predicated region
    $region74: #{forward.1} parent=1 // pred_check
      _
    $region75: #{forward.1} parent=1 // pred_check_branch
      %6883 = sbr.rel (0) target = $region77
    $region76: #{forward.1} parent=1 // pred_region
      _
    $region77: #{forward.1} parent=1 // pred_fallthru
      _
    %6884 = vsyncpa [#allocation3], 1
    %6885 = vsyncpa [#allocation5], 1
    %6886 = vsyncpa [#allocation8], 1
    %6887 = vsyncpa [#allocation11], 1
    %6888 = vsyncpa [#allocation14], 1

</llo_original>
